<compile_context>
chip_gen: v5e
topology: v5e:2x2
jax: 0.10.0
libtpu: 0.0.40
codegen_flags: <defaults>
</compile_context>

<pallas_src>
import jax
import jax.numpy as jnp
from jax import lax
from jax.experimental import pallas as pl
from jax.experimental.pallas import tpu as pltpu


def _bottleneck_kernel(x_ref, w1_ref, s1_ref, b1_ref,
                       w2_ref, s2_ref, b2_ref,
                       w3_ref, s3_ref, b3_ref,
                       o_ref, pad_ref):
    # Per grid step (nb images folded into one block):
    #   x_ref  : (nb, H, W, Cin)        bf16  activations cross HBM as bf16
    #   w1_ref : (Cin, width)           bf16
    #   w2_ref : (9, width, width)      bf16  tap-major: t = kh*3 + kw
    #   w3_ref : (width, Cout)          bf16
    #   s*/b*  : (1, C)                 f32   folded eval-mode BatchNorm
    #   o_ref  : (nb, H, W, Cout)       bf16
    #   pad_ref: (nb, H+2, W+2, width)  bf16  persistent scratch, 1-px halo
    nb, H, W, Cin = x_ref.shape
    width = w1_ref.shape[1]
    Cout = w3_ref.shape[1]
    M = nb * H * W

    # ---- conv1 (1x1) + BN1 + ReLU: bf16 MXU operands, f32 accumulation -----
    x2d = x_ref[...].reshape(M, Cin)                      # bf16, no f32 copy
    h1 = jnp.dot(x2d, w1_ref[...], preferred_element_type=jnp.float32)
    h1 = jnp.maximum(h1 * s1_ref[...] + b1_ref[...], 0.0)

    # ---- conv2 (3x3, stride=1, pad=1) as 9 accumulating matmuls ------------
    # Zero ONLY the 1-px halo each step (cheap, megacore-safe); the interior
    # is fully overwritten below.
    pad_ref[:, 0:1, :, :] = jnp.zeros((nb, 1, W + 2, width), jnp.bfloat16)
    pad_ref[:, H + 1:H + 2, :, :] = jnp.zeros((nb, 1, W + 2, width),
                                              jnp.bfloat16)
    pad_ref[:, 1:H + 1, 0:1, :] = jnp.zeros((nb, H, 1, width), jnp.bfloat16)
    pad_ref[:, 1:H + 1, W + 1:W + 2, :] = jnp.zeros((nb, H, 1, width),
                                                    jnp.bfloat16)
    pad_ref[:, 1:H + 1, 1:W + 1, :] = (
        h1.reshape(nb, H, W, width).astype(jnp.bfloat16))

    # Nine shifted views of pad_ref -> nine K=width matmuls accumulated in f32
    # (no im2col buffer; good for v7x MRB, relieves vld/vst slots everywhere).
    acc = jnp.dot(pad_ref[:, 0:H, 0:W, :].reshape(M, width), w2_ref[0],
                  preferred_element_type=jnp.float32)
    for t in range(1, 9):
        kh, kw = divmod(t, 3)
        tap = pad_ref[:, kh:kh + H, kw:kw + W, :].reshape(M, width)
        acc = acc + jnp.dot(tap, w2_ref[t],
                            preferred_element_type=jnp.float32)
    h2 = jnp.maximum(acc * s2_ref[...] + b2_ref[...], 0.0)

    # ---- conv3 (1x1) + BN3 + identity residual + ReLU ----------------------
    # NOTE: conv1/conv2 have N=width=128 -> half-width MXU on v6e/v7x; only
    # worth chasing once bf16 I/O / bigger tiles make the kernel compute-bound.
    h3 = jnp.dot(h2.astype(jnp.bfloat16), w3_ref[...],
                 preferred_element_type=jnp.float32)
    h3 = h3 * s3_ref[...] + b3_ref[...]
    identity = x_ref[...].reshape(M, Cin).astype(jnp.float32)  # re-read block
    out = jnp.maximum(h3 + identity, 0.0)
    o_ref[...] = out.reshape(nb, H, W, Cout).astype(o_ref.dtype)


def _fold_weights_for_kernel(params):
    """One-time (param-load-time) folding: w2 (3,3,in,out) -> (9,in,out);
    all conv weights -> bf16 MXU operands."""
    w1, s1, b1, w2, s2, b2, w3, s3, b3 = params
    width = w1.shape[1]
    bf = lambda a: a.astype(jnp.bfloat16)
    return (bf(w1), s1, b1,
            bf(w2.reshape(9, width, width)), s2, b2,
            bf(w3), s3, b3)


def _per_block_vmem_bytes(nb, H, W, Cin, width, Cout):
    bf16, f32 = 2, 4
    x_blk = nb * H * W * Cin * bf16
    o_blk = nb * H * W * Cout * bf16
    pad = nb * (H + 2) * (W + 2) * width * bf16
    weights = ((Cin * width + 9 * width * width + width * Cout) * bf16
               + (4 * width + 2 * Cout) * f32)
    interm = 3 * nb * H * W * width * f32        # h1 / acc / h2 (upper bound)
    # input/output blocks are double-buffered by the pipeline
    return 2 * (x_blk + o_blk) + 2 * weights + pad + interm


def _choose_images_per_block(N, H, W, Cin, width, Cout,
                             budget_bytes=24 * 1024 * 1024):
    """Largest divisor of N whose per-step live set fits a budget that is
    conservative on all of v5e/v6e/v7x.  Bigger blocks amortize grid-step
    overhead (main win for tiny shapes on v6e/v5e)."""
    for nb in range(N, 0, -1):
        if N % nb == 0 and _per_block_vmem_bytes(
                nb, H, W, Cin, width, Cout) <= budget_bytes:
            return nb
    return 1


def bottleneck_pallas_nhwc(x_nhwc, params, *, images_per_block=None):
    """x_nhwc: (N, H, W, Cin).  Activations cross HBM as bf16; returns a bf16
    (N, H, W, Cout) array.  Call this directly from an NHWC model."""
    w1, s1, b1, w2f, s2, b2, w3, s3, b3 = _fold_weights_for_kernel(params)
    N, H, W, Cin = x_nhwc.shape
    width = w1.shape[1]
    Cout = w3.shape[1]
    assert Cin == Cout, "identity residual requires Cin == Cout (downsample=None)"

    nb = images_per_block or _choose_images_per_block(N, H, W, Cin, width, Cout)
    assert N % nb == 0, "images_per_block must divide the batch"

    vmem_limit = min(
        max(int(1.5 * _per_block_vmem_bytes(nb, H, W, Cin, width, Cout)),
            32 * 1024 * 1024),
        120 * 1024 * 1024)

    x_bf = x_nhwc.astype(jnp.bfloat16)

    def const_spec(shape):
        # Grid-invariant operand (weights / folded BN): constant index map.
        return pl.BlockSpec(shape, lambda n, _nd=len(shape): (0,) * _nd)

    return pl.pallas_call(
        _bottleneck_kernel,
        out_shape=jax.ShapeDtypeStruct((N, H, W, Cout), jnp.bfloat16),
        grid=(N // nb,),
        in_specs=[
            pl.BlockSpec((nb, H, W, Cin), lambda n: (n, 0, 0, 0)),
            const_spec((Cin, width)),
            const_spec((1, width)), const_spec((1, width)),
            const_spec((9, width, width)),
            const_spec((1, width)), const_spec((1, width)),
            const_spec((width, Cout)),
            const_spec((1, Cout)), const_spec((1, Cout)),
        ],
        out_specs=pl.BlockSpec((nb, H, W, Cout), lambda n: (n, 0, 0, 0)),
        scratch_shapes=[pltpu.VMEM((nb, H + 2, W + 2, width), jnp.bfloat16)],
        compiler_params=pltpu.CompilerParams(
            dimension_semantics=("parallel",),
            vmem_limit_bytes=vmem_limit),
    )(x_bf, w1, s1, b1, w2f, s2, b2, w3, s3, b3)


def bottleneck_pallas(x_nchw, params, *, images_per_block=None):
    """NCHW wrapper matching the PyTorch module's interface.  Prefer the NHWC
    entry point from an NHWC model so the boundary transposes / dtype casts
    are paid once per network, not once per block."""
    x_nhwc = jnp.transpose(x_nchw, (0, 2, 3, 1))
    out_nhwc = bottleneck_pallas_nhwc(x_nhwc, params,
                                      images_per_block=images_per_block)
    return jnp.transpose(out_nhwc, (0, 3, 1, 2)).astype(x_nchw.dtype)


def make_params(key, inplanes, planes, base_width=64, groups=1):
    """Deterministic synthetic parameters matching the module's shapes
    (fan-in scaled conv weights, eval-mode BN folded to scale+bias)."""
    expansion = 4
    width = int(planes * (base_width / 64.0)) * groups
    outc = planes * expansion
    eps = 1e-5
    kw1, kw2, kw3, kbn1, kbn2, kbn3 = jax.random.split(key, 6)

    def conv_w(k, shape, fan_in):
        return jax.random.normal(k, shape, jnp.float32) * (2.0 / fan_in) ** 0.5

    # conv weights stored for NHWC matmul use:
    #   conv1x1 torch (out, in, 1, 1) -> (in, out)
    #   conv3x3 torch (out, in, 3, 3) -> (kh, kw, in, out)
    w1 = conv_w(kw1, (inplanes, width), inplanes)
    w2 = conv_w(kw2, (3, 3, width, width), 9 * width)
    w3 = conv_w(kw3, (width, outc), width)

    def bn_fold(k, c):
        kg, kb, km, kv = jax.random.split(k, 4)
        gamma = 1.0 + 0.1 * jax.random.normal(kg, (c,), jnp.float32)
        beta = 0.1 * jax.random.normal(kb, (c,), jnp.float32)
        mean = 0.1 * jax.random.normal(km, (c,), jnp.float32)
        var = jnp.abs(jax.random.normal(kv, (c,), jnp.float32)) + 1.0
        scale = gamma / jnp.sqrt(var + eps)
        bias = beta - mean * scale
        return scale.reshape(1, c), bias.reshape(1, c)

    s1, b1 = bn_fold(kbn1, width)
    s2, b2 = bn_fold(kbn2, width)
    s3, b3 = bn_fold(kbn3, outc)
    return (w1, s1, b1, w2, s2, b2, w3, s3, b3)


def bottleneck_reference(x_nchw, params, bf16_like_kernel=False):
    """Pure-JAX reference (eval-mode BN).  With bf16_like_kernel=True it
    mirrors the kernel's rounding: bf16 activations/weights at each conv and a
    bf16 final output, with f32 accumulation."""
    w1, s1, b1, w2, s2, b2, w3, s3, b3 = params
    if bf16_like_kernel:
        q = lambda a: a.astype(jnp.bfloat16).astype(jnp.float32)
    else:
        q = lambda a: a
    x = jnp.transpose(x_nchw, (0, 2, 3, 1))  # NHWC
    xq = q(x)
    dn = ('NHWC', 'HWIO', 'NHWC')

    h = lax.conv_general_dilated(xq, q(w1)[None, None], (1, 1), 'VALID',
                                 dimension_numbers=dn)
    h = jnp.maximum(h * s1[0] + b1[0], 0.0)
    h = lax.conv_general_dilated(q(h), q(w2), (1, 1), ((1, 1), (1, 1)),
                                 dimension_numbers=dn)
    h = jnp.maximum(h * s2[0] + b2[0], 0.0)
    h = lax.conv_general_dilated(q(h), q(w3)[None, None], (1, 1), 'VALID',
                                 dimension_numbers=dn)
    h = h * s3[0] + b3[0]
    out = jnp.maximum(h + xq, 0.0)
    if bf16_like_kernel:
        out = out.astype(jnp.bfloat16).astype(jnp.float32)
    return jnp.transpose(out, (0, 3, 1, 2))


if __name__ == "__main__":
    # Bottleneck(inplanes=512, planes=128): width = 128, out channels = 512 ==
    # inplanes (identity residual).  Channel counts are multiples of 128 so
    # matmuls / output stores are lane-dense.
    N, inplanes, planes, H, W = 2, 512, 128, 16, 16

    key = jax.random.PRNGKey(0)
    kx, kp = jax.random.split(key)
    x = jax.random.normal(kx, (N, inplanes, H, W), jnp.float32)
    params = make_params(kp, inplanes, planes)

    out = jax.block_until_ready(bottleneck_pallas(x, params))
    assert out.shape == (N, planes * 4, H, W)

    # Tight check against a reference that applies the same bf16 rounding the
    # kernel uses (bf16 activations/weights, f32 accumulation, bf16 output).
    ref_bf16 = bottleneck_reference(x, params, bf16_like_kernel=True)
    assert jnp.allclose(out, ref_bf16, atol=2e-2, rtol=2e-2), \
        "mismatch vs bf16-mirrored reference"

    # Sanity check against exact f32 module semantics (bf16 activation I/O and
    # MXU operands are an intentional, bounded approximation).
    ref_f32 = bottleneck_reference(x, params)
    rel_err = jnp.max(jnp.abs(out - ref_f32)) / jnp.max(jnp.abs(ref_f32))
    assert float(rel_err) < 5e-2, "excessive error vs f32 reference"

    print("KERNEL_OK")
</pallas_src>

<mosaic_0001>
module attributes {stable_mosaic.version = 11 : i64} {
  func.func @_bottleneck_kernel(%arg0: i32, %arg1: memref<2x16x16x512xbf16, #tpu.memory_space<vmem>>, %arg2: memref<512x128xbf16, #tpu.memory_space<vmem>>, %arg3: memref<1x128xf32, #tpu.memory_space<vmem>>, %arg4: memref<1x128xf32, #tpu.memory_space<vmem>>, %arg5: memref<9x128x128xbf16, #tpu.memory_space<vmem>>, %arg6: memref<1x128xf32, #tpu.memory_space<vmem>>, %arg7: memref<1x128xf32, #tpu.memory_space<vmem>>, %arg8: memref<128x512xbf16, #tpu.memory_space<vmem>>, %arg9: memref<1x512xf32, #tpu.memory_space<vmem>>, %arg10: memref<1x512xf32, #tpu.memory_space<vmem>>, %arg11: memref<2x16x16x512xbf16, #tpu.memory_space<vmem>>, %arg12: memref<2x18x18x128xbf16, #tpu.memory_space<vmem>>) attributes {dimension_semantics = [#tpu.dimension_semantics<parallel>], iteration_bounds = array<i64: 1>, scalar_prefetch = 0 : i64, scratch_operands = 1 : i64, tpu.core_type = #tpu.core_type<tc>, window_params = [{transform_indices = @transform_0, window_bounds = array<i64: 2, 16, 16, 512>}, {pipeline_mode = #tpu.pipeline_mode<synchronous>, transform_indices = @transform_1, window_bounds = array<i64: 512, 128>}, {pipeline_mode = #tpu.pipeline_mode<synchronous>, transform_indices = @transform_2, window_bounds = array<i64: 1, 128>}, {pipeline_mode = #tpu.pipeline_mode<synchronous>, transform_indices = @transform_3, window_bounds = array<i64: 1, 128>}, {pipeline_mode = #tpu.pipeline_mode<synchronous>, transform_indices = @transform_4, window_bounds = array<i64: 9, 128, 128>}, {pipeline_mode = #tpu.pipeline_mode<synchronous>, transform_indices = @transform_5, window_bounds = array<i64: 1, 128>}, {pipeline_mode = #tpu.pipeline_mode<synchronous>, transform_indices = @transform_6, window_bounds = array<i64: 1, 128>}, {pipeline_mode = #tpu.pipeline_mode<synchronous>, transform_indices = @transform_7, window_bounds = array<i64: 128, 512>}, {pipeline_mode = #tpu.pipeline_mode<synchronous>, transform_indices = @transform_8, window_bounds = array<i64: 1, 512>}, {pipeline_mode = #tpu.pipeline_mode<synchronous>, transform_indices = @transform_9, window_bounds = array<i64: 1, 512>}, {transform_indices = @transform_10, window_bounds = array<i64: 2, 16, 16, 512>}]} {
    %c0 = arith.constant 0 : index
    %c0_0 = arith.constant 0 : index
    %c0_1 = arith.constant 0 : index
    %c0_2 = arith.constant 0 : index
    %0 = vector.load %arg1[%c0, %c0_0, %c0_1, %c0_2] : memref<2x16x16x512xbf16, #tpu.memory_space<vmem>>, vector<2x16x16x512xbf16>
    %1 = vector.shape_cast %0 : vector<2x16x16x512xbf16> to vector<512x512xbf16>
    %c0_3 = arith.constant 0 : index
    %c0_4 = arith.constant 0 : index
    %2 = vector.load %arg2[%c0_3, %c0_4] : memref<512x128xbf16, #tpu.memory_space<vmem>>, vector<512x128xbf16>
    %cst = arith.constant dense<0.000000e+00> : vector<512x128xf32>
    %3 = tpu.matmul %1, %2, %cst {dimension_numbers = #tpu.dot_dimension_numbers<[1], [0], [0], [1], [0, 0, 1, 1], [], []>} : vector<512x512xbf16>, vector<512x128xbf16>, vector<512x128xf32> -> vector<512x128xf32>
    %c0_5 = arith.constant 0 : index
    %c0_6 = arith.constant 0 : index
    %4 = vector.load %arg3[%c0_5, %c0_6] : memref<1x128xf32, #tpu.memory_space<vmem>>, vector<1x128xf32>
    %5 = vector.broadcast %4 : vector<1x128xf32> to vector<512x128xf32>
    %6 = arith.mulf %3, %5 : vector<512x128xf32>
    %c0_7 = arith.constant 0 : index
    %c0_8 = arith.constant 0 : index
    %7 = vector.load %arg4[%c0_7, %c0_8] : memref<1x128xf32, #tpu.memory_space<vmem>>, vector<1x128xf32>
    %8 = vector.broadcast %7 : vector<1x128xf32> to vector<512x128xf32>
    %9 = arith.addf %6, %8 : vector<512x128xf32>
    %cst_9 = arith.constant 0.000000e+00 : f32
    %10 = vector.broadcast %cst_9 : f32 to vector<512x128xf32>
    %11 = arith.maximumf %9, %10 : vector<512x128xf32>
    %cst_10 = arith.constant 0.000000e+00 : bf16
    %12 = vector.broadcast %cst_10 : bf16 to vector<2x1x18x128xbf16>
    %c0_11 = arith.constant 0 : index
    %c0_12 = arith.constant 0 : index
    %c0_13 = arith.constant 0 : index
    %c0_14 = arith.constant 0 : index
    %13 = vector.load %arg12[%c0_11, %c0_12, %c0_13, %c0_14] : memref<2x18x18x128xbf16, #tpu.memory_space<vmem>>, vector<2x1x18x128xbf16>
    tpu.vector_store %arg12[%c0_11, %c0_12, %c0_13, %c0_14], %12 {strides = array<i32>} : memref<2x18x18x128xbf16, #tpu.memory_space<vmem>>, vector<2x1x18x128xbf16>,
    %cst_15 = arith.constant 0.000000e+00 : bf16
    %14 = vector.broadcast %cst_15 : bf16 to vector<2x1x18x128xbf16>
    %c0_16 = arith.constant 0 : index
    %c17 = arith.constant 17 : index
    %c0_17 = arith.constant 0 : index
    %c0_18 = arith.constant 0 : index
    %15 = vector.load %arg12[%c0_16, %c17, %c0_17, %c0_18] : memref<2x18x18x128xbf16, #tpu.memory_space<vmem>>, vector<2x1x18x128xbf16>
    tpu.vector_store %arg12[%c0_16, %c17, %c0_17, %c0_18], %14 {strides = array<i32>} : memref<2x18x18x128xbf16, #tpu.memory_space<vmem>>, vector<2x1x18x128xbf16>,
    %cst_19 = arith.constant 0.000000e+00 : bf16
    %16 = vector.broadcast %cst_19 : bf16 to vector<2x16x1x128xbf16>
    %c0_20 = arith.constant 0 : index
    %c1 = arith.constant 1 : index
    %c0_21 = arith.constant 0 : index
    %c0_22 = arith.constant 0 : index
    %17 = vector.load %arg12[%c0_20, %c1, %c0_21, %c0_22] : memref<2x18x18x128xbf16, #tpu.memory_space<vmem>>, vector<2x16x1x128xbf16>
    tpu.vector_store %arg12[%c0_20, %c1, %c0_21, %c0_22], %16 {strides = array<i32>} : memref<2x18x18x128xbf16, #tpu.memory_space<vmem>>, vector<2x16x1x128xbf16>,
    %cst_23 = arith.constant 0.000000e+00 : bf16
    %18 = vector.broadcast %cst_23 : bf16 to vector<2x16x1x128xbf16>
    %c0_24 = arith.constant 0 : index
    %c1_25 = arith.constant 1 : index
    %c17_26 = arith.constant 17 : index
    %c0_27 = arith.constant 0 : index
    %19 = vector.load %arg12[%c0_24, %c1_25, %c17_26, %c0_27] : memref<2x18x18x128xbf16, #tpu.memory_space<vmem>>, vector<2x16x1x128xbf16>
    tpu.vector_store %arg12[%c0_24, %c1_25, %c17_26, %c0_27], %18 {strides = array<i32>} : memref<2x18x18x128xbf16, #tpu.memory_space<vmem>>, vector<2x16x1x128xbf16>,
    %20 = vector.shape_cast %11 : vector<512x128xf32> to vector<2x16x16x128xf32>
    %21 = arith.truncf %20 : vector<2x16x16x128xf32> to vector<2x16x16x128xbf16>
    %c0_28 = arith.constant 0 : index
    %c1_29 = arith.constant 1 : index
    %c1_30 = arith.constant 1 : index
    %c0_31 = arith.constant 0 : index
    %22 = vector.load %arg12[%c0_28, %c1_29, %c1_30, %c0_31] : memref<2x18x18x128xbf16, #tpu.memory_space<vmem>>, vector<2x16x16x128xbf16>
    tpu.vector_store %arg12[%c0_28, %c1_29, %c1_30, %c0_31], %21 {strides = array<i32>} : memref<2x18x18x128xbf16, #tpu.memory_space<vmem>>, vector<2x16x16x128xbf16>,
    %c0_32 = arith.constant 0 : index
    %c0_33 = arith.constant 0 : index
    %c0_34 = arith.constant 0 : index
    %c0_35 = arith.constant 0 : index
    %23 = vector.load %arg12[%c0_32, %c0_33, %c0_34, %c0_35] : memref<2x18x18x128xbf16, #tpu.memory_space<vmem>>, vector<2x16x16x128xbf16>
    %24 = vector.shape_cast %23 : vector<2x16x16x128xbf16> to vector<512x128xbf16>
    %c0_36 = arith.constant 0 : index
    %c0_37 = arith.constant 0 : index
    %c0_38 = arith.constant 0 : index
    %25 = vector.load %arg5[%c0_36, %c0_37, %c0_38] : memref<9x128x128xbf16, #tpu.memory_space<vmem>>, vector<1x128x128xbf16>
    %26 = vector.shape_cast %25 : vector<1x128x128xbf16> to vector<128x128xbf16>
    %cst_39 = arith.constant dense<0.000000e+00> : vector<512x128xf32>
    %27 = tpu.matmul %24, %26, %cst_39 {dimension_numbers = #tpu.dot_dimension_numbers<[1], [0], [0], [1], [0, 0, 1, 1], [], []>} : vector<512x128xbf16>, vector<128x128xbf16>, vector<512x128xf32> -> vector<512x128xf32>
    %c0_40 = arith.constant 0 : index
    %c0_41 = arith.constant 0 : index
    %c1_42 = arith.constant 1 : index
    %c0_43 = arith.constant 0 : index
    %28 = vector.load %arg12[%c0_40, %c0_41, %c1_42, %c0_43] : memref<2x18x18x128xbf16, #tpu.memory_space<vmem>>, vector<2x16x16x128xbf16>
    %29 = vector.shape_cast %28 : vector<2x16x16x128xbf16> to vector<512x128xbf16>
    %c1_44 = arith.constant 1 : index
    %c0_45 = arith.constant 0 : index
    %c0_46 = arith.constant 0 : index
    %30 = vector.load %arg5[%c1_44, %c0_45, %c0_46] : memref<9x128x128xbf16, #tpu.memory_space<vmem>>, vector<1x128x128xbf16>
    %31 = vector.shape_cast %30 : vector<1x128x128xbf16> to vector<128x128xbf16>
    %cst_47 = arith.constant dense<0.000000e+00> : vector<512x128xf32>
    %32 = tpu.matmul %29, %31, %cst_47 {dimension_numbers = #tpu.dot_dimension_numbers<[1], [0], [0], [1], [0, 0, 1, 1], [], []>} : vector<512x128xbf16>, vector<128x128xbf16>, vector<512x128xf32> -> vector<512x128xf32>
    %33 = arith.addf %27, %32 : vector<512x128xf32>
    %c0_48 = arith.constant 0 : index
    %c0_49 = arith.constant 0 : index
    %c2 = arith.constant 2 : index
    %c0_50 = arith.constant 0 : index
    %34 = vector.load %arg12[%c0_48, %c0_49, %c2, %c0_50] : memref<2x18x18x128xbf16, #tpu.memory_space<vmem>>, vector<2x16x16x128xbf16>
    %35 = vector.shape_cast %34 : vector<2x16x16x128xbf16> to vector<512x128xbf16>
    %c2_51 = arith.constant 2 : index
    %c0_52 = arith.constant 0 : index
    %c0_53 = arith.constant 0 : index
    %36 = vector.load %arg5[%c2_51, %c0_52, %c0_53] : memref<9x128x128xbf16, #tpu.memory_space<vmem>>, vector<1x128x128xbf16>
    %37 = vector.shape_cast %36 : vector<1x128x128xbf16> to vector<128x128xbf16>
    %cst_54 = arith.constant dense<0.000000e+00> : vector<512x128xf32>
    %38 = tpu.matmul %35, %37, %cst_54 {dimension_numbers = #tpu.dot_dimension_numbers<[1], [0], [0], [1], [0, 0, 1, 1], [], []>} : vector<512x128xbf16>, vector<128x128xbf16>, vector<512x128xf32> -> vector<512x128xf32>
    %39 = arith.addf %33, %38 : vector<512x128xf32>
    %c0_55 = arith.constant 0 : index
    %c1_56 = arith.constant 1 : index
    %c0_57 = arith.constant 0 : index
    %c0_58 = arith.constant 0 : index
    %40 = vector.load %arg12[%c0_55, %c1_56, %c0_57, %c0_58] : memref<2x18x18x128xbf16, #tpu.memory_space<vmem>>, vector<2x16x16x128xbf16>
    %41 = vector.shape_cast %40 : vector<2x16x16x128xbf16> to vector<512x128xbf16>
    %c3 = arith.constant 3 : index
    %c0_59 = arith.constant 0 : index
    %c0_60 = arith.constant 0 : index
    %42 = vector.load %arg5[%c3, %c0_59, %c0_60] : memref<9x128x128xbf16, #tpu.memory_space<vmem>>, vector<1x128x128xbf16>
    %43 = vector.shape_cast %42 : vector<1x128x128xbf16> to vector<128x128xbf16>
    %cst_61 = arith.constant dense<0.000000e+00> : vector<512x128xf32>
    %44 = tpu.matmul %41, %43, %cst_61 {dimension_numbers = #tpu.dot_dimension_numbers<[1], [0], [0], [1], [0, 0, 1, 1], [], []>} : vector<512x128xbf16>, vector<128x128xbf16>, vector<512x128xf32> -> vector<512x128xf32>
    %45 = arith.addf %39, %44 : vector<512x128xf32>
    %c0_62 = arith.constant 0 : index
    %c1_63 = arith.constant 1 : index
    %c1_64 = arith.constant 1 : index
    %c0_65 = arith.constant 0 : index
    %46 = vector.load %arg12[%c0_62, %c1_63, %c1_64, %c0_65] : memref<2x18x18x128xbf16, #tpu.memory_space<vmem>>, vector<2x16x16x128xbf16>
    %47 = vector.shape_cast %46 : vector<2x16x16x128xbf16> to vector<512x128xbf16>
    %c4 = arith.constant 4 : index
    %c0_66 = arith.constant 0 : index
    %c0_67 = arith.constant 0 : index
    %48 = vector.load %arg5[%c4, %c0_66, %c0_67] : memref<9x128x128xbf16, #tpu.memory_space<vmem>>, vector<1x128x128xbf16>
    %49 = vector.shape_cast %48 : vector<1x128x128xbf16> to vector<128x128xbf16>
    %cst_68 = arith.constant dense<0.000000e+00> : vector<512x128xf32>
    %50 = tpu.matmul %47, %49, %cst_68 {dimension_numbers = #tpu.dot_dimension_numbers<[1], [0], [0], [1], [0, 0, 1, 1], [], []>} : vector<512x128xbf16>, vector<128x128xbf16>, vector<512x128xf32> -> vector<512x128xf32>
    %51 = arith.addf %45, %50 : vector<512x128xf32>
    %c0_69 = arith.constant 0 : index
    %c1_70 = arith.constant 1 : index
    %c2_71 = arith.constant 2 : index
    %c0_72 = arith.constant 0 : index
    %52 = vector.load %arg12[%c0_69, %c1_70, %c2_71, %c0_72] : memref<2x18x18x128xbf16, #tpu.memory_space<vmem>>, vector<2x16x16x128xbf16>
    %53 = vector.shape_cast %52 : vector<2x16x16x128xbf16> to vector<512x128xbf16>
    %c5 = arith.constant 5 : index
    %c0_73 = arith.constant 0 : index
    %c0_74 = arith.constant 0 : index
    %54 = vector.load %arg5[%c5, %c0_73, %c0_74] : memref<9x128x128xbf16, #tpu.memory_space<vmem>>, vector<1x128x128xbf16>
    %55 = vector.shape_cast %54 : vector<1x128x128xbf16> to vector<128x128xbf16>
    %cst_75 = arith.constant dense<0.000000e+00> : vector<512x128xf32>
    %56 = tpu.matmul %53, %55, %cst_75 {dimension_numbers = #tpu.dot_dimension_numbers<[1], [0], [0], [1], [0, 0, 1, 1], [], []>} : vector<512x128xbf16>, vector<128x128xbf16>, vector<512x128xf32> -> vector<512x128xf32>
    %57 = arith.addf %51, %56 : vector<512x128xf32>
    %c0_76 = arith.constant 0 : index
    %c2_77 = arith.constant 2 : index
    %c0_78 = arith.constant 0 : index
    %c0_79 = arith.constant 0 : index
    %58 = vector.load %arg12[%c0_76, %c2_77, %c0_78, %c0_79] : memref<2x18x18x128xbf16, #tpu.memory_space<vmem>>, vector<2x16x16x128xbf16>
    %59 = vector.shape_cast %58 : vector<2x16x16x128xbf16> to vector<512x128xbf16>
    %c6 = arith.constant 6 : index
    %c0_80 = arith.constant 0 : index
    %c0_81 = arith.constant 0 : index
    %60 = vector.load %arg5[%c6, %c0_80, %c0_81] : memref<9x128x128xbf16, #tpu.memory_space<vmem>>, vector<1x128x128xbf16>
    %61 = vector.shape_cast %60 : vector<1x128x128xbf16> to vector<128x128xbf16>
    %cst_82 = arith.constant dense<0.000000e+00> : vector<512x128xf32>
    %62 = tpu.matmul %59, %61, %cst_82 {dimension_numbers = #tpu.dot_dimension_numbers<[1], [0], [0], [1], [0, 0, 1, 1], [], []>} : vector<512x128xbf16>, vector<128x128xbf16>, vector<512x128xf32> -> vector<512x128xf32>
    %63 = arith.addf %57, %62 : vector<512x128xf32>
    %c0_83 = arith.constant 0 : index
    %c2_84 = arith.constant 2 : index
    %c1_85 = arith.constant 1 : index
    %c0_86 = arith.constant 0 : index
    %64 = vector.load %arg12[%c0_83, %c2_84, %c1_85, %c0_86] : memref<2x18x18x128xbf16, #tpu.memory_space<vmem>>, vector<2x16x16x128xbf16>
    %65 = vector.shape_cast %64 : vector<2x16x16x128xbf16> to vector<512x128xbf16>
    %c7 = arith.constant 7 : index
    %c0_87 = arith.constant 0 : index
    %c0_88 = arith.constant 0 : index
    %66 = vector.load %arg5[%c7, %c0_87, %c0_88] : memref<9x128x128xbf16, #tpu.memory_space<vmem>>, vector<1x128x128xbf16>
    %67 = vector.shape_cast %66 : vector<1x128x128xbf16> to vector<128x128xbf16>
    %cst_89 = arith.constant dense<0.000000e+00> : vector<512x128xf32>
    %68 = tpu.matmul %65, %67, %cst_89 {dimension_numbers = #tpu.dot_dimension_numbers<[1], [0], [0], [1], [0, 0, 1, 1], [], []>} : vector<512x128xbf16>, vector<128x128xbf16>, vector<512x128xf32> -> vector<512x128xf32>
    %69 = arith.addf %63, %68 : vector<512x128xf32>
    %c0_90 = arith.constant 0 : index
    %c2_91 = arith.constant 2 : index
    %c2_92 = arith.constant 2 : index
    %c0_93 = arith.constant 0 : index
    %70 = vector.load %arg12[%c0_90, %c2_91, %c2_92, %c0_93] : memref<2x18x18x128xbf16, #tpu.memory_space<vmem>>, vector<2x16x16x128xbf16>
    %71 = vector.shape_cast %70 : vector<2x16x16x128xbf16> to vector<512x128xbf16>
    %c8 = arith.constant 8 : index
    %c0_94 = arith.constant 0 : index
    %c0_95 = arith.constant 0 : index
    %72 = vector.load %arg5[%c8, %c0_94, %c0_95] : memref<9x128x128xbf16, #tpu.memory_space<vmem>>, vector<1x128x128xbf16>
    %73 = vector.shape_cast %72 : vector<1x128x128xbf16> to vector<128x128xbf16>
    %cst_96 = arith.constant dense<0.000000e+00> : vector<512x128xf32>
    %74 = tpu.matmul %71, %73, %cst_96 {dimension_numbers = #tpu.dot_dimension_numbers<[1], [0], [0], [1], [0, 0, 1, 1], [], []>} : vector<512x128xbf16>, vector<128x128xbf16>, vector<512x128xf32> -> vector<512x128xf32>
    %75 = arith.addf %69, %74 : vector<512x128xf32>
    %c0_97 = arith.constant 0 : index
    %c0_98 = arith.constant 0 : index
    %76 = vector.load %arg6[%c0_97, %c0_98] : memref<1x128xf32, #tpu.memory_space<vmem>>, vector<1x128xf32>
    %77 = vector.broadcast %76 : vector<1x128xf32> to vector<512x128xf32>
    %78 = arith.mulf %75, %77 : vector<512x128xf32>
    %c0_99 = arith.constant 0 : index
    %c0_100 = arith.constant 0 : index
    %79 = vector.load %arg7[%c0_99, %c0_100] : memref<1x128xf32, #tpu.memory_space<vmem>>, vector<1x128xf32>
    %80 = vector.broadcast %79 : vector<1x128xf32> to vector<512x128xf32>
    %81 = arith.addf %78, %80 : vector<512x128xf32>
    %cst_101 = arith.constant 0.000000e+00 : f32
    %82 = vector.broadcast %cst_101 : f32 to vector<512x128xf32>
    %83 = arith.maximumf %81, %82 : vector<512x128xf32>
    %84 = arith.truncf %83 : vector<512x128xf32> to vector<512x128xbf16>
    %c0_102 = arith.constant 0 : index
    %c0_103 = arith.constant 0 : index
    %85 = vector.load %arg8[%c0_102, %c0_103] : memref<128x512xbf16, #tpu.memory_space<vmem>>, vector<128x512xbf16>
    %cst_104 = arith.constant dense<0.000000e+00> : vector<512x512xf32>
    %86 = tpu.matmul %84, %85, %cst_104 {dimension_numbers = #tpu.dot_dimension_numbers<[1], [0], [0], [1], [0, 0, 1, 1], [], []>} : vector<512x128xbf16>, vector<128x512xbf16>, vector<512x512xf32> -> vector<512x512xf32>
    %c0_105 = arith.constant 0 : index
    %c0_106 = arith.constant 0 : index
    %87 = vector.load %arg9[%c0_105, %c0_106] : memref<1x512xf32, #tpu.memory_space<vmem>>, vector<1x512xf32>
    %88 = vector.broadcast %87 : vector<1x512xf32> to vector<512x512xf32>
    %89 = arith.mulf %86, %88 : vector<512x512xf32>
    %c0_107 = arith.constant 0 : index
    %c0_108 = arith.constant 0 : index
    %90 = vector.load %arg10[%c0_107, %c0_108] : memref<1x512xf32, #tpu.memory_space<vmem>>, vector<1x512xf32>
    %91 = vector.broadcast %90 : vector<1x512xf32> to vector<512x512xf32>
    %92 = arith.addf %89, %91 : vector<512x512xf32>
    %c0_109 = arith.constant 0 : index
    %c0_110 = arith.constant 0 : index
    %c0_111 = arith.constant 0 : index
    %c0_112 = arith.constant 0 : index
    %93 = vector.load %arg1[%c0_109, %c0_110, %c0_111, %c0_112] : memref<2x16x16x512xbf16, #tpu.memory_space<vmem>>, vector<2x16x16x512xbf16>
    %94 = vector.shape_cast %93 : vector<2x16x16x512xbf16> to vector<512x512xbf16>
    %95 = arith.extf %94 : vector<512x512xbf16> to vector<512x512xf32>
    %96 = arith.addf %92, %95 : vector<512x512xf32>
    %cst_113 = arith.constant 0.000000e+00 : f32
    %97 = vector.broadcast %cst_113 : f32 to vector<512x512xf32>
    %98 = arith.maximumf %96, %97 : vector<512x512xf32>
    %99 = vector.shape_cast %98 : vector<512x512xf32> to vector<2x16x16x512xf32>
    %100 = arith.truncf %99 : vector<2x16x16x512xf32> to vector<2x16x16x512xbf16>
    %c0_114 = arith.constant 0 : index
    %c0_115 = arith.constant 0 : index
    %c0_116 = arith.constant 0 : index
    %c0_117 = arith.constant 0 : index
    %101 = vector.load %arg11[%c0_114, %c0_115, %c0_116, %c0_117] : memref<2x16x16x512xbf16, #tpu.memory_space<vmem>>, vector<2x16x16x512xbf16>
    tpu.vector_store %arg11[%c0_114, %c0_115, %c0_116, %c0_117], %100 {strides = array<i32>} : memref<2x16x16x512xbf16, #tpu.memory_space<vmem>>, vector<2x16x16x512xbf16>,
    return
  }
  func.func @transform_0(%arg0: i32) -> (i32, i32, i32, i32) {
    %c0_i32 = arith.constant 0 : i32
    %c0_i32_0 = arith.constant 0 : i32
    %c0_i32_1 = arith.constant 0 : i32
    %c0_i32_2 = arith.constant 0 : i32
    return %arg0, %c0_i32, %c0_i32_0, %c0_i32_1 : i32, i32, i32, i32
  }
  func.func @transform_1(%arg0: i32) -> (i32, i32) {
    %c0_i32 = arith.constant 0 : i32
    %c0_i32_0 = arith.constant 0 : i32
    %c0_i32_1 = arith.constant 0 : i32
    return %c0_i32, %c0_i32_0 : i32, i32
  }
  func.func @transform_2(%arg0: i32) -> (i32, i32) {
    %c0_i32 = arith.constant 0 : i32
    %c0_i32_0 = arith.constant 0 : i32
    %c0_i32_1 = arith.constant 0 : i32
    return %c0_i32, %c0_i32_0 : i32, i32
  }
  func.func @transform_3(%arg0: i32) -> (i32, i32) {
    %c0_i32 = arith.constant 0 : i32
    %c0_i32_0 = arith.constant 0 : i32
    %c0_i32_1 = arith.constant 0 : i32
    return %c0_i32, %c0_i32_0 : i32, i32
  }
  func.func @transform_4(%arg0: i32) -> (i32, i32, i32) {
    %c0_i32 = arith.constant 0 : i32
    %c0_i32_0 = arith.constant 0 : i32
    %c0_i32_1 = arith.constant 0 : i32
    %c0_i32_2 = arith.constant 0 : i32
    return %c0_i32, %c0_i32_0, %c0_i32_1 : i32, i32, i32
  }
  func.func @transform_5(%arg0: i32) -> (i32, i32) {
    %c0_i32 = arith.constant 0 : i32
    %c0_i32_0 = arith.constant 0 : i32
    %c0_i32_1 = arith.constant 0 : i32
    return %c0_i32, %c0_i32_0 : i32, i32
  }
  func.func @transform_6(%arg0: i32) -> (i32, i32) {
    %c0_i32 = arith.constant 0 : i32
    %c0_i32_0 = arith.constant 0 : i32
    %c0_i32_1 = arith.constant 0 : i32
    return %c0_i32, %c0_i32_0 : i32, i32
  }
  func.func @transform_7(%arg0: i32) -> (i32, i32) {
    %c0_i32 = arith.constant 0 : i32
    %c0_i32_0 = arith.constant 0 : i32
    %c0_i32_1 = arith.constant 0 : i32
    return %c0_i32, %c0_i32_0 : i32, i32
  }
  func.func @transform_8(%arg0: i32) -> (i32, i32) {
    %c0_i32 = arith.constant 0 : i32
    %c0_i32_0 = arith.constant 0 : i32
    %c0_i32_1 = arith.constant 0 : i32
    return %c0_i32, %c0_i32_0 : i32, i32
  }
  func.func @transform_9(%arg0: i32) -> (i32, i32) {
    %c0_i32 = arith.constant 0 : i32
    %c0_i32_0 = arith.constant 0 : i32
    %c0_i32_1 = arith.constant 0 : i32
    return %c0_i32, %c0_i32_0 : i32, i32
  }
  func.func @transform_10(%arg0: i32) -> (i32, i32, i32, i32) {
    %c0_i32 = arith.constant 0 : i32
    %c0_i32_0 = arith.constant 0 : i32
    %c0_i32_1 = arith.constant 0 : i32
    %c0_i32_2 = arith.constant 0 : i32
    return %arg0, %c0_i32, %c0_i32_0, %c0_i32_1 : i32, i32, i32, i32
  }
}

</mosaic_0001>

<llo_original>
// kernel: tpu_custom_call.1
$region0: #{tpu_custom_call.1}
  #allocation0 [shape = 'u32[]', space=smem, size = 0x4, offset = 0x4, fixed_abs, tag = 'smem constant byte address 0x4 - core index']
  #allocation1 [shape = 'u32[72,128]{1,0:T(1,128)}', space=vmem, size = 0x9000, scoped, tag = 'internal scratch']
  #allocation2 [shape = 'bf16[2,18,18,128]{3,2,1,0:T(8,128)(2,1)}', space=vmem, size = 0x36000, scoped, tag = 'scratch operand']
  %s0 = inlined_call_operand.hbm [shape: bf16[2,16,16,512], index: 0, kind: input, shape index: {}]
  %s1 = inlined_call_operand.hbm [shape: bf16[512,128], index: 1, kind: input, shape index: {}]
  %s2 = inlined_call_operand.hbm [shape: f32[1,128], index: 2, kind: input, shape index: {}]
  %s3 = inlined_call_operand.hbm [shape: f32[1,128], index: 3, kind: input, shape index: {}]
  %s4 = inlined_call_operand.hbm [shape: bf16[9,128,128], index: 4, kind: input, shape index: {}]
  %s5 = inlined_call_operand.hbm [shape: f32[1,128], index: 5, kind: input, shape index: {}]
  %s6 = inlined_call_operand.hbm [shape: f32[1,128], index: 6, kind: input, shape index: {}]
  %s7 = inlined_call_operand.hbm [shape: bf16[128,512], index: 7, kind: input, shape index: {}]
  %s8 = inlined_call_operand.vmem [shape: f32[1,512], index: 8, kind: input, shape index: {}]
  %s9 = inlined_call_operand.vmem [shape: f32[1,512], index: 9, kind: input, shape index: {}]
  %s10 = inlined_call_operand.hbm [shape: bf16[2,16,16,512], index: 10, kind: output, shape index: {}]
  %s11 = sld [smem:[#allocation0]]
  $region82: #{tpu_custom_call.1} parent=0
    _
  %s13 = ssub.s32 1, %s11
  %s14 = scalar_select 0, %s13, %s11
  $region1: #{tpu_custom_call.1} parent=0
    #allocation3 [shape = 'u8[524288]{0}', space=vmem, size = 0x80000, scoped, tag = 'input window, operand 0, single buffered']
    #allocation4 [shape = 's32[1]{0}', space=sflag, size = 0x4, scoped, tag = 'scoped memory for tpu_custom_call.1']
    #allocation5 [shape = 's32[1]{0}', space=sflag, size = 0x4, scoped, tag = 'scoped memory for tpu_custom_call.1']
    #allocation6 [shape = 'u8[131072]{0}', space=vmem, size = 0x20000, scoped, tag = 'input window, operand 1, single buffered']
    #allocation7 [shape = 's32[1]{0}', space=sflag, size = 0x4, scoped, tag = 'scoped memory for tpu_custom_call.1']
    #allocation8 [shape = 'u8[512]{0}', space=vmem, size = 0x400, scoped, tag = 'input window, operand 2, single buffered']
    #allocation9 [shape = 'u8[512]{0}', space=vmem, size = 0x400, scoped, tag = 'input window, operand 3, single buffered']
    #allocation10 [shape = 's32[1]{0}', space=sflag, size = 0x4, scoped, tag = 'scoped memory for tpu_custom_call.1']
    #allocation11 [shape = 'u8[294912]{0}', space=vmem, size = 0x48000, scoped, tag = 'input window, operand 4, single buffered']
    #allocation12 [shape = 'u8[512]{0}', space=vmem, size = 0x400, scoped, tag = 'input window, operand 5, single buffered']
    #allocation13 [shape = 's32[1]{0}', space=sflag, size = 0x4, scoped, tag = 'scoped memory for tpu_custom_call.1']
    #allocation14 [shape = 'u8[512]{0}', space=vmem, size = 0x400, scoped, tag = 'input window, operand 6, single buffered']
    #allocation15 [shape = 'u8[131072]{0}', space=vmem, size = 0x20000, scoped, tag = 'input window, operand 7, single buffered']
    #allocation16 [shape = 's32[1]{0}', space=sflag, size = 0x4, scoped, tag = 'scoped memory for tpu_custom_call.1']
    #allocation17 [shape = 'u8[524288]{0}', space=vmem, size = 0x80000, scoped, tag = 'output window, operand 0, single buffered']
    %15 = vsyncpa [#allocation4], 0
    %16 = vsyncpa [#allocation7], 0
    %17 = vsyncpa [#allocation10], 0
    %18 = vsyncpa [#allocation13], 0
    %19 = vsyncpa [#allocation16], 0
    %20 = vsyncpa [#allocation5], 0
    // Predicated region
    $region2: #{tpu_custom_call.1} parent=1 // pred_check
      _
    $region3: #{tpu_custom_call.1} parent=1 // pred_check_branch
      %22 = sbr.rel (0) target = $region5
    $region4: #{tpu_custom_call.1} parent=1 // pred_region
      %24 = vsyncadd [#allocation4], 0
      %s25 = sshll.u32 %s0, 4
      %s26 = int_to_ptr.hbm [resolvable:$true] %s25
      %s27 = sshll.u32 [#allocation3], 4
      %s28 = int_to_ptr.vmem [resolvable:$true] %s27
      %33 = dma.hbm_to_vmem [thread:$0]  %s26, 16384, %s28, [#allocation4], 256, 256, 16
    $region5: #{tpu_custom_call.1} parent=1 // pred_fallthru
      _
    // Predicated region
    $region6: #{tpu_custom_call.1} parent=1 // pred_check
      _
    $region7: #{tpu_custom_call.1} parent=1 // pred_check_branch
      %35 = sbr.rel (0) target = $region9
    $region8: #{tpu_custom_call.1} parent=1 // pred_region
      %37 = vsyncadd [#allocation7], 0
      %s38 = sshll.u32 %s1, 4
      %s39 = int_to_ptr.hbm [resolvable:$true] %s38
      %s40 = sshll.u32 [#allocation6], 4
      %s41 = int_to_ptr.vmem [resolvable:$true] %s40
      %46 = dma.hbm_to_vmem [thread:$0]  %s39, 4096, %s41, [#allocation7], 64, 64, 4
    $region9: #{tpu_custom_call.1} parent=1 // pred_fallthru
      _
    // Predicated region
    $region10: #{tpu_custom_call.1} parent=1 // pred_check
      _
    $region11: #{tpu_custom_call.1} parent=1 // pred_check_branch
      %48 = sbr.rel (0) target = $region13
    $region12: #{tpu_custom_call.1} parent=1 // pred_region
      %50 = vsyncadd [#allocation7], 0
      %s52 = sshll.u32 %s2, 4
      %s53 = int_to_ptr.hbm [resolvable:$true] %s52
      %s54 = sshll.u32 [#allocation8], 4
      %s55 = int_to_ptr.vmem [resolvable:$true] %s54
      %57 = dma.hbm_to_vmem [thread:$0]  %s53, 16, %s55, [#allocation7]
    $region13: #{tpu_custom_call.1} parent=1 // pred_fallthru
      _
    // Predicated region
    $region14: #{tpu_custom_call.1} parent=1 // pred_check
      _
    $region15: #{tpu_custom_call.1} parent=1 // pred_check_branch
      %59 = sbr.rel (0) target = $region17
    $region16: #{tpu_custom_call.1} parent=1 // pred_region
      %61 = vsyncadd [#allocation10], 0
      %s63 = sshll.u32 %s3, 4
      %s64 = int_to_ptr.hbm [resolvable:$true] %s63
      %s65 = sshll.u32 [#allocation9], 4
      %s66 = int_to_ptr.vmem [resolvable:$true] %s65
      %68 = dma.hbm_to_vmem [thread:$0]  %s64, 16, %s66, [#allocation10]
    $region17: #{tpu_custom_call.1} parent=1 // pred_fallthru
      _
    // Predicated region
    $region18: #{tpu_custom_call.1} parent=1 // pred_check
      _
    $region19: #{tpu_custom_call.1} parent=1 // pred_check_branch
      %70 = sbr.rel (0) target = $region21
    $region20: #{tpu_custom_call.1} parent=1 // pred_region
      %72 = vsyncadd [#allocation10], 0
      %s73 = sshll.u32 %s4, 4
      %s74 = int_to_ptr.hbm [resolvable:$true] %s73
      %s75 = sshll.u32 [#allocation11], 4
      %s76 = int_to_ptr.vmem [resolvable:$true] %s75
      %81 = dma.hbm_to_vmem [thread:$0]  %s74, 9216, %s76, [#allocation10], 64, 64, 4
    $region21: #{tpu_custom_call.1} parent=1 // pred_fallthru
      _
    // Predicated region
    $region22: #{tpu_custom_call.1} parent=1 // pred_check
      _
    $region23: #{tpu_custom_call.1} parent=1 // pred_check_branch
      %83 = sbr.rel (0) target = $region25
    $region24: #{tpu_custom_call.1} parent=1 // pred_region
      %85 = vsyncadd [#allocation13], 0
      %s87 = sshll.u32 %s5, 4
      %s88 = int_to_ptr.hbm [resolvable:$true] %s87
      %s89 = sshll.u32 [#allocation12], 4
      %s90 = int_to_ptr.vmem [resolvable:$true] %s89
      %92 = dma.hbm_to_vmem [thread:$0]  %s88, 16, %s90, [#allocation13]
    $region25: #{tpu_custom_call.1} parent=1 // pred_fallthru
      _
    // Predicated region
    $region26: #{tpu_custom_call.1} parent=1 // pred_check
      _
    $region27: #{tpu_custom_call.1} parent=1 // pred_check_branch
      %94 = sbr.rel (0) target = $region29
    $region28: #{tpu_custom_call.1} parent=1 // pred_region
      %96 = vsyncadd [#allocation13], 0
      %s98 = sshll.u32 %s6, 4
      %s99 = int_to_ptr.hbm [resolvable:$true] %s98
      %s100 = sshll.u32 [#allocation14], 4
      %s101 = int_to_ptr.vmem [resolvable:$true] %s100
      %103 = dma.hbm_to_vmem [thread:$0]  %s99, 16, %s101, [#allocation13]
    $region29: #{tpu_custom_call.1} parent=1 // pred_fallthru
      _
    // Predicated region
    $region30: #{tpu_custom_call.1} parent=1 // pred_check
      _
    $region31: #{tpu_custom_call.1} parent=1 // pred_check_branch
      %105 = sbr.rel (0) target = $region33
    $region32: #{tpu_custom_call.1} parent=1 // pred_region
      %107 = vsyncadd [#allocation16], 0
      %s108 = sshll.u32 %s7, 4
      %s109 = int_to_ptr.hbm [resolvable:$true] %s108
      %s110 = sshll.u32 [#allocation15], 4
      %s111 = int_to_ptr.vmem [resolvable:$true] %s110
      %116 = dma.hbm_to_vmem [thread:$0]  %s109, 4096, %s111, [#allocation16], 256, 256, 16
    $region33: #{tpu_custom_call.1} parent=1 // pred_fallthru
      _
    // Predicated region
    $region34: #{tpu_custom_call.1} parent=1 // pred_check
      _
    $region35: #{tpu_custom_call.1} parent=1 // pred_check_branch
      %118 = sbr.rel (0) target = $region37
    $region36: #{tpu_custom_call.1} parent=1 // pred_region
      _
    $region37: #{tpu_custom_call.1} parent=1 // pred_fallthru
      _
    // Predicated region
    $region38: #{tpu_custom_call.1} parent=1 // pred_check
      _
    $region39: #{tpu_custom_call.1} parent=1 // pred_check_branch
      %120 = sbr.rel (0) target = $region41
    $region40: #{tpu_custom_call.1} parent=1 // pred_region
      _
    $region41: #{tpu_custom_call.1} parent=1 // pred_fallthru
      _
    // Predicated region
    $region42: #{tpu_custom_call.1} parent=1 // pred_check
      _
    $region43: #{tpu_custom_call.1} parent=1 // pred_check_branch
      %122 = sbr.rel (0) target = $region45
    $region44: #{tpu_custom_call.1} parent=1 // pred_region
      %124 = dma.done [#allocation4], 16384
    $region45: #{tpu_custom_call.1} parent=1 // pred_fallthru
      _
    // Predicated region
    $region46: #{tpu_custom_call.1} parent=1 // pred_check
      _
    $region47: #{tpu_custom_call.1} parent=1 // pred_check_branch
      %126 = sbr.rel (0) target = $region49
    $region48: #{tpu_custom_call.1} parent=1 // pred_region
      %128 = dma.done [#allocation7], 4096
    $region49: #{tpu_custom_call.1} parent=1 // pred_fallthru
      _
    // Predicated region
    $region50: #{tpu_custom_call.1} parent=1 // pred_check
      _
    $region51: #{tpu_custom_call.1} parent=1 // pred_check_branch
      %130 = sbr.rel (0) target = $region53
    $region52: #{tpu_custom_call.1} parent=1 // pred_region
      %132 = dma.done [#allocation7], 16
    $region53: #{tpu_custom_call.1} parent=1 // pred_fallthru
      _
    // Predicated region
    $region54: #{tpu_custom_call.1} parent=1 // pred_check
      _
    $region55: #{tpu_custom_call.1} parent=1 // pred_check_branch
      %134 = sbr.rel (0) target = $region57
    $region56: #{tpu_custom_call.1} parent=1 // pred_region
      %136 = dma.done [#allocation10], 16
    $region57: #{tpu_custom_call.1} parent=1 // pred_fallthru
      _
    // Predicated region
    $region58: #{tpu_custom_call.1} parent=1 // pred_check
      _
    $region59: #{tpu_custom_call.1} parent=1 // pred_check_branch
      %138 = sbr.rel (0) target = $region61
    $region60: #{tpu_custom_call.1} parent=1 // pred_region
      %140 = dma.done [#allocation10], 9216
    $region61: #{tpu_custom_call.1} parent=1 // pred_fallthru
      _
    // Predicated region
    $region62: #{tpu_custom_call.1} parent=1 // pred_check
      _
    $region63: #{tpu_custom_call.1} parent=1 // pred_check_branch
      %142 = sbr.rel (0) target = $region65
    $region64: #{tpu_custom_call.1} parent=1 // pred_region
      %144 = dma.done [#allocation13], 16
    $region65: #{tpu_custom_call.1} parent=1 // pred_fallthru
      _
    // Predicated region
    $region66: #{tpu_custom_call.1} parent=1 // pred_check
      _
    $region67: #{tpu_custom_call.1} parent=1 // pred_check_branch
      %146 = sbr.rel (0) target = $region69
    $region68: #{tpu_custom_call.1} parent=1 // pred_region
      %148 = dma.done [#allocation13], 16
    $region69: #{tpu_custom_call.1} parent=1 // pred_fallthru
      _
    // Predicated region
    $region70: #{tpu_custom_call.1} parent=1 // pred_check
      _
    $region71: #{tpu_custom_call.1} parent=1 // pred_check_branch
      %150 = sbr.rel (0) target = $region73
    $region72: #{tpu_custom_call.1} parent=1 // pred_region
      %152 = dma.done [#allocation16], 4096
    $region73: #{tpu_custom_call.1} parent=1 // pred_fallthru
      _
    %v154 = vld [vmem:[#allocation3] sm:$0xff]
    %v155 = vld [vmem:[#allocation3 + $0x8] sm:$0xff]
    %v156 = vld [vmem:[#allocation3 + $0x10] sm:$0xff]
    %v157 = vld [vmem:[#allocation3 + $0x18] sm:$0xff]
    %v158 = vld [vmem:[#allocation3 + $0x20] sm:$0xff]
    %v159 = vld [vmem:[#allocation3 + $0x28] sm:$0xff]
    %v160 = vld [vmem:[#allocation3 + $0x30] sm:$0xff]
    %v161 = vld [vmem:[#allocation3 + $0x38] sm:$0xff]
    %v162 = vld [vmem:[#allocation3 + $0x40] sm:$0xff]
    %v163 = vld [vmem:[#allocation3 + $0x48] sm:$0xff]
    %v164 = vld [vmem:[#allocation3 + $0x50] sm:$0xff]
    %v165 = vld [vmem:[#allocation3 + $0x58] sm:$0xff]
    %v166 = vld [vmem:[#allocation3 + $0x60] sm:$0xff]
    %v167 = vld [vmem:[#allocation3 + $0x68] sm:$0xff]
    %v168 = vld [vmem:[#allocation3 + $0x70] sm:$0xff]
    %v169 = vld [vmem:[#allocation3 + $0x78] sm:$0xff]
    %v170 = vld [vmem:[#allocation3 + $0x80] sm:$0xff]
    %v171 = vld [vmem:[#allocation3 + $0x88] sm:$0xff]
    %v172 = vld [vmem:[#allocation3 + $0x90] sm:$0xff]
    %v173 = vld [vmem:[#allocation3 + $0x98] sm:$0xff]
    %v174 = vld [vmem:[#allocation3 + $0xa0] sm:$0xff]
    %v175 = vld [vmem:[#allocation3 + $0xa8] sm:$0xff]
    %v176 = vld [vmem:[#allocation3 + $0xb0] sm:$0xff]
    %v177 = vld [vmem:[#allocation3 + $0xb8] sm:$0xff]
    %v178 = vld [vmem:[#allocation3 + $0xc0] sm:$0xff]
    %v179 = vld [vmem:[#allocation3 + $0xc8] sm:$0xff]
    %v180 = vld [vmem:[#allocation3 + $0xd0] sm:$0xff]
    %v181 = vld [vmem:[#allocation3 + $0xd8] sm:$0xff]
    %v182 = vld [vmem:[#allocation3 + $0xe0] sm:$0xff]
    %v183 = vld [vmem:[#allocation3 + $0xe8] sm:$0xff]
    %v184 = vld [vmem:[#allocation3 + $0xf0] sm:$0xff]
    %v185 = vld [vmem:[#allocation3 + $0xf8] sm:$0xff]
    %v186 = vld [vmem:[#allocation3 + $0x100] sm:$0xff]
    %v187 = vld [vmem:[#allocation3 + $0x108] sm:$0xff]
    %v188 = vld [vmem:[#allocation3 + $0x110] sm:$0xff]
    %v189 = vld [vmem:[#allocation3 + $0x118] sm:$0xff]
    %v190 = vld [vmem:[#allocation3 + $0x120] sm:$0xff]
    %v191 = vld [vmem:[#allocation3 + $0x128] sm:$0xff]
    %v192 = vld [vmem:[#allocation3 + $0x130] sm:$0xff]
    %v193 = vld [vmem:[#allocation3 + $0x138] sm:$0xff]
    %v194 = vld [vmem:[#allocation3 + $0x140] sm:$0xff]
    %v195 = vld [vmem:[#allocation3 + $0x148] sm:$0xff]
    %v196 = vld [vmem:[#allocation3 + $0x150] sm:$0xff]
    %v197 = vld [vmem:[#allocation3 + $0x158] sm:$0xff]
    %v198 = vld [vmem:[#allocation3 + $0x160] sm:$0xff]
    %v199 = vld [vmem:[#allocation3 + $0x168] sm:$0xff]
    %v200 = vld [vmem:[#allocation3 + $0x170] sm:$0xff]
    %v201 = vld [vmem:[#allocation3 + $0x178] sm:$0xff]
    %v202 = vld [vmem:[#allocation3 + $0x180] sm:$0xff]
    %v203 = vld [vmem:[#allocation3 + $0x188] sm:$0xff]
    %v204 = vld [vmem:[#allocation3 + $0x190] sm:$0xff]
    %v205 = vld [vmem:[#allocation3 + $0x198] sm:$0xff]
    %v206 = vld [vmem:[#allocation3 + $0x1a0] sm:$0xff]
    %v207 = vld [vmem:[#allocation3 + $0x1a8] sm:$0xff]
    %v208 = vld [vmem:[#allocation3 + $0x1b0] sm:$0xff]
    %v209 = vld [vmem:[#allocation3 + $0x1b8] sm:$0xff]
    %v210 = vld [vmem:[#allocation3 + $0x1c0] sm:$0xff]
    %v211 = vld [vmem:[#allocation3 + $0x1c8] sm:$0xff]
    %v212 = vld [vmem:[#allocation3 + $0x1d0] sm:$0xff]
    %v213 = vld [vmem:[#allocation3 + $0x1d8] sm:$0xff]
    %v214 = vld [vmem:[#allocation3 + $0x1e0] sm:$0xff]
    %v215 = vld [vmem:[#allocation3 + $0x1e8] sm:$0xff]
    %v216 = vld [vmem:[#allocation3 + $0x1f0] sm:$0xff]
    %v217 = vld [vmem:[#allocation3 + $0x1f8] sm:$0xff]
    %v218 = vld [vmem:[#allocation3 + $0x200] sm:$0xff]
    %v219 = vld [vmem:[#allocation3 + $0x208] sm:$0xff]
    %v220 = vld [vmem:[#allocation3 + $0x210] sm:$0xff]
    %v221 = vld [vmem:[#allocation3 + $0x218] sm:$0xff]
    %v222 = vld [vmem:[#allocation3 + $0x220] sm:$0xff]
    %v223 = vld [vmem:[#allocation3 + $0x228] sm:$0xff]
    %v224 = vld [vmem:[#allocation3 + $0x230] sm:$0xff]
    %v225 = vld [vmem:[#allocation3 + $0x238] sm:$0xff]
    %v226 = vld [vmem:[#allocation3 + $0x240] sm:$0xff]
    %v227 = vld [vmem:[#allocation3 + $0x248] sm:$0xff]
    %v228 = vld [vmem:[#allocation3 + $0x250] sm:$0xff]
    %v229 = vld [vmem:[#allocation3 + $0x258] sm:$0xff]
    %v230 = vld [vmem:[#allocation3 + $0x260] sm:$0xff]
    %v231 = vld [vmem:[#allocation3 + $0x268] sm:$0xff]
    %v232 = vld [vmem:[#allocation3 + $0x270] sm:$0xff]
    %v233 = vld [vmem:[#allocation3 + $0x278] sm:$0xff]
    %v234 = vld [vmem:[#allocation3 + $0x280] sm:$0xff]
    %v235 = vld [vmem:[#allocation3 + $0x288] sm:$0xff]
    %v236 = vld [vmem:[#allocation3 + $0x290] sm:$0xff]
    %v237 = vld [vmem:[#allocation3 + $0x298] sm:$0xff]
    %v238 = vld [vmem:[#allocation3 + $0x2a0] sm:$0xff]
    %v239 = vld [vmem:[#allocation3 + $0x2a8] sm:$0xff]
    %v240 = vld [vmem:[#allocation3 + $0x2b0] sm:$0xff]
    %v241 = vld [vmem:[#allocation3 + $0x2b8] sm:$0xff]
    %v242 = vld [vmem:[#allocation3 + $0x2c0] sm:$0xff]
    %v243 = vld [vmem:[#allocation3 + $0x2c8] sm:$0xff]
    %v244 = vld [vmem:[#allocation3 + $0x2d0] sm:$0xff]
    %v245 = vld [vmem:[#allocation3 + $0x2d8] sm:$0xff]
    %v246 = vld [vmem:[#allocation3 + $0x2e0] sm:$0xff]
    %v247 = vld [vmem:[#allocation3 + $0x2e8] sm:$0xff]
    %v248 = vld [vmem:[#allocation3 + $0x2f0] sm:$0xff]
    %v249 = vld [vmem:[#allocation3 + $0x2f8] sm:$0xff]
    %v250 = vld [vmem:[#allocation3 + $0x300] sm:$0xff]
    %v251 = vld [vmem:[#allocation3 + $0x308] sm:$0xff]
    %v252 = vld [vmem:[#allocation3 + $0x310] sm:$0xff]
    %v253 = vld [vmem:[#allocation3 + $0x318] sm:$0xff]
    %v254 = vld [vmem:[#allocation3 + $0x320] sm:$0xff]
    %v255 = vld [vmem:[#allocation3 + $0x328] sm:$0xff]
    %v256 = vld [vmem:[#allocation3 + $0x330] sm:$0xff]
    %v257 = vld [vmem:[#allocation3 + $0x338] sm:$0xff]
    %v258 = vld [vmem:[#allocation3 + $0x340] sm:$0xff]
    %v259 = vld [vmem:[#allocation3 + $0x348] sm:$0xff]
    %v260 = vld [vmem:[#allocation3 + $0x350] sm:$0xff]
    %v261 = vld [vmem:[#allocation3 + $0x358] sm:$0xff]
    %v262 = vld [vmem:[#allocation3 + $0x360] sm:$0xff]
    %v263 = vld [vmem:[#allocation3 + $0x368] sm:$0xff]
    %v264 = vld [vmem:[#allocation3 + $0x370] sm:$0xff]
    %v265 = vld [vmem:[#allocation3 + $0x378] sm:$0xff]
    %v266 = vld [vmem:[#allocation3 + $0x380] sm:$0xff]
    %v267 = vld [vmem:[#allocation3 + $0x388] sm:$0xff]
    %v268 = vld [vmem:[#allocation3 + $0x390] sm:$0xff]
    %v269 = vld [vmem:[#allocation3 + $0x398] sm:$0xff]
    %v270 = vld [vmem:[#allocation3 + $0x3a0] sm:$0xff]
    %v271 = vld [vmem:[#allocation3 + $0x3a8] sm:$0xff]
    %v272 = vld [vmem:[#allocation3 + $0x3b0] sm:$0xff]
    %v273 = vld [vmem:[#allocation3 + $0x3b8] sm:$0xff]
    %v274 = vld [vmem:[#allocation3 + $0x3c0] sm:$0xff]
    %v275 = vld [vmem:[#allocation3 + $0x3c8] sm:$0xff]
    %v276 = vld [vmem:[#allocation3 + $0x3d0] sm:$0xff]
    %v277 = vld [vmem:[#allocation3 + $0x3d8] sm:$0xff]
    %v278 = vld [vmem:[#allocation3 + $0x3e0] sm:$0xff]
    %v279 = vld [vmem:[#allocation3 + $0x3e8] sm:$0xff]
    %v280 = vld [vmem:[#allocation3 + $0x3f0] sm:$0xff]
    %v281 = vld [vmem:[#allocation3 + $0x3f8] sm:$0xff]
    %v282 = vld [vmem:[#allocation6] sm:$0xf]
    %v283 = vld [vmem:[#allocation6 + $0x4] sm:$0xf]
    %v284 = vld [vmem:[#allocation6 + $0x8] sm:$0xf]
    %v285 = vld [vmem:[#allocation6 + $0xc] sm:$0xf]
    %v286 = vld [vmem:[#allocation6 + $0x10] sm:$0xf]
    %v287 = vld [vmem:[#allocation6 + $0x14] sm:$0xf]
    %v288 = vld [vmem:[#allocation6 + $0x18] sm:$0xf]
    %v289 = vld [vmem:[#allocation6 + $0x1c] sm:$0xf]
    %v290 = vld [vmem:[#allocation6 + $0x20] sm:$0xf]
    %v291 = vld [vmem:[#allocation6 + $0x24] sm:$0xf]
    %v292 = vld [vmem:[#allocation6 + $0x28] sm:$0xf]
    %v293 = vld [vmem:[#allocation6 + $0x2c] sm:$0xf]
    %v294 = vld [vmem:[#allocation6 + $0x30] sm:$0xf]
    %v295 = vld [vmem:[#allocation6 + $0x34] sm:$0xf]
    %v296 = vld [vmem:[#allocation6 + $0x38] sm:$0xf]
    %v297 = vld [vmem:[#allocation6 + $0x3c] sm:$0xf]
    %v298 = vld [vmem:[#allocation6 + $0x40] sm:$0xf]
    %v299 = vld [vmem:[#allocation6 + $0x44] sm:$0xf]
    %v300 = vld [vmem:[#allocation6 + $0x48] sm:$0xf]
    %v301 = vld [vmem:[#allocation6 + $0x4c] sm:$0xf]
    %v302 = vld [vmem:[#allocation6 + $0x50] sm:$0xf]
    %v303 = vld [vmem:[#allocation6 + $0x54] sm:$0xf]
    %v304 = vld [vmem:[#allocation6 + $0x58] sm:$0xf]
    %v305 = vld [vmem:[#allocation6 + $0x5c] sm:$0xf]
    %v306 = vld [vmem:[#allocation6 + $0x60] sm:$0xf]
    %v307 = vld [vmem:[#allocation6 + $0x64] sm:$0xf]
    %v308 = vld [vmem:[#allocation6 + $0x68] sm:$0xf]
    %v309 = vld [vmem:[#allocation6 + $0x6c] sm:$0xf]
    %v310 = vld [vmem:[#allocation6 + $0x70] sm:$0xf]
    %v311 = vld [vmem:[#allocation6 + $0x74] sm:$0xf]
    %v312 = vld [vmem:[#allocation6 + $0x78] sm:$0xf]
    %v313 = vld [vmem:[#allocation6 + $0x7c] sm:$0xf]
    %v314 = vld [vmem:[#allocation6 + $0x80] sm:$0xf]
    %v315 = vld [vmem:[#allocation6 + $0x84] sm:$0xf]
    %v316 = vld [vmem:[#allocation6 + $0x88] sm:$0xf]
    %v317 = vld [vmem:[#allocation6 + $0x8c] sm:$0xf]
    %v318 = vld [vmem:[#allocation6 + $0x90] sm:$0xf]
    %v319 = vld [vmem:[#allocation6 + $0x94] sm:$0xf]
    %v320 = vld [vmem:[#allocation6 + $0x98] sm:$0xf]
    %v321 = vld [vmem:[#allocation6 + $0x9c] sm:$0xf]
    %v322 = vld [vmem:[#allocation6 + $0xa0] sm:$0xf]
    %v323 = vld [vmem:[#allocation6 + $0xa4] sm:$0xf]
    %v324 = vld [vmem:[#allocation6 + $0xa8] sm:$0xf]
    %v325 = vld [vmem:[#allocation6 + $0xac] sm:$0xf]
    %v326 = vld [vmem:[#allocation6 + $0xb0] sm:$0xf]
    %v327 = vld [vmem:[#allocation6 + $0xb4] sm:$0xf]
    %v328 = vld [vmem:[#allocation6 + $0xb8] sm:$0xf]
    %v329 = vld [vmem:[#allocation6 + $0xbc] sm:$0xf]
    %v330 = vld [vmem:[#allocation6 + $0xc0] sm:$0xf]
    %v331 = vld [vmem:[#allocation6 + $0xc4] sm:$0xf]
    %v332 = vld [vmem:[#allocation6 + $0xc8] sm:$0xf]
    %v333 = vld [vmem:[#allocation6 + $0xcc] sm:$0xf]
    %v334 = vld [vmem:[#allocation6 + $0xd0] sm:$0xf]
    %v335 = vld [vmem:[#allocation6 + $0xd4] sm:$0xf]
    %v336 = vld [vmem:[#allocation6 + $0xd8] sm:$0xf]
    %v337 = vld [vmem:[#allocation6 + $0xdc] sm:$0xf]
    %v338 = vld [vmem:[#allocation6 + $0xe0] sm:$0xf]
    %v339 = vld [vmem:[#allocation6 + $0xe4] sm:$0xf]
    %v340 = vld [vmem:[#allocation6 + $0xe8] sm:$0xf]
    %v341 = vld [vmem:[#allocation6 + $0xec] sm:$0xf]
    %v342 = vld [vmem:[#allocation6 + $0xf0] sm:$0xf]
    %v343 = vld [vmem:[#allocation6 + $0xf4] sm:$0xf]
    %v344 = vld [vmem:[#allocation6 + $0xf8] sm:$0xf]
    %v345 = vld [vmem:[#allocation6 + $0xfc] sm:$0xf]
    %v474 = vunpack.c.l.b16 %v154
    %v475 = vunpack.c.h.b16 %v154
    %v476 = vunpack.c.l.b16 %v155
    %v477 = vunpack.c.h.b16 %v155
    %v478 = vunpack.c.l.b16 %v156
    %v479 = vunpack.c.h.b16 %v156
    %v480 = vunpack.c.l.b16 %v157
    %v481 = vunpack.c.h.b16 %v157
    %v482 = vunpack.c.l.b16 %v158
    %v483 = vunpack.c.h.b16 %v158
    %v484 = vunpack.c.l.b16 %v159
    %v485 = vunpack.c.h.b16 %v159
    %v486 = vunpack.c.l.b16 %v160
    %v487 = vunpack.c.h.b16 %v160
    %v488 = vunpack.c.l.b16 %v161
    %v489 = vunpack.c.h.b16 %v161
    %v490 = vunpack.c.l.b16 %v162
    %v491 = vunpack.c.h.b16 %v162
    %v492 = vunpack.c.l.b16 %v163
    %v493 = vunpack.c.h.b16 %v163
    %v494 = vunpack.c.l.b16 %v164
    %v495 = vunpack.c.h.b16 %v164
    %v496 = vunpack.c.l.b16 %v165
    %v497 = vunpack.c.h.b16 %v165
    %v498 = vunpack.c.l.b16 %v166
    %v499 = vunpack.c.h.b16 %v166
    %v500 = vunpack.c.l.b16 %v167
    %v501 = vunpack.c.h.b16 %v167
    %v502 = vunpack.c.l.b16 %v168
    %v503 = vunpack.c.h.b16 %v168
    %v504 = vunpack.c.l.b16 %v169
    %v505 = vunpack.c.h.b16 %v169
    %v506 = vunpack.c.l.b16 %v170
    %v507 = vunpack.c.h.b16 %v170
    %v508 = vunpack.c.l.b16 %v171
    %v509 = vunpack.c.h.b16 %v171
    %v510 = vunpack.c.l.b16 %v172
    %v511 = vunpack.c.h.b16 %v172
    %v512 = vunpack.c.l.b16 %v173
    %v513 = vunpack.c.h.b16 %v173
    %v514 = vunpack.c.l.b16 %v174
    %v515 = vunpack.c.h.b16 %v174
    %v516 = vunpack.c.l.b16 %v175
    %v517 = vunpack.c.h.b16 %v175
    %v518 = vunpack.c.l.b16 %v176
    %v519 = vunpack.c.h.b16 %v176
    %v520 = vunpack.c.l.b16 %v177
    %v521 = vunpack.c.h.b16 %v177
    %v522 = vunpack.c.l.b16 %v178
    %v523 = vunpack.c.h.b16 %v178
    %v524 = vunpack.c.l.b16 %v179
    %v525 = vunpack.c.h.b16 %v179
    %v526 = vunpack.c.l.b16 %v180
    %v527 = vunpack.c.h.b16 %v180
    %v528 = vunpack.c.l.b16 %v181
    %v529 = vunpack.c.h.b16 %v181
    %v530 = vunpack.c.l.b16 %v182
    %v531 = vunpack.c.h.b16 %v182
    %v532 = vunpack.c.l.b16 %v183
    %v533 = vunpack.c.h.b16 %v183
    %v534 = vunpack.c.l.b16 %v184
    %v535 = vunpack.c.h.b16 %v184
    %v536 = vunpack.c.l.b16 %v185
    %v537 = vunpack.c.h.b16 %v185
    %v538 = vunpack.c.l.b16 %v186
    %v539 = vunpack.c.h.b16 %v186
    %v540 = vunpack.c.l.b16 %v187
    %v541 = vunpack.c.h.b16 %v187
    %v542 = vunpack.c.l.b16 %v188
    %v543 = vunpack.c.h.b16 %v188
    %v544 = vunpack.c.l.b16 %v189
    %v545 = vunpack.c.h.b16 %v189
    %v546 = vunpack.c.l.b16 %v190
    %v547 = vunpack.c.h.b16 %v190
    %v548 = vunpack.c.l.b16 %v191
    %v549 = vunpack.c.h.b16 %v191
    %v550 = vunpack.c.l.b16 %v192
    %v551 = vunpack.c.h.b16 %v192
    %v552 = vunpack.c.l.b16 %v193
    %v553 = vunpack.c.h.b16 %v193
    %v554 = vunpack.c.l.b16 %v194
    %v555 = vunpack.c.h.b16 %v194
    %v556 = vunpack.c.l.b16 %v195
    %v557 = vunpack.c.h.b16 %v195
    %v558 = vunpack.c.l.b16 %v196
    %v559 = vunpack.c.h.b16 %v196
    %v560 = vunpack.c.l.b16 %v197
    %v561 = vunpack.c.h.b16 %v197
    %v562 = vunpack.c.l.b16 %v198
    %v563 = vunpack.c.h.b16 %v198
    %v564 = vunpack.c.l.b16 %v199
    %v565 = vunpack.c.h.b16 %v199
    %v566 = vunpack.c.l.b16 %v200
    %v567 = vunpack.c.h.b16 %v200
    %v568 = vunpack.c.l.b16 %v201
    %v569 = vunpack.c.h.b16 %v201
    %v570 = vunpack.c.l.b16 %v202
    %v571 = vunpack.c.h.b16 %v202
    %v572 = vunpack.c.l.b16 %v203
    %v573 = vunpack.c.h.b16 %v203
    %v574 = vunpack.c.l.b16 %v204
    %v575 = vunpack.c.h.b16 %v204
    %v576 = vunpack.c.l.b16 %v205
    %v577 = vunpack.c.h.b16 %v205
    %v578 = vunpack.c.l.b16 %v206
    %v579 = vunpack.c.h.b16 %v206
    %v580 = vunpack.c.l.b16 %v207
    %v581 = vunpack.c.h.b16 %v207
    %v582 = vunpack.c.l.b16 %v208
    %v583 = vunpack.c.h.b16 %v208
    %v584 = vunpack.c.l.b16 %v209
    %v585 = vunpack.c.h.b16 %v209
    %v586 = vunpack.c.l.b16 %v210
    %v587 = vunpack.c.h.b16 %v210
    %v588 = vunpack.c.l.b16 %v211
    %v589 = vunpack.c.h.b16 %v211
    %v590 = vunpack.c.l.b16 %v212
    %v591 = vunpack.c.h.b16 %v212
    %v592 = vunpack.c.l.b16 %v213
    %v593 = vunpack.c.h.b16 %v213
    %v594 = vunpack.c.l.b16 %v214
    %v595 = vunpack.c.h.b16 %v214
    %v596 = vunpack.c.l.b16 %v215
    %v597 = vunpack.c.h.b16 %v215
    %v598 = vunpack.c.l.b16 %v216
    %v599 = vunpack.c.h.b16 %v216
    %v600 = vunpack.c.l.b16 %v217
    %v601 = vunpack.c.h.b16 %v217
    %v602 = vunpack.c.l.b16 %v218
    %v603 = vunpack.c.h.b16 %v218
    %v604 = vunpack.c.l.b16 %v219
    %v605 = vunpack.c.h.b16 %v219
    %v606 = vunpack.c.l.b16 %v220
    %v607 = vunpack.c.h.b16 %v220
    %v608 = vunpack.c.l.b16 %v221
    %v609 = vunpack.c.h.b16 %v221
    %v610 = vunpack.c.l.b16 %v222
    %v611 = vunpack.c.h.b16 %v222
    %v612 = vunpack.c.l.b16 %v223
    %v613 = vunpack.c.h.b16 %v223
    %v614 = vunpack.c.l.b16 %v224
    %v615 = vunpack.c.h.b16 %v224
    %v616 = vunpack.c.l.b16 %v225
    %v617 = vunpack.c.h.b16 %v225
    %v618 = vunpack.c.l.b16 %v226
    %v619 = vunpack.c.h.b16 %v226
    %v620 = vunpack.c.l.b16 %v227
    %v621 = vunpack.c.h.b16 %v227
    %v622 = vunpack.c.l.b16 %v228
    %v623 = vunpack.c.h.b16 %v228
    %v624 = vunpack.c.l.b16 %v229
    %v625 = vunpack.c.h.b16 %v229
    %v626 = vunpack.c.l.b16 %v230
    %v627 = vunpack.c.h.b16 %v230
    %v628 = vunpack.c.l.b16 %v231
    %v629 = vunpack.c.h.b16 %v231
    %v630 = vunpack.c.l.b16 %v232
    %v631 = vunpack.c.h.b16 %v232
    %v632 = vunpack.c.l.b16 %v233
    %v633 = vunpack.c.h.b16 %v233
    %v634 = vunpack.c.l.b16 %v234
    %v635 = vunpack.c.h.b16 %v234
    %v636 = vunpack.c.l.b16 %v235
    %v637 = vunpack.c.h.b16 %v235
    %v638 = vunpack.c.l.b16 %v236
    %v639 = vunpack.c.h.b16 %v236
    %v640 = vunpack.c.l.b16 %v237
    %v641 = vunpack.c.h.b16 %v237
    %v642 = vunpack.c.l.b16 %v238
    %v643 = vunpack.c.h.b16 %v238
    %v644 = vunpack.c.l.b16 %v239
    %v645 = vunpack.c.h.b16 %v239
    %v646 = vunpack.c.l.b16 %v240
    %v647 = vunpack.c.h.b16 %v240
    %v648 = vunpack.c.l.b16 %v241
    %v649 = vunpack.c.h.b16 %v241
    %v650 = vunpack.c.l.b16 %v242
    %v651 = vunpack.c.h.b16 %v242
    %v652 = vunpack.c.l.b16 %v243
    %v653 = vunpack.c.h.b16 %v243
    %v654 = vunpack.c.l.b16 %v244
    %v655 = vunpack.c.h.b16 %v244
    %v656 = vunpack.c.l.b16 %v245
    %v657 = vunpack.c.h.b16 %v245
    %v658 = vunpack.c.l.b16 %v246
    %v659 = vunpack.c.h.b16 %v246
    %v660 = vunpack.c.l.b16 %v247
    %v661 = vunpack.c.h.b16 %v247
    %v662 = vunpack.c.l.b16 %v248
    %v663 = vunpack.c.h.b16 %v248
    %v664 = vunpack.c.l.b16 %v249
    %v665 = vunpack.c.h.b16 %v249
    %v666 = vunpack.c.l.b16 %v250
    %v667 = vunpack.c.h.b16 %v250
    %v668 = vunpack.c.l.b16 %v251
    %v669 = vunpack.c.h.b16 %v251
    %v670 = vunpack.c.l.b16 %v252
    %v671 = vunpack.c.h.b16 %v252
    %v672 = vunpack.c.l.b16 %v253
    %v673 = vunpack.c.h.b16 %v253
    %v674 = vunpack.c.l.b16 %v254
    %v675 = vunpack.c.h.b16 %v254
    %v676 = vunpack.c.l.b16 %v255
    %v677 = vunpack.c.h.b16 %v255
    %v678 = vunpack.c.l.b16 %v256
    %v679 = vunpack.c.h.b16 %v256
    %v680 = vunpack.c.l.b16 %v257
    %v681 = vunpack.c.h.b16 %v257
    %v682 = vunpack.c.l.b16 %v258
    %v683 = vunpack.c.h.b16 %v258
    %v684 = vunpack.c.l.b16 %v259
    %v685 = vunpack.c.h.b16 %v259
    %v686 = vunpack.c.l.b16 %v260
    %v687 = vunpack.c.h.b16 %v260
    %v688 = vunpack.c.l.b16 %v261
    %v689 = vunpack.c.h.b16 %v261
    %v690 = vunpack.c.l.b16 %v262
    %v691 = vunpack.c.h.b16 %v262
    %v692 = vunpack.c.l.b16 %v263
    %v693 = vunpack.c.h.b16 %v263
    %v694 = vunpack.c.l.b16 %v264
    %v695 = vunpack.c.h.b16 %v264
    %v696 = vunpack.c.l.b16 %v265
    %v697 = vunpack.c.h.b16 %v265
    %v698 = vunpack.c.l.b16 %v266
    %v699 = vunpack.c.h.b16 %v266
    %v700 = vunpack.c.l.b16 %v267
    %v701 = vunpack.c.h.b16 %v267
    %v702 = vunpack.c.l.b16 %v268
    %v703 = vunpack.c.h.b16 %v268
    %v704 = vunpack.c.l.b16 %v269
    %v705 = vunpack.c.h.b16 %v269
    %v706 = vunpack.c.l.b16 %v270
    %v707 = vunpack.c.h.b16 %v270
    %v708 = vunpack.c.l.b16 %v271
    %v709 = vunpack.c.h.b16 %v271
    %v710 = vunpack.c.l.b16 %v272
    %v711 = vunpack.c.h.b16 %v272
    %v712 = vunpack.c.l.b16 %v273
    %v713 = vunpack.c.h.b16 %v273
    %v714 = vunpack.c.l.b16 %v274
    %v715 = vunpack.c.h.b16 %v274
    %v716 = vunpack.c.l.b16 %v275
    %v717 = vunpack.c.h.b16 %v275
    %v718 = vunpack.c.l.b16 %v276
    %v719 = vunpack.c.h.b16 %v276
    %v720 = vunpack.c.l.b16 %v277
    %v721 = vunpack.c.h.b16 %v277
    %v722 = vunpack.c.l.b16 %v278
    %v723 = vunpack.c.h.b16 %v278
    %v724 = vunpack.c.l.b16 %v279
    %v725 = vunpack.c.h.b16 %v279
    %v726 = vunpack.c.l.b16 %v280
    %v727 = vunpack.c.h.b16 %v280
    %v728 = vunpack.c.l.b16 %v281
    %v729 = vunpack.c.h.b16 %v281
    %v730 = vpack.c.b16 %v478, %v474
    %v731 = vpack.c.b16 %v479, %v475
    %v732 = vpack.c.b16 %v480, %v476
    %v733 = vpack.c.b16 %v481, %v477
    %v734 = vpack.c.b16 %v486, %v482
    %v735 = vpack.c.b16 %v487, %v483
    %v736 = vpack.c.b16 %v488, %v484
    %v737 = vpack.c.b16 %v489, %v485
    %v738 = vpack.c.b16 %v494, %v490
    %v739 = vpack.c.b16 %v495, %v491
    %v740 = vpack.c.b16 %v496, %v492
    %v741 = vpack.c.b16 %v497, %v493
    %v742 = vpack.c.b16 %v502, %v498
    %v743 = vpack.c.b16 %v503, %v499
    %v744 = vpack.c.b16 %v504, %v500
    %v745 = vpack.c.b16 %v505, %v501
    %v746 = vpack.c.b16 %v510, %v506
    %v747 = vpack.c.b16 %v511, %v507
    %v748 = vpack.c.b16 %v512, %v508
    %v749 = vpack.c.b16 %v513, %v509
    %v750 = vpack.c.b16 %v518, %v514
    %v751 = vpack.c.b16 %v519, %v515
    %v752 = vpack.c.b16 %v520, %v516
    %v753 = vpack.c.b16 %v521, %v517
    %v754 = vpack.c.b16 %v526, %v522
    %v755 = vpack.c.b16 %v527, %v523
    %v756 = vpack.c.b16 %v528, %v524
    %v757 = vpack.c.b16 %v529, %v525
    %v758 = vpack.c.b16 %v534, %v530
    %v759 = vpack.c.b16 %v535, %v531
    %v760 = vpack.c.b16 %v536, %v532
    %v761 = vpack.c.b16 %v537, %v533
    %v762 = vpack.c.b16 %v542, %v538
    %v763 = vpack.c.b16 %v543, %v539
    %v764 = vpack.c.b16 %v544, %v540
    %v765 = vpack.c.b16 %v545, %v541
    %v766 = vpack.c.b16 %v550, %v546
    %v767 = vpack.c.b16 %v551, %v547
    %v768 = vpack.c.b16 %v552, %v548
    %v769 = vpack.c.b16 %v553, %v549
    %v770 = vpack.c.b16 %v558, %v554
    %v771 = vpack.c.b16 %v559, %v555
    %v772 = vpack.c.b16 %v560, %v556
    %v773 = vpack.c.b16 %v561, %v557
    %v774 = vpack.c.b16 %v566, %v562
    %v775 = vpack.c.b16 %v567, %v563
    %v776 = vpack.c.b16 %v568, %v564
    %v777 = vpack.c.b16 %v569, %v565
    %v778 = vpack.c.b16 %v574, %v570
    %v779 = vpack.c.b16 %v575, %v571
    %v780 = vpack.c.b16 %v576, %v572
    %v781 = vpack.c.b16 %v577, %v573
    %v782 = vpack.c.b16 %v582, %v578
    %v783 = vpack.c.b16 %v583, %v579
    %v784 = vpack.c.b16 %v584, %v580
    %v785 = vpack.c.b16 %v585, %v581
    %v786 = vpack.c.b16 %v590, %v586
    %v787 = vpack.c.b16 %v591, %v587
    %v788 = vpack.c.b16 %v592, %v588
    %v789 = vpack.c.b16 %v593, %v589
    %v790 = vpack.c.b16 %v598, %v594
    %v791 = vpack.c.b16 %v599, %v595
    %v792 = vpack.c.b16 %v600, %v596
    %v793 = vpack.c.b16 %v601, %v597
    %v794 = vpack.c.b16 %v606, %v602
    %v795 = vpack.c.b16 %v607, %v603
    %v796 = vpack.c.b16 %v608, %v604
    %v797 = vpack.c.b16 %v609, %v605
    %v798 = vpack.c.b16 %v614, %v610
    %v799 = vpack.c.b16 %v615, %v611
    %v800 = vpack.c.b16 %v616, %v612
    %v801 = vpack.c.b16 %v617, %v613
    %v802 = vpack.c.b16 %v622, %v618
    %v803 = vpack.c.b16 %v623, %v619
    %v804 = vpack.c.b16 %v624, %v620
    %v805 = vpack.c.b16 %v625, %v621
    %v806 = vpack.c.b16 %v630, %v626
    %v807 = vpack.c.b16 %v631, %v627
    %v808 = vpack.c.b16 %v632, %v628
    %v809 = vpack.c.b16 %v633, %v629
    %v810 = vpack.c.b16 %v638, %v634
    %v811 = vpack.c.b16 %v639, %v635
    %v812 = vpack.c.b16 %v640, %v636
    %v813 = vpack.c.b16 %v641, %v637
    %v814 = vpack.c.b16 %v646, %v642
    %v815 = vpack.c.b16 %v647, %v643
    %v816 = vpack.c.b16 %v648, %v644
    %v817 = vpack.c.b16 %v649, %v645
    %v818 = vpack.c.b16 %v654, %v650
    %v819 = vpack.c.b16 %v655, %v651
    %v820 = vpack.c.b16 %v656, %v652
    %v821 = vpack.c.b16 %v657, %v653
    %v822 = vpack.c.b16 %v662, %v658
    %v823 = vpack.c.b16 %v663, %v659
    %v824 = vpack.c.b16 %v664, %v660
    %v825 = vpack.c.b16 %v665, %v661
    %v826 = vpack.c.b16 %v670, %v666
    %v827 = vpack.c.b16 %v671, %v667
    %v828 = vpack.c.b16 %v672, %v668
    %v829 = vpack.c.b16 %v673, %v669
    %v830 = vpack.c.b16 %v678, %v674
    %v831 = vpack.c.b16 %v679, %v675
    %v832 = vpack.c.b16 %v680, %v676
    %v833 = vpack.c.b16 %v681, %v677
    %v834 = vpack.c.b16 %v686, %v682
    %v835 = vpack.c.b16 %v687, %v683
    %v836 = vpack.c.b16 %v688, %v684
    %v837 = vpack.c.b16 %v689, %v685
    %v838 = vpack.c.b16 %v694, %v690
    %v839 = vpack.c.b16 %v695, %v691
    %v840 = vpack.c.b16 %v696, %v692
    %v841 = vpack.c.b16 %v697, %v693
    %v842 = vpack.c.b16 %v702, %v698
    %v843 = vpack.c.b16 %v703, %v699
    %v844 = vpack.c.b16 %v704, %v700
    %v845 = vpack.c.b16 %v705, %v701
    %v846 = vpack.c.b16 %v710, %v706
    %v847 = vpack.c.b16 %v711, %v707
    %v848 = vpack.c.b16 %v712, %v708
    %v849 = vpack.c.b16 %v713, %v709
    %v850 = vpack.c.b16 %v718, %v714
    %v851 = vpack.c.b16 %v719, %v715
    %v852 = vpack.c.b16 %v720, %v716
    %v853 = vpack.c.b16 %v721, %v717
    %v854 = vpack.c.b16 %v726, %v722
    %v855 = vpack.c.b16 %v727, %v723
    %v856 = vpack.c.b16 %v728, %v724
    %v857 = vpack.c.b16 %v729, %v725
    %v1050 = vunpack.c.l.b16 %v282
    %v1051 = vunpack.c.l.b16 %v283
    %v1052 = vunpack.c.l.b16 %v284
    %v1053 = vunpack.c.l.b16 %v285
    %v1054 = vunpack.c.l.b16 %v286
    %v1055 = vunpack.c.l.b16 %v287
    %v1056 = vunpack.c.l.b16 %v288
    %v1057 = vunpack.c.l.b16 %v289
    %v1058 = vunpack.c.l.b16 %v290
    %v1059 = vunpack.c.l.b16 %v291
    %v1060 = vunpack.c.l.b16 %v292
    %v1061 = vunpack.c.l.b16 %v293
    %v1062 = vunpack.c.l.b16 %v294
    %v1063 = vunpack.c.l.b16 %v295
    %v1064 = vunpack.c.l.b16 %v296
    %v1065 = vunpack.c.l.b16 %v297
    %v1066 = vunpack.c.l.b16 %v298
    %v1067 = vunpack.c.l.b16 %v299
    %v1068 = vunpack.c.l.b16 %v300
    %v1069 = vunpack.c.l.b16 %v301
    %v1070 = vunpack.c.l.b16 %v302
    %v1071 = vunpack.c.l.b16 %v303
    %v1072 = vunpack.c.l.b16 %v304
    %v1073 = vunpack.c.l.b16 %v305
    %v1074 = vunpack.c.l.b16 %v306
    %v1075 = vunpack.c.l.b16 %v307
    %v1076 = vunpack.c.l.b16 %v308
    %v1077 = vunpack.c.l.b16 %v309
    %v1078 = vunpack.c.l.b16 %v310
    %v1079 = vunpack.c.l.b16 %v311
    %v1080 = vunpack.c.l.b16 %v312
    %v1081 = vunpack.c.l.b16 %v313
    %v1082 = vunpack.c.l.b16 %v314
    %v1083 = vunpack.c.l.b16 %v315
    %v1084 = vunpack.c.l.b16 %v316
    %v1085 = vunpack.c.l.b16 %v317
    %v1086 = vunpack.c.l.b16 %v318
    %v1087 = vunpack.c.l.b16 %v319
    %v1088 = vunpack.c.l.b16 %v320
    %v1089 = vunpack.c.l.b16 %v321
    %v1090 = vunpack.c.l.b16 %v322
    %v1091 = vunpack.c.l.b16 %v323
    %v1092 = vunpack.c.l.b16 %v324
    %v1093 = vunpack.c.l.b16 %v325
    %v1094 = vunpack.c.l.b16 %v326
    %v1095 = vunpack.c.l.b16 %v327
    %v1096 = vunpack.c.l.b16 %v328
    %v1097 = vunpack.c.l.b16 %v329
    %v1098 = vunpack.c.l.b16 %v330
    %v1099 = vunpack.c.l.b16 %v331
    %v1100 = vunpack.c.l.b16 %v332
    %v1101 = vunpack.c.l.b16 %v333
    %v1102 = vunpack.c.l.b16 %v334
    %v1103 = vunpack.c.l.b16 %v335
    %v1104 = vunpack.c.l.b16 %v336
    %v1105 = vunpack.c.l.b16 %v337
    %v1106 = vunpack.c.l.b16 %v338
    %v1107 = vunpack.c.l.b16 %v339
    %v1108 = vunpack.c.l.b16 %v340
    %v1109 = vunpack.c.l.b16 %v341
    %v1110 = vunpack.c.l.b16 %v342
    %v1111 = vunpack.c.l.b16 %v343
    %v1112 = vunpack.c.l.b16 %v344
    %v1113 = vunpack.c.l.b16 %v345
    %v1114 = vpack.c.b16 %v1051, %v1050
    %v1115 = vpack.c.b16 %v1053, %v1052
    %v1116 = vpack.c.b16 %v1055, %v1054
    %v1117 = vpack.c.b16 %v1057, %v1056
    %v1118 = vpack.c.b16 %v1059, %v1058
    %v1119 = vpack.c.b16 %v1061, %v1060
    %v1120 = vpack.c.b16 %v1063, %v1062
    %v1121 = vpack.c.b16 %v1065, %v1064
    %v1122 = vpack.c.b16 %v1067, %v1066
    %v1123 = vpack.c.b16 %v1069, %v1068
    %v1124 = vpack.c.b16 %v1071, %v1070
    %v1125 = vpack.c.b16 %v1073, %v1072
    %v1126 = vpack.c.b16 %v1075, %v1074
    %v1127 = vpack.c.b16 %v1077, %v1076
    %v1128 = vpack.c.b16 %v1079, %v1078
    %v1129 = vpack.c.b16 %v1081, %v1080
    %v1130 = vpack.c.b16 %v1083, %v1082
    %v1131 = vpack.c.b16 %v1085, %v1084
    %v1132 = vpack.c.b16 %v1087, %v1086
    %v1133 = vpack.c.b16 %v1089, %v1088
    %v1134 = vpack.c.b16 %v1091, %v1090
    %v1135 = vpack.c.b16 %v1093, %v1092
    %v1136 = vpack.c.b16 %v1095, %v1094
    %v1137 = vpack.c.b16 %v1097, %v1096
    %v1138 = vpack.c.b16 %v1099, %v1098
    %v1139 = vpack.c.b16 %v1101, %v1100
    %v1140 = vpack.c.b16 %v1103, %v1102
    %v1141 = vpack.c.b16 %v1105, %v1104
    %v1142 = vpack.c.b16 %v1107, %v1106
    %v1143 = vpack.c.b16 %v1109, %v1108
    %v1144 = vpack.c.b16 %v1111, %v1110
    %v1145 = vpack.c.b16 %v1113, %v1112
    %1178 = vmatpush.bf16.msra.mxu0 %v1121
    %1179 = vmatpush.bf16.msra.mxu0 %v1120
    %1180 = vmatpush.bf16.msra.mxu0 %v1119
    %1181 = vmatpush.bf16.msra.mxu0 %v1118
    %1182 = vmatpush.bf16.msra.mxu0 %v1117
    %1183 = vmatpush.bf16.msra.mxu0 %v1116
    %1184 = vmatpush.bf16.msra.mxu0 %v1115
    %1185 = vmatpush.bf16.msra.mxu0 %v1114
    %1186 = vmatmul.bf16.gmra.mxu0 %v730
    %v1187 = vpop.f32.mrf.mxu0
    %v1188 = vadd.f32 0.0, %v1187
    %v1189 = vpop.f32.mrf.mxu0
    %v1190 = vadd.f32 0.0, %v1189
    %1191 = vmatmul.bf16.gmra.mxu0 %v734
    %v1192 = vpop.f32.mrf.mxu0
    %v1193 = vadd.f32 0.0, %v1192
    %v1194 = vpop.f32.mrf.mxu0
    %v1195 = vadd.f32 0.0, %v1194
    %1196 = vmatmul.bf16.gmra.mxu0 %v738
    %v1197 = vpop.f32.mrf.mxu0
    %v1198 = vadd.f32 0.0, %v1197
    %v1199 = vpop.f32.mrf.mxu0
    %v1200 = vadd.f32 0.0, %v1199
    %1201 = vmatmul.bf16.gmra.mxu0 %v742
    %v1202 = vpop.f32.mrf.mxu0
    %v1203 = vadd.f32 0.0, %v1202
    %v1204 = vpop.f32.mrf.mxu0
    %v1205 = vadd.f32 0.0, %v1204
    %1206 = vmatmul.bf16.gmra.mxu0 %v746
    %v1207 = vpop.f32.mrf.mxu0
    %v1208 = vadd.f32 0.0, %v1207
    %v1209 = vpop.f32.mrf.mxu0
    %v1210 = vadd.f32 0.0, %v1209
    %1211 = vmatmul.bf16.gmra.mxu0 %v750
    %v1212 = vpop.f32.mrf.mxu0
    %v1213 = vadd.f32 0.0, %v1212
    %v1214 = vpop.f32.mrf.mxu0
    %v1215 = vadd.f32 0.0, %v1214
    %1216 = vmatmul.bf16.gmra.mxu0 %v754
    %v1217 = vpop.f32.mrf.mxu0
    %v1218 = vadd.f32 0.0, %v1217
    %v1219 = vpop.f32.mrf.mxu0
    %v1220 = vadd.f32 0.0, %v1219
    %1221 = vmatmul.bf16.gmra.mxu0 %v758
    %v1222 = vpop.f32.mrf.mxu0
    %v1223 = vadd.f32 0.0, %v1222
    %v1224 = vpop.f32.mrf.mxu0
    %v1225 = vadd.f32 0.0, %v1224
    %1226 = vmatmul.bf16.gmra.mxu0 %v762
    %v1227 = vpop.f32.mrf.mxu0
    %v1228 = vadd.f32 0.0, %v1227
    %v1229 = vpop.f32.mrf.mxu0
    %v1230 = vadd.f32 0.0, %v1229
    %1231 = vmatmul.bf16.gmra.mxu0 %v766
    %v1232 = vpop.f32.mrf.mxu0
    %v1233 = vadd.f32 0.0, %v1232
    %v1234 = vpop.f32.mrf.mxu0
    %v1235 = vadd.f32 0.0, %v1234
    %1236 = vmatmul.bf16.gmra.mxu0 %v770
    %v1237 = vpop.f32.mrf.mxu0
    %v1238 = vadd.f32 0.0, %v1237
    %v1239 = vpop.f32.mrf.mxu0
    %v1240 = vadd.f32 0.0, %v1239
    %1241 = vmatmul.bf16.gmra.mxu0 %v774
    %v1242 = vpop.f32.mrf.mxu0
    %v1243 = vadd.f32 0.0, %v1242
    %v1244 = vpop.f32.mrf.mxu0
    %v1245 = vadd.f32 0.0, %v1244
    %1246 = vmatmul.bf16.gmra.mxu0 %v778
    %v1247 = vpop.f32.mrf.mxu0
    %v1248 = vadd.f32 0.0, %v1247
    %v1249 = vpop.f32.mrf.mxu0
    %v1250 = vadd.f32 0.0, %v1249
    %1251 = vmatmul.bf16.gmra.mxu0 %v782
    %v1252 = vpop.f32.mrf.mxu0
    %v1253 = vadd.f32 0.0, %v1252
    %v1254 = vpop.f32.mrf.mxu0
    %v1255 = vadd.f32 0.0, %v1254
    %1256 = vmatmul.bf16.gmra.mxu0 %v786
    %v1257 = vpop.f32.mrf.mxu0
    %v1258 = vadd.f32 0.0, %v1257
    %v1259 = vpop.f32.mrf.mxu0
    %v1260 = vadd.f32 0.0, %v1259
    %1261 = vmatmul.bf16.gmra.mxu0 %v790
    %v1262 = vpop.f32.mrf.mxu0
    %v1263 = vadd.f32 0.0, %v1262
    %v1264 = vpop.f32.mrf.mxu0
    %v1265 = vadd.f32 0.0, %v1264
    %1266 = vmatmul.bf16.gmra.mxu0 %v794
    %v1267 = vpop.f32.mrf.mxu0
    %v1268 = vadd.f32 0.0, %v1267
    %v1269 = vpop.f32.mrf.mxu0
    %v1270 = vadd.f32 0.0, %v1269
    %1271 = vmatmul.bf16.gmra.mxu0 %v798
    %v1272 = vpop.f32.mrf.mxu0
    %v1273 = vadd.f32 0.0, %v1272
    %v1274 = vpop.f32.mrf.mxu0
    %v1275 = vadd.f32 0.0, %v1274
    %1276 = vmatmul.bf16.gmra.mxu0 %v802
    %v1277 = vpop.f32.mrf.mxu0
    %v1278 = vadd.f32 0.0, %v1277
    %v1279 = vpop.f32.mrf.mxu0
    %v1280 = vadd.f32 0.0, %v1279
    %1281 = vmatmul.bf16.gmra.mxu0 %v806
    %v1282 = vpop.f32.mrf.mxu0
    %v1283 = vadd.f32 0.0, %v1282
    %v1284 = vpop.f32.mrf.mxu0
    %v1285 = vadd.f32 0.0, %v1284
    %1286 = vmatmul.bf16.gmra.mxu0 %v810
    %v1287 = vpop.f32.mrf.mxu0
    %v1288 = vadd.f32 0.0, %v1287
    %v1289 = vpop.f32.mrf.mxu0
    %v1290 = vadd.f32 0.0, %v1289
    %1291 = vmatmul.bf16.gmra.mxu0 %v814
    %v1292 = vpop.f32.mrf.mxu0
    %v1293 = vadd.f32 0.0, %v1292
    %v1294 = vpop.f32.mrf.mxu0
    %v1295 = vadd.f32 0.0, %v1294
    %1296 = vmatmul.bf16.gmra.mxu0 %v818
    %v1297 = vpop.f32.mrf.mxu0
    %v1298 = vadd.f32 0.0, %v1297
    %v1299 = vpop.f32.mrf.mxu0
    %v1300 = vadd.f32 0.0, %v1299
    %1301 = vmatmul.bf16.gmra.mxu0 %v822
    %v1302 = vpop.f32.mrf.mxu0
    %v1303 = vadd.f32 0.0, %v1302
    %v1304 = vpop.f32.mrf.mxu0
    %v1305 = vadd.f32 0.0, %v1304
    %1306 = vmatmul.bf16.gmra.mxu0 %v826
    %v1307 = vpop.f32.mrf.mxu0
    %v1308 = vadd.f32 0.0, %v1307
    %v1309 = vpop.f32.mrf.mxu0
    %v1310 = vadd.f32 0.0, %v1309
    %1311 = vmatmul.bf16.gmra.mxu0 %v830
    %v1312 = vpop.f32.mrf.mxu0
    %v1313 = vadd.f32 0.0, %v1312
    %v1314 = vpop.f32.mrf.mxu0
    %v1315 = vadd.f32 0.0, %v1314
    %1316 = vmatmul.bf16.gmra.mxu0 %v834
    %v1317 = vpop.f32.mrf.mxu0
    %v1318 = vadd.f32 0.0, %v1317
    %v1319 = vpop.f32.mrf.mxu0
    %v1320 = vadd.f32 0.0, %v1319
    %1321 = vmatmul.bf16.gmra.mxu0 %v838
    %v1322 = vpop.f32.mrf.mxu0
    %v1323 = vadd.f32 0.0, %v1322
    %v1324 = vpop.f32.mrf.mxu0
    %v1325 = vadd.f32 0.0, %v1324
    %1326 = vmatmul.bf16.gmra.mxu0 %v842
    %v1327 = vpop.f32.mrf.mxu0
    %v1328 = vadd.f32 0.0, %v1327
    %v1329 = vpop.f32.mrf.mxu0
    %v1330 = vadd.f32 0.0, %v1329
    %1331 = vmatmul.bf16.gmra.mxu0 %v846
    %v1332 = vpop.f32.mrf.mxu0
    %v1333 = vadd.f32 0.0, %v1332
    %v1334 = vpop.f32.mrf.mxu0
    %v1335 = vadd.f32 0.0, %v1334
    %1336 = vmatmul.bf16.gmra.mxu0 %v850
    %v1337 = vpop.f32.mrf.mxu0
    %v1338 = vadd.f32 0.0, %v1337
    %v1339 = vpop.f32.mrf.mxu0
    %v1340 = vadd.f32 0.0, %v1339
    %1341 = vmatmul.bf16.gmra.mxu0 %v854
    %v1342 = vpop.f32.mrf.mxu0
    %v1343 = vadd.f32 0.0, %v1342
    %v1344 = vpop.f32.mrf.mxu0
    %v1345 = vadd.f32 0.0, %v1344
    %1346 = vdwg.mxu0
    %1347 = vmatpush.bf16.msra.mxu0 %v1129
    %1348 = vmatpush.bf16.msra.mxu0 %v1128
    %1349 = vmatpush.bf16.msra.mxu0 %v1127
    %1350 = vmatpush.bf16.msra.mxu0 %v1126
    %1351 = vmatpush.bf16.msra.mxu0 %v1125
    %1352 = vmatpush.bf16.msra.mxu0 %v1124
    %1353 = vmatpush.bf16.msra.mxu0 %v1123
    %1354 = vmatpush.bf16.msra.mxu0 %v1122
    %1355 = vmatmul.bf16.gmra.mxu0 %v731
    %v1356 = vpop.f32.mrf.mxu0
    %v1357 = vadd.f32 %v1188, %v1356
    %v1358 = vpop.f32.mrf.mxu0
    %v1359 = vadd.f32 %v1190, %v1358
    %1360 = vmatmul.bf16.gmra.mxu0 %v735
    %v1361 = vpop.f32.mrf.mxu0
    %v1362 = vadd.f32 %v1193, %v1361
    %v1363 = vpop.f32.mrf.mxu0
    %v1364 = vadd.f32 %v1195, %v1363
    %1365 = vmatmul.bf16.gmra.mxu0 %v739
    %v1366 = vpop.f32.mrf.mxu0
    %v1367 = vadd.f32 %v1198, %v1366
    %v1368 = vpop.f32.mrf.mxu0
    %v1369 = vadd.f32 %v1200, %v1368
    %1370 = vmatmul.bf16.gmra.mxu0 %v743
    %v1371 = vpop.f32.mrf.mxu0
    %v1372 = vadd.f32 %v1203, %v1371
    %v1373 = vpop.f32.mrf.mxu0
    %v1374 = vadd.f32 %v1205, %v1373
    %1375 = vmatmul.bf16.gmra.mxu0 %v747
    %v1376 = vpop.f32.mrf.mxu0
    %v1377 = vadd.f32 %v1208, %v1376
    %v1378 = vpop.f32.mrf.mxu0
    %v1379 = vadd.f32 %v1210, %v1378
    %1380 = vmatmul.bf16.gmra.mxu0 %v751
    %v1381 = vpop.f32.mrf.mxu0
    %v1382 = vadd.f32 %v1213, %v1381
    %v1383 = vpop.f32.mrf.mxu0
    %v1384 = vadd.f32 %v1215, %v1383
    %1385 = vmatmul.bf16.gmra.mxu0 %v755
    %v1386 = vpop.f32.mrf.mxu0
    %v1387 = vadd.f32 %v1218, %v1386
    %v1388 = vpop.f32.mrf.mxu0
    %v1389 = vadd.f32 %v1220, %v1388
    %1390 = vmatmul.bf16.gmra.mxu0 %v759
    %v1391 = vpop.f32.mrf.mxu0
    %v1392 = vadd.f32 %v1223, %v1391
    %v1393 = vpop.f32.mrf.mxu0
    %v1394 = vadd.f32 %v1225, %v1393
    %1395 = vmatmul.bf16.gmra.mxu0 %v763
    %v1396 = vpop.f32.mrf.mxu0
    %v1397 = vadd.f32 %v1228, %v1396
    %v1398 = vpop.f32.mrf.mxu0
    %v1399 = vadd.f32 %v1230, %v1398
    %1400 = vmatmul.bf16.gmra.mxu0 %v767
    %v1401 = vpop.f32.mrf.mxu0
    %v1402 = vadd.f32 %v1233, %v1401
    %v1403 = vpop.f32.mrf.mxu0
    %v1404 = vadd.f32 %v1235, %v1403
    %1405 = vmatmul.bf16.gmra.mxu0 %v771
    %v1406 = vpop.f32.mrf.mxu0
    %v1407 = vadd.f32 %v1238, %v1406
    %v1408 = vpop.f32.mrf.mxu0
    %v1409 = vadd.f32 %v1240, %v1408
    %1410 = vmatmul.bf16.gmra.mxu0 %v775
    %v1411 = vpop.f32.mrf.mxu0
    %v1412 = vadd.f32 %v1243, %v1411
    %v1413 = vpop.f32.mrf.mxu0
    %v1414 = vadd.f32 %v1245, %v1413
    %1415 = vmatmul.bf16.gmra.mxu0 %v779
    %v1416 = vpop.f32.mrf.mxu0
    %v1417 = vadd.f32 %v1248, %v1416
    %v1418 = vpop.f32.mrf.mxu0
    %v1419 = vadd.f32 %v1250, %v1418
    %1420 = vmatmul.bf16.gmra.mxu0 %v783
    %v1421 = vpop.f32.mrf.mxu0
    %v1422 = vadd.f32 %v1253, %v1421
    %v1423 = vpop.f32.mrf.mxu0
    %v1424 = vadd.f32 %v1255, %v1423
    %1425 = vmatmul.bf16.gmra.mxu0 %v787
    %v1426 = vpop.f32.mrf.mxu0
    %v1427 = vadd.f32 %v1258, %v1426
    %v1428 = vpop.f32.mrf.mxu0
    %v1429 = vadd.f32 %v1260, %v1428
    %1430 = vmatmul.bf16.gmra.mxu0 %v791
    %v1431 = vpop.f32.mrf.mxu0
    %v1432 = vadd.f32 %v1263, %v1431
    %v1433 = vpop.f32.mrf.mxu0
    %v1434 = vadd.f32 %v1265, %v1433
    %1435 = vmatmul.bf16.gmra.mxu0 %v795
    %v1436 = vpop.f32.mrf.mxu0
    %v1437 = vadd.f32 %v1268, %v1436
    %v1438 = vpop.f32.mrf.mxu0
    %v1439 = vadd.f32 %v1270, %v1438
    %1440 = vmatmul.bf16.gmra.mxu0 %v799
    %v1441 = vpop.f32.mrf.mxu0
    %v1442 = vadd.f32 %v1273, %v1441
    %v1443 = vpop.f32.mrf.mxu0
    %v1444 = vadd.f32 %v1275, %v1443
    %1445 = vmatmul.bf16.gmra.mxu0 %v803
    %v1446 = vpop.f32.mrf.mxu0
    %v1447 = vadd.f32 %v1278, %v1446
    %v1448 = vpop.f32.mrf.mxu0
    %v1449 = vadd.f32 %v1280, %v1448
    %1450 = vmatmul.bf16.gmra.mxu0 %v807
    %v1451 = vpop.f32.mrf.mxu0
    %v1452 = vadd.f32 %v1283, %v1451
    %v1453 = vpop.f32.mrf.mxu0
    %v1454 = vadd.f32 %v1285, %v1453
    %1455 = vmatmul.bf16.gmra.mxu0 %v811
    %v1456 = vpop.f32.mrf.mxu0
    %v1457 = vadd.f32 %v1288, %v1456
    %v1458 = vpop.f32.mrf.mxu0
    %v1459 = vadd.f32 %v1290, %v1458
    %1460 = vmatmul.bf16.gmra.mxu0 %v815
    %v1461 = vpop.f32.mrf.mxu0
    %v1462 = vadd.f32 %v1293, %v1461
    %v1463 = vpop.f32.mrf.mxu0
    %v1464 = vadd.f32 %v1295, %v1463
    %1465 = vmatmul.bf16.gmra.mxu0 %v819
    %v1466 = vpop.f32.mrf.mxu0
    %v1467 = vadd.f32 %v1298, %v1466
    %v1468 = vpop.f32.mrf.mxu0
    %v1469 = vadd.f32 %v1300, %v1468
    %1470 = vmatmul.bf16.gmra.mxu0 %v823
    %v1471 = vpop.f32.mrf.mxu0
    %v1472 = vadd.f32 %v1303, %v1471
    %v1473 = vpop.f32.mrf.mxu0
    %v1474 = vadd.f32 %v1305, %v1473
    %1475 = vmatmul.bf16.gmra.mxu0 %v827
    %v1476 = vpop.f32.mrf.mxu0
    %v1477 = vadd.f32 %v1308, %v1476
    %v1478 = vpop.f32.mrf.mxu0
    %v1479 = vadd.f32 %v1310, %v1478
    %1480 = vmatmul.bf16.gmra.mxu0 %v831
    %v1481 = vpop.f32.mrf.mxu0
    %v1482 = vadd.f32 %v1313, %v1481
    %v1483 = vpop.f32.mrf.mxu0
    %v1484 = vadd.f32 %v1315, %v1483
    %1485 = vmatmul.bf16.gmra.mxu0 %v835
    %v1486 = vpop.f32.mrf.mxu0
    %v1487 = vadd.f32 %v1318, %v1486
    %v1488 = vpop.f32.mrf.mxu0
    %v1489 = vadd.f32 %v1320, %v1488
    %1490 = vmatmul.bf16.gmra.mxu0 %v839
    %v1491 = vpop.f32.mrf.mxu0
    %v1492 = vadd.f32 %v1323, %v1491
    %v1493 = vpop.f32.mrf.mxu0
    %v1494 = vadd.f32 %v1325, %v1493
    %1495 = vmatmul.bf16.gmra.mxu0 %v843
    %v1496 = vpop.f32.mrf.mxu0
    %v1497 = vadd.f32 %v1328, %v1496
    %v1498 = vpop.f32.mrf.mxu0
    %v1499 = vadd.f32 %v1330, %v1498
    %1500 = vmatmul.bf16.gmra.mxu0 %v847
    %v1501 = vpop.f32.mrf.mxu0
    %v1502 = vadd.f32 %v1333, %v1501
    %v1503 = vpop.f32.mrf.mxu0
    %v1504 = vadd.f32 %v1335, %v1503
    %1505 = vmatmul.bf16.gmra.mxu0 %v851
    %v1506 = vpop.f32.mrf.mxu0
    %v1507 = vadd.f32 %v1338, %v1506
    %v1508 = vpop.f32.mrf.mxu0
    %v1509 = vadd.f32 %v1340, %v1508
    %1510 = vmatmul.bf16.gmra.mxu0 %v855
    %v1511 = vpop.f32.mrf.mxu0
    %v1512 = vadd.f32 %v1343, %v1511
    %v1513 = vpop.f32.mrf.mxu0
    %v1514 = vadd.f32 %v1345, %v1513
    %1515 = vdwg.mxu0
    %1516 = vmatpush.bf16.msra.mxu0 %v1137
    %1517 = vmatpush.bf16.msra.mxu0 %v1136
    %1518 = vmatpush.bf16.msra.mxu0 %v1135
    %1519 = vmatpush.bf16.msra.mxu0 %v1134
    %1520 = vmatpush.bf16.msra.mxu0 %v1133
    %1521 = vmatpush.bf16.msra.mxu0 %v1132
    %1522 = vmatpush.bf16.msra.mxu0 %v1131
    %1523 = vmatpush.bf16.msra.mxu0 %v1130
    %1524 = vmatmul.bf16.gmra.mxu0 %v732
    %v1525 = vpop.f32.mrf.mxu0
    %v1526 = vadd.f32 %v1357, %v1525
    %v1527 = vpop.f32.mrf.mxu0
    %v1528 = vadd.f32 %v1359, %v1527
    %1529 = vmatmul.bf16.gmra.mxu0 %v736
    %v1530 = vpop.f32.mrf.mxu0
    %v1531 = vadd.f32 %v1362, %v1530
    %v1532 = vpop.f32.mrf.mxu0
    %v1533 = vadd.f32 %v1364, %v1532
    %1534 = vmatmul.bf16.gmra.mxu0 %v740
    %v1535 = vpop.f32.mrf.mxu0
    %v1536 = vadd.f32 %v1367, %v1535
    %v1537 = vpop.f32.mrf.mxu0
    %v1538 = vadd.f32 %v1369, %v1537
    %1539 = vmatmul.bf16.gmra.mxu0 %v744
    %v1540 = vpop.f32.mrf.mxu0
    %v1541 = vadd.f32 %v1372, %v1540
    %v1542 = vpop.f32.mrf.mxu0
    %v1543 = vadd.f32 %v1374, %v1542
    %1544 = vmatmul.bf16.gmra.mxu0 %v748
    %v1545 = vpop.f32.mrf.mxu0
    %v1546 = vadd.f32 %v1377, %v1545
    %v1547 = vpop.f32.mrf.mxu0
    %v1548 = vadd.f32 %v1379, %v1547
    %1549 = vmatmul.bf16.gmra.mxu0 %v752
    %v1550 = vpop.f32.mrf.mxu0
    %v1551 = vadd.f32 %v1382, %v1550
    %v1552 = vpop.f32.mrf.mxu0
    %v1553 = vadd.f32 %v1384, %v1552
    %1554 = vmatmul.bf16.gmra.mxu0 %v756
    %v1555 = vpop.f32.mrf.mxu0
    %v1556 = vadd.f32 %v1387, %v1555
    %v1557 = vpop.f32.mrf.mxu0
    %v1558 = vadd.f32 %v1389, %v1557
    %1559 = vmatmul.bf16.gmra.mxu0 %v760
    %v1560 = vpop.f32.mrf.mxu0
    %v1561 = vadd.f32 %v1392, %v1560
    %v1562 = vpop.f32.mrf.mxu0
    %v1563 = vadd.f32 %v1394, %v1562
    %1564 = vmatmul.bf16.gmra.mxu0 %v764
    %v1565 = vpop.f32.mrf.mxu0
    %v1566 = vadd.f32 %v1397, %v1565
    %v1567 = vpop.f32.mrf.mxu0
    %v1568 = vadd.f32 %v1399, %v1567
    %1569 = vmatmul.bf16.gmra.mxu0 %v768
    %v1570 = vpop.f32.mrf.mxu0
    %v1571 = vadd.f32 %v1402, %v1570
    %v1572 = vpop.f32.mrf.mxu0
    %v1573 = vadd.f32 %v1404, %v1572
    %1574 = vmatmul.bf16.gmra.mxu0 %v772
    %v1575 = vpop.f32.mrf.mxu0
    %v1576 = vadd.f32 %v1407, %v1575
    %v1577 = vpop.f32.mrf.mxu0
    %v1578 = vadd.f32 %v1409, %v1577
    %1579 = vmatmul.bf16.gmra.mxu0 %v776
    %v1580 = vpop.f32.mrf.mxu0
    %v1581 = vadd.f32 %v1412, %v1580
    %v1582 = vpop.f32.mrf.mxu0
    %v1583 = vadd.f32 %v1414, %v1582
    %1584 = vmatmul.bf16.gmra.mxu0 %v780
    %v1585 = vpop.f32.mrf.mxu0
    %v1586 = vadd.f32 %v1417, %v1585
    %v1587 = vpop.f32.mrf.mxu0
    %v1588 = vadd.f32 %v1419, %v1587
    %1589 = vmatmul.bf16.gmra.mxu0 %v784
    %v1590 = vpop.f32.mrf.mxu0
    %v1591 = vadd.f32 %v1422, %v1590
    %v1592 = vpop.f32.mrf.mxu0
    %v1593 = vadd.f32 %v1424, %v1592
    %1594 = vmatmul.bf16.gmra.mxu0 %v788
    %v1595 = vpop.f32.mrf.mxu0
    %v1596 = vadd.f32 %v1427, %v1595
    %v1597 = vpop.f32.mrf.mxu0
    %v1598 = vadd.f32 %v1429, %v1597
    %1599 = vmatmul.bf16.gmra.mxu0 %v792
    %v1600 = vpop.f32.mrf.mxu0
    %v1601 = vadd.f32 %v1432, %v1600
    %v1602 = vpop.f32.mrf.mxu0
    %v1603 = vadd.f32 %v1434, %v1602
    %1604 = vmatmul.bf16.gmra.mxu0 %v796
    %v1605 = vpop.f32.mrf.mxu0
    %v1606 = vadd.f32 %v1437, %v1605
    %v1607 = vpop.f32.mrf.mxu0
    %v1608 = vadd.f32 %v1439, %v1607
    %1609 = vmatmul.bf16.gmra.mxu0 %v800
    %v1610 = vpop.f32.mrf.mxu0
    %v1611 = vadd.f32 %v1442, %v1610
    %v1612 = vpop.f32.mrf.mxu0
    %v1613 = vadd.f32 %v1444, %v1612
    %1614 = vmatmul.bf16.gmra.mxu0 %v804
    %v1615 = vpop.f32.mrf.mxu0
    %v1616 = vadd.f32 %v1447, %v1615
    %v1617 = vpop.f32.mrf.mxu0
    %v1618 = vadd.f32 %v1449, %v1617
    %1619 = vmatmul.bf16.gmra.mxu0 %v808
    %v1620 = vpop.f32.mrf.mxu0
    %v1621 = vadd.f32 %v1452, %v1620
    %v1622 = vpop.f32.mrf.mxu0
    %v1623 = vadd.f32 %v1454, %v1622
    %1624 = vmatmul.bf16.gmra.mxu0 %v812
    %v1625 = vpop.f32.mrf.mxu0
    %v1626 = vadd.f32 %v1457, %v1625
    %v1627 = vpop.f32.mrf.mxu0
    %v1628 = vadd.f32 %v1459, %v1627
    %1629 = vmatmul.bf16.gmra.mxu0 %v816
    %v1630 = vpop.f32.mrf.mxu0
    %v1631 = vadd.f32 %v1462, %v1630
    %v1632 = vpop.f32.mrf.mxu0
    %v1633 = vadd.f32 %v1464, %v1632
    %1634 = vmatmul.bf16.gmra.mxu0 %v820
    %v1635 = vpop.f32.mrf.mxu0
    %v1636 = vadd.f32 %v1467, %v1635
    %v1637 = vpop.f32.mrf.mxu0
    %v1638 = vadd.f32 %v1469, %v1637
    %1639 = vmatmul.bf16.gmra.mxu0 %v824
    %v1640 = vpop.f32.mrf.mxu0
    %v1641 = vadd.f32 %v1472, %v1640
    %v1642 = vpop.f32.mrf.mxu0
    %v1643 = vadd.f32 %v1474, %v1642
    %1644 = vmatmul.bf16.gmra.mxu0 %v828
    %v1645 = vpop.f32.mrf.mxu0
    %v1646 = vadd.f32 %v1477, %v1645
    %v1647 = vpop.f32.mrf.mxu0
    %v1648 = vadd.f32 %v1479, %v1647
    %1649 = vmatmul.bf16.gmra.mxu0 %v832
    %v1650 = vpop.f32.mrf.mxu0
    %v1651 = vadd.f32 %v1482, %v1650
    %v1652 = vpop.f32.mrf.mxu0
    %v1653 = vadd.f32 %v1484, %v1652
    %1654 = vmatmul.bf16.gmra.mxu0 %v836
    %v1655 = vpop.f32.mrf.mxu0
    %v1656 = vadd.f32 %v1487, %v1655
    %v1657 = vpop.f32.mrf.mxu0
    %v1658 = vadd.f32 %v1489, %v1657
    %1659 = vmatmul.bf16.gmra.mxu0 %v840
    %v1660 = vpop.f32.mrf.mxu0
    %v1661 = vadd.f32 %v1492, %v1660
    %v1662 = vpop.f32.mrf.mxu0
    %v1663 = vadd.f32 %v1494, %v1662
    %1664 = vmatmul.bf16.gmra.mxu0 %v844
    %v1665 = vpop.f32.mrf.mxu0
    %v1666 = vadd.f32 %v1497, %v1665
    %v1667 = vpop.f32.mrf.mxu0
    %v1668 = vadd.f32 %v1499, %v1667
    %1669 = vmatmul.bf16.gmra.mxu0 %v848
    %v1670 = vpop.f32.mrf.mxu0
    %v1671 = vadd.f32 %v1502, %v1670
    %v1672 = vpop.f32.mrf.mxu0
    %v1673 = vadd.f32 %v1504, %v1672
    %1674 = vmatmul.bf16.gmra.mxu0 %v852
    %v1675 = vpop.f32.mrf.mxu0
    %v1676 = vadd.f32 %v1507, %v1675
    %v1677 = vpop.f32.mrf.mxu0
    %v1678 = vadd.f32 %v1509, %v1677
    %1679 = vmatmul.bf16.gmra.mxu0 %v856
    %v1680 = vpop.f32.mrf.mxu0
    %v1681 = vadd.f32 %v1512, %v1680
    %v1682 = vpop.f32.mrf.mxu0
    %v1683 = vadd.f32 %v1514, %v1682
    %1684 = vdwg.mxu0
    %1685 = vmatpush.bf16.msra.mxu0 %v1145
    %1686 = vmatpush.bf16.msra.mxu0 %v1144
    %1687 = vmatpush.bf16.msra.mxu0 %v1143
    %1688 = vmatpush.bf16.msra.mxu0 %v1142
    %1689 = vmatpush.bf16.msra.mxu0 %v1141
    %1690 = vmatpush.bf16.msra.mxu0 %v1140
    %1691 = vmatpush.bf16.msra.mxu0 %v1139
    %1692 = vmatpush.bf16.msra.mxu0 %v1138
    %1693 = vmatmul.bf16.gmra.mxu0 %v733
    %v1694 = vpop.f32.mrf.mxu0
    %v1695 = vadd.f32 %v1526, %v1694
    %v1696 = vpop.f32.mrf.mxu0
    %v1697 = vadd.f32 %v1528, %v1696
    %1698 = vmatmul.bf16.gmra.mxu0 %v737
    %v1699 = vpop.f32.mrf.mxu0
    %v1700 = vadd.f32 %v1531, %v1699
    %v1701 = vpop.f32.mrf.mxu0
    %v1702 = vadd.f32 %v1533, %v1701
    %1703 = vmatmul.bf16.gmra.mxu0 %v741
    %v1704 = vpop.f32.mrf.mxu0
    %v1705 = vadd.f32 %v1536, %v1704
    %v1706 = vpop.f32.mrf.mxu0
    %v1707 = vadd.f32 %v1538, %v1706
    %1708 = vmatmul.bf16.gmra.mxu0 %v745
    %v1709 = vpop.f32.mrf.mxu0
    %v1710 = vadd.f32 %v1541, %v1709
    %v1711 = vpop.f32.mrf.mxu0
    %v1712 = vadd.f32 %v1543, %v1711
    %1713 = vmatmul.bf16.gmra.mxu0 %v749
    %v1714 = vpop.f32.mrf.mxu0
    %v1715 = vadd.f32 %v1546, %v1714
    %v1716 = vpop.f32.mrf.mxu0
    %v1717 = vadd.f32 %v1548, %v1716
    %1718 = vmatmul.bf16.gmra.mxu0 %v753
    %v1719 = vpop.f32.mrf.mxu0
    %v1720 = vadd.f32 %v1551, %v1719
    %v1721 = vpop.f32.mrf.mxu0
    %v1722 = vadd.f32 %v1553, %v1721
    %1723 = vmatmul.bf16.gmra.mxu0 %v757
    %v1724 = vpop.f32.mrf.mxu0
    %v1725 = vadd.f32 %v1556, %v1724
    %v1726 = vpop.f32.mrf.mxu0
    %v1727 = vadd.f32 %v1558, %v1726
    %1728 = vmatmul.bf16.gmra.mxu0 %v761
    %v1729 = vpop.f32.mrf.mxu0
    %v1730 = vadd.f32 %v1561, %v1729
    %v1731 = vpop.f32.mrf.mxu0
    %v1732 = vadd.f32 %v1563, %v1731
    %1733 = vmatmul.bf16.gmra.mxu0 %v765
    %v1734 = vpop.f32.mrf.mxu0
    %v1735 = vadd.f32 %v1566, %v1734
    %v1736 = vpop.f32.mrf.mxu0
    %v1737 = vadd.f32 %v1568, %v1736
    %1738 = vmatmul.bf16.gmra.mxu0 %v769
    %v1739 = vpop.f32.mrf.mxu0
    %v1740 = vadd.f32 %v1571, %v1739
    %v1741 = vpop.f32.mrf.mxu0
    %v1742 = vadd.f32 %v1573, %v1741
    %1743 = vmatmul.bf16.gmra.mxu0 %v773
    %v1744 = vpop.f32.mrf.mxu0
    %v1745 = vadd.f32 %v1576, %v1744
    %v1746 = vpop.f32.mrf.mxu0
    %v1747 = vadd.f32 %v1578, %v1746
    %1748 = vmatmul.bf16.gmra.mxu0 %v777
    %v1749 = vpop.f32.mrf.mxu0
    %v1750 = vadd.f32 %v1581, %v1749
    %v1751 = vpop.f32.mrf.mxu0
    %v1752 = vadd.f32 %v1583, %v1751
    %1753 = vmatmul.bf16.gmra.mxu0 %v781
    %v1754 = vpop.f32.mrf.mxu0
    %v1755 = vadd.f32 %v1586, %v1754
    %v1756 = vpop.f32.mrf.mxu0
    %v1757 = vadd.f32 %v1588, %v1756
    %1758 = vmatmul.bf16.gmra.mxu0 %v785
    %v1759 = vpop.f32.mrf.mxu0
    %v1760 = vadd.f32 %v1591, %v1759
    %v1761 = vpop.f32.mrf.mxu0
    %v1762 = vadd.f32 %v1593, %v1761
    %1763 = vmatmul.bf16.gmra.mxu0 %v789
    %v1764 = vpop.f32.mrf.mxu0
    %v1765 = vadd.f32 %v1596, %v1764
    %v1766 = vpop.f32.mrf.mxu0
    %v1767 = vadd.f32 %v1598, %v1766
    %1768 = vmatmul.bf16.gmra.mxu0 %v793
    %v1769 = vpop.f32.mrf.mxu0
    %v1770 = vadd.f32 %v1601, %v1769
    %v1771 = vpop.f32.mrf.mxu0
    %v1772 = vadd.f32 %v1603, %v1771
    %1773 = vmatmul.bf16.gmra.mxu0 %v797
    %v1774 = vpop.f32.mrf.mxu0
    %v1775 = vadd.f32 %v1606, %v1774
    %v1776 = vpop.f32.mrf.mxu0
    %v1777 = vadd.f32 %v1608, %v1776
    %1778 = vmatmul.bf16.gmra.mxu0 %v801
    %v1779 = vpop.f32.mrf.mxu0
    %v1780 = vadd.f32 %v1611, %v1779
    %v1781 = vpop.f32.mrf.mxu0
    %v1782 = vadd.f32 %v1613, %v1781
    %1783 = vmatmul.bf16.gmra.mxu0 %v805
    %v1784 = vpop.f32.mrf.mxu0
    %v1785 = vadd.f32 %v1616, %v1784
    %v1786 = vpop.f32.mrf.mxu0
    %v1787 = vadd.f32 %v1618, %v1786
    %1788 = vmatmul.bf16.gmra.mxu0 %v809
    %v1789 = vpop.f32.mrf.mxu0
    %v1790 = vadd.f32 %v1621, %v1789
    %v1791 = vpop.f32.mrf.mxu0
    %v1792 = vadd.f32 %v1623, %v1791
    %1793 = vmatmul.bf16.gmra.mxu0 %v813
    %v1794 = vpop.f32.mrf.mxu0
    %v1795 = vadd.f32 %v1626, %v1794
    %v1796 = vpop.f32.mrf.mxu0
    %v1797 = vadd.f32 %v1628, %v1796
    %1798 = vmatmul.bf16.gmra.mxu0 %v817
    %v1799 = vpop.f32.mrf.mxu0
    %v1800 = vadd.f32 %v1631, %v1799
    %v1801 = vpop.f32.mrf.mxu0
    %v1802 = vadd.f32 %v1633, %v1801
    %1803 = vmatmul.bf16.gmra.mxu0 %v821
    %v1804 = vpop.f32.mrf.mxu0
    %v1805 = vadd.f32 %v1636, %v1804
    %v1806 = vpop.f32.mrf.mxu0
    %v1807 = vadd.f32 %v1638, %v1806
    %1808 = vmatmul.bf16.gmra.mxu0 %v825
    %v1809 = vpop.f32.mrf.mxu0
    %v1810 = vadd.f32 %v1641, %v1809
    %v1811 = vpop.f32.mrf.mxu0
    %v1812 = vadd.f32 %v1643, %v1811
    %1813 = vmatmul.bf16.gmra.mxu0 %v829
    %v1814 = vpop.f32.mrf.mxu0
    %v1815 = vadd.f32 %v1646, %v1814
    %v1816 = vpop.f32.mrf.mxu0
    %v1817 = vadd.f32 %v1648, %v1816
    %1818 = vmatmul.bf16.gmra.mxu0 %v833
    %v1819 = vpop.f32.mrf.mxu0
    %v1820 = vadd.f32 %v1651, %v1819
    %v1821 = vpop.f32.mrf.mxu0
    %v1822 = vadd.f32 %v1653, %v1821
    %1823 = vmatmul.bf16.gmra.mxu0 %v837
    %v1824 = vpop.f32.mrf.mxu0
    %v1825 = vadd.f32 %v1656, %v1824
    %v1826 = vpop.f32.mrf.mxu0
    %v1827 = vadd.f32 %v1658, %v1826
    %1828 = vmatmul.bf16.gmra.mxu0 %v841
    %v1829 = vpop.f32.mrf.mxu0
    %v1830 = vadd.f32 %v1661, %v1829
    %v1831 = vpop.f32.mrf.mxu0
    %v1832 = vadd.f32 %v1663, %v1831
    %1833 = vmatmul.bf16.gmra.mxu0 %v845
    %v1834 = vpop.f32.mrf.mxu0
    %v1835 = vadd.f32 %v1666, %v1834
    %v1836 = vpop.f32.mrf.mxu0
    %v1837 = vadd.f32 %v1668, %v1836
    %1838 = vmatmul.bf16.gmra.mxu0 %v849
    %v1839 = vpop.f32.mrf.mxu0
    %v1840 = vadd.f32 %v1671, %v1839
    %v1841 = vpop.f32.mrf.mxu0
    %v1842 = vadd.f32 %v1673, %v1841
    %1843 = vmatmul.bf16.gmra.mxu0 %v853
    %v1844 = vpop.f32.mrf.mxu0
    %v1845 = vadd.f32 %v1676, %v1844
    %v1846 = vpop.f32.mrf.mxu0
    %v1847 = vadd.f32 %v1678, %v1846
    %1848 = vmatmul.bf16.gmra.mxu0 %v857
    %v1849 = vpop.f32.mrf.mxu0
    %v1850 = vadd.f32 %v1681, %v1849
    %v1851 = vpop.f32.mrf.mxu0
    %v1852 = vadd.f32 %v1683, %v1851
    %1853 = vdwg.mxu0
    %v1854 = vld [vmem:[#allocation8] sm:$0x1]
    %v1856 = vperm.slane %v1854, 0
    %v1858 = vmul.f32 %v1695, %v1856
    %v1859 = vmul.f32 %v1697, %v1856
    %v1860 = vmul.f32 %v1700, %v1856
    %v1861 = vmul.f32 %v1702, %v1856
    %v1862 = vmul.f32 %v1705, %v1856
    %v1863 = vmul.f32 %v1707, %v1856
    %v1864 = vmul.f32 %v1710, %v1856
    %v1865 = vmul.f32 %v1712, %v1856
    %v1866 = vmul.f32 %v1715, %v1856
    %v1867 = vmul.f32 %v1717, %v1856
    %v1868 = vmul.f32 %v1720, %v1856
    %v1869 = vmul.f32 %v1722, %v1856
    %v1870 = vmul.f32 %v1725, %v1856
    %v1871 = vmul.f32 %v1727, %v1856
    %v1872 = vmul.f32 %v1730, %v1856
    %v1873 = vmul.f32 %v1732, %v1856
    %v1874 = vmul.f32 %v1735, %v1856
    %v1875 = vmul.f32 %v1737, %v1856
    %v1876 = vmul.f32 %v1740, %v1856
    %v1877 = vmul.f32 %v1742, %v1856
    %v1878 = vmul.f32 %v1745, %v1856
    %v1879 = vmul.f32 %v1747, %v1856
    %v1880 = vmul.f32 %v1750, %v1856
    %v1881 = vmul.f32 %v1752, %v1856
    %v1882 = vmul.f32 %v1755, %v1856
    %v1883 = vmul.f32 %v1757, %v1856
    %v1884 = vmul.f32 %v1760, %v1856
    %v1885 = vmul.f32 %v1762, %v1856
    %v1886 = vmul.f32 %v1765, %v1856
    %v1887 = vmul.f32 %v1767, %v1856
    %v1888 = vmul.f32 %v1770, %v1856
    %v1889 = vmul.f32 %v1772, %v1856
    %v1890 = vmul.f32 %v1775, %v1856
    %v1891 = vmul.f32 %v1777, %v1856
    %v1892 = vmul.f32 %v1780, %v1856
    %v1893 = vmul.f32 %v1782, %v1856
    %v1894 = vmul.f32 %v1785, %v1856
    %v1895 = vmul.f32 %v1787, %v1856
    %v1896 = vmul.f32 %v1790, %v1856
    %v1897 = vmul.f32 %v1792, %v1856
    %v1898 = vmul.f32 %v1795, %v1856
    %v1899 = vmul.f32 %v1797, %v1856
    %v1900 = vmul.f32 %v1800, %v1856
    %v1901 = vmul.f32 %v1802, %v1856
    %v1902 = vmul.f32 %v1805, %v1856
    %v1903 = vmul.f32 %v1807, %v1856
    %v1904 = vmul.f32 %v1810, %v1856
    %v1905 = vmul.f32 %v1812, %v1856
    %v1906 = vmul.f32 %v1815, %v1856
    %v1907 = vmul.f32 %v1817, %v1856
    %v1908 = vmul.f32 %v1820, %v1856
    %v1909 = vmul.f32 %v1822, %v1856
    %v1910 = vmul.f32 %v1825, %v1856
    %v1911 = vmul.f32 %v1827, %v1856
    %v1912 = vmul.f32 %v1830, %v1856
    %v1913 = vmul.f32 %v1832, %v1856
    %v1914 = vmul.f32 %v1835, %v1856
    %v1915 = vmul.f32 %v1837, %v1856
    %v1916 = vmul.f32 %v1840, %v1856
    %v1917 = vmul.f32 %v1842, %v1856
    %v1918 = vmul.f32 %v1845, %v1856
    %v1919 = vmul.f32 %v1847, %v1856
    %v1920 = vmul.f32 %v1850, %v1856
    %v1921 = vmul.f32 %v1852, %v1856
    %v1922 = vld [vmem:[#allocation9] sm:$0x1]
    %v1924 = vperm.slane %v1922, 0
    %v1926 = vadd.f32 %v1858, %v1924
    %v1927 = vadd.f32 %v1859, %v1924
    %v1928 = vadd.f32 %v1860, %v1924
    %v1929 = vadd.f32 %v1861, %v1924
    %v1930 = vadd.f32 %v1862, %v1924
    %v1931 = vadd.f32 %v1863, %v1924
    %v1932 = vadd.f32 %v1864, %v1924
    %v1933 = vadd.f32 %v1865, %v1924
    %v1934 = vadd.f32 %v1866, %v1924
    %v1935 = vadd.f32 %v1867, %v1924
    %v1936 = vadd.f32 %v1868, %v1924
    %v1937 = vadd.f32 %v1869, %v1924
    %v1938 = vadd.f32 %v1870, %v1924
    %v1939 = vadd.f32 %v1871, %v1924
    %v1940 = vadd.f32 %v1872, %v1924
    %v1941 = vadd.f32 %v1873, %v1924
    %v1942 = vadd.f32 %v1874, %v1924
    %v1943 = vadd.f32 %v1875, %v1924
    %v1944 = vadd.f32 %v1876, %v1924
    %v1945 = vadd.f32 %v1877, %v1924
    %v1946 = vadd.f32 %v1878, %v1924
    %v1947 = vadd.f32 %v1879, %v1924
    %v1948 = vadd.f32 %v1880, %v1924
    %v1949 = vadd.f32 %v1881, %v1924
    %v1950 = vadd.f32 %v1882, %v1924
    %v1951 = vadd.f32 %v1883, %v1924
    %v1952 = vadd.f32 %v1884, %v1924
    %v1953 = vadd.f32 %v1885, %v1924
    %v1954 = vadd.f32 %v1886, %v1924
    %v1955 = vadd.f32 %v1887, %v1924
    %v1956 = vadd.f32 %v1888, %v1924
    %v1957 = vadd.f32 %v1889, %v1924
    %v1958 = vadd.f32 %v1890, %v1924
    %v1959 = vadd.f32 %v1891, %v1924
    %v1960 = vadd.f32 %v1892, %v1924
    %v1961 = vadd.f32 %v1893, %v1924
    %v1962 = vadd.f32 %v1894, %v1924
    %v1963 = vadd.f32 %v1895, %v1924
    %v1964 = vadd.f32 %v1896, %v1924
    %v1965 = vadd.f32 %v1897, %v1924
    %v1966 = vadd.f32 %v1898, %v1924
    %v1967 = vadd.f32 %v1899, %v1924
    %v1968 = vadd.f32 %v1900, %v1924
    %v1969 = vadd.f32 %v1901, %v1924
    %v1970 = vadd.f32 %v1902, %v1924
    %v1971 = vadd.f32 %v1903, %v1924
    %v1972 = vadd.f32 %v1904, %v1924
    %v1973 = vadd.f32 %v1905, %v1924
    %v1974 = vadd.f32 %v1906, %v1924
    %v1975 = vadd.f32 %v1907, %v1924
    %v1976 = vadd.f32 %v1908, %v1924
    %v1977 = vadd.f32 %v1909, %v1924
    %v1978 = vadd.f32 %v1910, %v1924
    %v1979 = vadd.f32 %v1911, %v1924
    %v1980 = vadd.f32 %v1912, %v1924
    %v1981 = vadd.f32 %v1913, %v1924
    %v1982 = vadd.f32 %v1914, %v1924
    %v1983 = vadd.f32 %v1915, %v1924
    %v1984 = vadd.f32 %v1916, %v1924
    %v1985 = vadd.f32 %v1917, %v1924
    %v1986 = vadd.f32 %v1918, %v1924
    %v1987 = vadd.f32 %v1919, %v1924
    %v1988 = vadd.f32 %v1920, %v1924
    %v1989 = vadd.f32 %v1921, %v1924
    %v1990 = vmax.f32 %v1926, 0.0
    %v1991 = vmax.f32 %v1927, 0.0
    %v1992 = vmax.f32 %v1928, 0.0
    %v1993 = vmax.f32 %v1929, 0.0
    %v1994 = vmax.f32 %v1930, 0.0
    %v1995 = vmax.f32 %v1931, 0.0
    %v1996 = vmax.f32 %v1932, 0.0
    %v1997 = vmax.f32 %v1933, 0.0
    %v1998 = vmax.f32 %v1934, 0.0
    %v1999 = vmax.f32 %v1935, 0.0
    %v2000 = vmax.f32 %v1936, 0.0
    %v2001 = vmax.f32 %v1937, 0.0
    %v2002 = vmax.f32 %v1938, 0.0
    %v2003 = vmax.f32 %v1939, 0.0
    %v2004 = vmax.f32 %v1940, 0.0
    %v2005 = vmax.f32 %v1941, 0.0
    %v2006 = vmax.f32 %v1942, 0.0
    %v2007 = vmax.f32 %v1943, 0.0
    %v2008 = vmax.f32 %v1944, 0.0
    %v2009 = vmax.f32 %v1945, 0.0
    %v2010 = vmax.f32 %v1946, 0.0
    %v2011 = vmax.f32 %v1947, 0.0
    %v2012 = vmax.f32 %v1948, 0.0
    %v2013 = vmax.f32 %v1949, 0.0
    %v2014 = vmax.f32 %v1950, 0.0
    %v2015 = vmax.f32 %v1951, 0.0
    %v2016 = vmax.f32 %v1952, 0.0
    %v2017 = vmax.f32 %v1953, 0.0
    %v2018 = vmax.f32 %v1954, 0.0
    %v2019 = vmax.f32 %v1955, 0.0
    %v2020 = vmax.f32 %v1956, 0.0
    %v2021 = vmax.f32 %v1957, 0.0
    %v2022 = vmax.f32 %v1958, 0.0
    %v2023 = vmax.f32 %v1959, 0.0
    %v2024 = vmax.f32 %v1960, 0.0
    %v2025 = vmax.f32 %v1961, 0.0
    %v2026 = vmax.f32 %v1962, 0.0
    %v2027 = vmax.f32 %v1963, 0.0
    %v2028 = vmax.f32 %v1964, 0.0
    %v2029 = vmax.f32 %v1965, 0.0
    %v2030 = vmax.f32 %v1966, 0.0
    %v2031 = vmax.f32 %v1967, 0.0
    %v2032 = vmax.f32 %v1968, 0.0
    %v2033 = vmax.f32 %v1969, 0.0
    %v2034 = vmax.f32 %v1970, 0.0
    %v2035 = vmax.f32 %v1971, 0.0
    %v2036 = vmax.f32 %v1972, 0.0
    %v2037 = vmax.f32 %v1973, 0.0
    %v2038 = vmax.f32 %v1974, 0.0
    %v2039 = vmax.f32 %v1975, 0.0
    %v2040 = vmax.f32 %v1976, 0.0
    %v2041 = vmax.f32 %v1977, 0.0
    %v2042 = vmax.f32 %v1978, 0.0
    %v2043 = vmax.f32 %v1979, 0.0
    %v2044 = vmax.f32 %v1980, 0.0
    %v2045 = vmax.f32 %v1981, 0.0
    %v2046 = vmax.f32 %v1982, 0.0
    %v2047 = vmax.f32 %v1983, 0.0
    %v2048 = vmax.f32 %v1984, 0.0
    %v2049 = vmax.f32 %v1985, 0.0
    %v2050 = vmax.f32 %v1986, 0.0
    %v2051 = vmax.f32 %v1987, 0.0
    %v2052 = vmax.f32 %v1988, 0.0
    %v2053 = vmax.f32 %v1989, 0.0
    %2054 = vst [vmem:[#allocation2] sm:$0xf] 0
    %2055 = vst [vmem:[#allocation2 + $0x4] sm:$0xf] 0
    %2056 = vst [vmem:[#allocation2 + $0x8] sm:$0x1] 0
    %2057 = vst [vmem:[#allocation2 + $0xd8] sm:$0xf] 0
    %2058 = vst [vmem:[#allocation2 + $0xdc] sm:$0xf] 0
    %2059 = vst [vmem:[#allocation2 + $0xe0] sm:$0x1] 0
    %s2060 = scalar_lea.vmem [#allocation2], 204
    %2061 = vst [vmem:[%s2060] sm:$0xf] 0
    %2062 = vst [vmem:[%s2060 + $0x4] sm:$0xf] 0
    %2063 = vst [vmem:[%s2060 + $0x8] sm:$0x1] 0
    %2064 = vst [vmem:[%s2060 + $0xd8] sm:$0xf] 0
    %2065 = vst [vmem:[%s2060 + $0xdc] sm:$0xf] 0
    %2066 = vst [vmem:[%s2060 + $0xe0] sm:$0x1] 0
    %s2067 = scalar_lea.vmem [#allocation2], 12
    %vm2068 = vcmask 1040384
    %vm2069 = vsmask.f32 256
    %vm2070 = vmand %vm2068, %vm2069
    %v2071 = vld [vmem:[%s2067] sm:$0x1]
    %v2072 = vsel %vm2070, 0, %v2071
    %2073 = vst [vmem:[%s2067] sm:$0x1] %v2072
    %v2074 = vld [vmem:[%s2067 + $0xc] sm:$0x1]
    %v2075 = vsel %vm2070, 0, %v2074
    %2076 = vst [vmem:[%s2067 + $0xc] sm:$0x1] %v2075
    %v2077 = vld [vmem:[%s2067 + $0x18] sm:$0x1]
    %v2078 = vsel %vm2070, 0, %v2077
    %2079 = vst [vmem:[%s2067 + $0x18] sm:$0x1] %v2078
    %v2080 = vld [vmem:[%s2067 + $0x24] sm:$0x1]
    %v2081 = vsel %vm2070, 0, %v2080
    %2082 = vst [vmem:[%s2067 + $0x24] sm:$0x1] %v2081
    %v2083 = vld [vmem:[%s2067 + $0x30] sm:$0x1]
    %v2084 = vsel %vm2070, 0, %v2083
    %2085 = vst [vmem:[%s2067 + $0x30] sm:$0x1] %v2084
    %v2086 = vld [vmem:[%s2067 + $0x3c] sm:$0x1]
    %v2087 = vsel %vm2070, 0, %v2086
    %2088 = vst [vmem:[%s2067 + $0x3c] sm:$0x1] %v2087
    %v2089 = vld [vmem:[%s2067 + $0x48] sm:$0x1]
    %v2090 = vsel %vm2070, 0, %v2089
    %2091 = vst [vmem:[%s2067 + $0x48] sm:$0x1] %v2090
    %v2092 = vld [vmem:[%s2067 + $0x54] sm:$0x1]
    %v2093 = vsel %vm2070, 0, %v2092
    %2094 = vst [vmem:[%s2067 + $0x54] sm:$0x1] %v2093
    %v2095 = vld [vmem:[%s2067 + $0x60] sm:$0x1]
    %v2096 = vsel %vm2070, 0, %v2095
    %2097 = vst [vmem:[%s2067 + $0x60] sm:$0x1] %v2096
    %v2098 = vld [vmem:[%s2067 + $0x6c] sm:$0x1]
    %v2099 = vsel %vm2070, 0, %v2098
    %2100 = vst [vmem:[%s2067 + $0x6c] sm:$0x1] %v2099
    %v2101 = vld [vmem:[%s2067 + $0x78] sm:$0x1]
    %v2102 = vsel %vm2070, 0, %v2101
    %2103 = vst [vmem:[%s2067 + $0x78] sm:$0x1] %v2102
    %v2104 = vld [vmem:[%s2067 + $0x84] sm:$0x1]
    %v2105 = vsel %vm2070, 0, %v2104
    %2106 = vst [vmem:[%s2067 + $0x84] sm:$0x1] %v2105
    %v2107 = vld [vmem:[%s2067 + $0x90] sm:$0x1]
    %v2108 = vsel %vm2070, 0, %v2107
    %2109 = vst [vmem:[%s2067 + $0x90] sm:$0x1] %v2108
    %v2110 = vld [vmem:[%s2067 + $0x9c] sm:$0x1]
    %v2111 = vsel %vm2070, 0, %v2110
    %2112 = vst [vmem:[%s2067 + $0x9c] sm:$0x1] %v2111
    %v2113 = vld [vmem:[%s2067 + $0xa8] sm:$0x1]
    %v2114 = vsel %vm2070, 0, %v2113
    %2115 = vst [vmem:[%s2067 + $0xa8] sm:$0x1] %v2114
    %v2116 = vld [vmem:[%s2067 + $0xb4] sm:$0x1]
    %v2117 = vsel %vm2070, 0, %v2116
    %2118 = vst [vmem:[%s2067 + $0xb4] sm:$0x1] %v2117
    %v2119 = vld [vmem:[%s2067 + $0xd8] sm:$0x1]
    %v2120 = vsel %vm2070, 0, %v2119
    %2121 = vst [vmem:[%s2067 + $0xd8] sm:$0x1] %v2120
    %v2122 = vld [vmem:[%s2067 + $0xe4] sm:$0x1]
    %v2123 = vsel %vm2070, 0, %v2122
    %2124 = vst [vmem:[%s2067 + $0xe4] sm:$0x1] %v2123
    %v2125 = vld [vmem:[%s2067 + $0xf0] sm:$0x1]
    %v2126 = vsel %vm2070, 0, %v2125
    %2127 = vst [vmem:[%s2067 + $0xf0] sm:$0x1] %v2126
    %v2128 = vld [vmem:[%s2067 + $0xfc] sm:$0x1]
    %v2129 = vsel %vm2070, 0, %v2128
    %2130 = vst [vmem:[%s2067 + $0xfc] sm:$0x1] %v2129
    %v2131 = vld [vmem:[%s2067 + $0x108] sm:$0x1]
    %v2132 = vsel %vm2070, 0, %v2131
    %2133 = vst [vmem:[%s2067 + $0x108] sm:$0x1] %v2132
    %v2134 = vld [vmem:[%s2067 + $0x114] sm:$0x1]
    %v2135 = vsel %vm2070, 0, %v2134
    %2136 = vst [vmem:[%s2067 + $0x114] sm:$0x1] %v2135
    %v2137 = vld [vmem:[%s2067 + $0x120] sm:$0x1]
    %v2138 = vsel %vm2070, 0, %v2137
    %2139 = vst [vmem:[%s2067 + $0x120] sm:$0x1] %v2138
    %v2140 = vld [vmem:[%s2067 + $0x12c] sm:$0x1]
    %v2141 = vsel %vm2070, 0, %v2140
    %2142 = vst [vmem:[%s2067 + $0x12c] sm:$0x1] %v2141
    %v2143 = vld [vmem:[%s2067 + $0x138] sm:$0x1]
    %v2144 = vsel %vm2070, 0, %v2143
    %2145 = vst [vmem:[%s2067 + $0x138] sm:$0x1] %v2144
    %v2146 = vld [vmem:[%s2067 + $0x144] sm:$0x1]
    %v2147 = vsel %vm2070, 0, %v2146
    %2148 = vst [vmem:[%s2067 + $0x144] sm:$0x1] %v2147
    %v2149 = vld [vmem:[%s2067 + $0x150] sm:$0x1]
    %v2150 = vsel %vm2070, 0, %v2149
    %2151 = vst [vmem:[%s2067 + $0x150] sm:$0x1] %v2150
    %v2152 = vld [vmem:[%s2067 + $0x15c] sm:$0x1]
    %v2153 = vsel %vm2070, 0, %v2152
    %2154 = vst [vmem:[%s2067 + $0x15c] sm:$0x1] %v2153
    %v2155 = vld [vmem:[%s2067 + $0x168] sm:$0x1]
    %v2156 = vsel %vm2070, 0, %v2155
    %2157 = vst [vmem:[%s2067 + $0x168] sm:$0x1] %v2156
    %v2158 = vld [vmem:[%s2067 + $0x174] sm:$0x1]
    %v2159 = vsel %vm2070, 0, %v2158
    %2160 = vst [vmem:[%s2067 + $0x174] sm:$0x1] %v2159
    %v2161 = vld [vmem:[%s2067 + $0x180] sm:$0x1]
    %v2162 = vsel %vm2070, 0, %v2161
    %2163 = vst [vmem:[%s2067 + $0x180] sm:$0x1] %v2162
    %v2164 = vld [vmem:[%s2067 + $0x18c] sm:$0x1]
    %v2165 = vsel %vm2070, 0, %v2164
    %2166 = vst [vmem:[%s2067 + $0x18c] sm:$0x1] %v2165
    %vm2167 = vsmask.f32 7938
    %vm2168 = vmand %vm2068, %vm2167
    %v2169 = vld [vmem:[%s2067 + $0x8] sm:$0x1]
    %v2170 = vsel %vm2168, 0, %v2169
    %2171 = vst [vmem:[%s2067 + $0x8] sm:$0x1] %v2170
    %v2172 = vld [vmem:[%s2067 + $0x14] sm:$0x1]
    %v2173 = vsel %vm2168, 0, %v2172
    %2174 = vst [vmem:[%s2067 + $0x14] sm:$0x1] %v2173
    %v2175 = vld [vmem:[%s2067 + $0x20] sm:$0x1]
    %v2176 = vsel %vm2168, 0, %v2175
    %2177 = vst [vmem:[%s2067 + $0x20] sm:$0x1] %v2176
    %v2178 = vld [vmem:[%s2067 + $0x2c] sm:$0x1]
    %v2179 = vsel %vm2168, 0, %v2178
    %2180 = vst [vmem:[%s2067 + $0x2c] sm:$0x1] %v2179
    %v2181 = vld [vmem:[%s2067 + $0x38] sm:$0x1]
    %v2182 = vsel %vm2168, 0, %v2181
    %2183 = vst [vmem:[%s2067 + $0x38] sm:$0x1] %v2182
    %v2184 = vld [vmem:[%s2067 + $0x44] sm:$0x1]
    %v2185 = vsel %vm2168, 0, %v2184
    %2186 = vst [vmem:[%s2067 + $0x44] sm:$0x1] %v2185
    %v2187 = vld [vmem:[%s2067 + $0x50] sm:$0x1]
    %v2188 = vsel %vm2168, 0, %v2187
    %2189 = vst [vmem:[%s2067 + $0x50] sm:$0x1] %v2188
    %v2190 = vld [vmem:[%s2067 + $0x5c] sm:$0x1]
    %v2191 = vsel %vm2168, 0, %v2190
    %2192 = vst [vmem:[%s2067 + $0x5c] sm:$0x1] %v2191
    %v2193 = vld [vmem:[%s2067 + $0x68] sm:$0x1]
    %v2194 = vsel %vm2168, 0, %v2193
    %2195 = vst [vmem:[%s2067 + $0x68] sm:$0x1] %v2194
    %v2196 = vld [vmem:[%s2067 + $0x74] sm:$0x1]
    %v2197 = vsel %vm2168, 0, %v2196
    %2198 = vst [vmem:[%s2067 + $0x74] sm:$0x1] %v2197
    %v2199 = vld [vmem:[%s2067 + $0x80] sm:$0x1]
    %v2200 = vsel %vm2168, 0, %v2199
    %2201 = vst [vmem:[%s2067 + $0x80] sm:$0x1] %v2200
    %v2202 = vld [vmem:[%s2067 + $0x8c] sm:$0x1]
    %v2203 = vsel %vm2168, 0, %v2202
    %2204 = vst [vmem:[%s2067 + $0x8c] sm:$0x1] %v2203
    %v2205 = vld [vmem:[%s2067 + $0x98] sm:$0x1]
    %v2206 = vsel %vm2168, 0, %v2205
    %2207 = vst [vmem:[%s2067 + $0x98] sm:$0x1] %v2206
    %v2208 = vld [vmem:[%s2067 + $0xa4] sm:$0x1]
    %v2209 = vsel %vm2168, 0, %v2208
    %2210 = vst [vmem:[%s2067 + $0xa4] sm:$0x1] %v2209
    %v2211 = vld [vmem:[%s2067 + $0xb0] sm:$0x1]
    %v2212 = vsel %vm2168, 0, %v2211
    %2213 = vst [vmem:[%s2067 + $0xb0] sm:$0x1] %v2212
    %v2214 = vld [vmem:[%s2067 + $0xbc] sm:$0x1]
    %v2215 = vsel %vm2168, 0, %v2214
    %2216 = vst [vmem:[%s2067 + $0xbc] sm:$0x1] %v2215
    %v2217 = vld [vmem:[%s2067 + $0xe0] sm:$0x1]
    %v2218 = vsel %vm2168, 0, %v2217
    %2219 = vst [vmem:[%s2067 + $0xe0] sm:$0x1] %v2218
    %v2220 = vld [vmem:[%s2067 + $0xec] sm:$0x1]
    %v2221 = vsel %vm2168, 0, %v2220
    %2222 = vst [vmem:[%s2067 + $0xec] sm:$0x1] %v2221
    %v2223 = vld [vmem:[%s2067 + $0xf8] sm:$0x1]
    %v2224 = vsel %vm2168, 0, %v2223
    %2225 = vst [vmem:[%s2067 + $0xf8] sm:$0x1] %v2224
    %v2226 = vld [vmem:[%s2067 + $0x104] sm:$0x1]
    %v2227 = vsel %vm2168, 0, %v2226
    %2228 = vst [vmem:[%s2067 + $0x104] sm:$0x1] %v2227
    %v2229 = vld [vmem:[%s2067 + $0x110] sm:$0x1]
    %v2230 = vsel %vm2168, 0, %v2229
    %2231 = vst [vmem:[%s2067 + $0x110] sm:$0x1] %v2230
    %v2232 = vld [vmem:[%s2067 + $0x11c] sm:$0x1]
    %v2233 = vsel %vm2168, 0, %v2232
    %2234 = vst [vmem:[%s2067 + $0x11c] sm:$0x1] %v2233
    %v2235 = vld [vmem:[%s2067 + $0x128] sm:$0x1]
    %v2236 = vsel %vm2168, 0, %v2235
    %2237 = vst [vmem:[%s2067 + $0x128] sm:$0x1] %v2236
    %v2238 = vld [vmem:[%s2067 + $0x134] sm:$0x1]
    %v2239 = vsel %vm2168, 0, %v2238
    %2240 = vst [vmem:[%s2067 + $0x134] sm:$0x1] %v2239
    %v2241 = vld [vmem:[%s2067 + $0x140] sm:$0x1]
    %v2242 = vsel %vm2168, 0, %v2241
    %2243 = vst [vmem:[%s2067 + $0x140] sm:$0x1] %v2242
    %v2244 = vld [vmem:[%s2067 + $0x14c] sm:$0x1]
    %v2245 = vsel %vm2168, 0, %v2244
    %2246 = vst [vmem:[%s2067 + $0x14c] sm:$0x1] %v2245
    %v2247 = vld [vmem:[%s2067 + $0x158] sm:$0x1]
    %v2248 = vsel %vm2168, 0, %v2247
    %2249 = vst [vmem:[%s2067 + $0x158] sm:$0x1] %v2248
    %v2250 = vld [vmem:[%s2067 + $0x164] sm:$0x1]
    %v2251 = vsel %vm2168, 0, %v2250
    %2252 = vst [vmem:[%s2067 + $0x164] sm:$0x1] %v2251
    %v2253 = vld [vmem:[%s2067 + $0x170] sm:$0x1]
    %v2254 = vsel %vm2168, 0, %v2253
    %2255 = vst [vmem:[%s2067 + $0x170] sm:$0x1] %v2254
    %v2256 = vld [vmem:[%s2067 + $0x17c] sm:$0x1]
    %v2257 = vsel %vm2168, 0, %v2256
    %2258 = vst [vmem:[%s2067 + $0x17c] sm:$0x1] %v2257
    %v2259 = vld [vmem:[%s2067 + $0x188] sm:$0x1]
    %v2260 = vsel %vm2168, 0, %v2259
    %2261 = vst [vmem:[%s2067 + $0x188] sm:$0x1] %v2260
    %v2262 = vld [vmem:[%s2067 + $0x194] sm:$0x1]
    %v2263 = vsel %vm2168, 0, %v2262
    %2264 = vst [vmem:[%s2067 + $0x194] sm:$0x1] %v2263
    %v2265 = vpack.c.bf16 %v1990, %v1990
    %v2266 = vpack.c.bf16 %v1991, %v1991
    %v2267 = vpack.c.bf16 %v1992, %v1992
    %v2268 = vpack.c.bf16 %v1993, %v1993
    %v2269 = vpack.c.bf16 %v1994, %v1994
    %v2270 = vpack.c.bf16 %v1995, %v1995
    %v2271 = vpack.c.bf16 %v1996, %v1996
    %v2272 = vpack.c.bf16 %v1997, %v1997
    %v2273 = vpack.c.bf16 %v1998, %v1998
    %v2274 = vpack.c.bf16 %v1999, %v1999
    %v2275 = vpack.c.bf16 %v2000, %v2000
    %v2276 = vpack.c.bf16 %v2001, %v2001
    %v2277 = vpack.c.bf16 %v2002, %v2002
    %v2278 = vpack.c.bf16 %v2003, %v2003
    %v2279 = vpack.c.bf16 %v2004, %v2004
    %v2280 = vpack.c.bf16 %v2005, %v2005
    %v2281 = vpack.c.bf16 %v2006, %v2006
    %v2282 = vpack.c.bf16 %v2007, %v2007
    %v2283 = vpack.c.bf16 %v2008, %v2008
    %v2284 = vpack.c.bf16 %v2009, %v2009
    %v2285 = vpack.c.bf16 %v2010, %v2010
    %v2286 = vpack.c.bf16 %v2011, %v2011
    %v2287 = vpack.c.bf16 %v2012, %v2012
    %v2288 = vpack.c.bf16 %v2013, %v2013
    %v2289 = vpack.c.bf16 %v2014, %v2014
    %v2290 = vpack.c.bf16 %v2015, %v2015
    %v2291 = vpack.c.bf16 %v2016, %v2016
    %v2292 = vpack.c.bf16 %v2017, %v2017
    %v2293 = vpack.c.bf16 %v2018, %v2018
    %v2294 = vpack.c.bf16 %v2019, %v2019
    %v2295 = vpack.c.bf16 %v2020, %v2020
    %v2296 = vpack.c.bf16 %v2021, %v2021
    %v2297 = vpack.c.bf16 %v2022, %v2022
    %v2298 = vpack.c.bf16 %v2023, %v2023
    %v2299 = vpack.c.bf16 %v2024, %v2024
    %v2300 = vpack.c.bf16 %v2025, %v2025
    %v2301 = vpack.c.bf16 %v2026, %v2026
    %v2302 = vpack.c.bf16 %v2027, %v2027
    %v2303 = vpack.c.bf16 %v2028, %v2028
    %v2304 = vpack.c.bf16 %v2029, %v2029
    %v2305 = vpack.c.bf16 %v2030, %v2030
    %v2306 = vpack.c.bf16 %v2031, %v2031
    %v2307 = vpack.c.bf16 %v2032, %v2032
    %v2308 = vpack.c.bf16 %v2033, %v2033
    %v2309 = vpack.c.bf16 %v2034, %v2034
    %v2310 = vpack.c.bf16 %v2035, %v2035
    %v2311 = vpack.c.bf16 %v2036, %v2036
    %v2312 = vpack.c.bf16 %v2037, %v2037
    %v2313 = vpack.c.bf16 %v2038, %v2038
    %v2314 = vpack.c.bf16 %v2039, %v2039
    %v2315 = vpack.c.bf16 %v2040, %v2040
    %v2316 = vpack.c.bf16 %v2041, %v2041
    %v2317 = vpack.c.bf16 %v2042, %v2042
    %v2318 = vpack.c.bf16 %v2043, %v2043
    %v2319 = vpack.c.bf16 %v2044, %v2044
    %v2320 = vpack.c.bf16 %v2045, %v2045
    %v2321 = vpack.c.bf16 %v2046, %v2046
    %v2322 = vpack.c.bf16 %v2047, %v2047
    %v2323 = vpack.c.bf16 %v2048, %v2048
    %v2324 = vpack.c.bf16 %v2049, %v2049
    %v2325 = vpack.c.bf16 %v2050, %v2050
    %v2326 = vpack.c.bf16 %v2051, %v2051
    %v2327 = vpack.c.bf16 %v2052, %v2052
    %v2328 = vpack.c.bf16 %v2053, %v2053
    %vm2329 = vsmask.f32 4368
    %vm2330 = vmor %vm2069, %vm2329
    %v2332 = vshrl.u32 %v2265, 16
    %v2334 = vrot.slane %v2332, 7
    %v2335 = vshll.u32 %v2265, 16
    %v2337 = vor.u32 %v2334, %v2335
    %v2338 = vrot.slane %v2334, 4
    %v2340 = vshrl.u32 %v2266, 16
    %v2342 = vrot.slane %v2340, 7
    %v2343 = vshll.u32 %v2266, 16
    %v2345 = vor.u32 %v2342, %v2343
    %v2346 = vsel %vm2330, %v2338, %v2345
    %v2347 = vrot.slane %v2342, 4
    %v2349 = vshrl.u32 %v2267, 16
    %v2351 = vrot.slane %v2349, 7
    %v2352 = vshll.u32 %v2267, 16
    %v2354 = vor.u32 %v2351, %v2352
    %v2355 = vrot.slane %v2351, 4
    %v2357 = vshrl.u32 %v2268, 16
    %v2359 = vrot.slane %v2357, 7
    %v2360 = vshll.u32 %v2268, 16
    %v2362 = vor.u32 %v2359, %v2360
    %v2363 = vsel %vm2330, %v2355, %v2362
    %v2364 = vrot.slane %v2359, 4
    %v2366 = vshrl.u32 %v2269, 16
    %v2368 = vrot.slane %v2366, 7
    %v2369 = vshll.u32 %v2269, 16
    %v2371 = vor.u32 %v2368, %v2369
    %v2372 = vrot.slane %v2368, 4
    %v2374 = vshrl.u32 %v2270, 16
    %v2376 = vrot.slane %v2374, 7
    %v2377 = vshll.u32 %v2270, 16
    %v2379 = vor.u32 %v2376, %v2377
    %v2380 = vsel %vm2330, %v2372, %v2379
    %v2381 = vrot.slane %v2376, 4
    %v2383 = vshrl.u32 %v2271, 16
    %v2385 = vrot.slane %v2383, 7
    %v2386 = vshll.u32 %v2271, 16
    %v2388 = vor.u32 %v2385, %v2386
    %v2389 = vrot.slane %v2385, 4
    %v2391 = vshrl.u32 %v2272, 16
    %v2393 = vrot.slane %v2391, 7
    %v2394 = vshll.u32 %v2272, 16
    %v2396 = vor.u32 %v2393, %v2394
    %v2397 = vsel %vm2330, %v2389, %v2396
    %v2398 = vrot.slane %v2393, 4
    %v2400 = vshrl.u32 %v2273, 16
    %v2402 = vrot.slane %v2400, 7
    %v2403 = vshll.u32 %v2273, 16
    %v2405 = vor.u32 %v2402, %v2403
    %v2406 = vrot.slane %v2402, 4
    %v2408 = vshrl.u32 %v2274, 16
    %v2410 = vrot.slane %v2408, 7
    %v2411 = vshll.u32 %v2274, 16
    %v2413 = vor.u32 %v2410, %v2411
    %v2414 = vsel %vm2330, %v2406, %v2413
    %v2415 = vrot.slane %v2410, 4
    %v2417 = vshrl.u32 %v2275, 16
    %v2419 = vrot.slane %v2417, 7
    %v2420 = vshll.u32 %v2275, 16
    %v2422 = vor.u32 %v2419, %v2420
    %v2423 = vrot.slane %v2419, 4
    %v2425 = vshrl.u32 %v2276, 16
    %v2427 = vrot.slane %v2425, 7
    %v2428 = vshll.u32 %v2276, 16
    %v2430 = vor.u32 %v2427, %v2428
    %v2431 = vsel %vm2330, %v2423, %v2430
    %v2432 = vrot.slane %v2427, 4
    %v2434 = vshrl.u32 %v2277, 16
    %v2436 = vrot.slane %v2434, 7
    %v2437 = vshll.u32 %v2277, 16
    %v2439 = vor.u32 %v2436, %v2437
    %v2440 = vrot.slane %v2436, 4
    %v2442 = vshrl.u32 %v2278, 16
    %v2444 = vrot.slane %v2442, 7
    %v2445 = vshll.u32 %v2278, 16
    %v2447 = vor.u32 %v2444, %v2445
    %v2448 = vsel %vm2330, %v2440, %v2447
    %v2449 = vrot.slane %v2444, 4
    %v2451 = vshrl.u32 %v2279, 16
    %v2453 = vrot.slane %v2451, 7
    %v2454 = vshll.u32 %v2279, 16
    %v2456 = vor.u32 %v2453, %v2454
    %v2457 = vrot.slane %v2453, 4
    %v2459 = vshrl.u32 %v2280, 16
    %v2461 = vrot.slane %v2459, 7
    %v2462 = vshll.u32 %v2280, 16
    %v2464 = vor.u32 %v2461, %v2462
    %v2465 = vsel %vm2330, %v2457, %v2464
    %v2466 = vrot.slane %v2461, 4
    %v2468 = vshrl.u32 %v2281, 16
    %v2470 = vrot.slane %v2468, 7
    %v2471 = vshll.u32 %v2281, 16
    %v2473 = vor.u32 %v2470, %v2471
    %v2474 = vrot.slane %v2470, 4
    %v2476 = vshrl.u32 %v2282, 16
    %v2478 = vrot.slane %v2476, 7
    %v2479 = vshll.u32 %v2282, 16
    %v2481 = vor.u32 %v2478, %v2479
    %v2482 = vsel %vm2330, %v2474, %v2481
    %v2483 = vrot.slane %v2478, 4
    %v2485 = vshrl.u32 %v2283, 16
    %v2487 = vrot.slane %v2485, 7
    %v2488 = vshll.u32 %v2283, 16
    %v2490 = vor.u32 %v2487, %v2488
    %v2491 = vrot.slane %v2487, 4
    %v2493 = vshrl.u32 %v2284, 16
    %v2495 = vrot.slane %v2493, 7
    %v2496 = vshll.u32 %v2284, 16
    %v2498 = vor.u32 %v2495, %v2496
    %v2499 = vsel %vm2330, %v2491, %v2498
    %v2500 = vrot.slane %v2495, 4
    %v2502 = vshrl.u32 %v2285, 16
    %v2504 = vrot.slane %v2502, 7
    %v2505 = vshll.u32 %v2285, 16
    %v2507 = vor.u32 %v2504, %v2505
    %v2508 = vrot.slane %v2504, 4
    %v2510 = vshrl.u32 %v2286, 16
    %v2512 = vrot.slane %v2510, 7
    %v2513 = vshll.u32 %v2286, 16
    %v2515 = vor.u32 %v2512, %v2513
    %v2516 = vsel %vm2330, %v2508, %v2515
    %v2517 = vrot.slane %v2512, 4
    %v2519 = vshrl.u32 %v2287, 16
    %v2521 = vrot.slane %v2519, 7
    %v2522 = vshll.u32 %v2287, 16
    %v2524 = vor.u32 %v2521, %v2522
    %v2525 = vrot.slane %v2521, 4
    %v2527 = vshrl.u32 %v2288, 16
    %v2529 = vrot.slane %v2527, 7
    %v2530 = vshll.u32 %v2288, 16
    %v2532 = vor.u32 %v2529, %v2530
    %v2533 = vsel %vm2330, %v2525, %v2532
    %v2534 = vrot.slane %v2529, 4
    %v2536 = vshrl.u32 %v2289, 16
    %v2538 = vrot.slane %v2536, 7
    %v2539 = vshll.u32 %v2289, 16
    %v2541 = vor.u32 %v2538, %v2539
    %v2542 = vrot.slane %v2538, 4
    %v2544 = vshrl.u32 %v2290, 16
    %v2546 = vrot.slane %v2544, 7
    %v2547 = vshll.u32 %v2290, 16
    %v2549 = vor.u32 %v2546, %v2547
    %v2550 = vsel %vm2330, %v2542, %v2549
    %v2551 = vrot.slane %v2546, 4
    %v2553 = vshrl.u32 %v2291, 16
    %v2555 = vrot.slane %v2553, 7
    %v2556 = vshll.u32 %v2291, 16
    %v2558 = vor.u32 %v2555, %v2556
    %v2559 = vrot.slane %v2555, 4
    %v2561 = vshrl.u32 %v2292, 16
    %v2563 = vrot.slane %v2561, 7
    %v2564 = vshll.u32 %v2292, 16
    %v2566 = vor.u32 %v2563, %v2564
    %v2567 = vsel %vm2330, %v2559, %v2566
    %v2568 = vrot.slane %v2563, 4
    %v2570 = vshrl.u32 %v2293, 16
    %v2572 = vrot.slane %v2570, 7
    %v2573 = vshll.u32 %v2293, 16
    %v2575 = vor.u32 %v2572, %v2573
    %v2576 = vrot.slane %v2572, 4
    %v2578 = vshrl.u32 %v2294, 16
    %v2580 = vrot.slane %v2578, 7
    %v2581 = vshll.u32 %v2294, 16
    %v2583 = vor.u32 %v2580, %v2581
    %v2584 = vsel %vm2330, %v2576, %v2583
    %v2585 = vrot.slane %v2580, 4
    %v2587 = vshrl.u32 %v2295, 16
    %v2589 = vrot.slane %v2587, 7
    %v2590 = vshll.u32 %v2295, 16
    %v2592 = vor.u32 %v2589, %v2590
    %v2593 = vrot.slane %v2589, 4
    %v2595 = vshrl.u32 %v2296, 16
    %v2597 = vrot.slane %v2595, 7
    %v2598 = vshll.u32 %v2296, 16
    %v2600 = vor.u32 %v2597, %v2598
    %v2601 = vsel %vm2330, %v2593, %v2600
    %v2602 = vrot.slane %v2597, 4
    %v2604 = vshrl.u32 %v2297, 16
    %v2606 = vrot.slane %v2604, 7
    %v2607 = vshll.u32 %v2297, 16
    %v2609 = vor.u32 %v2606, %v2607
    %v2610 = vrot.slane %v2606, 4
    %v2612 = vshrl.u32 %v2298, 16
    %v2614 = vrot.slane %v2612, 7
    %v2615 = vshll.u32 %v2298, 16
    %v2617 = vor.u32 %v2614, %v2615
    %v2618 = vsel %vm2330, %v2610, %v2617
    %v2619 = vrot.slane %v2614, 4
    %v2621 = vshrl.u32 %v2299, 16
    %v2623 = vrot.slane %v2621, 7
    %v2624 = vshll.u32 %v2299, 16
    %v2626 = vor.u32 %v2623, %v2624
    %v2627 = vrot.slane %v2623, 4
    %v2629 = vshrl.u32 %v2300, 16
    %v2631 = vrot.slane %v2629, 7
    %v2632 = vshll.u32 %v2300, 16
    %v2634 = vor.u32 %v2631, %v2632
    %v2635 = vsel %vm2330, %v2627, %v2634
    %v2636 = vrot.slane %v2631, 4
    %v2638 = vshrl.u32 %v2301, 16
    %v2640 = vrot.slane %v2638, 7
    %v2641 = vshll.u32 %v2301, 16
    %v2643 = vor.u32 %v2640, %v2641
    %v2644 = vrot.slane %v2640, 4
    %v2646 = vshrl.u32 %v2302, 16
    %v2648 = vrot.slane %v2646, 7
    %v2649 = vshll.u32 %v2302, 16
    %v2651 = vor.u32 %v2648, %v2649
    %v2652 = vsel %vm2330, %v2644, %v2651
    %v2653 = vrot.slane %v2648, 4
    %v2655 = vshrl.u32 %v2303, 16
    %v2657 = vrot.slane %v2655, 7
    %v2658 = vshll.u32 %v2303, 16
    %v2660 = vor.u32 %v2657, %v2658
    %v2661 = vrot.slane %v2657, 4
    %v2663 = vshrl.u32 %v2304, 16
    %v2665 = vrot.slane %v2663, 7
    %v2666 = vshll.u32 %v2304, 16
    %v2668 = vor.u32 %v2665, %v2666
    %v2669 = vsel %vm2330, %v2661, %v2668
    %v2670 = vrot.slane %v2665, 4
    %v2672 = vshrl.u32 %v2305, 16
    %v2674 = vrot.slane %v2672, 7
    %v2675 = vshll.u32 %v2305, 16
    %v2677 = vor.u32 %v2674, %v2675
    %v2678 = vrot.slane %v2674, 4
    %v2680 = vshrl.u32 %v2306, 16
    %v2682 = vrot.slane %v2680, 7
    %v2683 = vshll.u32 %v2306, 16
    %v2685 = vor.u32 %v2682, %v2683
    %v2686 = vsel %vm2330, %v2678, %v2685
    %v2687 = vrot.slane %v2682, 4
    %v2689 = vshrl.u32 %v2307, 16
    %v2691 = vrot.slane %v2689, 7
    %v2692 = vshll.u32 %v2307, 16
    %v2694 = vor.u32 %v2691, %v2692
    %v2695 = vrot.slane %v2691, 4
    %v2697 = vshrl.u32 %v2308, 16
    %v2699 = vrot.slane %v2697, 7
    %v2700 = vshll.u32 %v2308, 16
    %v2702 = vor.u32 %v2699, %v2700
    %v2703 = vsel %vm2330, %v2695, %v2702
    %v2704 = vrot.slane %v2699, 4
    %v2706 = vshrl.u32 %v2309, 16
    %v2708 = vrot.slane %v2706, 7
    %v2709 = vshll.u32 %v2309, 16
    %v2711 = vor.u32 %v2708, %v2709
    %v2712 = vrot.slane %v2708, 4
    %v2714 = vshrl.u32 %v2310, 16
    %v2716 = vrot.slane %v2714, 7
    %v2717 = vshll.u32 %v2310, 16
    %v2719 = vor.u32 %v2716, %v2717
    %v2720 = vsel %vm2330, %v2712, %v2719
    %v2721 = vrot.slane %v2716, 4
    %v2723 = vshrl.u32 %v2311, 16
    %v2725 = vrot.slane %v2723, 7
    %v2726 = vshll.u32 %v2311, 16
    %v2728 = vor.u32 %v2725, %v2726
    %v2729 = vrot.slane %v2725, 4
    %v2731 = vshrl.u32 %v2312, 16
    %v2733 = vrot.slane %v2731, 7
    %v2734 = vshll.u32 %v2312, 16
    %v2736 = vor.u32 %v2733, %v2734
    %v2737 = vsel %vm2330, %v2729, %v2736
    %v2738 = vrot.slane %v2733, 4
    %v2740 = vshrl.u32 %v2313, 16
    %v2742 = vrot.slane %v2740, 7
    %v2743 = vshll.u32 %v2313, 16
    %v2745 = vor.u32 %v2742, %v2743
    %v2746 = vrot.slane %v2742, 4
    %v2748 = vshrl.u32 %v2314, 16
    %v2750 = vrot.slane %v2748, 7
    %v2751 = vshll.u32 %v2314, 16
    %v2753 = vor.u32 %v2750, %v2751
    %v2754 = vsel %vm2330, %v2746, %v2753
    %v2755 = vrot.slane %v2750, 4
    %v2757 = vshrl.u32 %v2315, 16
    %v2759 = vrot.slane %v2757, 7
    %v2760 = vshll.u32 %v2315, 16
    %v2762 = vor.u32 %v2759, %v2760
    %v2763 = vrot.slane %v2759, 4
    %v2765 = vshrl.u32 %v2316, 16
    %v2767 = vrot.slane %v2765, 7
    %v2768 = vshll.u32 %v2316, 16
    %v2770 = vor.u32 %v2767, %v2768
    %v2771 = vsel %vm2330, %v2763, %v2770
    %v2772 = vrot.slane %v2767, 4
    %v2774 = vshrl.u32 %v2317, 16
    %v2776 = vrot.slane %v2774, 7
    %v2777 = vshll.u32 %v2317, 16
    %v2779 = vor.u32 %v2776, %v2777
    %v2780 = vrot.slane %v2776, 4
    %v2782 = vshrl.u32 %v2318, 16
    %v2784 = vrot.slane %v2782, 7
    %v2785 = vshll.u32 %v2318, 16
    %v2787 = vor.u32 %v2784, %v2785
    %v2788 = vsel %vm2330, %v2780, %v2787
    %v2789 = vrot.slane %v2784, 4
    %v2791 = vshrl.u32 %v2319, 16
    %v2793 = vrot.slane %v2791, 7
    %v2794 = vshll.u32 %v2319, 16
    %v2796 = vor.u32 %v2793, %v2794
    %v2797 = vrot.slane %v2793, 4
    %v2799 = vshrl.u32 %v2320, 16
    %v2801 = vrot.slane %v2799, 7
    %v2802 = vshll.u32 %v2320, 16
    %v2804 = vor.u32 %v2801, %v2802
    %v2805 = vsel %vm2330, %v2797, %v2804
    %v2806 = vrot.slane %v2801, 4
    %v2808 = vshrl.u32 %v2321, 16
    %v2810 = vrot.slane %v2808, 7
    %v2811 = vshll.u32 %v2321, 16
    %v2813 = vor.u32 %v2810, %v2811
    %v2814 = vrot.slane %v2810, 4
    %v2816 = vshrl.u32 %v2322, 16
    %v2818 = vrot.slane %v2816, 7
    %v2819 = vshll.u32 %v2322, 16
    %v2821 = vor.u32 %v2818, %v2819
    %v2822 = vsel %vm2330, %v2814, %v2821
    %v2823 = vrot.slane %v2818, 4
    %v2825 = vshrl.u32 %v2323, 16
    %v2827 = vrot.slane %v2825, 7
    %v2828 = vshll.u32 %v2323, 16
    %v2830 = vor.u32 %v2827, %v2828
    %v2831 = vrot.slane %v2827, 4
    %v2833 = vshrl.u32 %v2324, 16
    %v2835 = vrot.slane %v2833, 7
    %v2836 = vshll.u32 %v2324, 16
    %v2838 = vor.u32 %v2835, %v2836
    %v2839 = vsel %vm2330, %v2831, %v2838
    %v2840 = vrot.slane %v2835, 4
    %v2842 = vshrl.u32 %v2325, 16
    %v2844 = vrot.slane %v2842, 7
    %v2845 = vshll.u32 %v2325, 16
    %v2847 = vor.u32 %v2844, %v2845
    %v2848 = vrot.slane %v2844, 4
    %v2850 = vshrl.u32 %v2326, 16
    %v2852 = vrot.slane %v2850, 7
    %v2853 = vshll.u32 %v2326, 16
    %v2855 = vor.u32 %v2852, %v2853
    %v2856 = vsel %vm2330, %v2848, %v2855
    %v2857 = vrot.slane %v2852, 4
    %v2859 = vshrl.u32 %v2327, 16
    %v2861 = vrot.slane %v2859, 7
    %v2862 = vshll.u32 %v2327, 16
    %v2864 = vor.u32 %v2861, %v2862
    %v2865 = vrot.slane %v2861, 4
    %v2867 = vshrl.u32 %v2328, 16
    %v2869 = vrot.slane %v2867, 7
    %v2870 = vshll.u32 %v2328, 16
    %v2872 = vor.u32 %v2869, %v2870
    %v2873 = vsel %vm2330, %v2865, %v2872
    %v2874 = vrot.slane %v2869, 4
    %vm2971 = vcmask 1043456
    %vm2972 = vmand %vm2971, %vm2167
    %v2973 = vld [vmem:[%s2067] sm:$0xf]
    %v2974 = vsel %vm2972, %v2337, %v2973
    %2975 = vst [vmem:[%s2067] sm:$0xf] %v2974
    %2976 = vst [vmem:[%s2067 + $0x4] sm:$0xf] %v2346
    %v2977 = vld [vmem:[%s2067 + $0x8] sm:$0x1]
    %v2978 = vsel %vm2070, %v2347, %v2977
    %2979 = vst [vmem:[%s2067 + $0x8] sm:$0x1] %v2978
    %v2980 = vld [vmem:[%s2067 + $0xc] sm:$0xf]
    %v2981 = vsel %vm2972, %v2354, %v2980
    %2982 = vst [vmem:[%s2067 + $0xc] sm:$0xf] %v2981
    %2983 = vst [vmem:[%s2067 + $0x10] sm:$0xf] %v2363
    %v2984 = vld [vmem:[%s2067 + $0x14] sm:$0x1]
    %v2985 = vsel %vm2070, %v2364, %v2984
    %2986 = vst [vmem:[%s2067 + $0x14] sm:$0x1] %v2985
    %v2987 = vld [vmem:[%s2067 + $0x18] sm:$0xf]
    %v2988 = vsel %vm2972, %v2371, %v2987
    %2989 = vst [vmem:[%s2067 + $0x18] sm:$0xf] %v2988
    %2990 = vst [vmem:[%s2067 + $0x1c] sm:$0xf] %v2380
    %v2991 = vld [vmem:[%s2067 + $0x20] sm:$0x1]
    %v2992 = vsel %vm2070, %v2381, %v2991
    %2993 = vst [vmem:[%s2067 + $0x20] sm:$0x1] %v2992
    %v2994 = vld [vmem:[%s2067 + $0x24] sm:$0xf]
    %v2995 = vsel %vm2972, %v2388, %v2994
    %2996 = vst [vmem:[%s2067 + $0x24] sm:$0xf] %v2995
    %2997 = vst [vmem:[%s2067 + $0x28] sm:$0xf] %v2397
    %v2998 = vld [vmem:[%s2067 + $0x2c] sm:$0x1]
    %v2999 = vsel %vm2070, %v2398, %v2998
    %3000 = vst [vmem:[%s2067 + $0x2c] sm:$0x1] %v2999
    %v3001 = vld [vmem:[%s2067 + $0x30] sm:$0xf]
    %v3002 = vsel %vm2972, %v2405, %v3001
    %3003 = vst [vmem:[%s2067 + $0x30] sm:$0xf] %v3002
    %3004 = vst [vmem:[%s2067 + $0x34] sm:$0xf] %v2414
    %v3005 = vld [vmem:[%s2067 + $0x38] sm:$0x1]
    %v3006 = vsel %vm2070, %v2415, %v3005
    %3007 = vst [vmem:[%s2067 + $0x38] sm:$0x1] %v3006
    %v3008 = vld [vmem:[%s2067 + $0x3c] sm:$0xf]
    %v3009 = vsel %vm2972, %v2422, %v3008
    %3010 = vst [vmem:[%s2067 + $0x3c] sm:$0xf] %v3009
    %3011 = vst [vmem:[%s2067 + $0x40] sm:$0xf] %v2431
    %v3012 = vld [vmem:[%s2067 + $0x44] sm:$0x1]
    %v3013 = vsel %vm2070, %v2432, %v3012
    %3014 = vst [vmem:[%s2067 + $0x44] sm:$0x1] %v3013
    %v3015 = vld [vmem:[%s2067 + $0x48] sm:$0xf]
    %v3016 = vsel %vm2972, %v2439, %v3015
    %3017 = vst [vmem:[%s2067 + $0x48] sm:$0xf] %v3016
    %3018 = vst [vmem:[%s2067 + $0x4c] sm:$0xf] %v2448
    %v3019 = vld [vmem:[%s2067 + $0x50] sm:$0x1]
    %v3020 = vsel %vm2070, %v2449, %v3019
    %3021 = vst [vmem:[%s2067 + $0x50] sm:$0x1] %v3020
    %v3022 = vld [vmem:[%s2067 + $0x54] sm:$0xf]
    %v3023 = vsel %vm2972, %v2456, %v3022
    %3024 = vst [vmem:[%s2067 + $0x54] sm:$0xf] %v3023
    %3025 = vst [vmem:[%s2067 + $0x58] sm:$0xf] %v2465
    %v3026 = vld [vmem:[%s2067 + $0x5c] sm:$0x1]
    %v3027 = vsel %vm2070, %v2466, %v3026
    %3028 = vst [vmem:[%s2067 + $0x5c] sm:$0x1] %v3027
    %v3029 = vld [vmem:[%s2067 + $0x60] sm:$0xf]
    %v3030 = vsel %vm2972, %v2473, %v3029
    %3031 = vst [vmem:[%s2067 + $0x60] sm:$0xf] %v3030
    %3032 = vst [vmem:[%s2067 + $0x64] sm:$0xf] %v2482
    %v3033 = vld [vmem:[%s2067 + $0x68] sm:$0x1]
    %v3034 = vsel %vm2070, %v2483, %v3033
    %3035 = vst [vmem:[%s2067 + $0x68] sm:$0x1] %v3034
    %v3036 = vld [vmem:[%s2067 + $0x6c] sm:$0xf]
    %v3037 = vsel %vm2972, %v2490, %v3036
    %3038 = vst [vmem:[%s2067 + $0x6c] sm:$0xf] %v3037
    %3039 = vst [vmem:[%s2067 + $0x70] sm:$0xf] %v2499
    %v3040 = vld [vmem:[%s2067 + $0x74] sm:$0x1]
    %v3041 = vsel %vm2070, %v2500, %v3040
    %3042 = vst [vmem:[%s2067 + $0x74] sm:$0x1] %v3041
    %v3043 = vld [vmem:[%s2067 + $0x78] sm:$0xf]
    %v3044 = vsel %vm2972, %v2507, %v3043
    %3045 = vst [vmem:[%s2067 + $0x78] sm:$0xf] %v3044
    %3046 = vst [vmem:[%s2067 + $0x7c] sm:$0xf] %v2516
    %v3047 = vld [vmem:[%s2067 + $0x80] sm:$0x1]
    %v3048 = vsel %vm2070, %v2517, %v3047
    %3049 = vst [vmem:[%s2067 + $0x80] sm:$0x1] %v3048
    %v3050 = vld [vmem:[%s2067 + $0x84] sm:$0xf]
    %v3051 = vsel %vm2972, %v2524, %v3050
    %3052 = vst [vmem:[%s2067 + $0x84] sm:$0xf] %v3051
    %3053 = vst [vmem:[%s2067 + $0x88] sm:$0xf] %v2533
    %v3054 = vld [vmem:[%s2067 + $0x8c] sm:$0x1]
    %v3055 = vsel %vm2070, %v2534, %v3054
    %3056 = vst [vmem:[%s2067 + $0x8c] sm:$0x1] %v3055
    %v3057 = vld [vmem:[%s2067 + $0x90] sm:$0xf]
    %v3058 = vsel %vm2972, %v2541, %v3057
    %3059 = vst [vmem:[%s2067 + $0x90] sm:$0xf] %v3058
    %3060 = vst [vmem:[%s2067 + $0x94] sm:$0xf] %v2550
    %v3061 = vld [vmem:[%s2067 + $0x98] sm:$0x1]
    %v3062 = vsel %vm2070, %v2551, %v3061
    %3063 = vst [vmem:[%s2067 + $0x98] sm:$0x1] %v3062
    %v3064 = vld [vmem:[%s2067 + $0x9c] sm:$0xf]
    %v3065 = vsel %vm2972, %v2558, %v3064
    %3066 = vst [vmem:[%s2067 + $0x9c] sm:$0xf] %v3065
    %3067 = vst [vmem:[%s2067 + $0xa0] sm:$0xf] %v2567
    %v3068 = vld [vmem:[%s2067 + $0xa4] sm:$0x1]
    %v3069 = vsel %vm2070, %v2568, %v3068
    %3070 = vst [vmem:[%s2067 + $0xa4] sm:$0x1] %v3069
    %v3071 = vld [vmem:[%s2067 + $0xa8] sm:$0xf]
    %v3072 = vsel %vm2972, %v2575, %v3071
    %3073 = vst [vmem:[%s2067 + $0xa8] sm:$0xf] %v3072
    %3074 = vst [vmem:[%s2067 + $0xac] sm:$0xf] %v2584
    %v3075 = vld [vmem:[%s2067 + $0xb0] sm:$0x1]
    %v3076 = vsel %vm2070, %v2585, %v3075
    %3077 = vst [vmem:[%s2067 + $0xb0] sm:$0x1] %v3076
    %v3078 = vld [vmem:[%s2067 + $0xb4] sm:$0xf]
    %v3079 = vsel %vm2972, %v2592, %v3078
    %3080 = vst [vmem:[%s2067 + $0xb4] sm:$0xf] %v3079
    %3081 = vst [vmem:[%s2067 + $0xb8] sm:$0xf] %v2601
    %v3082 = vld [vmem:[%s2067 + $0xbc] sm:$0x1]
    %v3083 = vsel %vm2070, %v2602, %v3082
    %3084 = vst [vmem:[%s2067 + $0xbc] sm:$0x1] %v3083
    %v3085 = vld [vmem:[%s2067 + $0xd8] sm:$0xf]
    %v3086 = vsel %vm2972, %v2609, %v3085
    %3087 = vst [vmem:[%s2067 + $0xd8] sm:$0xf] %v3086
    %3088 = vst [vmem:[%s2067 + $0xdc] sm:$0xf] %v2618
    %v3089 = vld [vmem:[%s2067 + $0xe0] sm:$0x1]
    %v3090 = vsel %vm2070, %v2619, %v3089
    %3091 = vst [vmem:[%s2067 + $0xe0] sm:$0x1] %v3090
    %v3092 = vld [vmem:[%s2067 + $0xe4] sm:$0xf]
    %v3093 = vsel %vm2972, %v2626, %v3092
    %3094 = vst [vmem:[%s2067 + $0xe4] sm:$0xf] %v3093
    %3095 = vst [vmem:[%s2067 + $0xe8] sm:$0xf] %v2635
    %v3096 = vld [vmem:[%s2067 + $0xec] sm:$0x1]
    %v3097 = vsel %vm2070, %v2636, %v3096
    %3098 = vst [vmem:[%s2067 + $0xec] sm:$0x1] %v3097
    %v3099 = vld [vmem:[%s2067 + $0xf0] sm:$0xf]
    %v3100 = vsel %vm2972, %v2643, %v3099
    %3101 = vst [vmem:[%s2067 + $0xf0] sm:$0xf] %v3100
    %3102 = vst [vmem:[%s2067 + $0xf4] sm:$0xf] %v2652
    %v3103 = vld [vmem:[%s2067 + $0xf8] sm:$0x1]
    %v3104 = vsel %vm2070, %v2653, %v3103
    %3105 = vst [vmem:[%s2067 + $0xf8] sm:$0x1] %v3104
    %v3106 = vld [vmem:[%s2067 + $0xfc] sm:$0xf]
    %v3107 = vsel %vm2972, %v2660, %v3106
    %3108 = vst [vmem:[%s2067 + $0xfc] sm:$0xf] %v3107
    %3109 = vst [vmem:[%s2067 + $0x100] sm:$0xf] %v2669
    %v3110 = vld [vmem:[%s2067 + $0x104] sm:$0x1]
    %v3111 = vsel %vm2070, %v2670, %v3110
    %3112 = vst [vmem:[%s2067 + $0x104] sm:$0x1] %v3111
    %v3113 = vld [vmem:[%s2067 + $0x108] sm:$0xf]
    %v3114 = vsel %vm2972, %v2677, %v3113
    %3115 = vst [vmem:[%s2067 + $0x108] sm:$0xf] %v3114
    %3116 = vst [vmem:[%s2067 + $0x10c] sm:$0xf] %v2686
    %v3117 = vld [vmem:[%s2067 + $0x110] sm:$0x1]
    %v3118 = vsel %vm2070, %v2687, %v3117
    %3119 = vst [vmem:[%s2067 + $0x110] sm:$0x1] %v3118
    %v3120 = vld [vmem:[%s2067 + $0x114] sm:$0xf]
    %v3121 = vsel %vm2972, %v2694, %v3120
    %3122 = vst [vmem:[%s2067 + $0x114] sm:$0xf] %v3121
    %3123 = vst [vmem:[%s2067 + $0x118] sm:$0xf] %v2703
    %v3124 = vld [vmem:[%s2067 + $0x11c] sm:$0x1]
    %v3125 = vsel %vm2070, %v2704, %v3124
    %3126 = vst [vmem:[%s2067 + $0x11c] sm:$0x1] %v3125
    %v3127 = vld [vmem:[%s2067 + $0x120] sm:$0xf]
    %v3128 = vsel %vm2972, %v2711, %v3127
    %3129 = vst [vmem:[%s2067 + $0x120] sm:$0xf] %v3128
    %3130 = vst [vmem:[%s2067 + $0x124] sm:$0xf] %v2720
    %v3131 = vld [vmem:[%s2067 + $0x128] sm:$0x1]
    %v3132 = vsel %vm2070, %v2721, %v3131
    %3133 = vst [vmem:[%s2067 + $0x128] sm:$0x1] %v3132
    %v3134 = vld [vmem:[%s2067 + $0x12c] sm:$0xf]
    %v3135 = vsel %vm2972, %v2728, %v3134
    %3136 = vst [vmem:[%s2067 + $0x12c] sm:$0xf] %v3135
    %3137 = vst [vmem:[%s2067 + $0x130] sm:$0xf] %v2737
    %v3138 = vld [vmem:[%s2067 + $0x134] sm:$0x1]
    %v3139 = vsel %vm2070, %v2738, %v3138
    %3140 = vst [vmem:[%s2067 + $0x134] sm:$0x1] %v3139
    %v3141 = vld [vmem:[%s2067 + $0x138] sm:$0xf]
    %v3142 = vsel %vm2972, %v2745, %v3141
    %3143 = vst [vmem:[%s2067 + $0x138] sm:$0xf] %v3142
    %3144 = vst [vmem:[%s2067 + $0x13c] sm:$0xf] %v2754
    %v3145 = vld [vmem:[%s2067 + $0x140] sm:$0x1]
    %v3146 = vsel %vm2070, %v2755, %v3145
    %3147 = vst [vmem:[%s2067 + $0x140] sm:$0x1] %v3146
    %v3148 = vld [vmem:[%s2067 + $0x144] sm:$0xf]
    %v3149 = vsel %vm2972, %v2762, %v3148
    %3150 = vst [vmem:[%s2067 + $0x144] sm:$0xf] %v3149
    %3151 = vst [vmem:[%s2067 + $0x148] sm:$0xf] %v2771
    %v3152 = vld [vmem:[%s2067 + $0x14c] sm:$0x1]
    %v3153 = vsel %vm2070, %v2772, %v3152
    %3154 = vst [vmem:[%s2067 + $0x14c] sm:$0x1] %v3153
    %v3155 = vld [vmem:[%s2067 + $0x150] sm:$0xf]
    %v3156 = vsel %vm2972, %v2779, %v3155
    %3157 = vst [vmem:[%s2067 + $0x150] sm:$0xf] %v3156
    %3158 = vst [vmem:[%s2067 + $0x154] sm:$0xf] %v2788
    %v3159 = vld [vmem:[%s2067 + $0x158] sm:$0x1]
    %v3160 = vsel %vm2070, %v2789, %v3159
    %3161 = vst [vmem:[%s2067 + $0x158] sm:$0x1] %v3160
    %v3162 = vld [vmem:[%s2067 + $0x15c] sm:$0xf]
    %v3163 = vsel %vm2972, %v2796, %v3162
    %3164 = vst [vmem:[%s2067 + $0x15c] sm:$0xf] %v3163
    %3165 = vst [vmem:[%s2067 + $0x160] sm:$0xf] %v2805
    %v3166 = vld [vmem:[%s2067 + $0x164] sm:$0x1]
    %v3167 = vsel %vm2070, %v2806, %v3166
    %3168 = vst [vmem:[%s2067 + $0x164] sm:$0x1] %v3167
    %v3169 = vld [vmem:[%s2067 + $0x168] sm:$0xf]
    %v3170 = vsel %vm2972, %v2813, %v3169
    %3171 = vst [vmem:[%s2067 + $0x168] sm:$0xf] %v3170
    %3172 = vst [vmem:[%s2067 + $0x16c] sm:$0xf] %v2822
    %v3173 = vld [vmem:[%s2067 + $0x170] sm:$0x1]
    %v3174 = vsel %vm2070, %v2823, %v3173
    %3175 = vst [vmem:[%s2067 + $0x170] sm:$0x1] %v3174
    %v3176 = vld [vmem:[%s2067 + $0x174] sm:$0xf]
    %v3177 = vsel %vm2972, %v2830, %v3176
    %3178 = vst [vmem:[%s2067 + $0x174] sm:$0xf] %v3177
    %3179 = vst [vmem:[%s2067 + $0x178] sm:$0xf] %v2839
    %v3180 = vld [vmem:[%s2067 + $0x17c] sm:$0x1]
    %v3181 = vsel %vm2070, %v2840, %v3180
    %3182 = vst [vmem:[%s2067 + $0x17c] sm:$0x1] %v3181
    %v3183 = vld [vmem:[%s2067 + $0x180] sm:$0xf]
    %v3184 = vsel %vm2972, %v2847, %v3183
    %3185 = vst [vmem:[%s2067 + $0x180] sm:$0xf] %v3184
    %3186 = vst [vmem:[%s2067 + $0x184] sm:$0xf] %v2856
    %v3187 = vld [vmem:[%s2067 + $0x188] sm:$0x1]
    %v3188 = vsel %vm2070, %v2857, %v3187
    %3189 = vst [vmem:[%s2067 + $0x188] sm:$0x1] %v3188
    %v3190 = vld [vmem:[%s2067 + $0x18c] sm:$0xf]
    %v3191 = vsel %vm2972, %v2864, %v3190
    %3192 = vst [vmem:[%s2067 + $0x18c] sm:$0xf] %v3191
    %3193 = vst [vmem:[%s2067 + $0x190] sm:$0xf] %v2873
    %v3194 = vld [vmem:[%s2067 + $0x194] sm:$0x1]
    %v3195 = vsel %vm2070, %v2874, %v3194
    %3196 = vst [vmem:[%s2067 + $0x194] sm:$0x1] %v3195
    %v3197 = vld [vmem:[#allocation2] sm:$0xf]
    %v3198 = vld [vmem:[#allocation2 + $0x4] sm:$0xf]
    %v3199 = vld [vmem:[#allocation2 + $0xc] sm:$0xf]
    %v3200 = vld [vmem:[#allocation2 + $0x10] sm:$0xf]
    %v3201 = vld [vmem:[#allocation2 + $0x18] sm:$0xf]
    %v3202 = vld [vmem:[#allocation2 + $0x1c] sm:$0xf]
    %v3203 = vld [vmem:[#allocation2 + $0x24] sm:$0xf]
    %v3204 = vld [vmem:[#allocation2 + $0x28] sm:$0xf]
    %v3205 = vld [vmem:[#allocation2 + $0x30] sm:$0xf]
    %v3206 = vld [vmem:[#allocation2 + $0x34] sm:$0xf]
    %v3207 = vld [vmem:[#allocation2 + $0x3c] sm:$0xf]
    %v3208 = vld [vmem:[#allocation2 + $0x40] sm:$0xf]
    %v3209 = vld [vmem:[#allocation2 + $0x48] sm:$0xf]
    %v3210 = vld [vmem:[#allocation2 + $0x4c] sm:$0xf]
    %v3211 = vld [vmem:[#allocation2 + $0x54] sm:$0xf]
    %v3212 = vld [vmem:[#allocation2 + $0x58] sm:$0xf]
    %v3213 = vld [vmem:[#allocation2 + $0x60] sm:$0xf]
    %v3214 = vld [vmem:[#allocation2 + $0x64] sm:$0xf]
    %v3215 = vld [vmem:[#allocation2 + $0x6c] sm:$0xf]
    %v3216 = vld [vmem:[#allocation2 + $0x70] sm:$0xf]
    %v3217 = vld [vmem:[#allocation2 + $0x78] sm:$0xf]
    %v3218 = vld [vmem:[#allocation2 + $0x7c] sm:$0xf]
    %v3219 = vld [vmem:[#allocation2 + $0x84] sm:$0xf]
    %v3220 = vld [vmem:[#allocation2 + $0x88] sm:$0xf]
    %v3221 = vld [vmem:[#allocation2 + $0x90] sm:$0xf]
    %v3222 = vld [vmem:[#allocation2 + $0x94] sm:$0xf]
    %v3223 = vld [vmem:[#allocation2 + $0x9c] sm:$0xf]
    %v3224 = vld [vmem:[#allocation2 + $0xa0] sm:$0xf]
    %v3225 = vld [vmem:[#allocation2 + $0xa8] sm:$0xf]
    %v3226 = vld [vmem:[#allocation2 + $0xac] sm:$0xf]
    %v3227 = vld [vmem:[#allocation2 + $0xb4] sm:$0xf]
    %v3228 = vld [vmem:[#allocation2 + $0xb8] sm:$0xf]
    %v3229 = vld [vmem:[#allocation2 + $0xd8] sm:$0xf]
    %v3230 = vld [vmem:[#allocation2 + $0xdc] sm:$0xf]
    %v3231 = vld [vmem:[#allocation2 + $0xe4] sm:$0xf]
    %v3232 = vld [vmem:[#allocation2 + $0xe8] sm:$0xf]
    %v3233 = vld [vmem:[#allocation2 + $0xf0] sm:$0xf]
    %v3234 = vld [vmem:[#allocation2 + $0xf4] sm:$0xf]
    %v3235 = vld [vmem:[#allocation2 + $0xfc] sm:$0xf]
    %v3236 = vld [vmem:[#allocation2 + $0x100] sm:$0xf]
    %v3237 = vld [vmem:[#allocation2 + $0x108] sm:$0xf]
    %v3238 = vld [vmem:[#allocation2 + $0x10c] sm:$0xf]
    %v3239 = vld [vmem:[#allocation2 + $0x114] sm:$0xf]
    %v3240 = vld [vmem:[#allocation2 + $0x118] sm:$0xf]
    %v3241 = vld [vmem:[#allocation2 + $0x120] sm:$0xf]
    %v3242 = vld [vmem:[#allocation2 + $0x124] sm:$0xf]
    %v3243 = vld [vmem:[#allocation2 + $0x12c] sm:$0xf]
    %v3244 = vld [vmem:[#allocation2 + $0x130] sm:$0xf]
    %v3245 = vld [vmem:[#allocation2 + $0x138] sm:$0xf]
    %v3246 = vld [vmem:[#allocation2 + $0x13c] sm:$0xf]
    %v3247 = vld [vmem:[#allocation2 + $0x144] sm:$0xf]
    %v3248 = vld [vmem:[#allocation2 + $0x148] sm:$0xf]
    %v3249 = vld [vmem:[#allocation2 + $0x150] sm:$0xf]
    %v3250 = vld [vmem:[#allocation2 + $0x154] sm:$0xf]
    %v3251 = vld [vmem:[#allocation2 + $0x15c] sm:$0xf]
    %v3252 = vld [vmem:[#allocation2 + $0x160] sm:$0xf]
    %v3253 = vld [vmem:[#allocation2 + $0x168] sm:$0xf]
    %v3254 = vld [vmem:[#allocation2 + $0x16c] sm:$0xf]
    %v3255 = vld [vmem:[#allocation2 + $0x174] sm:$0xf]
    %v3256 = vld [vmem:[#allocation2 + $0x178] sm:$0xf]
    %v3257 = vld [vmem:[#allocation2 + $0x180] sm:$0xf]
    %v3258 = vld [vmem:[#allocation2 + $0x184] sm:$0xf]
    %v3259 = vld [vmem:[#allocation2 + $0x18c] sm:$0xf]
    %v3260 = vld [vmem:[#allocation2 + $0x190] sm:$0xf]
    %v3261 = vld [vmem:[#allocation11] sm:$0xf]
    %v3262 = vld [vmem:[#allocation11 + $0x4] sm:$0xf]
    %v3263 = vld [vmem:[#allocation11 + $0x8] sm:$0xf]
    %v3264 = vld [vmem:[#allocation11 + $0xc] sm:$0xf]
    %v3265 = vld [vmem:[#allocation11 + $0x10] sm:$0xf]
    %v3266 = vld [vmem:[#allocation11 + $0x14] sm:$0xf]
    %v3267 = vld [vmem:[#allocation11 + $0x18] sm:$0xf]
    %v3268 = vld [vmem:[#allocation11 + $0x1c] sm:$0xf]
    %v3269 = vld [vmem:[#allocation11 + $0x20] sm:$0xf]
    %v3270 = vld [vmem:[#allocation11 + $0x24] sm:$0xf]
    %v3271 = vld [vmem:[#allocation11 + $0x28] sm:$0xf]
    %v3272 = vld [vmem:[#allocation11 + $0x2c] sm:$0xf]
    %v3273 = vld [vmem:[#allocation11 + $0x30] sm:$0xf]
    %v3274 = vld [vmem:[#allocation11 + $0x34] sm:$0xf]
    %v3275 = vld [vmem:[#allocation11 + $0x38] sm:$0xf]
    %v3276 = vld [vmem:[#allocation11 + $0x3c] sm:$0xf]
    %v3277 = vld [vmem:[#allocation2 + $0x8] sm:$0x1]
    %v3278 = vld [vmem:[#allocation2 + $0x14] sm:$0x1]
    %v3279 = vld [vmem:[#allocation2 + $0x20] sm:$0x1]
    %v3280 = vld [vmem:[#allocation2 + $0x2c] sm:$0x1]
    %v3281 = vld [vmem:[#allocation2 + $0x38] sm:$0x1]
    %v3282 = vld [vmem:[#allocation2 + $0x44] sm:$0x1]
    %v3283 = vld [vmem:[#allocation2 + $0x50] sm:$0x1]
    %v3284 = vld [vmem:[#allocation2 + $0x5c] sm:$0x1]
    %v3285 = vld [vmem:[#allocation2 + $0x68] sm:$0x1]
    %v3286 = vld [vmem:[#allocation2 + $0x74] sm:$0x1]
    %v3287 = vld [vmem:[#allocation2 + $0x80] sm:$0x1]
    %v3288 = vld [vmem:[#allocation2 + $0x8c] sm:$0x1]
    %v3289 = vld [vmem:[#allocation2 + $0x98] sm:$0x1]
    %v3290 = vld [vmem:[#allocation2 + $0xa4] sm:$0x1]
    %v3291 = vld [vmem:[#allocation2 + $0xb0] sm:$0x1]
    %v3292 = vld [vmem:[#allocation2 + $0xbc] sm:$0x1]
    %v3293 = vld [vmem:[#allocation2 + $0xe0] sm:$0x1]
    %v3294 = vld [vmem:[#allocation2 + $0xec] sm:$0x1]
    %v3295 = vld [vmem:[#allocation2 + $0xf8] sm:$0x1]
    %v3296 = vld [vmem:[#allocation2 + $0x104] sm:$0x1]
    %v3297 = vld [vmem:[#allocation2 + $0x110] sm:$0x1]
    %v3298 = vld [vmem:[#allocation2 + $0x11c] sm:$0x1]
    %v3299 = vld [vmem:[#allocation2 + $0x128] sm:$0x1]
    %v3300 = vld [vmem:[#allocation2 + $0x134] sm:$0x1]
    %v3301 = vld [vmem:[#allocation2 + $0x140] sm:$0x1]
    %v3302 = vld [vmem:[#allocation2 + $0x14c] sm:$0x1]
    %v3303 = vld [vmem:[#allocation2 + $0x158] sm:$0x1]
    %v3304 = vld [vmem:[#allocation2 + $0x164] sm:$0x1]
    %v3305 = vld [vmem:[#allocation2 + $0x170] sm:$0x1]
    %v3306 = vld [vmem:[#allocation2 + $0x17c] sm:$0x1]
    %v3307 = vld [vmem:[#allocation2 + $0x188] sm:$0x1]
    %v3308 = vld [vmem:[#allocation2 + $0x194] sm:$0x1]
    %vm3309 = vsmask.f32 3328
    %vm3310 = vsmask.f32 7440
    %vm3311 = vmor %vm3309, %vm3310
    %v3313 = vshrl.u32 %v3197, 16
    %v3315 = vrot.slane %v3313, 4
    %v3316 = vshll.u32 %v3197, 16
    %v3318 = vrot.slane %v3316, 5
    %v3319 = vor.u32 %v3315, %v3318
    %v3320 = vrot.slane %v3319, 4
    %v3322 = vshll.u32 %v3198, 16
    %v3324 = vrot.slane %v3322, 5
    %v3325 = vsel %vm3311, %v3320, %v3324
    %v3326 = vshrl.u32 %v3198, 16
    %v3328 = vrot.slane %v3326, 4
    %v3329 = vor.u32 %v3328, %v3324
    %v3330 = vrot.slane %v3329, 4
    %v3332 = vshll.u32 %v3277, 16
    %v3334 = vrot.slane %v3332, 5
    %v3335 = vsel %vm3311, %v3330, %v3334
    %v3337 = vshrl.u32 %v3199, 16
    %v3339 = vrot.slane %v3337, 4
    %v3340 = vshll.u32 %v3199, 16
    %v3342 = vrot.slane %v3340, 5
    %v3343 = vor.u32 %v3339, %v3342
    %v3344 = vrot.slane %v3343, 4
    %v3346 = vshll.u32 %v3200, 16
    %v3348 = vrot.slane %v3346, 5
    %v3349 = vsel %vm3311, %v3344, %v3348
    %v3350 = vshrl.u32 %v3200, 16
    %v3352 = vrot.slane %v3350, 4
    %v3353 = vor.u32 %v3352, %v3348
    %v3354 = vrot.slane %v3353, 4
    %v3356 = vshll.u32 %v3278, 16
    %v3358 = vrot.slane %v3356, 5
    %v3359 = vsel %vm3311, %v3354, %v3358
    %v3361 = vshrl.u32 %v3201, 16
    %v3363 = vrot.slane %v3361, 4
    %v3364 = vshll.u32 %v3201, 16
    %v3366 = vrot.slane %v3364, 5
    %v3367 = vor.u32 %v3363, %v3366
    %v3368 = vrot.slane %v3367, 4
    %v3370 = vshll.u32 %v3202, 16
    %v3372 = vrot.slane %v3370, 5
    %v3373 = vsel %vm3311, %v3368, %v3372
    %v3374 = vshrl.u32 %v3202, 16
    %v3376 = vrot.slane %v3374, 4
    %v3377 = vor.u32 %v3376, %v3372
    %v3378 = vrot.slane %v3377, 4
    %v3380 = vshll.u32 %v3279, 16
    %v3382 = vrot.slane %v3380, 5
    %v3383 = vsel %vm3311, %v3378, %v3382
    %v3385 = vshrl.u32 %v3203, 16
    %v3387 = vrot.slane %v3385, 4
    %v3388 = vshll.u32 %v3203, 16
    %v3390 = vrot.slane %v3388, 5
    %v3391 = vor.u32 %v3387, %v3390
    %v3392 = vrot.slane %v3391, 4
    %v3394 = vshll.u32 %v3204, 16
    %v3396 = vrot.slane %v3394, 5
    %v3397 = vsel %vm3311, %v3392, %v3396
    %v3398 = vshrl.u32 %v3204, 16
    %v3400 = vrot.slane %v3398, 4
    %v3401 = vor.u32 %v3400, %v3396
    %v3402 = vrot.slane %v3401, 4
    %v3404 = vshll.u32 %v3280, 16
    %v3406 = vrot.slane %v3404, 5
    %v3407 = vsel %vm3311, %v3402, %v3406
    %v3409 = vshrl.u32 %v3205, 16
    %v3411 = vrot.slane %v3409, 4
    %v3412 = vshll.u32 %v3205, 16
    %v3414 = vrot.slane %v3412, 5
    %v3415 = vor.u32 %v3411, %v3414
    %v3416 = vrot.slane %v3415, 4
    %v3418 = vshll.u32 %v3206, 16
    %v3420 = vrot.slane %v3418, 5
    %v3421 = vsel %vm3311, %v3416, %v3420
    %v3422 = vshrl.u32 %v3206, 16
    %v3424 = vrot.slane %v3422, 4
    %v3425 = vor.u32 %v3424, %v3420
    %v3426 = vrot.slane %v3425, 4
    %v3428 = vshll.u32 %v3281, 16
    %v3430 = vrot.slane %v3428, 5
    %v3431 = vsel %vm3311, %v3426, %v3430
    %v3433 = vshrl.u32 %v3207, 16
    %v3435 = vrot.slane %v3433, 4
    %v3436 = vshll.u32 %v3207, 16
    %v3438 = vrot.slane %v3436, 5
    %v3439 = vor.u32 %v3435, %v3438
    %v3440 = vrot.slane %v3439, 4
    %v3442 = vshll.u32 %v3208, 16
    %v3444 = vrot.slane %v3442, 5
    %v3445 = vsel %vm3311, %v3440, %v3444
    %v3446 = vshrl.u32 %v3208, 16
    %v3448 = vrot.slane %v3446, 4
    %v3449 = vor.u32 %v3448, %v3444
    %v3450 = vrot.slane %v3449, 4
    %v3452 = vshll.u32 %v3282, 16
    %v3454 = vrot.slane %v3452, 5
    %v3455 = vsel %vm3311, %v3450, %v3454
    %v3457 = vshrl.u32 %v3209, 16
    %v3459 = vrot.slane %v3457, 4
    %v3460 = vshll.u32 %v3209, 16
    %v3462 = vrot.slane %v3460, 5
    %v3463 = vor.u32 %v3459, %v3462
    %v3464 = vrot.slane %v3463, 4
    %v3466 = vshll.u32 %v3210, 16
    %v3468 = vrot.slane %v3466, 5
    %v3469 = vsel %vm3311, %v3464, %v3468
    %v3470 = vshrl.u32 %v3210, 16
    %v3472 = vrot.slane %v3470, 4
    %v3473 = vor.u32 %v3472, %v3468
    %v3474 = vrot.slane %v3473, 4
    %v3476 = vshll.u32 %v3283, 16
    %v3478 = vrot.slane %v3476, 5
    %v3479 = vsel %vm3311, %v3474, %v3478
    %v3481 = vshrl.u32 %v3211, 16
    %v3483 = vrot.slane %v3481, 4
    %v3484 = vshll.u32 %v3211, 16
    %v3486 = vrot.slane %v3484, 5
    %v3487 = vor.u32 %v3483, %v3486
    %v3488 = vrot.slane %v3487, 4
    %v3490 = vshll.u32 %v3212, 16
    %v3492 = vrot.slane %v3490, 5
    %v3493 = vsel %vm3311, %v3488, %v3492
    %v3494 = vshrl.u32 %v3212, 16
    %v3496 = vrot.slane %v3494, 4
    %v3497 = vor.u32 %v3496, %v3492
    %v3498 = vrot.slane %v3497, 4
    %v3500 = vshll.u32 %v3284, 16
    %v3502 = vrot.slane %v3500, 5
    %v3503 = vsel %vm3311, %v3498, %v3502
    %v3505 = vshrl.u32 %v3213, 16
    %v3507 = vrot.slane %v3505, 4
    %v3508 = vshll.u32 %v3213, 16
    %v3510 = vrot.slane %v3508, 5
    %v3511 = vor.u32 %v3507, %v3510
    %v3512 = vrot.slane %v3511, 4
    %v3514 = vshll.u32 %v3214, 16
    %v3516 = vrot.slane %v3514, 5
    %v3517 = vsel %vm3311, %v3512, %v3516
    %v3518 = vshrl.u32 %v3214, 16
    %v3520 = vrot.slane %v3518, 4
    %v3521 = vor.u32 %v3520, %v3516
    %v3522 = vrot.slane %v3521, 4
    %v3524 = vshll.u32 %v3285, 16
    %v3526 = vrot.slane %v3524, 5
    %v3527 = vsel %vm3311, %v3522, %v3526
    %v3529 = vshrl.u32 %v3215, 16
    %v3531 = vrot.slane %v3529, 4
    %v3532 = vshll.u32 %v3215, 16
    %v3534 = vrot.slane %v3532, 5
    %v3535 = vor.u32 %v3531, %v3534
    %v3536 = vrot.slane %v3535, 4
    %v3538 = vshll.u32 %v3216, 16
    %v3540 = vrot.slane %v3538, 5
    %v3541 = vsel %vm3311, %v3536, %v3540
    %v3542 = vshrl.u32 %v3216, 16
    %v3544 = vrot.slane %v3542, 4
    %v3545 = vor.u32 %v3544, %v3540
    %v3546 = vrot.slane %v3545, 4
    %v3548 = vshll.u32 %v3286, 16
    %v3550 = vrot.slane %v3548, 5
    %v3551 = vsel %vm3311, %v3546, %v3550
    %v3553 = vshrl.u32 %v3217, 16
    %v3555 = vrot.slane %v3553, 4
    %v3556 = vshll.u32 %v3217, 16
    %v3558 = vrot.slane %v3556, 5
    %v3559 = vor.u32 %v3555, %v3558
    %v3560 = vrot.slane %v3559, 4
    %v3562 = vshll.u32 %v3218, 16
    %v3564 = vrot.slane %v3562, 5
    %v3565 = vsel %vm3311, %v3560, %v3564
    %v3566 = vshrl.u32 %v3218, 16
    %v3568 = vrot.slane %v3566, 4
    %v3569 = vor.u32 %v3568, %v3564
    %v3570 = vrot.slane %v3569, 4
    %v3572 = vshll.u32 %v3287, 16
    %v3574 = vrot.slane %v3572, 5
    %v3575 = vsel %vm3311, %v3570, %v3574
    %v3577 = vshrl.u32 %v3219, 16
    %v3579 = vrot.slane %v3577, 4
    %v3580 = vshll.u32 %v3219, 16
    %v3582 = vrot.slane %v3580, 5
    %v3583 = vor.u32 %v3579, %v3582
    %v3584 = vrot.slane %v3583, 4
    %v3586 = vshll.u32 %v3220, 16
    %v3588 = vrot.slane %v3586, 5
    %v3589 = vsel %vm3311, %v3584, %v3588
    %v3590 = vshrl.u32 %v3220, 16
    %v3592 = vrot.slane %v3590, 4
    %v3593 = vor.u32 %v3592, %v3588
    %v3594 = vrot.slane %v3593, 4
    %v3596 = vshll.u32 %v3288, 16
    %v3598 = vrot.slane %v3596, 5
    %v3599 = vsel %vm3311, %v3594, %v3598
    %v3601 = vshrl.u32 %v3221, 16
    %v3603 = vrot.slane %v3601, 4
    %v3604 = vshll.u32 %v3221, 16
    %v3606 = vrot.slane %v3604, 5
    %v3607 = vor.u32 %v3603, %v3606
    %v3608 = vrot.slane %v3607, 4
    %v3610 = vshll.u32 %v3222, 16
    %v3612 = vrot.slane %v3610, 5
    %v3613 = vsel %vm3311, %v3608, %v3612
    %v3614 = vshrl.u32 %v3222, 16
    %v3616 = vrot.slane %v3614, 4
    %v3617 = vor.u32 %v3616, %v3612
    %v3618 = vrot.slane %v3617, 4
    %v3620 = vshll.u32 %v3289, 16
    %v3622 = vrot.slane %v3620, 5
    %v3623 = vsel %vm3311, %v3618, %v3622
    %v3625 = vshrl.u32 %v3223, 16
    %v3627 = vrot.slane %v3625, 4
    %v3628 = vshll.u32 %v3223, 16
    %v3630 = vrot.slane %v3628, 5
    %v3631 = vor.u32 %v3627, %v3630
    %v3632 = vrot.slane %v3631, 4
    %v3634 = vshll.u32 %v3224, 16
    %v3636 = vrot.slane %v3634, 5
    %v3637 = vsel %vm3311, %v3632, %v3636
    %v3638 = vshrl.u32 %v3224, 16
    %v3640 = vrot.slane %v3638, 4
    %v3641 = vor.u32 %v3640, %v3636
    %v3642 = vrot.slane %v3641, 4
    %v3644 = vshll.u32 %v3290, 16
    %v3646 = vrot.slane %v3644, 5
    %v3647 = vsel %vm3311, %v3642, %v3646
    %v3649 = vshrl.u32 %v3225, 16
    %v3651 = vrot.slane %v3649, 4
    %v3652 = vshll.u32 %v3225, 16
    %v3654 = vrot.slane %v3652, 5
    %v3655 = vor.u32 %v3651, %v3654
    %v3656 = vrot.slane %v3655, 4
    %v3658 = vshll.u32 %v3226, 16
    %v3660 = vrot.slane %v3658, 5
    %v3661 = vsel %vm3311, %v3656, %v3660
    %v3662 = vshrl.u32 %v3226, 16
    %v3664 = vrot.slane %v3662, 4
    %v3665 = vor.u32 %v3664, %v3660
    %v3666 = vrot.slane %v3665, 4
    %v3668 = vshll.u32 %v3291, 16
    %v3670 = vrot.slane %v3668, 5
    %v3671 = vsel %vm3311, %v3666, %v3670
    %v3673 = vshrl.u32 %v3227, 16
    %v3675 = vrot.slane %v3673, 4
    %v3676 = vshll.u32 %v3227, 16
    %v3678 = vrot.slane %v3676, 5
    %v3679 = vor.u32 %v3675, %v3678
    %v3680 = vrot.slane %v3679, 4
    %v3682 = vshll.u32 %v3228, 16
    %v3684 = vrot.slane %v3682, 5
    %v3685 = vsel %vm3311, %v3680, %v3684
    %v3686 = vshrl.u32 %v3228, 16
    %v3688 = vrot.slane %v3686, 4
    %v3689 = vor.u32 %v3688, %v3684
    %v3690 = vrot.slane %v3689, 4
    %v3692 = vshll.u32 %v3292, 16
    %v3694 = vrot.slane %v3692, 5
    %v3695 = vsel %vm3311, %v3690, %v3694
    %v3697 = vshrl.u32 %v3229, 16
    %v3699 = vrot.slane %v3697, 4
    %v3700 = vshll.u32 %v3229, 16
    %v3702 = vrot.slane %v3700, 5
    %v3703 = vor.u32 %v3699, %v3702
    %v3704 = vrot.slane %v3703, 4
    %v3706 = vshll.u32 %v3230, 16
    %v3708 = vrot.slane %v3706, 5
    %v3709 = vsel %vm3311, %v3704, %v3708
    %v3710 = vshrl.u32 %v3230, 16
    %v3712 = vrot.slane %v3710, 4
    %v3713 = vor.u32 %v3712, %v3708
    %v3714 = vrot.slane %v3713, 4
    %v3716 = vshll.u32 %v3293, 16
    %v3718 = vrot.slane %v3716, 5
    %v3719 = vsel %vm3311, %v3714, %v3718
    %v3721 = vshrl.u32 %v3231, 16
    %v3723 = vrot.slane %v3721, 4
    %v3724 = vshll.u32 %v3231, 16
    %v3726 = vrot.slane %v3724, 5
    %v3727 = vor.u32 %v3723, %v3726
    %v3728 = vrot.slane %v3727, 4
    %v3730 = vshll.u32 %v3232, 16
    %v3732 = vrot.slane %v3730, 5
    %v3733 = vsel %vm3311, %v3728, %v3732
    %v3734 = vshrl.u32 %v3232, 16
    %v3736 = vrot.slane %v3734, 4
    %v3737 = vor.u32 %v3736, %v3732
    %v3738 = vrot.slane %v3737, 4
    %v3740 = vshll.u32 %v3294, 16
    %v3742 = vrot.slane %v3740, 5
    %v3743 = vsel %vm3311, %v3738, %v3742
    %v3745 = vshrl.u32 %v3233, 16
    %v3747 = vrot.slane %v3745, 4
    %v3748 = vshll.u32 %v3233, 16
    %v3750 = vrot.slane %v3748, 5
    %v3751 = vor.u32 %v3747, %v3750
    %v3752 = vrot.slane %v3751, 4
    %v3754 = vshll.u32 %v3234, 16
    %v3756 = vrot.slane %v3754, 5
    %v3757 = vsel %vm3311, %v3752, %v3756
    %v3758 = vshrl.u32 %v3234, 16
    %v3760 = vrot.slane %v3758, 4
    %v3761 = vor.u32 %v3760, %v3756
    %v3762 = vrot.slane %v3761, 4
    %v3764 = vshll.u32 %v3295, 16
    %v3766 = vrot.slane %v3764, 5
    %v3767 = vsel %vm3311, %v3762, %v3766
    %v3769 = vshrl.u32 %v3235, 16
    %v3771 = vrot.slane %v3769, 4
    %v3772 = vshll.u32 %v3235, 16
    %v3774 = vrot.slane %v3772, 5
    %v3775 = vor.u32 %v3771, %v3774
    %v3776 = vrot.slane %v3775, 4
    %v3778 = vshll.u32 %v3236, 16
    %v3780 = vrot.slane %v3778, 5
    %v3781 = vsel %vm3311, %v3776, %v3780
    %v3782 = vshrl.u32 %v3236, 16
    %v3784 = vrot.slane %v3782, 4
    %v3785 = vor.u32 %v3784, %v3780
    %v3786 = vrot.slane %v3785, 4
    %v3788 = vshll.u32 %v3296, 16
    %v3790 = vrot.slane %v3788, 5
    %v3791 = vsel %vm3311, %v3786, %v3790
    %v3793 = vshrl.u32 %v3237, 16
    %v3795 = vrot.slane %v3793, 4
    %v3796 = vshll.u32 %v3237, 16
    %v3798 = vrot.slane %v3796, 5
    %v3799 = vor.u32 %v3795, %v3798
    %v3800 = vrot.slane %v3799, 4
    %v3802 = vshll.u32 %v3238, 16
    %v3804 = vrot.slane %v3802, 5
    %v3805 = vsel %vm3311, %v3800, %v3804
    %v3806 = vshrl.u32 %v3238, 16
    %v3808 = vrot.slane %v3806, 4
    %v3809 = vor.u32 %v3808, %v3804
    %v3810 = vrot.slane %v3809, 4
    %v3812 = vshll.u32 %v3297, 16
    %v3814 = vrot.slane %v3812, 5
    %v3815 = vsel %vm3311, %v3810, %v3814
    %v3817 = vshrl.u32 %v3239, 16
    %v3819 = vrot.slane %v3817, 4
    %v3820 = vshll.u32 %v3239, 16
    %v3822 = vrot.slane %v3820, 5
    %v3823 = vor.u32 %v3819, %v3822
    %v3824 = vrot.slane %v3823, 4
    %v3826 = vshll.u32 %v3240, 16
    %v3828 = vrot.slane %v3826, 5
    %v3829 = vsel %vm3311, %v3824, %v3828
    %v3830 = vshrl.u32 %v3240, 16
    %v3832 = vrot.slane %v3830, 4
    %v3833 = vor.u32 %v3832, %v3828
    %v3834 = vrot.slane %v3833, 4
    %v3836 = vshll.u32 %v3298, 16
    %v3838 = vrot.slane %v3836, 5
    %v3839 = vsel %vm3311, %v3834, %v3838
    %v3841 = vshrl.u32 %v3241, 16
    %v3843 = vrot.slane %v3841, 4
    %v3844 = vshll.u32 %v3241, 16
    %v3846 = vrot.slane %v3844, 5
    %v3847 = vor.u32 %v3843, %v3846
    %v3848 = vrot.slane %v3847, 4
    %v3850 = vshll.u32 %v3242, 16
    %v3852 = vrot.slane %v3850, 5
    %v3853 = vsel %vm3311, %v3848, %v3852
    %v3854 = vshrl.u32 %v3242, 16
    %v3856 = vrot.slane %v3854, 4
    %v3857 = vor.u32 %v3856, %v3852
    %v3858 = vrot.slane %v3857, 4
    %v3860 = vshll.u32 %v3299, 16
    %v3862 = vrot.slane %v3860, 5
    %v3863 = vsel %vm3311, %v3858, %v3862
    %v3865 = vshrl.u32 %v3243, 16
    %v3867 = vrot.slane %v3865, 4
    %v3868 = vshll.u32 %v3243, 16
    %v3870 = vrot.slane %v3868, 5
    %v3871 = vor.u32 %v3867, %v3870
    %v3872 = vrot.slane %v3871, 4
    %v3874 = vshll.u32 %v3244, 16
    %v3876 = vrot.slane %v3874, 5
    %v3877 = vsel %vm3311, %v3872, %v3876
    %v3878 = vshrl.u32 %v3244, 16
    %v3880 = vrot.slane %v3878, 4
    %v3881 = vor.u32 %v3880, %v3876
    %v3882 = vrot.slane %v3881, 4
    %v3884 = vshll.u32 %v3300, 16
    %v3886 = vrot.slane %v3884, 5
    %v3887 = vsel %vm3311, %v3882, %v3886
    %v3889 = vshrl.u32 %v3245, 16
    %v3891 = vrot.slane %v3889, 4
    %v3892 = vshll.u32 %v3245, 16
    %v3894 = vrot.slane %v3892, 5
    %v3895 = vor.u32 %v3891, %v3894
    %v3896 = vrot.slane %v3895, 4
    %v3898 = vshll.u32 %v3246, 16
    %v3900 = vrot.slane %v3898, 5
    %v3901 = vsel %vm3311, %v3896, %v3900
    %v3902 = vshrl.u32 %v3246, 16
    %v3904 = vrot.slane %v3902, 4
    %v3905 = vor.u32 %v3904, %v3900
    %v3906 = vrot.slane %v3905, 4
    %v3908 = vshll.u32 %v3301, 16
    %v3910 = vrot.slane %v3908, 5
    %v3911 = vsel %vm3311, %v3906, %v3910
    %v3913 = vshrl.u32 %v3247, 16
    %v3915 = vrot.slane %v3913, 4
    %v3916 = vshll.u32 %v3247, 16
    %v3918 = vrot.slane %v3916, 5
    %v3919 = vor.u32 %v3915, %v3918
    %v3920 = vrot.slane %v3919, 4
    %v3922 = vshll.u32 %v3248, 16
    %v3924 = vrot.slane %v3922, 5
    %v3925 = vsel %vm3311, %v3920, %v3924
    %v3926 = vshrl.u32 %v3248, 16
    %v3928 = vrot.slane %v3926, 4
    %v3929 = vor.u32 %v3928, %v3924
    %v3930 = vrot.slane %v3929, 4
    %v3932 = vshll.u32 %v3302, 16
    %v3934 = vrot.slane %v3932, 5
    %v3935 = vsel %vm3311, %v3930, %v3934
    %v3937 = vshrl.u32 %v3249, 16
    %v3939 = vrot.slane %v3937, 4
    %v3940 = vshll.u32 %v3249, 16
    %v3942 = vrot.slane %v3940, 5
    %v3943 = vor.u32 %v3939, %v3942
    %v3944 = vrot.slane %v3943, 4
    %v3946 = vshll.u32 %v3250, 16
    %v3948 = vrot.slane %v3946, 5
    %v3949 = vsel %vm3311, %v3944, %v3948
    %v3950 = vshrl.u32 %v3250, 16
    %v3952 = vrot.slane %v3950, 4
    %v3953 = vor.u32 %v3952, %v3948
    %v3954 = vrot.slane %v3953, 4
    %v3956 = vshll.u32 %v3303, 16
    %v3958 = vrot.slane %v3956, 5
    %v3959 = vsel %vm3311, %v3954, %v3958
    %v3961 = vshrl.u32 %v3251, 16
    %v3963 = vrot.slane %v3961, 4
    %v3964 = vshll.u32 %v3251, 16
    %v3966 = vrot.slane %v3964, 5
    %v3967 = vor.u32 %v3963, %v3966
    %v3968 = vrot.slane %v3967, 4
    %v3970 = vshll.u32 %v3252, 16
    %v3972 = vrot.slane %v3970, 5
    %v3973 = vsel %vm3311, %v3968, %v3972
    %v3974 = vshrl.u32 %v3252, 16
    %v3976 = vrot.slane %v3974, 4
    %v3977 = vor.u32 %v3976, %v3972
    %v3978 = vrot.slane %v3977, 4
    %v3980 = vshll.u32 %v3304, 16
    %v3982 = vrot.slane %v3980, 5
    %v3983 = vsel %vm3311, %v3978, %v3982
    %v3985 = vshrl.u32 %v3253, 16
    %v3987 = vrot.slane %v3985, 4
    %v3988 = vshll.u32 %v3253, 16
    %v3990 = vrot.slane %v3988, 5
    %v3991 = vor.u32 %v3987, %v3990
    %v3992 = vrot.slane %v3991, 4
    %v3994 = vshll.u32 %v3254, 16
    %v3996 = vrot.slane %v3994, 5
    %v3997 = vsel %vm3311, %v3992, %v3996
    %v3998 = vshrl.u32 %v3254, 16
    %v4000 = vrot.slane %v3998, 4
    %v4001 = vor.u32 %v4000, %v3996
    %v4002 = vrot.slane %v4001, 4
    %v4004 = vshll.u32 %v3305, 16
    %v4006 = vrot.slane %v4004, 5
    %v4007 = vsel %vm3311, %v4002, %v4006
    %v4009 = vshrl.u32 %v3255, 16
    %v4011 = vrot.slane %v4009, 4
    %v4012 = vshll.u32 %v3255, 16
    %v4014 = vrot.slane %v4012, 5
    %v4015 = vor.u32 %v4011, %v4014
    %v4016 = vrot.slane %v4015, 4
    %v4018 = vshll.u32 %v3256, 16
    %v4020 = vrot.slane %v4018, 5
    %v4021 = vsel %vm3311, %v4016, %v4020
    %v4022 = vshrl.u32 %v3256, 16
    %v4024 = vrot.slane %v4022, 4
    %v4025 = vor.u32 %v4024, %v4020
    %v4026 = vrot.slane %v4025, 4
    %v4028 = vshll.u32 %v3306, 16
    %v4030 = vrot.slane %v4028, 5
    %v4031 = vsel %vm3311, %v4026, %v4030
    %v4033 = vshrl.u32 %v3257, 16
    %v4035 = vrot.slane %v4033, 4
    %v4036 = vshll.u32 %v3257, 16
    %v4038 = vrot.slane %v4036, 5
    %v4039 = vor.u32 %v4035, %v4038
    %v4040 = vrot.slane %v4039, 4
    %v4042 = vshll.u32 %v3258, 16
    %v4044 = vrot.slane %v4042, 5
    %v4045 = vsel %vm3311, %v4040, %v4044
    %v4046 = vshrl.u32 %v3258, 16
    %v4048 = vrot.slane %v4046, 4
    %v4049 = vor.u32 %v4048, %v4044
    %v4050 = vrot.slane %v4049, 4
    %v4052 = vshll.u32 %v3307, 16
    %v4054 = vrot.slane %v4052, 5
    %v4055 = vsel %vm3311, %v4050, %v4054
    %v4057 = vshrl.u32 %v3259, 16
    %v4059 = vrot.slane %v4057, 4
    %v4060 = vshll.u32 %v3259, 16
    %v4062 = vrot.slane %v4060, 5
    %v4063 = vor.u32 %v4059, %v4062
    %v4064 = vrot.slane %v4063, 4
    %v4066 = vshll.u32 %v3260, 16
    %v4068 = vrot.slane %v4066, 5
    %v4069 = vsel %vm3311, %v4064, %v4068
    %v4070 = vshrl.u32 %v3260, 16
    %v4072 = vrot.slane %v4070, 4
    %v4073 = vor.u32 %v4072, %v4068
    %v4074 = vrot.slane %v4073, 4
    %v4076 = vshll.u32 %v3308, 16
    %v4078 = vrot.slane %v4076, 5
    %v4079 = vsel %vm3311, %v4074, %v4078
    %s4080 = scalar_lea.vmem [#allocation11], 64
    %v4081 = vld [vmem:[%s4080] sm:$0xf]
    %v4082 = vld [vmem:[%s4080 + $0x4] sm:$0xf]
    %v4083 = vld [vmem:[%s4080 + $0x8] sm:$0xf]
    %v4084 = vld [vmem:[%s4080 + $0xc] sm:$0xf]
    %v4085 = vld [vmem:[%s4080 + $0x10] sm:$0xf]
    %v4086 = vld [vmem:[%s4080 + $0x14] sm:$0xf]
    %v4087 = vld [vmem:[%s4080 + $0x18] sm:$0xf]
    %v4088 = vld [vmem:[%s4080 + $0x1c] sm:$0xf]
    %v4089 = vld [vmem:[%s4080 + $0x20] sm:$0xf]
    %v4090 = vld [vmem:[%s4080 + $0x24] sm:$0xf]
    %v4091 = vld [vmem:[%s4080 + $0x28] sm:$0xf]
    %v4092 = vld [vmem:[%s4080 + $0x2c] sm:$0xf]
    %v4093 = vld [vmem:[%s4080 + $0x30] sm:$0xf]
    %v4094 = vld [vmem:[%s4080 + $0x34] sm:$0xf]
    %v4095 = vld [vmem:[%s4080 + $0x38] sm:$0xf]
    %v4096 = vld [vmem:[%s4080 + $0x3c] sm:$0xf]
    %v4097 = vunpack.c.l.b16 %v3325
    %v4098 = vunpack.c.l.b16 %v3335
    %v4099 = vunpack.c.l.b16 %v3349
    %v4100 = vunpack.c.l.b16 %v3359
    %v4101 = vunpack.c.l.b16 %v3373
    %v4102 = vunpack.c.l.b16 %v3383
    %v4103 = vunpack.c.l.b16 %v3397
    %v4104 = vunpack.c.l.b16 %v3407
    %v4105 = vunpack.c.l.b16 %v3421
    %v4106 = vunpack.c.l.b16 %v3431
    %v4107 = vunpack.c.l.b16 %v3445
    %v4108 = vunpack.c.l.b16 %v3455
    %v4109 = vunpack.c.l.b16 %v3469
    %v4110 = vunpack.c.l.b16 %v3479
    %v4111 = vunpack.c.l.b16 %v3493
    %v4112 = vunpack.c.l.b16 %v3503
    %v4113 = vunpack.c.l.b16 %v3517
    %v4114 = vunpack.c.l.b16 %v3527
    %v4115 = vunpack.c.l.b16 %v3541
    %v4116 = vunpack.c.l.b16 %v3551
    %v4117 = vunpack.c.l.b16 %v3565
    %v4118 = vunpack.c.l.b16 %v3575
    %v4119 = vunpack.c.l.b16 %v3589
    %v4120 = vunpack.c.l.b16 %v3599
    %v4121 = vunpack.c.l.b16 %v3613
    %v4122 = vunpack.c.l.b16 %v3623
    %v4123 = vunpack.c.l.b16 %v3637
    %v4124 = vunpack.c.l.b16 %v3647
    %v4125 = vunpack.c.l.b16 %v3661
    %v4126 = vunpack.c.l.b16 %v3671
    %v4127 = vunpack.c.l.b16 %v3685
    %v4128 = vunpack.c.l.b16 %v3695
    %v4129 = vunpack.c.l.b16 %v3709
    %v4130 = vunpack.c.l.b16 %v3719
    %v4131 = vunpack.c.l.b16 %v3733
    %v4132 = vunpack.c.l.b16 %v3743
    %v4133 = vunpack.c.l.b16 %v3757
    %v4134 = vunpack.c.l.b16 %v3767
    %v4135 = vunpack.c.l.b16 %v3781
    %v4136 = vunpack.c.l.b16 %v3791
    %v4137 = vunpack.c.l.b16 %v3805
    %v4138 = vunpack.c.l.b16 %v3815
    %v4139 = vunpack.c.l.b16 %v3829
    %v4140 = vunpack.c.l.b16 %v3839
    %v4141 = vunpack.c.l.b16 %v3853
    %v4142 = vunpack.c.l.b16 %v3863
    %v4143 = vunpack.c.l.b16 %v3877
    %v4144 = vunpack.c.l.b16 %v3887
    %v4145 = vunpack.c.l.b16 %v3901
    %v4146 = vunpack.c.l.b16 %v3911
    %v4147 = vunpack.c.l.b16 %v3925
    %v4148 = vunpack.c.l.b16 %v3935
    %v4149 = vunpack.c.l.b16 %v3949
    %v4150 = vunpack.c.l.b16 %v3959
    %v4151 = vunpack.c.l.b16 %v3973
    %v4152 = vunpack.c.l.b16 %v3983
    %v4153 = vunpack.c.l.b16 %v3997
    %v4154 = vunpack.c.l.b16 %v4007
    %v4155 = vunpack.c.l.b16 %v4021
    %v4156 = vunpack.c.l.b16 %v4031
    %v4157 = vunpack.c.l.b16 %v4045
    %v4158 = vunpack.c.l.b16 %v4055
    %v4159 = vunpack.c.l.b16 %v4069
    %v4160 = vunpack.c.l.b16 %v4079
    %v4161 = vpack.c.b16 %v4098, %v4097
    %v4162 = vpack.c.b16 %v4100, %v4099
    %v4163 = vpack.c.b16 %v4102, %v4101
    %v4164 = vpack.c.b16 %v4104, %v4103
    %v4165 = vpack.c.b16 %v4106, %v4105
    %v4166 = vpack.c.b16 %v4108, %v4107
    %v4167 = vpack.c.b16 %v4110, %v4109
    %v4168 = vpack.c.b16 %v4112, %v4111
    %v4169 = vpack.c.b16 %v4114, %v4113
    %v4170 = vpack.c.b16 %v4116, %v4115
    %v4171 = vpack.c.b16 %v4118, %v4117
    %v4172 = vpack.c.b16 %v4120, %v4119
    %v4173 = vpack.c.b16 %v4122, %v4121
    %v4174 = vpack.c.b16 %v4124, %v4123
    %v4175 = vpack.c.b16 %v4126, %v4125
    %v4176 = vpack.c.b16 %v4128, %v4127
    %v4177 = vpack.c.b16 %v4130, %v4129
    %v4178 = vpack.c.b16 %v4132, %v4131
    %v4179 = vpack.c.b16 %v4134, %v4133
    %v4180 = vpack.c.b16 %v4136, %v4135
    %v4181 = vpack.c.b16 %v4138, %v4137
    %v4182 = vpack.c.b16 %v4140, %v4139
    %v4183 = vpack.c.b16 %v4142, %v4141
    %v4184 = vpack.c.b16 %v4144, %v4143
    %v4185 = vpack.c.b16 %v4146, %v4145
    %v4186 = vpack.c.b16 %v4148, %v4147
    %v4187 = vpack.c.b16 %v4150, %v4149
    %v4188 = vpack.c.b16 %v4152, %v4151
    %v4189 = vpack.c.b16 %v4154, %v4153
    %v4190 = vpack.c.b16 %v4156, %v4155
    %v4191 = vpack.c.b16 %v4158, %v4157
    %v4192 = vpack.c.b16 %v4160, %v4159
    %v4241 = vunpack.c.l.b16 %v4081
    %v4242 = vunpack.c.l.b16 %v4082
    %v4243 = vunpack.c.l.b16 %v4083
    %v4244 = vunpack.c.l.b16 %v4084
    %v4245 = vunpack.c.l.b16 %v4085
    %v4246 = vunpack.c.l.b16 %v4086
    %v4247 = vunpack.c.l.b16 %v4087
    %v4248 = vunpack.c.l.b16 %v4088
    %v4249 = vunpack.c.l.b16 %v4089
    %v4250 = vunpack.c.l.b16 %v4090
    %v4251 = vunpack.c.l.b16 %v4091
    %v4252 = vunpack.c.l.b16 %v4092
    %v4253 = vunpack.c.l.b16 %v4093
    %v4254 = vunpack.c.l.b16 %v4094
    %v4255 = vunpack.c.l.b16 %v4095
    %v4256 = vunpack.c.l.b16 %v4096
    %v4257 = vpack.c.b16 %v4242, %v4241
    %v4258 = vpack.c.b16 %v4244, %v4243
    %v4259 = vpack.c.b16 %v4246, %v4245
    %v4260 = vpack.c.b16 %v4248, %v4247
    %v4261 = vpack.c.b16 %v4250, %v4249
    %v4262 = vpack.c.b16 %v4252, %v4251
    %v4263 = vpack.c.b16 %v4254, %v4253
    %v4264 = vpack.c.b16 %v4256, %v4255
    %4273 = vmatpush.bf16.msra.mxu0 %v4264
    %4274 = vmatpush.bf16.msra.mxu0 %v4263
    %4275 = vmatpush.bf16.msra.mxu0 %v4262
    %4276 = vmatpush.bf16.msra.mxu0 %v4261
    %4277 = vmatpush.bf16.msra.mxu0 %v4260
    %4278 = vmatpush.bf16.msra.mxu0 %v4259
    %4279 = vmatpush.bf16.msra.mxu0 %v4258
    %4280 = vmatpush.bf16.msra.mxu0 %v4257
    %4281 = vmatmul.bf16.gmra.mxu0 %v4161
    %v4282 = vpop.f32.mrf.mxu0
    %v4283 = vadd.f32 0.0, %v4282
    %v4284 = vpop.f32.mrf.mxu0
    %v4285 = vadd.f32 0.0, %v4284
    %4286 = vmatmul.bf16.gmra.mxu0 %v4162
    %v4287 = vpop.f32.mrf.mxu0
    %v4288 = vadd.f32 0.0, %v4287
    %v4289 = vpop.f32.mrf.mxu0
    %v4290 = vadd.f32 0.0, %v4289
    %4291 = vmatmul.bf16.gmra.mxu0 %v4163
    %v4292 = vpop.f32.mrf.mxu0
    %v4293 = vadd.f32 0.0, %v4292
    %v4294 = vpop.f32.mrf.mxu0
    %v4295 = vadd.f32 0.0, %v4294
    %4296 = vmatmul.bf16.gmra.mxu0 %v4164
    %v4297 = vpop.f32.mrf.mxu0
    %v4298 = vadd.f32 0.0, %v4297
    %v4299 = vpop.f32.mrf.mxu0
    %v4300 = vadd.f32 0.0, %v4299
    %4301 = vmatmul.bf16.gmra.mxu0 %v4165
    %v4302 = vpop.f32.mrf.mxu0
    %v4303 = vadd.f32 0.0, %v4302
    %v4304 = vpop.f32.mrf.mxu0
    %v4305 = vadd.f32 0.0, %v4304
    %4306 = vmatmul.bf16.gmra.mxu0 %v4166
    %v4307 = vpop.f32.mrf.mxu0
    %v4308 = vadd.f32 0.0, %v4307
    %v4309 = vpop.f32.mrf.mxu0
    %v4310 = vadd.f32 0.0, %v4309
    %4311 = vmatmul.bf16.gmra.mxu0 %v4167
    %v4312 = vpop.f32.mrf.mxu0
    %v4313 = vadd.f32 0.0, %v4312
    %v4314 = vpop.f32.mrf.mxu0
    %v4315 = vadd.f32 0.0, %v4314
    %4316 = vmatmul.bf16.gmra.mxu0 %v4168
    %v4317 = vpop.f32.mrf.mxu0
    %v4318 = vadd.f32 0.0, %v4317
    %v4319 = vpop.f32.mrf.mxu0
    %v4320 = vadd.f32 0.0, %v4319
    %4321 = vmatmul.bf16.gmra.mxu0 %v4169
    %v4322 = vpop.f32.mrf.mxu0
    %v4323 = vadd.f32 0.0, %v4322
    %v4324 = vpop.f32.mrf.mxu0
    %v4325 = vadd.f32 0.0, %v4324
    %4326 = vmatmul.bf16.gmra.mxu0 %v4170
    %v4327 = vpop.f32.mrf.mxu0
    %v4328 = vadd.f32 0.0, %v4327
    %v4329 = vpop.f32.mrf.mxu0
    %v4330 = vadd.f32 0.0, %v4329
    %4331 = vmatmul.bf16.gmra.mxu0 %v4171
    %v4332 = vpop.f32.mrf.mxu0
    %v4333 = vadd.f32 0.0, %v4332
    %v4334 = vpop.f32.mrf.mxu0
    %v4335 = vadd.f32 0.0, %v4334
    %4336 = vmatmul.bf16.gmra.mxu0 %v4172
    %v4337 = vpop.f32.mrf.mxu0
    %v4338 = vadd.f32 0.0, %v4337
    %v4339 = vpop.f32.mrf.mxu0
    %v4340 = vadd.f32 0.0, %v4339
    %4341 = vmatmul.bf16.gmra.mxu0 %v4173
    %v4342 = vpop.f32.mrf.mxu0
    %v4343 = vadd.f32 0.0, %v4342
    %v4344 = vpop.f32.mrf.mxu0
    %v4345 = vadd.f32 0.0, %v4344
    %4346 = vmatmul.bf16.gmra.mxu0 %v4174
    %v4347 = vpop.f32.mrf.mxu0
    %v4348 = vadd.f32 0.0, %v4347
    %v4349 = vpop.f32.mrf.mxu0
    %v4350 = vadd.f32 0.0, %v4349
    %4351 = vmatmul.bf16.gmra.mxu0 %v4175
    %v4352 = vpop.f32.mrf.mxu0
    %v4353 = vadd.f32 0.0, %v4352
    %v4354 = vpop.f32.mrf.mxu0
    %v4355 = vadd.f32 0.0, %v4354
    %4356 = vmatmul.bf16.gmra.mxu0 %v4176
    %v4357 = vpop.f32.mrf.mxu0
    %v4358 = vadd.f32 0.0, %v4357
    %v4359 = vpop.f32.mrf.mxu0
    %v4360 = vadd.f32 0.0, %v4359
    %4361 = vmatmul.bf16.gmra.mxu0 %v4177
    %v4362 = vpop.f32.mrf.mxu0
    %v4363 = vadd.f32 0.0, %v4362
    %v4364 = vpop.f32.mrf.mxu0
    %v4365 = vadd.f32 0.0, %v4364
    %4366 = vmatmul.bf16.gmra.mxu0 %v4178
    %v4367 = vpop.f32.mrf.mxu0
    %v4368 = vadd.f32 0.0, %v4367
    %v4369 = vpop.f32.mrf.mxu0
    %v4370 = vadd.f32 0.0, %v4369
    %4371 = vmatmul.bf16.gmra.mxu0 %v4179
    %v4372 = vpop.f32.mrf.mxu0
    %v4373 = vadd.f32 0.0, %v4372
    %v4374 = vpop.f32.mrf.mxu0
    %v4375 = vadd.f32 0.0, %v4374
    %4376 = vmatmul.bf16.gmra.mxu0 %v4180
    %v4377 = vpop.f32.mrf.mxu0
    %v4378 = vadd.f32 0.0, %v4377
    %v4379 = vpop.f32.mrf.mxu0
    %v4380 = vadd.f32 0.0, %v4379
    %4381 = vmatmul.bf16.gmra.mxu0 %v4181
    %v4382 = vpop.f32.mrf.mxu0
    %v4383 = vadd.f32 0.0, %v4382
    %v4384 = vpop.f32.mrf.mxu0
    %v4385 = vadd.f32 0.0, %v4384
    %4386 = vmatmul.bf16.gmra.mxu0 %v4182
    %v4387 = vpop.f32.mrf.mxu0
    %v4388 = vadd.f32 0.0, %v4387
    %v4389 = vpop.f32.mrf.mxu0
    %v4390 = vadd.f32 0.0, %v4389
    %4391 = vmatmul.bf16.gmra.mxu0 %v4183
    %v4392 = vpop.f32.mrf.mxu0
    %v4393 = vadd.f32 0.0, %v4392
    %v4394 = vpop.f32.mrf.mxu0
    %v4395 = vadd.f32 0.0, %v4394
    %4396 = vmatmul.bf16.gmra.mxu0 %v4184
    %v4397 = vpop.f32.mrf.mxu0
    %v4398 = vadd.f32 0.0, %v4397
    %v4399 = vpop.f32.mrf.mxu0
    %v4400 = vadd.f32 0.0, %v4399
    %4401 = vmatmul.bf16.gmra.mxu0 %v4185
    %v4402 = vpop.f32.mrf.mxu0
    %v4403 = vadd.f32 0.0, %v4402
    %v4404 = vpop.f32.mrf.mxu0
    %v4405 = vadd.f32 0.0, %v4404
    %4406 = vmatmul.bf16.gmra.mxu0 %v4186
    %v4407 = vpop.f32.mrf.mxu0
    %v4408 = vadd.f32 0.0, %v4407
    %v4409 = vpop.f32.mrf.mxu0
    %v4410 = vadd.f32 0.0, %v4409
    %4411 = vmatmul.bf16.gmra.mxu0 %v4187
    %v4412 = vpop.f32.mrf.mxu0
    %v4413 = vadd.f32 0.0, %v4412
    %v4414 = vpop.f32.mrf.mxu0
    %v4415 = vadd.f32 0.0, %v4414
    %4416 = vmatmul.bf16.gmra.mxu0 %v4188
    %v4417 = vpop.f32.mrf.mxu0
    %v4418 = vadd.f32 0.0, %v4417
    %v4419 = vpop.f32.mrf.mxu0
    %v4420 = vadd.f32 0.0, %v4419
    %4421 = vmatmul.bf16.gmra.mxu0 %v4189
    %v4422 = vpop.f32.mrf.mxu0
    %v4423 = vadd.f32 0.0, %v4422
    %v4424 = vpop.f32.mrf.mxu0
    %v4425 = vadd.f32 0.0, %v4424
    %4426 = vmatmul.bf16.gmra.mxu0 %v4190
    %v4427 = vpop.f32.mrf.mxu0
    %v4428 = vadd.f32 0.0, %v4427
    %v4429 = vpop.f32.mrf.mxu0
    %v4430 = vadd.f32 0.0, %v4429
    %4431 = vmatmul.bf16.gmra.mxu0 %v4191
    %v4432 = vpop.f32.mrf.mxu0
    %v4433 = vadd.f32 0.0, %v4432
    %v4434 = vpop.f32.mrf.mxu0
    %v4435 = vadd.f32 0.0, %v4434
    %4436 = vmatmul.bf16.gmra.mxu0 %v4192
    %v4437 = vpop.f32.mrf.mxu0
    %v4438 = vadd.f32 0.0, %v4437
    %v4439 = vpop.f32.mrf.mxu0
    %v4440 = vadd.f32 0.0, %v4439
    %4441 = vdwg.mxu0
    %v4506 = vunpack.c.l.b16 %v3197
    %v4507 = vunpack.c.l.b16 %v3198
    %v4508 = vunpack.c.l.b16 %v3199
    %v4509 = vunpack.c.l.b16 %v3200
    %v4510 = vunpack.c.l.b16 %v3201
    %v4511 = vunpack.c.l.b16 %v3202
    %v4512 = vunpack.c.l.b16 %v3203
    %v4513 = vunpack.c.l.b16 %v3204
    %v4514 = vunpack.c.l.b16 %v3205
    %v4515 = vunpack.c.l.b16 %v3206
    %v4516 = vunpack.c.l.b16 %v3207
    %v4517 = vunpack.c.l.b16 %v3208
    %v4518 = vunpack.c.l.b16 %v3209
    %v4519 = vunpack.c.l.b16 %v3210
    %v4520 = vunpack.c.l.b16 %v3211
    %v4521 = vunpack.c.l.b16 %v3212
    %v4522 = vunpack.c.l.b16 %v3213
    %v4523 = vunpack.c.l.b16 %v3214
    %v4524 = vunpack.c.l.b16 %v3215
    %v4525 = vunpack.c.l.b16 %v3216
    %v4526 = vunpack.c.l.b16 %v3217
    %v4527 = vunpack.c.l.b16 %v3218
    %v4528 = vunpack.c.l.b16 %v3219
    %v4529 = vunpack.c.l.b16 %v3220
    %v4530 = vunpack.c.l.b16 %v3221
    %v4531 = vunpack.c.l.b16 %v3222
    %v4532 = vunpack.c.l.b16 %v3223
    %v4533 = vunpack.c.l.b16 %v3224
    %v4534 = vunpack.c.l.b16 %v3225
    %v4535 = vunpack.c.l.b16 %v3226
    %v4536 = vunpack.c.l.b16 %v3227
    %v4537 = vunpack.c.l.b16 %v3228
    %v4538 = vunpack.c.l.b16 %v3229
    %v4539 = vunpack.c.l.b16 %v3230
    %v4540 = vunpack.c.l.b16 %v3231
    %v4541 = vunpack.c.l.b16 %v3232
    %v4542 = vunpack.c.l.b16 %v3233
    %v4543 = vunpack.c.l.b16 %v3234
    %v4544 = vunpack.c.l.b16 %v3235
    %v4545 = vunpack.c.l.b16 %v3236
    %v4546 = vunpack.c.l.b16 %v3237
    %v4547 = vunpack.c.l.b16 %v3238
    %v4548 = vunpack.c.l.b16 %v3239
    %v4549 = vunpack.c.l.b16 %v3240
    %v4550 = vunpack.c.l.b16 %v3241
    %v4551 = vunpack.c.l.b16 %v3242
    %v4552 = vunpack.c.l.b16 %v3243
    %v4553 = vunpack.c.l.b16 %v3244
    %v4554 = vunpack.c.l.b16 %v3245
    %v4555 = vunpack.c.l.b16 %v3246
    %v4556 = vunpack.c.l.b16 %v3247
    %v4557 = vunpack.c.l.b16 %v3248
    %v4558 = vunpack.c.l.b16 %v3249
    %v4559 = vunpack.c.l.b16 %v3250
    %v4560 = vunpack.c.l.b16 %v3251
    %v4561 = vunpack.c.l.b16 %v3252
    %v4562 = vunpack.c.l.b16 %v3253
    %v4563 = vunpack.c.l.b16 %v3254
    %v4564 = vunpack.c.l.b16 %v3255
    %v4565 = vunpack.c.l.b16 %v3256
    %v4566 = vunpack.c.l.b16 %v3257
    %v4567 = vunpack.c.l.b16 %v3258
    %v4568 = vunpack.c.l.b16 %v3259
    %v4569 = vunpack.c.l.b16 %v3260
    %v4570 = vpack.c.b16 %v4507, %v4506
    %v4571 = vpack.c.b16 %v4509, %v4508
    %v4572 = vpack.c.b16 %v4511, %v4510
    %v4573 = vpack.c.b16 %v4513, %v4512
    %v4574 = vpack.c.b16 %v4515, %v4514
    %v4575 = vpack.c.b16 %v4517, %v4516
    %v4576 = vpack.c.b16 %v4519, %v4518
    %v4577 = vpack.c.b16 %v4521, %v4520
    %v4578 = vpack.c.b16 %v4523, %v4522
    %v4579 = vpack.c.b16 %v4525, %v4524
    %v4580 = vpack.c.b16 %v4527, %v4526
    %v4581 = vpack.c.b16 %v4529, %v4528
    %v4582 = vpack.c.b16 %v4531, %v4530
    %v4583 = vpack.c.b16 %v4533, %v4532
    %v4584 = vpack.c.b16 %v4535, %v4534
    %v4585 = vpack.c.b16 %v4537, %v4536
    %v4586 = vpack.c.b16 %v4539, %v4538
    %v4587 = vpack.c.b16 %v4541, %v4540
    %v4588 = vpack.c.b16 %v4543, %v4542
    %v4589 = vpack.c.b16 %v4545, %v4544
    %v4590 = vpack.c.b16 %v4547, %v4546
    %v4591 = vpack.c.b16 %v4549, %v4548
    %v4592 = vpack.c.b16 %v4551, %v4550
    %v4593 = vpack.c.b16 %v4553, %v4552
    %v4594 = vpack.c.b16 %v4555, %v4554
    %v4595 = vpack.c.b16 %v4557, %v4556
    %v4596 = vpack.c.b16 %v4559, %v4558
    %v4597 = vpack.c.b16 %v4561, %v4560
    %v4598 = vpack.c.b16 %v4563, %v4562
    %v4599 = vpack.c.b16 %v4565, %v4564
    %v4600 = vpack.c.b16 %v4567, %v4566
    %v4601 = vpack.c.b16 %v4569, %v4568
    %v4650 = vunpack.c.l.b16 %v3261
    %v4651 = vunpack.c.l.b16 %v3262
    %v4652 = vunpack.c.l.b16 %v3263
    %v4653 = vunpack.c.l.b16 %v3264
    %v4654 = vunpack.c.l.b16 %v3265
    %v4655 = vunpack.c.l.b16 %v3266
    %v4656 = vunpack.c.l.b16 %v3267
    %v4657 = vunpack.c.l.b16 %v3268
    %v4658 = vunpack.c.l.b16 %v3269
    %v4659 = vunpack.c.l.b16 %v3270
    %v4660 = vunpack.c.l.b16 %v3271
    %v4661 = vunpack.c.l.b16 %v3272
    %v4662 = vunpack.c.l.b16 %v3273
    %v4663 = vunpack.c.l.b16 %v3274
    %v4664 = vunpack.c.l.b16 %v3275
    %v4665 = vunpack.c.l.b16 %v3276
    %v4666 = vpack.c.b16 %v4651, %v4650
    %v4667 = vpack.c.b16 %v4653, %v4652
    %v4668 = vpack.c.b16 %v4655, %v4654
    %v4669 = vpack.c.b16 %v4657, %v4656
    %v4670 = vpack.c.b16 %v4659, %v4658
    %v4671 = vpack.c.b16 %v4661, %v4660
    %v4672 = vpack.c.b16 %v4663, %v4662
    %v4673 = vpack.c.b16 %v4665, %v4664
    %4682 = vmatpush.bf16.msra.mxu0 %v4673
    %4683 = vmatpush.bf16.msra.mxu0 %v4672
    %4684 = vmatpush.bf16.msra.mxu0 %v4671
    %4685 = vmatpush.bf16.msra.mxu0 %v4670
    %4686 = vmatpush.bf16.msra.mxu0 %v4669
    %4687 = vmatpush.bf16.msra.mxu0 %v4668
    %4688 = vmatpush.bf16.msra.mxu0 %v4667
    %4689 = vmatpush.bf16.msra.mxu0 %v4666
    %4690 = vmatmul.bf16.gmra.mxu0 %v4570
    %v4691 = vpop.f32.mrf.mxu0
    %v4692 = vadd.f32 %v4283, %v4691
    %v4693 = vpop.f32.mrf.mxu0
    %v4694 = vadd.f32 %v4285, %v4693
    %4695 = vmatmul.bf16.gmra.mxu0 %v4571
    %v4696 = vpop.f32.mrf.mxu0
    %v4697 = vadd.f32 %v4288, %v4696
    %v4698 = vpop.f32.mrf.mxu0
    %v4699 = vadd.f32 %v4290, %v4698
    %4700 = vmatmul.bf16.gmra.mxu0 %v4572
    %v4701 = vpop.f32.mrf.mxu0
    %v4702 = vadd.f32 %v4293, %v4701
    %v4703 = vpop.f32.mrf.mxu0
    %v4704 = vadd.f32 %v4295, %v4703
    %4705 = vmatmul.bf16.gmra.mxu0 %v4573
    %v4706 = vpop.f32.mrf.mxu0
    %v4707 = vadd.f32 %v4298, %v4706
    %v4708 = vpop.f32.mrf.mxu0
    %v4709 = vadd.f32 %v4300, %v4708
    %4710 = vmatmul.bf16.gmra.mxu0 %v4574
    %v4711 = vpop.f32.mrf.mxu0
    %v4712 = vadd.f32 %v4303, %v4711
    %v4713 = vpop.f32.mrf.mxu0
    %v4714 = vadd.f32 %v4305, %v4713
    %4715 = vmatmul.bf16.gmra.mxu0 %v4575
    %v4716 = vpop.f32.mrf.mxu0
    %v4717 = vadd.f32 %v4308, %v4716
    %v4718 = vpop.f32.mrf.mxu0
    %v4719 = vadd.f32 %v4310, %v4718
    %4720 = vmatmul.bf16.gmra.mxu0 %v4576
    %v4721 = vpop.f32.mrf.mxu0
    %v4722 = vadd.f32 %v4313, %v4721
    %v4723 = vpop.f32.mrf.mxu0
    %v4724 = vadd.f32 %v4315, %v4723
    %4725 = vmatmul.bf16.gmra.mxu0 %v4577
    %v4726 = vpop.f32.mrf.mxu0
    %v4727 = vadd.f32 %v4318, %v4726
    %v4728 = vpop.f32.mrf.mxu0
    %v4729 = vadd.f32 %v4320, %v4728
    %4730 = vmatmul.bf16.gmra.mxu0 %v4578
    %v4731 = vpop.f32.mrf.mxu0
    %v4732 = vadd.f32 %v4323, %v4731
    %v4733 = vpop.f32.mrf.mxu0
    %v4734 = vadd.f32 %v4325, %v4733
    %4735 = vmatmul.bf16.gmra.mxu0 %v4579
    %v4736 = vpop.f32.mrf.mxu0
    %v4737 = vadd.f32 %v4328, %v4736
    %v4738 = vpop.f32.mrf.mxu0
    %v4739 = vadd.f32 %v4330, %v4738
    %4740 = vmatmul.bf16.gmra.mxu0 %v4580
    %v4741 = vpop.f32.mrf.mxu0
    %v4742 = vadd.f32 %v4333, %v4741
    %v4743 = vpop.f32.mrf.mxu0
    %v4744 = vadd.f32 %v4335, %v4743
    %4745 = vmatmul.bf16.gmra.mxu0 %v4581
    %v4746 = vpop.f32.mrf.mxu0
    %v4747 = vadd.f32 %v4338, %v4746
    %v4748 = vpop.f32.mrf.mxu0
    %v4749 = vadd.f32 %v4340, %v4748
    %4750 = vmatmul.bf16.gmra.mxu0 %v4582
    %v4751 = vpop.f32.mrf.mxu0
    %v4752 = vadd.f32 %v4343, %v4751
    %v4753 = vpop.f32.mrf.mxu0
    %v4754 = vadd.f32 %v4345, %v4753
    %4755 = vmatmul.bf16.gmra.mxu0 %v4583
    %v4756 = vpop.f32.mrf.mxu0
    %v4757 = vadd.f32 %v4348, %v4756
    %v4758 = vpop.f32.mrf.mxu0
    %v4759 = vadd.f32 %v4350, %v4758
    %4760 = vmatmul.bf16.gmra.mxu0 %v4584
    %v4761 = vpop.f32.mrf.mxu0
    %v4762 = vadd.f32 %v4353, %v4761
    %v4763 = vpop.f32.mrf.mxu0
    %v4764 = vadd.f32 %v4355, %v4763
    %4765 = vmatmul.bf16.gmra.mxu0 %v4585
    %v4766 = vpop.f32.mrf.mxu0
    %v4767 = vadd.f32 %v4358, %v4766
    %v4768 = vpop.f32.mrf.mxu0
    %v4769 = vadd.f32 %v4360, %v4768
    %4770 = vmatmul.bf16.gmra.mxu0 %v4586
    %v4771 = vpop.f32.mrf.mxu0
    %v4772 = vadd.f32 %v4363, %v4771
    %v4773 = vpop.f32.mrf.mxu0
    %v4774 = vadd.f32 %v4365, %v4773
    %4775 = vmatmul.bf16.gmra.mxu0 %v4587
    %v4776 = vpop.f32.mrf.mxu0
    %v4777 = vadd.f32 %v4368, %v4776
    %v4778 = vpop.f32.mrf.mxu0
    %v4779 = vadd.f32 %v4370, %v4778
    %4780 = vmatmul.bf16.gmra.mxu0 %v4588
    %v4781 = vpop.f32.mrf.mxu0
    %v4782 = vadd.f32 %v4373, %v4781
    %v4783 = vpop.f32.mrf.mxu0
    %v4784 = vadd.f32 %v4375, %v4783
    %4785 = vmatmul.bf16.gmra.mxu0 %v4589
    %v4786 = vpop.f32.mrf.mxu0
    %v4787 = vadd.f32 %v4378, %v4786
    %v4788 = vpop.f32.mrf.mxu0
    %v4789 = vadd.f32 %v4380, %v4788
    %4790 = vmatmul.bf16.gmra.mxu0 %v4590
    %v4791 = vpop.f32.mrf.mxu0
    %v4792 = vadd.f32 %v4383, %v4791
    %v4793 = vpop.f32.mrf.mxu0
    %v4794 = vadd.f32 %v4385, %v4793
    %4795 = vmatmul.bf16.gmra.mxu0 %v4591
    %v4796 = vpop.f32.mrf.mxu0
    %v4797 = vadd.f32 %v4388, %v4796
    %v4798 = vpop.f32.mrf.mxu0
    %v4799 = vadd.f32 %v4390, %v4798
    %4800 = vmatmul.bf16.gmra.mxu0 %v4592
    %v4801 = vpop.f32.mrf.mxu0
    %v4802 = vadd.f32 %v4393, %v4801
    %v4803 = vpop.f32.mrf.mxu0
    %v4804 = vadd.f32 %v4395, %v4803
    %4805 = vmatmul.bf16.gmra.mxu0 %v4593
    %v4806 = vpop.f32.mrf.mxu0
    %v4807 = vadd.f32 %v4398, %v4806
    %v4808 = vpop.f32.mrf.mxu0
    %v4809 = vadd.f32 %v4400, %v4808
    %4810 = vmatmul.bf16.gmra.mxu0 %v4594
    %v4811 = vpop.f32.mrf.mxu0
    %v4812 = vadd.f32 %v4403, %v4811
    %v4813 = vpop.f32.mrf.mxu0
    %v4814 = vadd.f32 %v4405, %v4813
    %4815 = vmatmul.bf16.gmra.mxu0 %v4595
    %v4816 = vpop.f32.mrf.mxu0
    %v4817 = vadd.f32 %v4408, %v4816
    %v4818 = vpop.f32.mrf.mxu0
    %v4819 = vadd.f32 %v4410, %v4818
    %4820 = vmatmul.bf16.gmra.mxu0 %v4596
    %v4821 = vpop.f32.mrf.mxu0
    %v4822 = vadd.f32 %v4413, %v4821
    %v4823 = vpop.f32.mrf.mxu0
    %v4824 = vadd.f32 %v4415, %v4823
    %4825 = vmatmul.bf16.gmra.mxu0 %v4597
    %v4826 = vpop.f32.mrf.mxu0
    %v4827 = vadd.f32 %v4418, %v4826
    %v4828 = vpop.f32.mrf.mxu0
    %v4829 = vadd.f32 %v4420, %v4828
    %4830 = vmatmul.bf16.gmra.mxu0 %v4598
    %v4831 = vpop.f32.mrf.mxu0
    %v4832 = vadd.f32 %v4423, %v4831
    %v4833 = vpop.f32.mrf.mxu0
    %v4834 = vadd.f32 %v4425, %v4833
    %4835 = vmatmul.bf16.gmra.mxu0 %v4599
    %v4836 = vpop.f32.mrf.mxu0
    %v4837 = vadd.f32 %v4428, %v4836
    %v4838 = vpop.f32.mrf.mxu0
    %v4839 = vadd.f32 %v4430, %v4838
    %4840 = vmatmul.bf16.gmra.mxu0 %v4600
    %v4841 = vpop.f32.mrf.mxu0
    %v4842 = vadd.f32 %v4433, %v4841
    %v4843 = vpop.f32.mrf.mxu0
    %v4844 = vadd.f32 %v4435, %v4843
    %4845 = vmatmul.bf16.gmra.mxu0 %v4601
    %v4846 = vpop.f32.mrf.mxu0
    %v4847 = vadd.f32 %v4438, %v4846
    %v4848 = vpop.f32.mrf.mxu0
    %v4849 = vadd.f32 %v4440, %v4848
    %4850 = vdwg.mxu0
    %v4851 = vld [vmem:[#allocation2] sm:$0xe]
    %v4852 = vld [vmem:[#allocation2 + $0xc] sm:$0xe]
    %v4853 = vld [vmem:[#allocation2 + $0x18] sm:$0xe]
    %v4854 = vld [vmem:[#allocation2 + $0x24] sm:$0xe]
    %v4855 = vld [vmem:[#allocation2 + $0x30] sm:$0xe]
    %v4856 = vld [vmem:[#allocation2 + $0x3c] sm:$0xe]
    %v4857 = vld [vmem:[#allocation2 + $0x48] sm:$0xe]
    %v4858 = vld [vmem:[#allocation2 + $0x54] sm:$0xe]
    %v4859 = vld [vmem:[#allocation2 + $0x60] sm:$0xe]
    %v4860 = vld [vmem:[#allocation2 + $0x6c] sm:$0xe]
    %v4861 = vld [vmem:[#allocation2 + $0x78] sm:$0xe]
    %v4862 = vld [vmem:[#allocation2 + $0x84] sm:$0xe]
    %v4863 = vld [vmem:[#allocation2 + $0x90] sm:$0xe]
    %v4864 = vld [vmem:[#allocation2 + $0x9c] sm:$0xe]
    %v4865 = vld [vmem:[#allocation2 + $0xa8] sm:$0xe]
    %v4866 = vld [vmem:[#allocation2 + $0xb4] sm:$0xe]
    %v4867 = vld [vmem:[#allocation2 + $0xd8] sm:$0xe]
    %v4868 = vld [vmem:[#allocation2 + $0xe4] sm:$0xe]
    %v4869 = vld [vmem:[#allocation2 + $0xf0] sm:$0xe]
    %v4870 = vld [vmem:[#allocation2 + $0xfc] sm:$0xe]
    %v4871 = vld [vmem:[#allocation2 + $0x108] sm:$0xe]
    %v4872 = vld [vmem:[#allocation2 + $0x114] sm:$0xe]
    %v4873 = vld [vmem:[#allocation2 + $0x120] sm:$0xe]
    %v4874 = vld [vmem:[#allocation2 + $0x12c] sm:$0xe]
    %v4875 = vld [vmem:[#allocation2 + $0x138] sm:$0xe]
    %v4876 = vld [vmem:[#allocation2 + $0x144] sm:$0xe]
    %v4877 = vld [vmem:[#allocation2 + $0x150] sm:$0xe]
    %v4878 = vld [vmem:[#allocation2 + $0x15c] sm:$0xe]
    %v4879 = vld [vmem:[#allocation2 + $0x168] sm:$0xe]
    %v4880 = vld [vmem:[#allocation2 + $0x174] sm:$0xe]
    %v4881 = vld [vmem:[#allocation2 + $0x180] sm:$0xe]
    %v4882 = vld [vmem:[#allocation2 + $0x18c] sm:$0xe]
    %vm4947 = vcmask 1042432
    %vm4948 = vcmask 1046532
    %vm4949 = vmor %vm4947, %vm4948
    %v4950 = vrot.slane %v4851, 5
    %v4951 = vrot.slane %v4950, 4
    %v4952 = vrot.slane %v3198, 5
    %v4953 = vsel %vm4949, %v4951, %v4952
    %v4954 = vrot.slane %v4952, 4
    %v4955 = vrot.slane %v3277, 5
    %v4956 = vsel %vm4949, %v4954, %v4955
    %v4957 = vrot.slane %v4852, 5
    %v4958 = vrot.slane %v4957, 4
    %v4959 = vrot.slane %v3200, 5
    %v4960 = vsel %vm4949, %v4958, %v4959
    %v4961 = vrot.slane %v4959, 4
    %v4962 = vrot.slane %v3278, 5
    %v4963 = vsel %vm4949, %v4961, %v4962
    %v4964 = vrot.slane %v4853, 5
    %v4965 = vrot.slane %v4964, 4
    %v4966 = vrot.slane %v3202, 5
    %v4967 = vsel %vm4949, %v4965, %v4966
    %v4968 = vrot.slane %v4966, 4
    %v4969 = vrot.slane %v3279, 5
    %v4970 = vsel %vm4949, %v4968, %v4969
    %v4971 = vrot.slane %v4854, 5
    %v4972 = vrot.slane %v4971, 4
    %v4973 = vrot.slane %v3204, 5
    %v4974 = vsel %vm4949, %v4972, %v4973
    %v4975 = vrot.slane %v4973, 4
    %v4976 = vrot.slane %v3280, 5
    %v4977 = vsel %vm4949, %v4975, %v4976
    %v4978 = vrot.slane %v4855, 5
    %v4979 = vrot.slane %v4978, 4
    %v4980 = vrot.slane %v3206, 5
    %v4981 = vsel %vm4949, %v4979, %v4980
    %v4982 = vrot.slane %v4980, 4
    %v4983 = vrot.slane %v3281, 5
    %v4984 = vsel %vm4949, %v4982, %v4983
    %v4985 = vrot.slane %v4856, 5
    %v4986 = vrot.slane %v4985, 4
    %v4987 = vrot.slane %v3208, 5
    %v4988 = vsel %vm4949, %v4986, %v4987
    %v4989 = vrot.slane %v4987, 4
    %v4990 = vrot.slane %v3282, 5
    %v4991 = vsel %vm4949, %v4989, %v4990
    %v4992 = vrot.slane %v4857, 5
    %v4993 = vrot.slane %v4992, 4
    %v4994 = vrot.slane %v3210, 5
    %v4995 = vsel %vm4949, %v4993, %v4994
    %v4996 = vrot.slane %v4994, 4
    %v4997 = vrot.slane %v3283, 5
    %v4998 = vsel %vm4949, %v4996, %v4997
    %v4999 = vrot.slane %v4858, 5
    %v5000 = vrot.slane %v4999, 4
    %v5001 = vrot.slane %v3212, 5
    %v5002 = vsel %vm4949, %v5000, %v5001
    %v5003 = vrot.slane %v5001, 4
    %v5004 = vrot.slane %v3284, 5
    %v5005 = vsel %vm4949, %v5003, %v5004
    %v5006 = vrot.slane %v4859, 5
    %v5007 = vrot.slane %v5006, 4
    %v5008 = vrot.slane %v3214, 5
    %v5009 = vsel %vm4949, %v5007, %v5008
    %v5010 = vrot.slane %v5008, 4
    %v5011 = vrot.slane %v3285, 5
    %v5012 = vsel %vm4949, %v5010, %v5011
    %v5013 = vrot.slane %v4860, 5
    %v5014 = vrot.slane %v5013, 4
    %v5015 = vrot.slane %v3216, 5
    %v5016 = vsel %vm4949, %v5014, %v5015
    %v5017 = vrot.slane %v5015, 4
    %v5018 = vrot.slane %v3286, 5
    %v5019 = vsel %vm4949, %v5017, %v5018
    %v5020 = vrot.slane %v4861, 5
    %v5021 = vrot.slane %v5020, 4
    %v5022 = vrot.slane %v3218, 5
    %v5023 = vsel %vm4949, %v5021, %v5022
    %v5024 = vrot.slane %v5022, 4
    %v5025 = vrot.slane %v3287, 5
    %v5026 = vsel %vm4949, %v5024, %v5025
    %v5027 = vrot.slane %v4862, 5
    %v5028 = vrot.slane %v5027, 4
    %v5029 = vrot.slane %v3220, 5
    %v5030 = vsel %vm4949, %v5028, %v5029
    %v5031 = vrot.slane %v5029, 4
    %v5032 = vrot.slane %v3288, 5
    %v5033 = vsel %vm4949, %v5031, %v5032
    %v5034 = vrot.slane %v4863, 5
    %v5035 = vrot.slane %v5034, 4
    %v5036 = vrot.slane %v3222, 5
    %v5037 = vsel %vm4949, %v5035, %v5036
    %v5038 = vrot.slane %v5036, 4
    %v5039 = vrot.slane %v3289, 5
    %v5040 = vsel %vm4949, %v5038, %v5039
    %v5041 = vrot.slane %v4864, 5
    %v5042 = vrot.slane %v5041, 4
    %v5043 = vrot.slane %v3224, 5
    %v5044 = vsel %vm4949, %v5042, %v5043
    %v5045 = vrot.slane %v5043, 4
    %v5046 = vrot.slane %v3290, 5
    %v5047 = vsel %vm4949, %v5045, %v5046
    %v5048 = vrot.slane %v4865, 5
    %v5049 = vrot.slane %v5048, 4
    %v5050 = vrot.slane %v3226, 5
    %v5051 = vsel %vm4949, %v5049, %v5050
    %v5052 = vrot.slane %v5050, 4
    %v5053 = vrot.slane %v3291, 5
    %v5054 = vsel %vm4949, %v5052, %v5053
    %v5055 = vrot.slane %v4866, 5
    %v5056 = vrot.slane %v5055, 4
    %v5057 = vrot.slane %v3228, 5
    %v5058 = vsel %vm4949, %v5056, %v5057
    %v5059 = vrot.slane %v5057, 4
    %v5060 = vrot.slane %v3292, 5
    %v5061 = vsel %vm4949, %v5059, %v5060
    %v5062 = vrot.slane %v4867, 5
    %v5063 = vrot.slane %v5062, 4
    %v5064 = vrot.slane %v3230, 5
    %v5065 = vsel %vm4949, %v5063, %v5064
    %v5066 = vrot.slane %v5064, 4
    %v5067 = vrot.slane %v3293, 5
    %v5068 = vsel %vm4949, %v5066, %v5067
    %v5069 = vrot.slane %v4868, 5
    %v5070 = vrot.slane %v5069, 4
    %v5071 = vrot.slane %v3232, 5
    %v5072 = vsel %vm4949, %v5070, %v5071
    %v5073 = vrot.slane %v5071, 4
    %v5074 = vrot.slane %v3294, 5
    %v5075 = vsel %vm4949, %v5073, %v5074
    %v5076 = vrot.slane %v4869, 5
    %v5077 = vrot.slane %v5076, 4
    %v5078 = vrot.slane %v3234, 5
    %v5079 = vsel %vm4949, %v5077, %v5078
    %v5080 = vrot.slane %v5078, 4
    %v5081 = vrot.slane %v3295, 5
    %v5082 = vsel %vm4949, %v5080, %v5081
    %v5083 = vrot.slane %v4870, 5
    %v5084 = vrot.slane %v5083, 4
    %v5085 = vrot.slane %v3236, 5
    %v5086 = vsel %vm4949, %v5084, %v5085
    %v5087 = vrot.slane %v5085, 4
    %v5088 = vrot.slane %v3296, 5
    %v5089 = vsel %vm4949, %v5087, %v5088
    %v5090 = vrot.slane %v4871, 5
    %v5091 = vrot.slane %v5090, 4
    %v5092 = vrot.slane %v3238, 5
    %v5093 = vsel %vm4949, %v5091, %v5092
    %v5094 = vrot.slane %v5092, 4
    %v5095 = vrot.slane %v3297, 5
    %v5096 = vsel %vm4949, %v5094, %v5095
    %v5097 = vrot.slane %v4872, 5
    %v5098 = vrot.slane %v5097, 4
    %v5099 = vrot.slane %v3240, 5
    %v5100 = vsel %vm4949, %v5098, %v5099
    %v5101 = vrot.slane %v5099, 4
    %v5102 = vrot.slane %v3298, 5
    %v5103 = vsel %vm4949, %v5101, %v5102
    %v5104 = vrot.slane %v4873, 5
    %v5105 = vrot.slane %v5104, 4
    %v5106 = vrot.slane %v3242, 5
    %v5107 = vsel %vm4949, %v5105, %v5106
    %v5108 = vrot.slane %v5106, 4
    %v5109 = vrot.slane %v3299, 5
    %v5110 = vsel %vm4949, %v5108, %v5109
    %v5111 = vrot.slane %v4874, 5
    %v5112 = vrot.slane %v5111, 4
    %v5113 = vrot.slane %v3244, 5
    %v5114 = vsel %vm4949, %v5112, %v5113
    %v5115 = vrot.slane %v5113, 4
    %v5116 = vrot.slane %v3300, 5
    %v5117 = vsel %vm4949, %v5115, %v5116
    %v5118 = vrot.slane %v4875, 5
    %v5119 = vrot.slane %v5118, 4
    %v5120 = vrot.slane %v3246, 5
    %v5121 = vsel %vm4949, %v5119, %v5120
    %v5122 = vrot.slane %v5120, 4
    %v5123 = vrot.slane %v3301, 5
    %v5124 = vsel %vm4949, %v5122, %v5123
    %v5125 = vrot.slane %v4876, 5
    %v5126 = vrot.slane %v5125, 4
    %v5127 = vrot.slane %v3248, 5
    %v5128 = vsel %vm4949, %v5126, %v5127
    %v5129 = vrot.slane %v5127, 4
    %v5130 = vrot.slane %v3302, 5
    %v5131 = vsel %vm4949, %v5129, %v5130
    %v5132 = vrot.slane %v4877, 5
    %v5133 = vrot.slane %v5132, 4
    %v5134 = vrot.slane %v3250, 5
    %v5135 = vsel %vm4949, %v5133, %v5134
    %v5136 = vrot.slane %v5134, 4
    %v5137 = vrot.slane %v3303, 5
    %v5138 = vsel %vm4949, %v5136, %v5137
    %v5139 = vrot.slane %v4878, 5
    %v5140 = vrot.slane %v5139, 4
    %v5141 = vrot.slane %v3252, 5
    %v5142 = vsel %vm4949, %v5140, %v5141
    %v5143 = vrot.slane %v5141, 4
    %v5144 = vrot.slane %v3304, 5
    %v5145 = vsel %vm4949, %v5143, %v5144
    %v5146 = vrot.slane %v4879, 5
    %v5147 = vrot.slane %v5146, 4
    %v5148 = vrot.slane %v3254, 5
    %v5149 = vsel %vm4949, %v5147, %v5148
    %v5150 = vrot.slane %v5148, 4
    %v5151 = vrot.slane %v3305, 5
    %v5152 = vsel %vm4949, %v5150, %v5151
    %v5153 = vrot.slane %v4880, 5
    %v5154 = vrot.slane %v5153, 4
    %v5155 = vrot.slane %v3256, 5
    %v5156 = vsel %vm4949, %v5154, %v5155
    %v5157 = vrot.slane %v5155, 4
    %v5158 = vrot.slane %v3306, 5
    %v5159 = vsel %vm4949, %v5157, %v5158
    %v5160 = vrot.slane %v4881, 5
    %v5161 = vrot.slane %v5160, 4
    %v5162 = vrot.slane %v3258, 5
    %v5163 = vsel %vm4949, %v5161, %v5162
    %v5164 = vrot.slane %v5162, 4
    %v5165 = vrot.slane %v3307, 5
    %v5166 = vsel %vm4949, %v5164, %v5165
    %v5167 = vrot.slane %v4882, 5
    %v5168 = vrot.slane %v5167, 4
    %v5169 = vrot.slane %v3260, 5
    %v5170 = vsel %vm4949, %v5168, %v5169
    %v5171 = vrot.slane %v5169, 4
    %v5172 = vrot.slane %v3308, 5
    %v5173 = vsel %vm4949, %v5171, %v5172
    %s5174 = scalar_lea.vmem [#allocation11], 128
    %v5175 = vld [vmem:[%s5174] sm:$0xf]
    %v5176 = vld [vmem:[%s5174 + $0x4] sm:$0xf]
    %v5177 = vld [vmem:[%s5174 + $0x8] sm:$0xf]
    %v5178 = vld [vmem:[%s5174 + $0xc] sm:$0xf]
    %v5179 = vld [vmem:[%s5174 + $0x10] sm:$0xf]
    %v5180 = vld [vmem:[%s5174 + $0x14] sm:$0xf]
    %v5181 = vld [vmem:[%s5174 + $0x18] sm:$0xf]
    %v5182 = vld [vmem:[%s5174 + $0x1c] sm:$0xf]
    %v5183 = vld [vmem:[%s5174 + $0x20] sm:$0xf]
    %v5184 = vld [vmem:[%s5174 + $0x24] sm:$0xf]
    %v5185 = vld [vmem:[%s5174 + $0x28] sm:$0xf]
    %v5186 = vld [vmem:[%s5174 + $0x2c] sm:$0xf]
    %v5187 = vld [vmem:[%s5174 + $0x30] sm:$0xf]
    %v5188 = vld [vmem:[%s5174 + $0x34] sm:$0xf]
    %v5189 = vld [vmem:[%s5174 + $0x38] sm:$0xf]
    %v5190 = vld [vmem:[%s5174 + $0x3c] sm:$0xf]
    %v5191 = vunpack.c.l.b16 %v4953
    %v5192 = vunpack.c.l.b16 %v4956
    %v5193 = vunpack.c.l.b16 %v4960
    %v5194 = vunpack.c.l.b16 %v4963
    %v5195 = vunpack.c.l.b16 %v4967
    %v5196 = vunpack.c.l.b16 %v4970
    %v5197 = vunpack.c.l.b16 %v4974
    %v5198 = vunpack.c.l.b16 %v4977
    %v5199 = vunpack.c.l.b16 %v4981
    %v5200 = vunpack.c.l.b16 %v4984
    %v5201 = vunpack.c.l.b16 %v4988
    %v5202 = vunpack.c.l.b16 %v4991
    %v5203 = vunpack.c.l.b16 %v4995
    %v5204 = vunpack.c.l.b16 %v4998
    %v5205 = vunpack.c.l.b16 %v5002
    %v5206 = vunpack.c.l.b16 %v5005
    %v5207 = vunpack.c.l.b16 %v5009
    %v5208 = vunpack.c.l.b16 %v5012
    %v5209 = vunpack.c.l.b16 %v5016
    %v5210 = vunpack.c.l.b16 %v5019
    %v5211 = vunpack.c.l.b16 %v5023
    %v5212 = vunpack.c.l.b16 %v5026
    %v5213 = vunpack.c.l.b16 %v5030
    %v5214 = vunpack.c.l.b16 %v5033
    %v5215 = vunpack.c.l.b16 %v5037
    %v5216 = vunpack.c.l.b16 %v5040
    %v5217 = vunpack.c.l.b16 %v5044
    %v5218 = vunpack.c.l.b16 %v5047
    %v5219 = vunpack.c.l.b16 %v5051
    %v5220 = vunpack.c.l.b16 %v5054
    %v5221 = vunpack.c.l.b16 %v5058
    %v5222 = vunpack.c.l.b16 %v5061
    %v5223 = vunpack.c.l.b16 %v5065
    %v5224 = vunpack.c.l.b16 %v5068
    %v5225 = vunpack.c.l.b16 %v5072
    %v5226 = vunpack.c.l.b16 %v5075
    %v5227 = vunpack.c.l.b16 %v5079
    %v5228 = vunpack.c.l.b16 %v5082
    %v5229 = vunpack.c.l.b16 %v5086
    %v5230 = vunpack.c.l.b16 %v5089
    %v5231 = vunpack.c.l.b16 %v5093
    %v5232 = vunpack.c.l.b16 %v5096
    %v5233 = vunpack.c.l.b16 %v5100
    %v5234 = vunpack.c.l.b16 %v5103
    %v5235 = vunpack.c.l.b16 %v5107
    %v5236 = vunpack.c.l.b16 %v5110
    %v5237 = vunpack.c.l.b16 %v5114
    %v5238 = vunpack.c.l.b16 %v5117
    %v5239 = vunpack.c.l.b16 %v5121
    %v5240 = vunpack.c.l.b16 %v5124
    %v5241 = vunpack.c.l.b16 %v5128
    %v5242 = vunpack.c.l.b16 %v5131
    %v5243 = vunpack.c.l.b16 %v5135
    %v5244 = vunpack.c.l.b16 %v5138
    %v5245 = vunpack.c.l.b16 %v5142
    %v5246 = vunpack.c.l.b16 %v5145
    %v5247 = vunpack.c.l.b16 %v5149
    %v5248 = vunpack.c.l.b16 %v5152
    %v5249 = vunpack.c.l.b16 %v5156
    %v5250 = vunpack.c.l.b16 %v5159
    %v5251 = vunpack.c.l.b16 %v5163
    %v5252 = vunpack.c.l.b16 %v5166
    %v5253 = vunpack.c.l.b16 %v5170
    %v5254 = vunpack.c.l.b16 %v5173
    %v5255 = vpack.c.b16 %v5192, %v5191
    %v5256 = vpack.c.b16 %v5194, %v5193
    %v5257 = vpack.c.b16 %v5196, %v5195
    %v5258 = vpack.c.b16 %v5198, %v5197
    %v5259 = vpack.c.b16 %v5200, %v5199
    %v5260 = vpack.c.b16 %v5202, %v5201
    %v5261 = vpack.c.b16 %v5204, %v5203
    %v5262 = vpack.c.b16 %v5206, %v5205
    %v5263 = vpack.c.b16 %v5208, %v5207
    %v5264 = vpack.c.b16 %v5210, %v5209
    %v5265 = vpack.c.b16 %v5212, %v5211
    %v5266 = vpack.c.b16 %v5214, %v5213
    %v5267 = vpack.c.b16 %v5216, %v5215
    %v5268 = vpack.c.b16 %v5218, %v5217
    %v5269 = vpack.c.b16 %v5220, %v5219
    %v5270 = vpack.c.b16 %v5222, %v5221
    %v5271 = vpack.c.b16 %v5224, %v5223
    %v5272 = vpack.c.b16 %v5226, %v5225
    %v5273 = vpack.c.b16 %v5228, %v5227
    %v5274 = vpack.c.b16 %v5230, %v5229
    %v5275 = vpack.c.b16 %v5232, %v5231
    %v5276 = vpack.c.b16 %v5234, %v5233
    %v5277 = vpack.c.b16 %v5236, %v5235
    %v5278 = vpack.c.b16 %v5238, %v5237
    %v5279 = vpack.c.b16 %v5240, %v5239
    %v5280 = vpack.c.b16 %v5242, %v5241
    %v5281 = vpack.c.b16 %v5244, %v5243
    %v5282 = vpack.c.b16 %v5246, %v5245
    %v5283 = vpack.c.b16 %v5248, %v5247
    %v5284 = vpack.c.b16 %v5250, %v5249
    %v5285 = vpack.c.b16 %v5252, %v5251
    %v5286 = vpack.c.b16 %v5254, %v5253
    %v5335 = vunpack.c.l.b16 %v5175
    %v5336 = vunpack.c.l.b16 %v5176
    %v5337 = vunpack.c.l.b16 %v5177
    %v5338 = vunpack.c.l.b16 %v5178
    %v5339 = vunpack.c.l.b16 %v5179
    %v5340 = vunpack.c.l.b16 %v5180
    %v5341 = vunpack.c.l.b16 %v5181
    %v5342 = vunpack.c.l.b16 %v5182
    %v5343 = vunpack.c.l.b16 %v5183
    %v5344 = vunpack.c.l.b16 %v5184
    %v5345 = vunpack.c.l.b16 %v5185
    %v5346 = vunpack.c.l.b16 %v5186
    %v5347 = vunpack.c.l.b16 %v5187
    %v5348 = vunpack.c.l.b16 %v5188
    %v5349 = vunpack.c.l.b16 %v5189
    %v5350 = vunpack.c.l.b16 %v5190
    %v5351 = vpack.c.b16 %v5336, %v5335
    %v5352 = vpack.c.b16 %v5338, %v5337
    %v5353 = vpack.c.b16 %v5340, %v5339
    %v5354 = vpack.c.b16 %v5342, %v5341
    %v5355 = vpack.c.b16 %v5344, %v5343
    %v5356 = vpack.c.b16 %v5346, %v5345
    %v5357 = vpack.c.b16 %v5348, %v5347
    %v5358 = vpack.c.b16 %v5350, %v5349
    %5367 = vmatpush.bf16.msra.mxu0 %v5358
    %5368 = vmatpush.bf16.msra.mxu0 %v5357
    %5369 = vmatpush.bf16.msra.mxu0 %v5356
    %5370 = vmatpush.bf16.msra.mxu0 %v5355
    %5371 = vmatpush.bf16.msra.mxu0 %v5354
    %5372 = vmatpush.bf16.msra.mxu0 %v5353
    %5373 = vmatpush.bf16.msra.mxu0 %v5352
    %5374 = vmatpush.bf16.msra.mxu0 %v5351
    %5375 = vmatmul.bf16.gmra.mxu0 %v5255
    %v5376 = vpop.f32.mrf.mxu0
    %v5377 = vadd.f32 0.0, %v5376
    %v5378 = vpop.f32.mrf.mxu0
    %v5379 = vadd.f32 0.0, %v5378
    %5380 = vmatmul.bf16.gmra.mxu0 %v5256
    %v5381 = vpop.f32.mrf.mxu0
    %v5382 = vadd.f32 0.0, %v5381
    %v5383 = vpop.f32.mrf.mxu0
    %v5384 = vadd.f32 0.0, %v5383
    %5385 = vmatmul.bf16.gmra.mxu0 %v5257
    %v5386 = vpop.f32.mrf.mxu0
    %v5387 = vadd.f32 0.0, %v5386
    %v5388 = vpop.f32.mrf.mxu0
    %v5389 = vadd.f32 0.0, %v5388
    %5390 = vmatmul.bf16.gmra.mxu0 %v5258
    %v5391 = vpop.f32.mrf.mxu0
    %v5392 = vadd.f32 0.0, %v5391
    %v5393 = vpop.f32.mrf.mxu0
    %v5394 = vadd.f32 0.0, %v5393
    %5395 = vmatmul.bf16.gmra.mxu0 %v5259
    %v5396 = vpop.f32.mrf.mxu0
    %v5397 = vadd.f32 0.0, %v5396
    %v5398 = vpop.f32.mrf.mxu0
    %v5399 = vadd.f32 0.0, %v5398
    %5400 = vmatmul.bf16.gmra.mxu0 %v5260
    %v5401 = vpop.f32.mrf.mxu0
    %v5402 = vadd.f32 0.0, %v5401
    %v5403 = vpop.f32.mrf.mxu0
    %v5404 = vadd.f32 0.0, %v5403
    %5405 = vmatmul.bf16.gmra.mxu0 %v5261
    %v5406 = vpop.f32.mrf.mxu0
    %v5407 = vadd.f32 0.0, %v5406
    %v5408 = vpop.f32.mrf.mxu0
    %v5409 = vadd.f32 0.0, %v5408
    %5410 = vmatmul.bf16.gmra.mxu0 %v5262
    %v5411 = vpop.f32.mrf.mxu0
    %v5412 = vadd.f32 0.0, %v5411
    %v5413 = vpop.f32.mrf.mxu0
    %v5414 = vadd.f32 0.0, %v5413
    %5415 = vmatmul.bf16.gmra.mxu0 %v5263
    %v5416 = vpop.f32.mrf.mxu0
    %v5417 = vadd.f32 0.0, %v5416
    %v5418 = vpop.f32.mrf.mxu0
    %v5419 = vadd.f32 0.0, %v5418
    %5420 = vmatmul.bf16.gmra.mxu0 %v5264
    %v5421 = vpop.f32.mrf.mxu0
    %v5422 = vadd.f32 0.0, %v5421
    %v5423 = vpop.f32.mrf.mxu0
    %v5424 = vadd.f32 0.0, %v5423
    %5425 = vmatmul.bf16.gmra.mxu0 %v5265
    %v5426 = vpop.f32.mrf.mxu0
    %v5427 = vadd.f32 0.0, %v5426
    %v5428 = vpop.f32.mrf.mxu0
    %v5429 = vadd.f32 0.0, %v5428
    %5430 = vmatmul.bf16.gmra.mxu0 %v5266
    %v5431 = vpop.f32.mrf.mxu0
    %v5432 = vadd.f32 0.0, %v5431
    %v5433 = vpop.f32.mrf.mxu0
    %v5434 = vadd.f32 0.0, %v5433
    %5435 = vmatmul.bf16.gmra.mxu0 %v5267
    %v5436 = vpop.f32.mrf.mxu0
    %v5437 = vadd.f32 0.0, %v5436
    %v5438 = vpop.f32.mrf.mxu0
    %v5439 = vadd.f32 0.0, %v5438
    %5440 = vmatmul.bf16.gmra.mxu0 %v5268
    %v5441 = vpop.f32.mrf.mxu0
    %v5442 = vadd.f32 0.0, %v5441
    %v5443 = vpop.f32.mrf.mxu0
    %v5444 = vadd.f32 0.0, %v5443
    %5445 = vmatmul.bf16.gmra.mxu0 %v5269
    %v5446 = vpop.f32.mrf.mxu0
    %v5447 = vadd.f32 0.0, %v5446
    %v5448 = vpop.f32.mrf.mxu0
    %v5449 = vadd.f32 0.0, %v5448
    %5450 = vmatmul.bf16.gmra.mxu0 %v5270
    %v5451 = vpop.f32.mrf.mxu0
    %v5452 = vadd.f32 0.0, %v5451
    %v5453 = vpop.f32.mrf.mxu0
    %v5454 = vadd.f32 0.0, %v5453
    %5455 = vmatmul.bf16.gmra.mxu0 %v5271
    %v5456 = vpop.f32.mrf.mxu0
    %v5457 = vadd.f32 0.0, %v5456
    %v5458 = vpop.f32.mrf.mxu0
    %v5459 = vadd.f32 0.0, %v5458
    %5460 = vmatmul.bf16.gmra.mxu0 %v5272
    %v5461 = vpop.f32.mrf.mxu0
    %v5462 = vadd.f32 0.0, %v5461
    %v5463 = vpop.f32.mrf.mxu0
    %v5464 = vadd.f32 0.0, %v5463
    %5465 = vmatmul.bf16.gmra.mxu0 %v5273
    %v5466 = vpop.f32.mrf.mxu0
    %v5467 = vadd.f32 0.0, %v5466
    %v5468 = vpop.f32.mrf.mxu0
    %v5469 = vadd.f32 0.0, %v5468
    %5470 = vmatmul.bf16.gmra.mxu0 %v5274
    %v5471 = vpop.f32.mrf.mxu0
    %v5472 = vadd.f32 0.0, %v5471
    %v5473 = vpop.f32.mrf.mxu0
    %v5474 = vadd.f32 0.0, %v5473
    %5475 = vmatmul.bf16.gmra.mxu0 %v5275
    %v5476 = vpop.f32.mrf.mxu0
    %v5477 = vadd.f32 0.0, %v5476
    %v5478 = vpop.f32.mrf.mxu0
    %v5479 = vadd.f32 0.0, %v5478
    %5480 = vmatmul.bf16.gmra.mxu0 %v5276
    %v5481 = vpop.f32.mrf.mxu0
    %v5482 = vadd.f32 0.0, %v5481
    %v5483 = vpop.f32.mrf.mxu0
    %v5484 = vadd.f32 0.0, %v5483
    %5485 = vmatmul.bf16.gmra.mxu0 %v5277
    %v5486 = vpop.f32.mrf.mxu0
    %v5487 = vadd.f32 0.0, %v5486
    %v5488 = vpop.f32.mrf.mxu0
    %v5489 = vadd.f32 0.0, %v5488
    %5490 = vmatmul.bf16.gmra.mxu0 %v5278
    %v5491 = vpop.f32.mrf.mxu0
    %v5492 = vadd.f32 0.0, %v5491
    %v5493 = vpop.f32.mrf.mxu0
    %v5494 = vadd.f32 0.0, %v5493
    %5495 = vmatmul.bf16.gmra.mxu0 %v5279
    %v5496 = vpop.f32.mrf.mxu0
    %v5497 = vadd.f32 0.0, %v5496
    %v5498 = vpop.f32.mrf.mxu0
    %v5499 = vadd.f32 0.0, %v5498
    %5500 = vmatmul.bf16.gmra.mxu0 %v5280
    %v5501 = vpop.f32.mrf.mxu0
    %v5502 = vadd.f32 0.0, %v5501
    %v5503 = vpop.f32.mrf.mxu0
    %v5504 = vadd.f32 0.0, %v5503
    %5505 = vmatmul.bf16.gmra.mxu0 %v5281
    %v5506 = vpop.f32.mrf.mxu0
    %v5507 = vadd.f32 0.0, %v5506
    %v5508 = vpop.f32.mrf.mxu0
    %v5509 = vadd.f32 0.0, %v5508
    %5510 = vmatmul.bf16.gmra.mxu0 %v5282
    %v5511 = vpop.f32.mrf.mxu0
    %v5512 = vadd.f32 0.0, %v5511
    %v5513 = vpop.f32.mrf.mxu0
    %v5514 = vadd.f32 0.0, %v5513
    %5515 = vmatmul.bf16.gmra.mxu0 %v5283
    %v5516 = vpop.f32.mrf.mxu0
    %v5517 = vadd.f32 0.0, %v5516
    %v5518 = vpop.f32.mrf.mxu0
    %v5519 = vadd.f32 0.0, %v5518
    %5520 = vmatmul.bf16.gmra.mxu0 %v5284
    %v5521 = vpop.f32.mrf.mxu0
    %v5522 = vadd.f32 0.0, %v5521
    %v5523 = vpop.f32.mrf.mxu0
    %v5524 = vadd.f32 0.0, %v5523
    %5525 = vmatmul.bf16.gmra.mxu0 %v5285
    %v5526 = vpop.f32.mrf.mxu0
    %v5527 = vadd.f32 0.0, %v5526
    %v5528 = vpop.f32.mrf.mxu0
    %v5529 = vadd.f32 0.0, %v5528
    %5530 = vmatmul.bf16.gmra.mxu0 %v5286
    %v5531 = vpop.f32.mrf.mxu0
    %v5532 = vadd.f32 0.0, %v5531
    %v5533 = vpop.f32.mrf.mxu0
    %v5534 = vadd.f32 0.0, %v5533
    %5535 = vdwg.mxu0
    %v5536 = vadd.f32 %v4692, %v5377
    %v5537 = vadd.f32 %v4694, %v5379
    %v5538 = vadd.f32 %v4697, %v5382
    %v5539 = vadd.f32 %v4699, %v5384
    %v5540 = vadd.f32 %v4702, %v5387
    %v5541 = vadd.f32 %v4704, %v5389
    %v5542 = vadd.f32 %v4707, %v5392
    %v5543 = vadd.f32 %v4709, %v5394
    %v5544 = vadd.f32 %v4712, %v5397
    %v5545 = vadd.f32 %v4714, %v5399
    %v5546 = vadd.f32 %v4717, %v5402
    %v5547 = vadd.f32 %v4719, %v5404
    %v5548 = vadd.f32 %v4722, %v5407
    %v5549 = vadd.f32 %v4724, %v5409
    %v5550 = vadd.f32 %v4727, %v5412
    %v5551 = vadd.f32 %v4729, %v5414
    %v5552 = vadd.f32 %v4732, %v5417
    %v5553 = vadd.f32 %v4734, %v5419
    %v5554 = vadd.f32 %v4737, %v5422
    %v5555 = vadd.f32 %v4739, %v5424
    %v5556 = vadd.f32 %v4742, %v5427
    %v5557 = vadd.f32 %v4744, %v5429
    %v5558 = vadd.f32 %v4747, %v5432
    %v5559 = vadd.f32 %v4749, %v5434
    %v5560 = vadd.f32 %v4752, %v5437
    %v5561 = vadd.f32 %v4754, %v5439
    %v5562 = vadd.f32 %v4757, %v5442
    %v5563 = vadd.f32 %v4759, %v5444
    %v5564 = vadd.f32 %v4762, %v5447
    %v5565 = vadd.f32 %v4764, %v5449
    %v5566 = vadd.f32 %v4767, %v5452
    %v5567 = vadd.f32 %v4769, %v5454
    %v5568 = vadd.f32 %v4772, %v5457
    %v5569 = vadd.f32 %v4774, %v5459
    %v5570 = vadd.f32 %v4777, %v5462
    %v5571 = vadd.f32 %v4779, %v5464
    %v5572 = vadd.f32 %v4782, %v5467
    %v5573 = vadd.f32 %v4784, %v5469
    %v5574 = vadd.f32 %v4787, %v5472
    %v5575 = vadd.f32 %v4789, %v5474
    %v5576 = vadd.f32 %v4792, %v5477
    %v5577 = vadd.f32 %v4794, %v5479
    %v5578 = vadd.f32 %v4797, %v5482
    %v5579 = vadd.f32 %v4799, %v5484
    %v5580 = vadd.f32 %v4802, %v5487
    %v5581 = vadd.f32 %v4804, %v5489
    %v5582 = vadd.f32 %v4807, %v5492
    %v5583 = vadd.f32 %v4809, %v5494
    %v5584 = vadd.f32 %v4812, %v5497
    %v5585 = vadd.f32 %v4814, %v5499
    %v5586 = vadd.f32 %v4817, %v5502
    %v5587 = vadd.f32 %v4819, %v5504
    %v5588 = vadd.f32 %v4822, %v5507
    %v5589 = vadd.f32 %v4824, %v5509
    %v5590 = vadd.f32 %v4827, %v5512
    %v5591 = vadd.f32 %v4829, %v5514
    %v5592 = vadd.f32 %v4832, %v5517
    %v5593 = vadd.f32 %v4834, %v5519
    %v5594 = vadd.f32 %v4837, %v5522
    %v5595 = vadd.f32 %v4839, %v5524
    %v5596 = vadd.f32 %v4842, %v5527
    %v5597 = vadd.f32 %v4844, %v5529
    %v5598 = vadd.f32 %v4847, %v5532
    %v5599 = vadd.f32 %v4849, %v5534
    %v5600 = vld [vmem:[%s2067] sm:$0xf]
    %v5601 = vld [vmem:[%s2067 + $0x4] sm:$0xf]
    %v5602 = vld [vmem:[%s2067 + $0xc] sm:$0xf]
    %v5603 = vld [vmem:[%s2067 + $0x10] sm:$0xf]
    %v5604 = vld [vmem:[%s2067 + $0x18] sm:$0xf]
    %v5605 = vld [vmem:[%s2067 + $0x1c] sm:$0xf]
    %v5606 = vld [vmem:[%s2067 + $0x24] sm:$0xf]
    %v5607 = vld [vmem:[%s2067 + $0x28] sm:$0xf]
    %v5608 = vld [vmem:[%s2067 + $0x30] sm:$0xf]
    %v5609 = vld [vmem:[%s2067 + $0x34] sm:$0xf]
    %v5610 = vld [vmem:[%s2067 + $0x3c] sm:$0xf]
    %v5611 = vld [vmem:[%s2067 + $0x40] sm:$0xf]
    %v5612 = vld [vmem:[%s2067 + $0x48] sm:$0xf]
    %v5613 = vld [vmem:[%s2067 + $0x4c] sm:$0xf]
    %v5614 = vld [vmem:[%s2067 + $0x54] sm:$0xf]
    %v5615 = vld [vmem:[%s2067 + $0x58] sm:$0xf]
    %v5616 = vld [vmem:[%s2067 + $0x60] sm:$0xf]
    %v5617 = vld [vmem:[%s2067 + $0x64] sm:$0xf]
    %v5618 = vld [vmem:[%s2067 + $0x6c] sm:$0xf]
    %v5619 = vld [vmem:[%s2067 + $0x70] sm:$0xf]
    %v5620 = vld [vmem:[%s2067 + $0x78] sm:$0xf]
    %v5621 = vld [vmem:[%s2067 + $0x7c] sm:$0xf]
    %v5622 = vld [vmem:[%s2067 + $0x84] sm:$0xf]
    %v5623 = vld [vmem:[%s2067 + $0x88] sm:$0xf]
    %v5624 = vld [vmem:[%s2067 + $0x90] sm:$0xf]
    %v5625 = vld [vmem:[%s2067 + $0x94] sm:$0xf]
    %v5626 = vld [vmem:[%s2067 + $0x9c] sm:$0xf]
    %v5627 = vld [vmem:[%s2067 + $0xa0] sm:$0xf]
    %v5628 = vld [vmem:[%s2067 + $0xa8] sm:$0xf]
    %v5629 = vld [vmem:[%s2067 + $0xac] sm:$0xf]
    %v5630 = vld [vmem:[%s2067 + $0xb4] sm:$0xf]
    %v5631 = vld [vmem:[%s2067 + $0xb8] sm:$0xf]
    %v5632 = vld [vmem:[%s2067 + $0xd8] sm:$0xf]
    %v5633 = vld [vmem:[%s2067 + $0xdc] sm:$0xf]
    %v5634 = vld [vmem:[%s2067 + $0xe4] sm:$0xf]
    %v5635 = vld [vmem:[%s2067 + $0xe8] sm:$0xf]
    %v5636 = vld [vmem:[%s2067 + $0xf0] sm:$0xf]
    %v5637 = vld [vmem:[%s2067 + $0xf4] sm:$0xf]
    %v5638 = vld [vmem:[%s2067 + $0xfc] sm:$0xf]
    %v5639 = vld [vmem:[%s2067 + $0x100] sm:$0xf]
    %v5640 = vld [vmem:[%s2067 + $0x108] sm:$0xf]
    %v5641 = vld [vmem:[%s2067 + $0x10c] sm:$0xf]
    %v5642 = vld [vmem:[%s2067 + $0x114] sm:$0xf]
    %v5643 = vld [vmem:[%s2067 + $0x118] sm:$0xf]
    %v5644 = vld [vmem:[%s2067 + $0x120] sm:$0xf]
    %v5645 = vld [vmem:[%s2067 + $0x124] sm:$0xf]
    %v5646 = vld [vmem:[%s2067 + $0x12c] sm:$0xf]
    %v5647 = vld [vmem:[%s2067 + $0x130] sm:$0xf]
    %v5648 = vld [vmem:[%s2067 + $0x138] sm:$0xf]
    %v5649 = vld [vmem:[%s2067 + $0x13c] sm:$0xf]
    %v5650 = vld [vmem:[%s2067 + $0x144] sm:$0xf]
    %v5651 = vld [vmem:[%s2067 + $0x148] sm:$0xf]
    %v5652 = vld [vmem:[%s2067 + $0x150] sm:$0xf]
    %v5653 = vld [vmem:[%s2067 + $0x154] sm:$0xf]
    %v5654 = vld [vmem:[%s2067 + $0x15c] sm:$0xf]
    %v5655 = vld [vmem:[%s2067 + $0x160] sm:$0xf]
    %v5656 = vld [vmem:[%s2067 + $0x168] sm:$0xf]
    %v5657 = vld [vmem:[%s2067 + $0x16c] sm:$0xf]
    %v5658 = vld [vmem:[%s2067 + $0x174] sm:$0xf]
    %v5659 = vld [vmem:[%s2067 + $0x178] sm:$0xf]
    %v5660 = vld [vmem:[%s2067 + $0x180] sm:$0xf]
    %v5661 = vld [vmem:[%s2067 + $0x184] sm:$0xf]
    %v5662 = vld [vmem:[%s2067 + $0x18c] sm:$0xf]
    %v5663 = vld [vmem:[%s2067 + $0x190] sm:$0xf]
    %s5664 = scalar_lea.vmem [#allocation11], 192
    %v5665 = vld [vmem:[%s5664] sm:$0xf]
    %v5666 = vld [vmem:[%s5664 + $0x4] sm:$0xf]
    %v5667 = vld [vmem:[%s5664 + $0x8] sm:$0xf]
    %v5668 = vld [vmem:[%s5664 + $0xc] sm:$0xf]
    %v5669 = vld [vmem:[%s5664 + $0x10] sm:$0xf]
    %v5670 = vld [vmem:[%s5664 + $0x14] sm:$0xf]
    %v5671 = vld [vmem:[%s5664 + $0x18] sm:$0xf]
    %v5672 = vld [vmem:[%s5664 + $0x1c] sm:$0xf]
    %v5673 = vld [vmem:[%s5664 + $0x20] sm:$0xf]
    %v5674 = vld [vmem:[%s5664 + $0x24] sm:$0xf]
    %v5675 = vld [vmem:[%s5664 + $0x28] sm:$0xf]
    %v5676 = vld [vmem:[%s5664 + $0x2c] sm:$0xf]
    %v5677 = vld [vmem:[%s5664 + $0x30] sm:$0xf]
    %v5678 = vld [vmem:[%s5664 + $0x34] sm:$0xf]
    %v5679 = vld [vmem:[%s5664 + $0x38] sm:$0xf]
    %v5680 = vld [vmem:[%s5664 + $0x3c] sm:$0xf]
    %v5745 = vunpack.c.l.b16 %v5600
    %v5746 = vunpack.c.l.b16 %v5601
    %v5747 = vunpack.c.l.b16 %v5602
    %v5748 = vunpack.c.l.b16 %v5603
    %v5749 = vunpack.c.l.b16 %v5604
    %v5750 = vunpack.c.l.b16 %v5605
    %v5751 = vunpack.c.l.b16 %v5606
    %v5752 = vunpack.c.l.b16 %v5607
    %v5753 = vunpack.c.l.b16 %v5608
    %v5754 = vunpack.c.l.b16 %v5609
    %v5755 = vunpack.c.l.b16 %v5610
    %v5756 = vunpack.c.l.b16 %v5611
    %v5757 = vunpack.c.l.b16 %v5612
    %v5758 = vunpack.c.l.b16 %v5613
    %v5759 = vunpack.c.l.b16 %v5614
    %v5760 = vunpack.c.l.b16 %v5615
    %v5761 = vunpack.c.l.b16 %v5616
    %v5762 = vunpack.c.l.b16 %v5617
    %v5763 = vunpack.c.l.b16 %v5618
    %v5764 = vunpack.c.l.b16 %v5619
    %v5765 = vunpack.c.l.b16 %v5620
    %v5766 = vunpack.c.l.b16 %v5621
    %v5767 = vunpack.c.l.b16 %v5622
    %v5768 = vunpack.c.l.b16 %v5623
    %v5769 = vunpack.c.l.b16 %v5624
    %v5770 = vunpack.c.l.b16 %v5625
    %v5771 = vunpack.c.l.b16 %v5626
    %v5772 = vunpack.c.l.b16 %v5627
    %v5773 = vunpack.c.l.b16 %v5628
    %v5774 = vunpack.c.l.b16 %v5629
    %v5775 = vunpack.c.l.b16 %v5630
    %v5776 = vunpack.c.l.b16 %v5631
    %v5777 = vunpack.c.l.b16 %v5632
    %v5778 = vunpack.c.l.b16 %v5633
    %v5779 = vunpack.c.l.b16 %v5634
    %v5780 = vunpack.c.l.b16 %v5635
    %v5781 = vunpack.c.l.b16 %v5636
    %v5782 = vunpack.c.l.b16 %v5637
    %v5783 = vunpack.c.l.b16 %v5638
    %v5784 = vunpack.c.l.b16 %v5639
    %v5785 = vunpack.c.l.b16 %v5640
    %v5786 = vunpack.c.l.b16 %v5641
    %v5787 = vunpack.c.l.b16 %v5642
    %v5788 = vunpack.c.l.b16 %v5643
    %v5789 = vunpack.c.l.b16 %v5644
    %v5790 = vunpack.c.l.b16 %v5645
    %v5791 = vunpack.c.l.b16 %v5646
    %v5792 = vunpack.c.l.b16 %v5647
    %v5793 = vunpack.c.l.b16 %v5648
    %v5794 = vunpack.c.l.b16 %v5649
    %v5795 = vunpack.c.l.b16 %v5650
    %v5796 = vunpack.c.l.b16 %v5651
    %v5797 = vunpack.c.l.b16 %v5652
    %v5798 = vunpack.c.l.b16 %v5653
    %v5799 = vunpack.c.l.b16 %v5654
    %v5800 = vunpack.c.l.b16 %v5655
    %v5801 = vunpack.c.l.b16 %v5656
    %v5802 = vunpack.c.l.b16 %v5657
    %v5803 = vunpack.c.l.b16 %v5658
    %v5804 = vunpack.c.l.b16 %v5659
    %v5805 = vunpack.c.l.b16 %v5660
    %v5806 = vunpack.c.l.b16 %v5661
    %v5807 = vunpack.c.l.b16 %v5662
    %v5808 = vunpack.c.l.b16 %v5663
    %v5809 = vpack.c.b16 %v5746, %v5745
    %v5810 = vpack.c.b16 %v5748, %v5747
    %v5811 = vpack.c.b16 %v5750, %v5749
    %v5812 = vpack.c.b16 %v5752, %v5751
    %v5813 = vpack.c.b16 %v5754, %v5753
    %v5814 = vpack.c.b16 %v5756, %v5755
    %v5815 = vpack.c.b16 %v5758, %v5757
    %v5816 = vpack.c.b16 %v5760, %v5759
    %v5817 = vpack.c.b16 %v5762, %v5761
    %v5818 = vpack.c.b16 %v5764, %v5763
    %v5819 = vpack.c.b16 %v5766, %v5765
    %v5820 = vpack.c.b16 %v5768, %v5767
    %v5821 = vpack.c.b16 %v5770, %v5769
    %v5822 = vpack.c.b16 %v5772, %v5771
    %v5823 = vpack.c.b16 %v5774, %v5773
    %v5824 = vpack.c.b16 %v5776, %v5775
    %v5825 = vpack.c.b16 %v5778, %v5777
    %v5826 = vpack.c.b16 %v5780, %v5779
    %v5827 = vpack.c.b16 %v5782, %v5781
    %v5828 = vpack.c.b16 %v5784, %v5783
    %v5829 = vpack.c.b16 %v5786, %v5785
    %v5830 = vpack.c.b16 %v5788, %v5787
    %v5831 = vpack.c.b16 %v5790, %v5789
    %v5832 = vpack.c.b16 %v5792, %v5791
    %v5833 = vpack.c.b16 %v5794, %v5793
    %v5834 = vpack.c.b16 %v5796, %v5795
    %v5835 = vpack.c.b16 %v5798, %v5797
    %v5836 = vpack.c.b16 %v5800, %v5799
    %v5837 = vpack.c.b16 %v5802, %v5801
    %v5838 = vpack.c.b16 %v5804, %v5803
    %v5839 = vpack.c.b16 %v5806, %v5805
    %v5840 = vpack.c.b16 %v5808, %v5807
    %v5889 = vunpack.c.l.b16 %v5665
    %v5890 = vunpack.c.l.b16 %v5666
    %v5891 = vunpack.c.l.b16 %v5667
    %v5892 = vunpack.c.l.b16 %v5668
    %v5893 = vunpack.c.l.b16 %v5669
    %v5894 = vunpack.c.l.b16 %v5670
    %v5895 = vunpack.c.l.b16 %v5671
    %v5896 = vunpack.c.l.b16 %v5672
    %v5897 = vunpack.c.l.b16 %v5673
    %v5898 = vunpack.c.l.b16 %v5674
    %v5899 = vunpack.c.l.b16 %v5675
    %v5900 = vunpack.c.l.b16 %v5676
    %v5901 = vunpack.c.l.b16 %v5677
    %v5902 = vunpack.c.l.b16 %v5678
    %v5903 = vunpack.c.l.b16 %v5679
    %v5904 = vunpack.c.l.b16 %v5680
    %v5905 = vpack.c.b16 %v5890, %v5889
    %v5906 = vpack.c.b16 %v5892, %v5891
    %v5907 = vpack.c.b16 %v5894, %v5893
    %v5908 = vpack.c.b16 %v5896, %v5895
    %v5909 = vpack.c.b16 %v5898, %v5897
    %v5910 = vpack.c.b16 %v5900, %v5899
    %v5911 = vpack.c.b16 %v5902, %v5901
    %v5912 = vpack.c.b16 %v5904, %v5903
    %5921 = vmatpush.bf16.msra.mxu0 %v5912
    %5922 = vmatpush.bf16.msra.mxu0 %v5911
    %5923 = vmatpush.bf16.msra.mxu0 %v5910
    %5924 = vmatpush.bf16.msra.mxu0 %v5909
    %5925 = vmatpush.bf16.msra.mxu0 %v5908
    %5926 = vmatpush.bf16.msra.mxu0 %v5907
    %5927 = vmatpush.bf16.msra.mxu0 %v5906
    %5928 = vmatpush.bf16.msra.mxu0 %v5905
    %5929 = vmatmul.bf16.gmra.mxu0 %v5809
    %v5930 = vpop.f32.mrf.mxu0
    %v5931 = vadd.f32 0.0, %v5930
    %v5932 = vpop.f32.mrf.mxu0
    %v5933 = vadd.f32 0.0, %v5932
    %5934 = vmatmul.bf16.gmra.mxu0 %v5810
    %v5935 = vpop.f32.mrf.mxu0
    %v5936 = vadd.f32 0.0, %v5935
    %v5937 = vpop.f32.mrf.mxu0
    %v5938 = vadd.f32 0.0, %v5937
    %5939 = vmatmul.bf16.gmra.mxu0 %v5811
    %v5940 = vpop.f32.mrf.mxu0
    %v5941 = vadd.f32 0.0, %v5940
    %v5942 = vpop.f32.mrf.mxu0
    %v5943 = vadd.f32 0.0, %v5942
    %5944 = vmatmul.bf16.gmra.mxu0 %v5812
    %v5945 = vpop.f32.mrf.mxu0
    %v5946 = vadd.f32 0.0, %v5945
    %v5947 = vpop.f32.mrf.mxu0
    %v5948 = vadd.f32 0.0, %v5947
    %5949 = vmatmul.bf16.gmra.mxu0 %v5813
    %v5950 = vpop.f32.mrf.mxu0
    %v5951 = vadd.f32 0.0, %v5950
    %v5952 = vpop.f32.mrf.mxu0
    %v5953 = vadd.f32 0.0, %v5952
    %5954 = vmatmul.bf16.gmra.mxu0 %v5814
    %v5955 = vpop.f32.mrf.mxu0
    %v5956 = vadd.f32 0.0, %v5955
    %v5957 = vpop.f32.mrf.mxu0
    %v5958 = vadd.f32 0.0, %v5957
    %5959 = vmatmul.bf16.gmra.mxu0 %v5815
    %v5960 = vpop.f32.mrf.mxu0
    %v5961 = vadd.f32 0.0, %v5960
    %v5962 = vpop.f32.mrf.mxu0
    %v5963 = vadd.f32 0.0, %v5962
    %5964 = vmatmul.bf16.gmra.mxu0 %v5816
    %v5965 = vpop.f32.mrf.mxu0
    %v5966 = vadd.f32 0.0, %v5965
    %v5967 = vpop.f32.mrf.mxu0
    %v5968 = vadd.f32 0.0, %v5967
    %5969 = vmatmul.bf16.gmra.mxu0 %v5817
    %v5970 = vpop.f32.mrf.mxu0
    %v5971 = vadd.f32 0.0, %v5970
    %v5972 = vpop.f32.mrf.mxu0
    %v5973 = vadd.f32 0.0, %v5972
    %5974 = vmatmul.bf16.gmra.mxu0 %v5818
    %v5975 = vpop.f32.mrf.mxu0
    %v5976 = vadd.f32 0.0, %v5975
    %v5977 = vpop.f32.mrf.mxu0
    %v5978 = vadd.f32 0.0, %v5977
    %5979 = vmatmul.bf16.gmra.mxu0 %v5819
    %v5980 = vpop.f32.mrf.mxu0
    %v5981 = vadd.f32 0.0, %v5980
    %v5982 = vpop.f32.mrf.mxu0
    %v5983 = vadd.f32 0.0, %v5982
    %5984 = vmatmul.bf16.gmra.mxu0 %v5820
    %v5985 = vpop.f32.mrf.mxu0
    %v5986 = vadd.f32 0.0, %v5985
    %v5987 = vpop.f32.mrf.mxu0
    %v5988 = vadd.f32 0.0, %v5987
    %5989 = vmatmul.bf16.gmra.mxu0 %v5821
    %v5990 = vpop.f32.mrf.mxu0
    %v5991 = vadd.f32 0.0, %v5990
    %v5992 = vpop.f32.mrf.mxu0
    %v5993 = vadd.f32 0.0, %v5992
    %5994 = vmatmul.bf16.gmra.mxu0 %v5822
    %v5995 = vpop.f32.mrf.mxu0
    %v5996 = vadd.f32 0.0, %v5995
    %v5997 = vpop.f32.mrf.mxu0
    %v5998 = vadd.f32 0.0, %v5997
    %5999 = vmatmul.bf16.gmra.mxu0 %v5823
    %v6000 = vpop.f32.mrf.mxu0
    %v6001 = vadd.f32 0.0, %v6000
    %v6002 = vpop.f32.mrf.mxu0
    %v6003 = vadd.f32 0.0, %v6002
    %6004 = vmatmul.bf16.gmra.mxu0 %v5824
    %v6005 = vpop.f32.mrf.mxu0
    %v6006 = vadd.f32 0.0, %v6005
    %v6007 = vpop.f32.mrf.mxu0
    %v6008 = vadd.f32 0.0, %v6007
    %6009 = vmatmul.bf16.gmra.mxu0 %v5825
    %v6010 = vpop.f32.mrf.mxu0
    %v6011 = vadd.f32 0.0, %v6010
    %v6012 = vpop.f32.mrf.mxu0
    %v6013 = vadd.f32 0.0, %v6012
    %6014 = vmatmul.bf16.gmra.mxu0 %v5826
    %v6015 = vpop.f32.mrf.mxu0
    %v6016 = vadd.f32 0.0, %v6015
    %v6017 = vpop.f32.mrf.mxu0
    %v6018 = vadd.f32 0.0, %v6017
    %6019 = vmatmul.bf16.gmra.mxu0 %v5827
    %v6020 = vpop.f32.mrf.mxu0
    %v6021 = vadd.f32 0.0, %v6020
    %v6022 = vpop.f32.mrf.mxu0
    %v6023 = vadd.f32 0.0, %v6022
    %6024 = vmatmul.bf16.gmra.mxu0 %v5828
    %v6025 = vpop.f32.mrf.mxu0
    %v6026 = vadd.f32 0.0, %v6025
    %v6027 = vpop.f32.mrf.mxu0
    %v6028 = vadd.f32 0.0, %v6027
    %6029 = vmatmul.bf16.gmra.mxu0 %v5829
    %v6030 = vpop.f32.mrf.mxu0
    %v6031 = vadd.f32 0.0, %v6030
    %v6032 = vpop.f32.mrf.mxu0
    %v6033 = vadd.f32 0.0, %v6032
    %6034 = vmatmul.bf16.gmra.mxu0 %v5830
    %v6035 = vpop.f32.mrf.mxu0
    %v6036 = vadd.f32 0.0, %v6035
    %v6037 = vpop.f32.mrf.mxu0
    %v6038 = vadd.f32 0.0, %v6037
    %6039 = vmatmul.bf16.gmra.mxu0 %v5831
    %v6040 = vpop.f32.mrf.mxu0
    %v6041 = vadd.f32 0.0, %v6040
    %v6042 = vpop.f32.mrf.mxu0
    %v6043 = vadd.f32 0.0, %v6042
    %6044 = vmatmul.bf16.gmra.mxu0 %v5832
    %v6045 = vpop.f32.mrf.mxu0
    %v6046 = vadd.f32 0.0, %v6045
    %v6047 = vpop.f32.mrf.mxu0
    %v6048 = vadd.f32 0.0, %v6047
    %6049 = vmatmul.bf16.gmra.mxu0 %v5833
    %v6050 = vpop.f32.mrf.mxu0
    %v6051 = vadd.f32 0.0, %v6050
    %v6052 = vpop.f32.mrf.mxu0
    %v6053 = vadd.f32 0.0, %v6052
    %6054 = vmatmul.bf16.gmra.mxu0 %v5834
    %v6055 = vpop.f32.mrf.mxu0
    %v6056 = vadd.f32 0.0, %v6055
    %v6057 = vpop.f32.mrf.mxu0
    %v6058 = vadd.f32 0.0, %v6057
    %6059 = vmatmul.bf16.gmra.mxu0 %v5835
    %v6060 = vpop.f32.mrf.mxu0
    %v6061 = vadd.f32 0.0, %v6060
    %v6062 = vpop.f32.mrf.mxu0
    %v6063 = vadd.f32 0.0, %v6062
    %6064 = vmatmul.bf16.gmra.mxu0 %v5836
    %v6065 = vpop.f32.mrf.mxu0
    %v6066 = vadd.f32 0.0, %v6065
    %v6067 = vpop.f32.mrf.mxu0
    %v6068 = vadd.f32 0.0, %v6067
    %6069 = vmatmul.bf16.gmra.mxu0 %v5837
    %v6070 = vpop.f32.mrf.mxu0
    %v6071 = vadd.f32 0.0, %v6070
    %v6072 = vpop.f32.mrf.mxu0
    %v6073 = vadd.f32 0.0, %v6072
    %6074 = vmatmul.bf16.gmra.mxu0 %v5838
    %v6075 = vpop.f32.mrf.mxu0
    %v6076 = vadd.f32 0.0, %v6075
    %v6077 = vpop.f32.mrf.mxu0
    %v6078 = vadd.f32 0.0, %v6077
    %6079 = vmatmul.bf16.gmra.mxu0 %v5839
    %v6080 = vpop.f32.mrf.mxu0
    %v6081 = vadd.f32 0.0, %v6080
    %v6082 = vpop.f32.mrf.mxu0
    %v6083 = vadd.f32 0.0, %v6082
    %6084 = vmatmul.bf16.gmra.mxu0 %v5840
    %v6085 = vpop.f32.mrf.mxu0
    %v6086 = vadd.f32 0.0, %v6085
    %v6087 = vpop.f32.mrf.mxu0
    %v6088 = vadd.f32 0.0, %v6087
    %6089 = vdwg.mxu0
    %v6090 = vadd.f32 %v5536, %v5931
    %v6091 = vadd.f32 %v5537, %v5933
    %v6092 = vadd.f32 %v5538, %v5936
    %v6093 = vadd.f32 %v5539, %v5938
    %v6094 = vadd.f32 %v5540, %v5941
    %v6095 = vadd.f32 %v5541, %v5943
    %v6096 = vadd.f32 %v5542, %v5946
    %v6097 = vadd.f32 %v5543, %v5948
    %v6098 = vadd.f32 %v5544, %v5951
    %v6099 = vadd.f32 %v5545, %v5953
    %v6100 = vadd.f32 %v5546, %v5956
    %v6101 = vadd.f32 %v5547, %v5958
    %v6102 = vadd.f32 %v5548, %v5961
    %v6103 = vadd.f32 %v5549, %v5963
    %v6104 = vadd.f32 %v5550, %v5966
    %v6105 = vadd.f32 %v5551, %v5968
    %v6106 = vadd.f32 %v5552, %v5971
    %v6107 = vadd.f32 %v5553, %v5973
    %v6108 = vadd.f32 %v5554, %v5976
    %v6109 = vadd.f32 %v5555, %v5978
    %v6110 = vadd.f32 %v5556, %v5981
    %v6111 = vadd.f32 %v5557, %v5983
    %v6112 = vadd.f32 %v5558, %v5986
    %v6113 = vadd.f32 %v5559, %v5988
    %v6114 = vadd.f32 %v5560, %v5991
    %v6115 = vadd.f32 %v5561, %v5993
    %v6116 = vadd.f32 %v5562, %v5996
    %v6117 = vadd.f32 %v5563, %v5998
    %v6118 = vadd.f32 %v5564, %v6001
    %v6119 = vadd.f32 %v5565, %v6003
    %v6120 = vadd.f32 %v5566, %v6006
    %v6121 = vadd.f32 %v5567, %v6008
    %v6122 = vadd.f32 %v5568, %v6011
    %v6123 = vadd.f32 %v5569, %v6013
    %v6124 = vadd.f32 %v5570, %v6016
    %v6125 = vadd.f32 %v5571, %v6018
    %v6126 = vadd.f32 %v5572, %v6021
    %v6127 = vadd.f32 %v5573, %v6023
    %v6128 = vadd.f32 %v5574, %v6026
    %v6129 = vadd.f32 %v5575, %v6028
    %v6130 = vadd.f32 %v5576, %v6031
    %v6131 = vadd.f32 %v5577, %v6033
    %v6132 = vadd.f32 %v5578, %v6036
    %v6133 = vadd.f32 %v5579, %v6038
    %v6134 = vadd.f32 %v5580, %v6041
    %v6135 = vadd.f32 %v5581, %v6043
    %v6136 = vadd.f32 %v5582, %v6046
    %v6137 = vadd.f32 %v5583, %v6048
    %v6138 = vadd.f32 %v5584, %v6051
    %v6139 = vadd.f32 %v5585, %v6053
    %v6140 = vadd.f32 %v5586, %v6056
    %v6141 = vadd.f32 %v5587, %v6058
    %v6142 = vadd.f32 %v5588, %v6061
    %v6143 = vadd.f32 %v5589, %v6063
    %v6144 = vadd.f32 %v5590, %v6066
    %v6145 = vadd.f32 %v5591, %v6068
    %v6146 = vadd.f32 %v5592, %v6071
    %v6147 = vadd.f32 %v5593, %v6073
    %v6148 = vadd.f32 %v5594, %v6076
    %v6149 = vadd.f32 %v5595, %v6078
    %v6150 = vadd.f32 %v5596, %v6081
    %v6151 = vadd.f32 %v5597, %v6083
    %v6152 = vadd.f32 %v5598, %v6086
    %v6153 = vadd.f32 %v5599, %v6088
    %v6154 = vld [vmem:[%s2067] sm:$0xf]
    %v6155 = vld [vmem:[%s2067 + $0x4] sm:$0xf]
    %v6156 = vld [vmem:[%s2067 + $0x8] sm:$0x1]
    %v6157 = vld [vmem:[%s2067 + $0xc] sm:$0xf]
    %v6158 = vld [vmem:[%s2067 + $0x10] sm:$0xf]
    %v6159 = vld [vmem:[%s2067 + $0x14] sm:$0x1]
    %v6160 = vld [vmem:[%s2067 + $0x18] sm:$0xf]
    %v6161 = vld [vmem:[%s2067 + $0x1c] sm:$0xf]
    %v6162 = vld [vmem:[%s2067 + $0x20] sm:$0x1]
    %v6163 = vld [vmem:[%s2067 + $0x24] sm:$0xf]
    %v6164 = vld [vmem:[%s2067 + $0x28] sm:$0xf]
    %v6165 = vld [vmem:[%s2067 + $0x2c] sm:$0x1]
    %v6166 = vld [vmem:[%s2067 + $0x30] sm:$0xf]
    %v6167 = vld [vmem:[%s2067 + $0x34] sm:$0xf]
    %v6168 = vld [vmem:[%s2067 + $0x38] sm:$0x1]
    %v6169 = vld [vmem:[%s2067 + $0x3c] sm:$0xf]
    %v6170 = vld [vmem:[%s2067 + $0x40] sm:$0xf]
    %v6171 = vld [vmem:[%s2067 + $0x44] sm:$0x1]
    %v6172 = vld [vmem:[%s2067 + $0x48] sm:$0xf]
    %v6173 = vld [vmem:[%s2067 + $0x4c] sm:$0xf]
    %v6174 = vld [vmem:[%s2067 + $0x50] sm:$0x1]
    %v6175 = vld [vmem:[%s2067 + $0x54] sm:$0xf]
    %v6176 = vld [vmem:[%s2067 + $0x58] sm:$0xf]
    %v6177 = vld [vmem:[%s2067 + $0x5c] sm:$0x1]
    %v6178 = vld [vmem:[%s2067 + $0x60] sm:$0xf]
    %v6179 = vld [vmem:[%s2067 + $0x64] sm:$0xf]
    %v6180 = vld [vmem:[%s2067 + $0x68] sm:$0x1]
    %v6181 = vld [vmem:[%s2067 + $0x6c] sm:$0xf]
    %v6182 = vld [vmem:[%s2067 + $0x70] sm:$0xf]
    %v6183 = vld [vmem:[%s2067 + $0x74] sm:$0x1]
    %v6184 = vld [vmem:[%s2067 + $0x78] sm:$0xf]
    %v6185 = vld [vmem:[%s2067 + $0x7c] sm:$0xf]
    %v6186 = vld [vmem:[%s2067 + $0x80] sm:$0x1]
    %v6187 = vld [vmem:[%s2067 + $0x84] sm:$0xf]
    %v6188 = vld [vmem:[%s2067 + $0x88] sm:$0xf]
    %v6189 = vld [vmem:[%s2067 + $0x8c] sm:$0x1]
    %v6190 = vld [vmem:[%s2067 + $0x90] sm:$0xf]
    %v6191 = vld [vmem:[%s2067 + $0x94] sm:$0xf]
    %v6192 = vld [vmem:[%s2067 + $0x98] sm:$0x1]
    %v6193 = vld [vmem:[%s2067 + $0x9c] sm:$0xf]
    %v6194 = vld [vmem:[%s2067 + $0xa0] sm:$0xf]
    %v6195 = vld [vmem:[%s2067 + $0xa4] sm:$0x1]
    %v6196 = vld [vmem:[%s2067 + $0xa8] sm:$0xf]
    %v6197 = vld [vmem:[%s2067 + $0xac] sm:$0xf]
    %v6198 = vld [vmem:[%s2067 + $0xb0] sm:$0x1]
    %v6199 = vld [vmem:[%s2067 + $0xb4] sm:$0xf]
    %v6200 = vld [vmem:[%s2067 + $0xb8] sm:$0xf]
    %v6201 = vld [vmem:[%s2067 + $0xbc] sm:$0x1]
    %v6202 = vld [vmem:[%s2067 + $0xd8] sm:$0xf]
    %v6203 = vld [vmem:[%s2067 + $0xdc] sm:$0xf]
    %v6204 = vld [vmem:[%s2067 + $0xe0] sm:$0x1]
    %v6205 = vld [vmem:[%s2067 + $0xe4] sm:$0xf]
    %v6206 = vld [vmem:[%s2067 + $0xe8] sm:$0xf]
    %v6207 = vld [vmem:[%s2067 + $0xec] sm:$0x1]
    %v6208 = vld [vmem:[%s2067 + $0xf0] sm:$0xf]
    %v6209 = vld [vmem:[%s2067 + $0xf4] sm:$0xf]
    %v6210 = vld [vmem:[%s2067 + $0xf8] sm:$0x1]
    %v6211 = vld [vmem:[%s2067 + $0xfc] sm:$0xf]
    %v6212 = vld [vmem:[%s2067 + $0x100] sm:$0xf]
    %v6213 = vld [vmem:[%s2067 + $0x104] sm:$0x1]
    %v6214 = vld [vmem:[%s2067 + $0x108] sm:$0xf]
    %v6215 = vld [vmem:[%s2067 + $0x10c] sm:$0xf]
    %v6216 = vld [vmem:[%s2067 + $0x110] sm:$0x1]
    %v6217 = vld [vmem:[%s2067 + $0x114] sm:$0xf]
    %v6218 = vld [vmem:[%s2067 + $0x118] sm:$0xf]
    %v6219 = vld [vmem:[%s2067 + $0x11c] sm:$0x1]
    %v6220 = vld [vmem:[%s2067 + $0x120] sm:$0xf]
    %v6221 = vld [vmem:[%s2067 + $0x124] sm:$0xf]
    %v6222 = vld [vmem:[%s2067 + $0x128] sm:$0x1]
    %v6223 = vld [vmem:[%s2067 + $0x12c] sm:$0xf]
    %v6224 = vld [vmem:[%s2067 + $0x130] sm:$0xf]
    %v6225 = vld [vmem:[%s2067 + $0x134] sm:$0x1]
    %v6226 = vld [vmem:[%s2067 + $0x138] sm:$0xf]
    %v6227 = vld [vmem:[%s2067 + $0x13c] sm:$0xf]
    %v6228 = vld [vmem:[%s2067 + $0x140] sm:$0x1]
    %v6229 = vld [vmem:[%s2067 + $0x144] sm:$0xf]
    %v6230 = vld [vmem:[%s2067 + $0x148] sm:$0xf]
    %v6231 = vld [vmem:[%s2067 + $0x14c] sm:$0x1]
    %v6232 = vld [vmem:[%s2067 + $0x150] sm:$0xf]
    %v6233 = vld [vmem:[%s2067 + $0x154] sm:$0xf]
    %v6234 = vld [vmem:[%s2067 + $0x158] sm:$0x1]
    %v6235 = vld [vmem:[%s2067 + $0x15c] sm:$0xf]
    %v6236 = vld [vmem:[%s2067 + $0x160] sm:$0xf]
    %v6237 = vld [vmem:[%s2067 + $0x164] sm:$0x1]
    %v6238 = vld [vmem:[%s2067 + $0x168] sm:$0xf]
    %v6239 = vld [vmem:[%s2067 + $0x16c] sm:$0xf]
    %v6240 = vld [vmem:[%s2067 + $0x170] sm:$0x1]
    %v6241 = vld [vmem:[%s2067 + $0x174] sm:$0xf]
    %v6242 = vld [vmem:[%s2067 + $0x178] sm:$0xf]
    %v6243 = vld [vmem:[%s2067 + $0x17c] sm:$0x1]
    %v6244 = vld [vmem:[%s2067 + $0x180] sm:$0xf]
    %v6245 = vld [vmem:[%s2067 + $0x184] sm:$0xf]
    %v6246 = vld [vmem:[%s2067 + $0x188] sm:$0x1]
    %v6247 = vld [vmem:[%s2067 + $0x18c] sm:$0xf]
    %v6248 = vld [vmem:[%s2067 + $0x190] sm:$0xf]
    %v6249 = vld [vmem:[%s2067 + $0x194] sm:$0x1]
    %v6251 = vshrl.u32 %v6154, 16
    %v6253 = vrot.slane %v6251, 4
    %v6254 = vshll.u32 %v6154, 16
    %v6256 = vrot.slane %v6254, 5
    %v6257 = vor.u32 %v6253, %v6256
    %v6258 = vrot.slane %v6257, 4
    %v6260 = vshll.u32 %v6155, 16
    %v6262 = vrot.slane %v6260, 5
    %v6263 = vsel %vm3311, %v6258, %v6262
    %v6264 = vshrl.u32 %v6155, 16
    %v6266 = vrot.slane %v6264, 4
    %v6267 = vor.u32 %v6266, %v6262
    %v6268 = vrot.slane %v6267, 4
    %v6270 = vshll.u32 %v6156, 16
    %v6272 = vrot.slane %v6270, 5
    %v6273 = vsel %vm3311, %v6268, %v6272
    %v6275 = vshrl.u32 %v6157, 16
    %v6277 = vrot.slane %v6275, 4
    %v6278 = vshll.u32 %v6157, 16
    %v6280 = vrot.slane %v6278, 5
    %v6281 = vor.u32 %v6277, %v6280
    %v6282 = vrot.slane %v6281, 4
    %v6284 = vshll.u32 %v6158, 16
    %v6286 = vrot.slane %v6284, 5
    %v6287 = vsel %vm3311, %v6282, %v6286
    %v6288 = vshrl.u32 %v6158, 16
    %v6290 = vrot.slane %v6288, 4
    %v6291 = vor.u32 %v6290, %v6286
    %v6292 = vrot.slane %v6291, 4
    %v6294 = vshll.u32 %v6159, 16
    %v6296 = vrot.slane %v6294, 5
    %v6297 = vsel %vm3311, %v6292, %v6296
    %v6299 = vshrl.u32 %v6160, 16
    %v6301 = vrot.slane %v6299, 4
    %v6302 = vshll.u32 %v6160, 16
    %v6304 = vrot.slane %v6302, 5
    %v6305 = vor.u32 %v6301, %v6304
    %v6306 = vrot.slane %v6305, 4
    %v6308 = vshll.u32 %v6161, 16
    %v6310 = vrot.slane %v6308, 5
    %v6311 = vsel %vm3311, %v6306, %v6310
    %v6312 = vshrl.u32 %v6161, 16
    %v6314 = vrot.slane %v6312, 4
    %v6315 = vor.u32 %v6314, %v6310
    %v6316 = vrot.slane %v6315, 4
    %v6318 = vshll.u32 %v6162, 16
    %v6320 = vrot.slane %v6318, 5
    %v6321 = vsel %vm3311, %v6316, %v6320
    %v6323 = vshrl.u32 %v6163, 16
    %v6325 = vrot.slane %v6323, 4
    %v6326 = vshll.u32 %v6163, 16
    %v6328 = vrot.slane %v6326, 5
    %v6329 = vor.u32 %v6325, %v6328
    %v6330 = vrot.slane %v6329, 4
    %v6332 = vshll.u32 %v6164, 16
    %v6334 = vrot.slane %v6332, 5
    %v6335 = vsel %vm3311, %v6330, %v6334
    %v6336 = vshrl.u32 %v6164, 16
    %v6338 = vrot.slane %v6336, 4
    %v6339 = vor.u32 %v6338, %v6334
    %v6340 = vrot.slane %v6339, 4
    %v6342 = vshll.u32 %v6165, 16
    %v6344 = vrot.slane %v6342, 5
    %v6345 = vsel %vm3311, %v6340, %v6344
    %v6347 = vshrl.u32 %v6166, 16
    %v6349 = vrot.slane %v6347, 4
    %v6350 = vshll.u32 %v6166, 16
    %v6352 = vrot.slane %v6350, 5
    %v6353 = vor.u32 %v6349, %v6352
    %v6354 = vrot.slane %v6353, 4
    %v6356 = vshll.u32 %v6167, 16
    %v6358 = vrot.slane %v6356, 5
    %v6359 = vsel %vm3311, %v6354, %v6358
    %v6360 = vshrl.u32 %v6167, 16
    %v6362 = vrot.slane %v6360, 4
    %v6363 = vor.u32 %v6362, %v6358
    %v6364 = vrot.slane %v6363, 4
    %v6366 = vshll.u32 %v6168, 16
    %v6368 = vrot.slane %v6366, 5
    %v6369 = vsel %vm3311, %v6364, %v6368
    %v6371 = vshrl.u32 %v6169, 16
    %v6373 = vrot.slane %v6371, 4
    %v6374 = vshll.u32 %v6169, 16
    %v6376 = vrot.slane %v6374, 5
    %v6377 = vor.u32 %v6373, %v6376
    %v6378 = vrot.slane %v6377, 4
    %v6380 = vshll.u32 %v6170, 16
    %v6382 = vrot.slane %v6380, 5
    %v6383 = vsel %vm3311, %v6378, %v6382
    %v6384 = vshrl.u32 %v6170, 16
    %v6386 = vrot.slane %v6384, 4
    %v6387 = vor.u32 %v6386, %v6382
    %v6388 = vrot.slane %v6387, 4
    %v6390 = vshll.u32 %v6171, 16
    %v6392 = vrot.slane %v6390, 5
    %v6393 = vsel %vm3311, %v6388, %v6392
    %v6395 = vshrl.u32 %v6172, 16
    %v6397 = vrot.slane %v6395, 4
    %v6398 = vshll.u32 %v6172, 16
    %v6400 = vrot.slane %v6398, 5
    %v6401 = vor.u32 %v6397, %v6400
    %v6402 = vrot.slane %v6401, 4
    %v6404 = vshll.u32 %v6173, 16
    %v6406 = vrot.slane %v6404, 5
    %v6407 = vsel %vm3311, %v6402, %v6406
    %v6408 = vshrl.u32 %v6173, 16
    %v6410 = vrot.slane %v6408, 4
    %v6411 = vor.u32 %v6410, %v6406
    %v6412 = vrot.slane %v6411, 4
    %v6414 = vshll.u32 %v6174, 16
    %v6416 = vrot.slane %v6414, 5
    %v6417 = vsel %vm3311, %v6412, %v6416
    %v6419 = vshrl.u32 %v6175, 16
    %v6421 = vrot.slane %v6419, 4
    %v6422 = vshll.u32 %v6175, 16
    %v6424 = vrot.slane %v6422, 5
    %v6425 = vor.u32 %v6421, %v6424
    %v6426 = vrot.slane %v6425, 4
    %v6428 = vshll.u32 %v6176, 16
    %v6430 = vrot.slane %v6428, 5
    %v6431 = vsel %vm3311, %v6426, %v6430
    %v6432 = vshrl.u32 %v6176, 16
    %v6434 = vrot.slane %v6432, 4
    %v6435 = vor.u32 %v6434, %v6430
    %v6436 = vrot.slane %v6435, 4
    %v6438 = vshll.u32 %v6177, 16
    %v6440 = vrot.slane %v6438, 5
    %v6441 = vsel %vm3311, %v6436, %v6440
    %v6443 = vshrl.u32 %v6178, 16
    %v6445 = vrot.slane %v6443, 4
    %v6446 = vshll.u32 %v6178, 16
    %v6448 = vrot.slane %v6446, 5
    %v6449 = vor.u32 %v6445, %v6448
    %v6450 = vrot.slane %v6449, 4
    %v6452 = vshll.u32 %v6179, 16
    %v6454 = vrot.slane %v6452, 5
    %v6455 = vsel %vm3311, %v6450, %v6454
    %v6456 = vshrl.u32 %v6179, 16
    %v6458 = vrot.slane %v6456, 4
    %v6459 = vor.u32 %v6458, %v6454
    %v6460 = vrot.slane %v6459, 4
    %v6462 = vshll.u32 %v6180, 16
    %v6464 = vrot.slane %v6462, 5
    %v6465 = vsel %vm3311, %v6460, %v6464
    %v6467 = vshrl.u32 %v6181, 16
    %v6469 = vrot.slane %v6467, 4
    %v6470 = vshll.u32 %v6181, 16
    %v6472 = vrot.slane %v6470, 5
    %v6473 = vor.u32 %v6469, %v6472
    %v6474 = vrot.slane %v6473, 4
    %v6476 = vshll.u32 %v6182, 16
    %v6478 = vrot.slane %v6476, 5
    %v6479 = vsel %vm3311, %v6474, %v6478
    %v6480 = vshrl.u32 %v6182, 16
    %v6482 = vrot.slane %v6480, 4
    %v6483 = vor.u32 %v6482, %v6478
    %v6484 = vrot.slane %v6483, 4
    %v6486 = vshll.u32 %v6183, 16
    %v6488 = vrot.slane %v6486, 5
    %v6489 = vsel %vm3311, %v6484, %v6488
    %v6491 = vshrl.u32 %v6184, 16
    %v6493 = vrot.slane %v6491, 4
    %v6494 = vshll.u32 %v6184, 16
    %v6496 = vrot.slane %v6494, 5
    %v6497 = vor.u32 %v6493, %v6496
    %v6498 = vrot.slane %v6497, 4
    %v6500 = vshll.u32 %v6185, 16
    %v6502 = vrot.slane %v6500, 5
    %v6503 = vsel %vm3311, %v6498, %v6502
    %v6504 = vshrl.u32 %v6185, 16
    %v6506 = vrot.slane %v6504, 4
    %v6507 = vor.u32 %v6506, %v6502
    %v6508 = vrot.slane %v6507, 4
    %v6510 = vshll.u32 %v6186, 16
    %v6512 = vrot.slane %v6510, 5
    %v6513 = vsel %vm3311, %v6508, %v6512
    %v6515 = vshrl.u32 %v6187, 16
    %v6517 = vrot.slane %v6515, 4
    %v6518 = vshll.u32 %v6187, 16
    %v6520 = vrot.slane %v6518, 5
    %v6521 = vor.u32 %v6517, %v6520
    %v6522 = vrot.slane %v6521, 4
    %v6524 = vshll.u32 %v6188, 16
    %v6526 = vrot.slane %v6524, 5
    %v6527 = vsel %vm3311, %v6522, %v6526
    %v6528 = vshrl.u32 %v6188, 16
    %v6530 = vrot.slane %v6528, 4
    %v6531 = vor.u32 %v6530, %v6526
    %v6532 = vrot.slane %v6531, 4
    %v6534 = vshll.u32 %v6189, 16
    %v6536 = vrot.slane %v6534, 5
    %v6537 = vsel %vm3311, %v6532, %v6536
    %v6539 = vshrl.u32 %v6190, 16
    %v6541 = vrot.slane %v6539, 4
    %v6542 = vshll.u32 %v6190, 16
    %v6544 = vrot.slane %v6542, 5
    %v6545 = vor.u32 %v6541, %v6544
    %v6546 = vrot.slane %v6545, 4
    %v6548 = vshll.u32 %v6191, 16
    %v6550 = vrot.slane %v6548, 5
    %v6551 = vsel %vm3311, %v6546, %v6550
    %v6552 = vshrl.u32 %v6191, 16
    %v6554 = vrot.slane %v6552, 4
    %v6555 = vor.u32 %v6554, %v6550
    %v6556 = vrot.slane %v6555, 4
    %v6558 = vshll.u32 %v6192, 16
    %v6560 = vrot.slane %v6558, 5
    %v6561 = vsel %vm3311, %v6556, %v6560
    %v6563 = vshrl.u32 %v6193, 16
    %v6565 = vrot.slane %v6563, 4
    %v6566 = vshll.u32 %v6193, 16
    %v6568 = vrot.slane %v6566, 5
    %v6569 = vor.u32 %v6565, %v6568
    %v6570 = vrot.slane %v6569, 4
    %v6572 = vshll.u32 %v6194, 16
    %v6574 = vrot.slane %v6572, 5
    %v6575 = vsel %vm3311, %v6570, %v6574
    %v6576 = vshrl.u32 %v6194, 16
    %v6578 = vrot.slane %v6576, 4
    %v6579 = vor.u32 %v6578, %v6574
    %v6580 = vrot.slane %v6579, 4
    %v6582 = vshll.u32 %v6195, 16
    %v6584 = vrot.slane %v6582, 5
    %v6585 = vsel %vm3311, %v6580, %v6584
    %v6587 = vshrl.u32 %v6196, 16
    %v6589 = vrot.slane %v6587, 4
    %v6590 = vshll.u32 %v6196, 16
    %v6592 = vrot.slane %v6590, 5
    %v6593 = vor.u32 %v6589, %v6592
    %v6594 = vrot.slane %v6593, 4
    %v6596 = vshll.u32 %v6197, 16
    %v6598 = vrot.slane %v6596, 5
    %v6599 = vsel %vm3311, %v6594, %v6598
    %v6600 = vshrl.u32 %v6197, 16
    %v6602 = vrot.slane %v6600, 4
    %v6603 = vor.u32 %v6602, %v6598
    %v6604 = vrot.slane %v6603, 4
    %v6606 = vshll.u32 %v6198, 16
    %v6608 = vrot.slane %v6606, 5
    %v6609 = vsel %vm3311, %v6604, %v6608
    %v6611 = vshrl.u32 %v6199, 16
    %v6613 = vrot.slane %v6611, 4
    %v6614 = vshll.u32 %v6199, 16
    %v6616 = vrot.slane %v6614, 5
    %v6617 = vor.u32 %v6613, %v6616
    %v6618 = vrot.slane %v6617, 4
    %v6620 = vshll.u32 %v6200, 16
    %v6622 = vrot.slane %v6620, 5
    %v6623 = vsel %vm3311, %v6618, %v6622
    %v6624 = vshrl.u32 %v6200, 16
    %v6626 = vrot.slane %v6624, 4
    %v6627 = vor.u32 %v6626, %v6622
    %v6628 = vrot.slane %v6627, 4
    %v6630 = vshll.u32 %v6201, 16
    %v6632 = vrot.slane %v6630, 5
    %v6633 = vsel %vm3311, %v6628, %v6632
    %v6635 = vshrl.u32 %v6202, 16
    %v6637 = vrot.slane %v6635, 4
    %v6638 = vshll.u32 %v6202, 16
    %v6640 = vrot.slane %v6638, 5
    %v6641 = vor.u32 %v6637, %v6640
    %v6642 = vrot.slane %v6641, 4
    %v6644 = vshll.u32 %v6203, 16
    %v6646 = vrot.slane %v6644, 5
    %v6647 = vsel %vm3311, %v6642, %v6646
    %v6648 = vshrl.u32 %v6203, 16
    %v6650 = vrot.slane %v6648, 4
    %v6651 = vor.u32 %v6650, %v6646
    %v6652 = vrot.slane %v6651, 4
    %v6654 = vshll.u32 %v6204, 16
    %v6656 = vrot.slane %v6654, 5
    %v6657 = vsel %vm3311, %v6652, %v6656
    %v6659 = vshrl.u32 %v6205, 16
    %v6661 = vrot.slane %v6659, 4
    %v6662 = vshll.u32 %v6205, 16
    %v6664 = vrot.slane %v6662, 5
    %v6665 = vor.u32 %v6661, %v6664
    %v6666 = vrot.slane %v6665, 4
    %v6668 = vshll.u32 %v6206, 16
    %v6670 = vrot.slane %v6668, 5
    %v6671 = vsel %vm3311, %v6666, %v6670
    %v6672 = vshrl.u32 %v6206, 16
    %v6674 = vrot.slane %v6672, 4
    %v6675 = vor.u32 %v6674, %v6670
    %v6676 = vrot.slane %v6675, 4
    %v6678 = vshll.u32 %v6207, 16
    %v6680 = vrot.slane %v6678, 5
    %v6681 = vsel %vm3311, %v6676, %v6680
    %v6683 = vshrl.u32 %v6208, 16
    %v6685 = vrot.slane %v6683, 4
    %v6686 = vshll.u32 %v6208, 16
    %v6688 = vrot.slane %v6686, 5
    %v6689 = vor.u32 %v6685, %v6688
    %v6690 = vrot.slane %v6689, 4
    %v6692 = vshll.u32 %v6209, 16
    %v6694 = vrot.slane %v6692, 5
    %v6695 = vsel %vm3311, %v6690, %v6694
    %v6696 = vshrl.u32 %v6209, 16
    %v6698 = vrot.slane %v6696, 4
    %v6699 = vor.u32 %v6698, %v6694
    %v6700 = vrot.slane %v6699, 4
    %v6702 = vshll.u32 %v6210, 16
    %v6704 = vrot.slane %v6702, 5
    %v6705 = vsel %vm3311, %v6700, %v6704
    %v6707 = vshrl.u32 %v6211, 16
    %v6709 = vrot.slane %v6707, 4
    %v6710 = vshll.u32 %v6211, 16
    %v6712 = vrot.slane %v6710, 5
    %v6713 = vor.u32 %v6709, %v6712
    %v6714 = vrot.slane %v6713, 4
    %v6716 = vshll.u32 %v6212, 16
    %v6718 = vrot.slane %v6716, 5
    %v6719 = vsel %vm3311, %v6714, %v6718
    %v6720 = vshrl.u32 %v6212, 16
    %v6722 = vrot.slane %v6720, 4
    %v6723 = vor.u32 %v6722, %v6718
    %v6724 = vrot.slane %v6723, 4
    %v6726 = vshll.u32 %v6213, 16
    %v6728 = vrot.slane %v6726, 5
    %v6729 = vsel %vm3311, %v6724, %v6728
    %v6731 = vshrl.u32 %v6214, 16
    %v6733 = vrot.slane %v6731, 4
    %v6734 = vshll.u32 %v6214, 16
    %v6736 = vrot.slane %v6734, 5
    %v6737 = vor.u32 %v6733, %v6736
    %v6738 = vrot.slane %v6737, 4
    %v6740 = vshll.u32 %v6215, 16
    %v6742 = vrot.slane %v6740, 5
    %v6743 = vsel %vm3311, %v6738, %v6742
    %v6744 = vshrl.u32 %v6215, 16
    %v6746 = vrot.slane %v6744, 4
    %v6747 = vor.u32 %v6746, %v6742
    %v6748 = vrot.slane %v6747, 4
    %v6750 = vshll.u32 %v6216, 16
    %v6752 = vrot.slane %v6750, 5
    %v6753 = vsel %vm3311, %v6748, %v6752
    %v6755 = vshrl.u32 %v6217, 16
    %v6757 = vrot.slane %v6755, 4
    %v6758 = vshll.u32 %v6217, 16
    %v6760 = vrot.slane %v6758, 5
    %v6761 = vor.u32 %v6757, %v6760
    %v6762 = vrot.slane %v6761, 4
    %v6764 = vshll.u32 %v6218, 16
    %v6766 = vrot.slane %v6764, 5
    %v6767 = vsel %vm3311, %v6762, %v6766
    %v6768 = vshrl.u32 %v6218, 16
    %v6770 = vrot.slane %v6768, 4
    %v6771 = vor.u32 %v6770, %v6766
    %v6772 = vrot.slane %v6771, 4
    %v6774 = vshll.u32 %v6219, 16
    %v6776 = vrot.slane %v6774, 5
    %v6777 = vsel %vm3311, %v6772, %v6776
    %v6779 = vshrl.u32 %v6220, 16
    %v6781 = vrot.slane %v6779, 4
    %v6782 = vshll.u32 %v6220, 16
    %v6784 = vrot.slane %v6782, 5
    %v6785 = vor.u32 %v6781, %v6784
    %v6786 = vrot.slane %v6785, 4
    %v6788 = vshll.u32 %v6221, 16
    %v6790 = vrot.slane %v6788, 5
    %v6791 = vsel %vm3311, %v6786, %v6790
    %v6792 = vshrl.u32 %v6221, 16
    %v6794 = vrot.slane %v6792, 4
    %v6795 = vor.u32 %v6794, %v6790
    %v6796 = vrot.slane %v6795, 4
    %v6798 = vshll.u32 %v6222, 16
    %v6800 = vrot.slane %v6798, 5
    %v6801 = vsel %vm3311, %v6796, %v6800
    %v6803 = vshrl.u32 %v6223, 16
    %v6805 = vrot.slane %v6803, 4
    %v6806 = vshll.u32 %v6223, 16
    %v6808 = vrot.slane %v6806, 5
    %v6809 = vor.u32 %v6805, %v6808
    %v6810 = vrot.slane %v6809, 4
    %v6812 = vshll.u32 %v6224, 16
    %v6814 = vrot.slane %v6812, 5
    %v6815 = vsel %vm3311, %v6810, %v6814
    %v6816 = vshrl.u32 %v6224, 16
    %v6818 = vrot.slane %v6816, 4
    %v6819 = vor.u32 %v6818, %v6814
    %v6820 = vrot.slane %v6819, 4
    %v6822 = vshll.u32 %v6225, 16
    %v6824 = vrot.slane %v6822, 5
    %v6825 = vsel %vm3311, %v6820, %v6824
    %v6827 = vshrl.u32 %v6226, 16
    %v6829 = vrot.slane %v6827, 4
    %v6830 = vshll.u32 %v6226, 16
    %v6832 = vrot.slane %v6830, 5
    %v6833 = vor.u32 %v6829, %v6832
    %v6834 = vrot.slane %v6833, 4
    %v6836 = vshll.u32 %v6227, 16
    %v6838 = vrot.slane %v6836, 5
    %v6839 = vsel %vm3311, %v6834, %v6838
    %v6840 = vshrl.u32 %v6227, 16
    %v6842 = vrot.slane %v6840, 4
    %v6843 = vor.u32 %v6842, %v6838
    %v6844 = vrot.slane %v6843, 4
    %v6846 = vshll.u32 %v6228, 16
    %v6848 = vrot.slane %v6846, 5
    %v6849 = vsel %vm3311, %v6844, %v6848
    %v6851 = vshrl.u32 %v6229, 16
    %v6853 = vrot.slane %v6851, 4
    %v6854 = vshll.u32 %v6229, 16
    %v6856 = vrot.slane %v6854, 5
    %v6857 = vor.u32 %v6853, %v6856
    %v6858 = vrot.slane %v6857, 4
    %v6860 = vshll.u32 %v6230, 16
    %v6862 = vrot.slane %v6860, 5
    %v6863 = vsel %vm3311, %v6858, %v6862
    %v6864 = vshrl.u32 %v6230, 16
    %v6866 = vrot.slane %v6864, 4
    %v6867 = vor.u32 %v6866, %v6862
    %v6868 = vrot.slane %v6867, 4
    %v6870 = vshll.u32 %v6231, 16
    %v6872 = vrot.slane %v6870, 5
    %v6873 = vsel %vm3311, %v6868, %v6872
    %v6875 = vshrl.u32 %v6232, 16
    %v6877 = vrot.slane %v6875, 4
    %v6878 = vshll.u32 %v6232, 16
    %v6880 = vrot.slane %v6878, 5
    %v6881 = vor.u32 %v6877, %v6880
    %v6882 = vrot.slane %v6881, 4
    %v6884 = vshll.u32 %v6233, 16
    %v6886 = vrot.slane %v6884, 5
    %v6887 = vsel %vm3311, %v6882, %v6886
    %v6888 = vshrl.u32 %v6233, 16
    %v6890 = vrot.slane %v6888, 4
    %v6891 = vor.u32 %v6890, %v6886
    %v6892 = vrot.slane %v6891, 4
    %v6894 = vshll.u32 %v6234, 16
    %v6896 = vrot.slane %v6894, 5
    %v6897 = vsel %vm3311, %v6892, %v6896
    %v6899 = vshrl.u32 %v6235, 16
    %v6901 = vrot.slane %v6899, 4
    %v6902 = vshll.u32 %v6235, 16
    %v6904 = vrot.slane %v6902, 5
    %v6905 = vor.u32 %v6901, %v6904
    %v6906 = vrot.slane %v6905, 4
    %v6908 = vshll.u32 %v6236, 16
    %v6910 = vrot.slane %v6908, 5
    %v6911 = vsel %vm3311, %v6906, %v6910
    %v6912 = vshrl.u32 %v6236, 16
    %v6914 = vrot.slane %v6912, 4
    %v6915 = vor.u32 %v6914, %v6910
    %v6916 = vrot.slane %v6915, 4
    %v6918 = vshll.u32 %v6237, 16
    %v6920 = vrot.slane %v6918, 5
    %v6921 = vsel %vm3311, %v6916, %v6920
    %v6923 = vshrl.u32 %v6238, 16
    %v6925 = vrot.slane %v6923, 4
    %v6926 = vshll.u32 %v6238, 16
    %v6928 = vrot.slane %v6926, 5
    %v6929 = vor.u32 %v6925, %v6928
    %v6930 = vrot.slane %v6929, 4
    %v6932 = vshll.u32 %v6239, 16
    %v6934 = vrot.slane %v6932, 5
    %v6935 = vsel %vm3311, %v6930, %v6934
    %v6936 = vshrl.u32 %v6239, 16
    %v6938 = vrot.slane %v6936, 4
    %v6939 = vor.u32 %v6938, %v6934
    %v6940 = vrot.slane %v6939, 4
    %v6942 = vshll.u32 %v6240, 16
    %v6944 = vrot.slane %v6942, 5
    %v6945 = vsel %vm3311, %v6940, %v6944
    %v6947 = vshrl.u32 %v6241, 16
    %v6949 = vrot.slane %v6947, 4
    %v6950 = vshll.u32 %v6241, 16
    %v6952 = vrot.slane %v6950, 5
    %v6953 = vor.u32 %v6949, %v6952
    %v6954 = vrot.slane %v6953, 4
    %v6956 = vshll.u32 %v6242, 16
    %v6958 = vrot.slane %v6956, 5
    %v6959 = vsel %vm3311, %v6954, %v6958
    %v6960 = vshrl.u32 %v6242, 16
    %v6962 = vrot.slane %v6960, 4
    %v6963 = vor.u32 %v6962, %v6958
    %v6964 = vrot.slane %v6963, 4
    %v6966 = vshll.u32 %v6243, 16
    %v6968 = vrot.slane %v6966, 5
    %v6969 = vsel %vm3311, %v6964, %v6968
    %v6971 = vshrl.u32 %v6244, 16
    %v6973 = vrot.slane %v6971, 4
    %v6974 = vshll.u32 %v6244, 16
    %v6976 = vrot.slane %v6974, 5
    %v6977 = vor.u32 %v6973, %v6976
    %v6978 = vrot.slane %v6977, 4
    %v6980 = vshll.u32 %v6245, 16
    %v6982 = vrot.slane %v6980, 5
    %v6983 = vsel %vm3311, %v6978, %v6982
    %v6984 = vshrl.u32 %v6245, 16
    %v6986 = vrot.slane %v6984, 4
    %v6987 = vor.u32 %v6986, %v6982
    %v6988 = vrot.slane %v6987, 4
    %v6990 = vshll.u32 %v6246, 16
    %v6992 = vrot.slane %v6990, 5
    %v6993 = vsel %vm3311, %v6988, %v6992
    %v6995 = vshrl.u32 %v6247, 16
    %v6997 = vrot.slane %v6995, 4
    %v6998 = vshll.u32 %v6247, 16
    %v7000 = vrot.slane %v6998, 5
    %v7001 = vor.u32 %v6997, %v7000
    %v7002 = vrot.slane %v7001, 4
    %v7004 = vshll.u32 %v6248, 16
    %v7006 = vrot.slane %v7004, 5
    %v7007 = vsel %vm3311, %v7002, %v7006
    %v7008 = vshrl.u32 %v6248, 16
    %v7010 = vrot.slane %v7008, 4
    %v7011 = vor.u32 %v7010, %v7006
    %v7012 = vrot.slane %v7011, 4
    %v7014 = vshll.u32 %v6249, 16
    %v7016 = vrot.slane %v7014, 5
    %v7017 = vsel %vm3311, %v7012, %v7016
    %s7018 = scalar_lea.vmem [#allocation11], 256
    %v7019 = vld [vmem:[%s7018] sm:$0xf]
    %v7020 = vld [vmem:[%s7018 + $0x4] sm:$0xf]
    %v7021 = vld [vmem:[%s7018 + $0x8] sm:$0xf]
    %v7022 = vld [vmem:[%s7018 + $0xc] sm:$0xf]
    %v7023 = vld [vmem:[%s7018 + $0x10] sm:$0xf]
    %v7024 = vld [vmem:[%s7018 + $0x14] sm:$0xf]
    %v7025 = vld [vmem:[%s7018 + $0x18] sm:$0xf]
    %v7026 = vld [vmem:[%s7018 + $0x1c] sm:$0xf]
    %v7027 = vld [vmem:[%s7018 + $0x20] sm:$0xf]
    %v7028 = vld [vmem:[%s7018 + $0x24] sm:$0xf]
    %v7029 = vld [vmem:[%s7018 + $0x28] sm:$0xf]
    %v7030 = vld [vmem:[%s7018 + $0x2c] sm:$0xf]
    %v7031 = vld [vmem:[%s7018 + $0x30] sm:$0xf]
    %v7032 = vld [vmem:[%s7018 + $0x34] sm:$0xf]
    %v7033 = vld [vmem:[%s7018 + $0x38] sm:$0xf]
    %v7034 = vld [vmem:[%s7018 + $0x3c] sm:$0xf]
    %v7035 = vunpack.c.l.b16 %v6263
    %v7036 = vunpack.c.l.b16 %v6273
    %v7037 = vunpack.c.l.b16 %v6287
    %v7038 = vunpack.c.l.b16 %v6297
    %v7039 = vunpack.c.l.b16 %v6311
    %v7040 = vunpack.c.l.b16 %v6321
    %v7041 = vunpack.c.l.b16 %v6335
    %v7042 = vunpack.c.l.b16 %v6345
    %v7043 = vunpack.c.l.b16 %v6359
    %v7044 = vunpack.c.l.b16 %v6369
    %v7045 = vunpack.c.l.b16 %v6383
    %v7046 = vunpack.c.l.b16 %v6393
    %v7047 = vunpack.c.l.b16 %v6407
    %v7048 = vunpack.c.l.b16 %v6417
    %v7049 = vunpack.c.l.b16 %v6431
    %v7050 = vunpack.c.l.b16 %v6441
    %v7051 = vunpack.c.l.b16 %v6455
    %v7052 = vunpack.c.l.b16 %v6465
    %v7053 = vunpack.c.l.b16 %v6479
    %v7054 = vunpack.c.l.b16 %v6489
    %v7055 = vunpack.c.l.b16 %v6503
    %v7056 = vunpack.c.l.b16 %v6513
    %v7057 = vunpack.c.l.b16 %v6527
    %v7058 = vunpack.c.l.b16 %v6537
    %v7059 = vunpack.c.l.b16 %v6551
    %v7060 = vunpack.c.l.b16 %v6561
    %v7061 = vunpack.c.l.b16 %v6575
    %v7062 = vunpack.c.l.b16 %v6585
    %v7063 = vunpack.c.l.b16 %v6599
    %v7064 = vunpack.c.l.b16 %v6609
    %v7065 = vunpack.c.l.b16 %v6623
    %v7066 = vunpack.c.l.b16 %v6633
    %v7067 = vunpack.c.l.b16 %v6647
    %v7068 = vunpack.c.l.b16 %v6657
    %v7069 = vunpack.c.l.b16 %v6671
    %v7070 = vunpack.c.l.b16 %v6681
    %v7071 = vunpack.c.l.b16 %v6695
    %v7072 = vunpack.c.l.b16 %v6705
    %v7073 = vunpack.c.l.b16 %v6719
    %v7074 = vunpack.c.l.b16 %v6729
    %v7075 = vunpack.c.l.b16 %v6743
    %v7076 = vunpack.c.l.b16 %v6753
    %v7077 = vunpack.c.l.b16 %v6767
    %v7078 = vunpack.c.l.b16 %v6777
    %v7079 = vunpack.c.l.b16 %v6791
    %v7080 = vunpack.c.l.b16 %v6801
    %v7081 = vunpack.c.l.b16 %v6815
    %v7082 = vunpack.c.l.b16 %v6825
    %v7083 = vunpack.c.l.b16 %v6839
    %v7084 = vunpack.c.l.b16 %v6849
    %v7085 = vunpack.c.l.b16 %v6863
    %v7086 = vunpack.c.l.b16 %v6873
    %v7087 = vunpack.c.l.b16 %v6887
    %v7088 = vunpack.c.l.b16 %v6897
    %v7089 = vunpack.c.l.b16 %v6911
    %v7090 = vunpack.c.l.b16 %v6921
    %v7091 = vunpack.c.l.b16 %v6935
    %v7092 = vunpack.c.l.b16 %v6945
    %v7093 = vunpack.c.l.b16 %v6959
    %v7094 = vunpack.c.l.b16 %v6969
    %v7095 = vunpack.c.l.b16 %v6983
    %v7096 = vunpack.c.l.b16 %v6993
    %v7097 = vunpack.c.l.b16 %v7007
    %v7098 = vunpack.c.l.b16 %v7017
    %v7099 = vpack.c.b16 %v7036, %v7035
    %v7100 = vpack.c.b16 %v7038, %v7037
    %v7101 = vpack.c.b16 %v7040, %v7039
    %v7102 = vpack.c.b16 %v7042, %v7041
    %v7103 = vpack.c.b16 %v7044, %v7043
    %v7104 = vpack.c.b16 %v7046, %v7045
    %v7105 = vpack.c.b16 %v7048, %v7047
    %v7106 = vpack.c.b16 %v7050, %v7049
    %v7107 = vpack.c.b16 %v7052, %v7051
    %v7108 = vpack.c.b16 %v7054, %v7053
    %v7109 = vpack.c.b16 %v7056, %v7055
    %v7110 = vpack.c.b16 %v7058, %v7057
    %v7111 = vpack.c.b16 %v7060, %v7059
    %v7112 = vpack.c.b16 %v7062, %v7061
    %v7113 = vpack.c.b16 %v7064, %v7063
    %v7114 = vpack.c.b16 %v7066, %v7065
    %v7115 = vpack.c.b16 %v7068, %v7067
    %v7116 = vpack.c.b16 %v7070, %v7069
    %v7117 = vpack.c.b16 %v7072, %v7071
    %v7118 = vpack.c.b16 %v7074, %v7073
    %v7119 = vpack.c.b16 %v7076, %v7075
    %v7120 = vpack.c.b16 %v7078, %v7077
    %v7121 = vpack.c.b16 %v7080, %v7079
    %v7122 = vpack.c.b16 %v7082, %v7081
    %v7123 = vpack.c.b16 %v7084, %v7083
    %v7124 = vpack.c.b16 %v7086, %v7085
    %v7125 = vpack.c.b16 %v7088, %v7087
    %v7126 = vpack.c.b16 %v7090, %v7089
    %v7127 = vpack.c.b16 %v7092, %v7091
    %v7128 = vpack.c.b16 %v7094, %v7093
    %v7129 = vpack.c.b16 %v7096, %v7095
    %v7130 = vpack.c.b16 %v7098, %v7097
    %v7179 = vunpack.c.l.b16 %v7019
    %v7180 = vunpack.c.l.b16 %v7020
    %v7181 = vunpack.c.l.b16 %v7021
    %v7182 = vunpack.c.l.b16 %v7022
    %v7183 = vunpack.c.l.b16 %v7023
    %v7184 = vunpack.c.l.b16 %v7024
    %v7185 = vunpack.c.l.b16 %v7025
    %v7186 = vunpack.c.l.b16 %v7026
    %v7187 = vunpack.c.l.b16 %v7027
    %v7188 = vunpack.c.l.b16 %v7028
    %v7189 = vunpack.c.l.b16 %v7029
    %v7190 = vunpack.c.l.b16 %v7030
    %v7191 = vunpack.c.l.b16 %v7031
    %v7192 = vunpack.c.l.b16 %v7032
    %v7193 = vunpack.c.l.b16 %v7033
    %v7194 = vunpack.c.l.b16 %v7034
    %v7195 = vpack.c.b16 %v7180, %v7179
    %v7196 = vpack.c.b16 %v7182, %v7181
    %v7197 = vpack.c.b16 %v7184, %v7183
    %v7198 = vpack.c.b16 %v7186, %v7185
    %v7199 = vpack.c.b16 %v7188, %v7187
    %v7200 = vpack.c.b16 %v7190, %v7189
    %v7201 = vpack.c.b16 %v7192, %v7191
    %v7202 = vpack.c.b16 %v7194, %v7193
    %7211 = vmatpush.bf16.msra.mxu0 %v7202
    %7212 = vmatpush.bf16.msra.mxu0 %v7201
    %7213 = vmatpush.bf16.msra.mxu0 %v7200
    %7214 = vmatpush.bf16.msra.mxu0 %v7199
    %7215 = vmatpush.bf16.msra.mxu0 %v7198
    %7216 = vmatpush.bf16.msra.mxu0 %v7197
    %7217 = vmatpush.bf16.msra.mxu0 %v7196
    %7218 = vmatpush.bf16.msra.mxu0 %v7195
    %7219 = vmatmul.bf16.gmra.mxu0 %v7099
    %v7220 = vpop.f32.mrf.mxu0
    %v7221 = vadd.f32 0.0, %v7220
    %v7222 = vpop.f32.mrf.mxu0
    %v7223 = vadd.f32 0.0, %v7222
    %7224 = vmatmul.bf16.gmra.mxu0 %v7100
    %v7225 = vpop.f32.mrf.mxu0
    %v7226 = vadd.f32 0.0, %v7225
    %v7227 = vpop.f32.mrf.mxu0
    %v7228 = vadd.f32 0.0, %v7227
    %7229 = vmatmul.bf16.gmra.mxu0 %v7101
    %v7230 = vpop.f32.mrf.mxu0
    %v7231 = vadd.f32 0.0, %v7230
    %v7232 = vpop.f32.mrf.mxu0
    %v7233 = vadd.f32 0.0, %v7232
    %7234 = vmatmul.bf16.gmra.mxu0 %v7102
    %v7235 = vpop.f32.mrf.mxu0
    %v7236 = vadd.f32 0.0, %v7235
    %v7237 = vpop.f32.mrf.mxu0
    %v7238 = vadd.f32 0.0, %v7237
    %7239 = vmatmul.bf16.gmra.mxu0 %v7103
    %v7240 = vpop.f32.mrf.mxu0
    %v7241 = vadd.f32 0.0, %v7240
    %v7242 = vpop.f32.mrf.mxu0
    %v7243 = vadd.f32 0.0, %v7242
    %7244 = vmatmul.bf16.gmra.mxu0 %v7104
    %v7245 = vpop.f32.mrf.mxu0
    %v7246 = vadd.f32 0.0, %v7245
    %v7247 = vpop.f32.mrf.mxu0
    %v7248 = vadd.f32 0.0, %v7247
    %7249 = vmatmul.bf16.gmra.mxu0 %v7105
    %v7250 = vpop.f32.mrf.mxu0
    %v7251 = vadd.f32 0.0, %v7250
    %v7252 = vpop.f32.mrf.mxu0
    %v7253 = vadd.f32 0.0, %v7252
    %7254 = vmatmul.bf16.gmra.mxu0 %v7106
    %v7255 = vpop.f32.mrf.mxu0
    %v7256 = vadd.f32 0.0, %v7255
    %v7257 = vpop.f32.mrf.mxu0
    %v7258 = vadd.f32 0.0, %v7257
    %7259 = vmatmul.bf16.gmra.mxu0 %v7107
    %v7260 = vpop.f32.mrf.mxu0
    %v7261 = vadd.f32 0.0, %v7260
    %v7262 = vpop.f32.mrf.mxu0
    %v7263 = vadd.f32 0.0, %v7262
    %7264 = vmatmul.bf16.gmra.mxu0 %v7108
    %v7265 = vpop.f32.mrf.mxu0
    %v7266 = vadd.f32 0.0, %v7265
    %v7267 = vpop.f32.mrf.mxu0
    %v7268 = vadd.f32 0.0, %v7267
    %7269 = vmatmul.bf16.gmra.mxu0 %v7109
    %v7270 = vpop.f32.mrf.mxu0
    %v7271 = vadd.f32 0.0, %v7270
    %v7272 = vpop.f32.mrf.mxu0
    %v7273 = vadd.f32 0.0, %v7272
    %7274 = vmatmul.bf16.gmra.mxu0 %v7110
    %v7275 = vpop.f32.mrf.mxu0
    %v7276 = vadd.f32 0.0, %v7275
    %v7277 = vpop.f32.mrf.mxu0
    %v7278 = vadd.f32 0.0, %v7277
    %7279 = vmatmul.bf16.gmra.mxu0 %v7111
    %v7280 = vpop.f32.mrf.mxu0
    %v7281 = vadd.f32 0.0, %v7280
    %v7282 = vpop.f32.mrf.mxu0
    %v7283 = vadd.f32 0.0, %v7282
    %7284 = vmatmul.bf16.gmra.mxu0 %v7112
    %v7285 = vpop.f32.mrf.mxu0
    %v7286 = vadd.f32 0.0, %v7285
    %v7287 = vpop.f32.mrf.mxu0
    %v7288 = vadd.f32 0.0, %v7287
    %7289 = vmatmul.bf16.gmra.mxu0 %v7113
    %v7290 = vpop.f32.mrf.mxu0
    %v7291 = vadd.f32 0.0, %v7290
    %v7292 = vpop.f32.mrf.mxu0
    %v7293 = vadd.f32 0.0, %v7292
    %7294 = vmatmul.bf16.gmra.mxu0 %v7114
    %v7295 = vpop.f32.mrf.mxu0
    %v7296 = vadd.f32 0.0, %v7295
    %v7297 = vpop.f32.mrf.mxu0
    %v7298 = vadd.f32 0.0, %v7297
    %7299 = vmatmul.bf16.gmra.mxu0 %v7115
    %v7300 = vpop.f32.mrf.mxu0
    %v7301 = vadd.f32 0.0, %v7300
    %v7302 = vpop.f32.mrf.mxu0
    %v7303 = vadd.f32 0.0, %v7302
    %7304 = vmatmul.bf16.gmra.mxu0 %v7116
    %v7305 = vpop.f32.mrf.mxu0
    %v7306 = vadd.f32 0.0, %v7305
    %v7307 = vpop.f32.mrf.mxu0
    %v7308 = vadd.f32 0.0, %v7307
    %7309 = vmatmul.bf16.gmra.mxu0 %v7117
    %v7310 = vpop.f32.mrf.mxu0
    %v7311 = vadd.f32 0.0, %v7310
    %v7312 = vpop.f32.mrf.mxu0
    %v7313 = vadd.f32 0.0, %v7312
    %7314 = vmatmul.bf16.gmra.mxu0 %v7118
    %v7315 = vpop.f32.mrf.mxu0
    %v7316 = vadd.f32 0.0, %v7315
    %v7317 = vpop.f32.mrf.mxu0
    %v7318 = vadd.f32 0.0, %v7317
    %7319 = vmatmul.bf16.gmra.mxu0 %v7119
    %v7320 = vpop.f32.mrf.mxu0
    %v7321 = vadd.f32 0.0, %v7320
    %v7322 = vpop.f32.mrf.mxu0
    %v7323 = vadd.f32 0.0, %v7322
    %7324 = vmatmul.bf16.gmra.mxu0 %v7120
    %v7325 = vpop.f32.mrf.mxu0
    %v7326 = vadd.f32 0.0, %v7325
    %v7327 = vpop.f32.mrf.mxu0
    %v7328 = vadd.f32 0.0, %v7327
    %7329 = vmatmul.bf16.gmra.mxu0 %v7121
    %v7330 = vpop.f32.mrf.mxu0
    %v7331 = vadd.f32 0.0, %v7330
    %v7332 = vpop.f32.mrf.mxu0
    %v7333 = vadd.f32 0.0, %v7332
    %7334 = vmatmul.bf16.gmra.mxu0 %v7122
    %v7335 = vpop.f32.mrf.mxu0
    %v7336 = vadd.f32 0.0, %v7335
    %v7337 = vpop.f32.mrf.mxu0
    %v7338 = vadd.f32 0.0, %v7337
    %7339 = vmatmul.bf16.gmra.mxu0 %v7123
    %v7340 = vpop.f32.mrf.mxu0
    %v7341 = vadd.f32 0.0, %v7340
    %v7342 = vpop.f32.mrf.mxu0
    %v7343 = vadd.f32 0.0, %v7342
    %7344 = vmatmul.bf16.gmra.mxu0 %v7124
    %v7345 = vpop.f32.mrf.mxu0
    %v7346 = vadd.f32 0.0, %v7345
    %v7347 = vpop.f32.mrf.mxu0
    %v7348 = vadd.f32 0.0, %v7347
    %7349 = vmatmul.bf16.gmra.mxu0 %v7125
    %v7350 = vpop.f32.mrf.mxu0
    %v7351 = vadd.f32 0.0, %v7350
    %v7352 = vpop.f32.mrf.mxu0
    %v7353 = vadd.f32 0.0, %v7352
    %7354 = vmatmul.bf16.gmra.mxu0 %v7126
    %v7355 = vpop.f32.mrf.mxu0
    %v7356 = vadd.f32 0.0, %v7355
    %v7357 = vpop.f32.mrf.mxu0
    %v7358 = vadd.f32 0.0, %v7357
    %7359 = vmatmul.bf16.gmra.mxu0 %v7127
    %v7360 = vpop.f32.mrf.mxu0
    %v7361 = vadd.f32 0.0, %v7360
    %v7362 = vpop.f32.mrf.mxu0
    %v7363 = vadd.f32 0.0, %v7362
    %7364 = vmatmul.bf16.gmra.mxu0 %v7128
    %v7365 = vpop.f32.mrf.mxu0
    %v7366 = vadd.f32 0.0, %v7365
    %v7367 = vpop.f32.mrf.mxu0
    %v7368 = vadd.f32 0.0, %v7367
    %7369 = vmatmul.bf16.gmra.mxu0 %v7129
    %v7370 = vpop.f32.mrf.mxu0
    %v7371 = vadd.f32 0.0, %v7370
    %v7372 = vpop.f32.mrf.mxu0
    %v7373 = vadd.f32 0.0, %v7372
    %7374 = vmatmul.bf16.gmra.mxu0 %v7130
    %v7375 = vpop.f32.mrf.mxu0
    %v7376 = vadd.f32 0.0, %v7375
    %v7377 = vpop.f32.mrf.mxu0
    %v7378 = vadd.f32 0.0, %v7377
    %7379 = vdwg.mxu0
    %v7380 = vadd.f32 %v6090, %v7221
    %v7381 = vadd.f32 %v6091, %v7223
    %v7382 = vadd.f32 %v6092, %v7226
    %v7383 = vadd.f32 %v6093, %v7228
    %v7384 = vadd.f32 %v6094, %v7231
    %v7385 = vadd.f32 %v6095, %v7233
    %v7386 = vadd.f32 %v6096, %v7236
    %v7387 = vadd.f32 %v6097, %v7238
    %v7388 = vadd.f32 %v6098, %v7241
    %v7389 = vadd.f32 %v6099, %v7243
    %v7390 = vadd.f32 %v6100, %v7246
    %v7391 = vadd.f32 %v6101, %v7248
    %v7392 = vadd.f32 %v6102, %v7251
    %v7393 = vadd.f32 %v6103, %v7253
    %v7394 = vadd.f32 %v6104, %v7256
    %v7395 = vadd.f32 %v6105, %v7258
    %v7396 = vadd.f32 %v6106, %v7261
    %v7397 = vadd.f32 %v6107, %v7263
    %v7398 = vadd.f32 %v6108, %v7266
    %v7399 = vadd.f32 %v6109, %v7268
    %v7400 = vadd.f32 %v6110, %v7271
    %v7401 = vadd.f32 %v6111, %v7273
    %v7402 = vadd.f32 %v6112, %v7276
    %v7403 = vadd.f32 %v6113, %v7278
    %v7404 = vadd.f32 %v6114, %v7281
    %v7405 = vadd.f32 %v6115, %v7283
    %v7406 = vadd.f32 %v6116, %v7286
    %v7407 = vadd.f32 %v6117, %v7288
    %v7408 = vadd.f32 %v6118, %v7291
    %v7409 = vadd.f32 %v6119, %v7293
    %v7410 = vadd.f32 %v6120, %v7296
    %v7411 = vadd.f32 %v6121, %v7298
    %v7412 = vadd.f32 %v6122, %v7301
    %v7413 = vadd.f32 %v6123, %v7303
    %v7414 = vadd.f32 %v6124, %v7306
    %v7415 = vadd.f32 %v6125, %v7308
    %v7416 = vadd.f32 %v6126, %v7311
    %v7417 = vadd.f32 %v6127, %v7313
    %v7418 = vadd.f32 %v6128, %v7316
    %v7419 = vadd.f32 %v6129, %v7318
    %v7420 = vadd.f32 %v6130, %v7321
    %v7421 = vadd.f32 %v6131, %v7323
    %v7422 = vadd.f32 %v6132, %v7326
    %v7423 = vadd.f32 %v6133, %v7328
    %v7424 = vadd.f32 %v6134, %v7331
    %v7425 = vadd.f32 %v6135, %v7333
    %v7426 = vadd.f32 %v6136, %v7336
    %v7427 = vadd.f32 %v6137, %v7338
    %v7428 = vadd.f32 %v6138, %v7341
    %v7429 = vadd.f32 %v6139, %v7343
    %v7430 = vadd.f32 %v6140, %v7346
    %v7431 = vadd.f32 %v6141, %v7348
    %v7432 = vadd.f32 %v6142, %v7351
    %v7433 = vadd.f32 %v6143, %v7353
    %v7434 = vadd.f32 %v6144, %v7356
    %v7435 = vadd.f32 %v6145, %v7358
    %v7436 = vadd.f32 %v6146, %v7361
    %v7437 = vadd.f32 %v6147, %v7363
    %v7438 = vadd.f32 %v6148, %v7366
    %v7439 = vadd.f32 %v6149, %v7368
    %v7440 = vadd.f32 %v6150, %v7371
    %v7441 = vadd.f32 %v6151, %v7373
    %v7442 = vadd.f32 %v6152, %v7376
    %v7443 = vadd.f32 %v6153, %v7378
    %v7444 = vld [vmem:[%s2067] sm:$0xe]
    %v7445 = vld [vmem:[%s2067 + $0xc] sm:$0xe]
    %v7446 = vld [vmem:[%s2067 + $0x18] sm:$0xe]
    %v7447 = vld [vmem:[%s2067 + $0x24] sm:$0xe]
    %v7448 = vld [vmem:[%s2067 + $0x30] sm:$0xe]
    %v7449 = vld [vmem:[%s2067 + $0x3c] sm:$0xe]
    %v7450 = vld [vmem:[%s2067 + $0x48] sm:$0xe]
    %v7451 = vld [vmem:[%s2067 + $0x54] sm:$0xe]
    %v7452 = vld [vmem:[%s2067 + $0x60] sm:$0xe]
    %v7453 = vld [vmem:[%s2067 + $0x6c] sm:$0xe]
    %v7454 = vld [vmem:[%s2067 + $0x78] sm:$0xe]
    %v7455 = vld [vmem:[%s2067 + $0x84] sm:$0xe]
    %v7456 = vld [vmem:[%s2067 + $0x90] sm:$0xe]
    %v7457 = vld [vmem:[%s2067 + $0x9c] sm:$0xe]
    %v7458 = vld [vmem:[%s2067 + $0xa8] sm:$0xe]
    %v7459 = vld [vmem:[%s2067 + $0xb4] sm:$0xe]
    %v7460 = vld [vmem:[%s2067 + $0xd8] sm:$0xe]
    %v7461 = vld [vmem:[%s2067 + $0xe4] sm:$0xe]
    %v7462 = vld [vmem:[%s2067 + $0xf0] sm:$0xe]
    %v7463 = vld [vmem:[%s2067 + $0xfc] sm:$0xe]
    %v7464 = vld [vmem:[%s2067 + $0x108] sm:$0xe]
    %v7465 = vld [vmem:[%s2067 + $0x114] sm:$0xe]
    %v7466 = vld [vmem:[%s2067 + $0x120] sm:$0xe]
    %v7467 = vld [vmem:[%s2067 + $0x12c] sm:$0xe]
    %v7468 = vld [vmem:[%s2067 + $0x138] sm:$0xe]
    %v7469 = vld [vmem:[%s2067 + $0x144] sm:$0xe]
    %v7470 = vld [vmem:[%s2067 + $0x150] sm:$0xe]
    %v7471 = vld [vmem:[%s2067 + $0x15c] sm:$0xe]
    %v7472 = vld [vmem:[%s2067 + $0x168] sm:$0xe]
    %v7473 = vld [vmem:[%s2067 + $0x174] sm:$0xe]
    %v7474 = vld [vmem:[%s2067 + $0x180] sm:$0xe]
    %v7475 = vld [vmem:[%s2067 + $0x18c] sm:$0xe]
    %v7572 = vrot.slane %v7444, 5
    %v7573 = vrot.slane %v7572, 4
    %v7574 = vrot.slane %v6155, 5
    %v7575 = vsel %vm4949, %v7573, %v7574
    %v7576 = vrot.slane %v7574, 4
    %v7577 = vrot.slane %v6156, 5
    %v7578 = vsel %vm4949, %v7576, %v7577
    %v7579 = vrot.slane %v7445, 5
    %v7580 = vrot.slane %v7579, 4
    %v7581 = vrot.slane %v6158, 5
    %v7582 = vsel %vm4949, %v7580, %v7581
    %v7583 = vrot.slane %v7581, 4
    %v7584 = vrot.slane %v6159, 5
    %v7585 = vsel %vm4949, %v7583, %v7584
    %v7586 = vrot.slane %v7446, 5
    %v7587 = vrot.slane %v7586, 4
    %v7588 = vrot.slane %v6161, 5
    %v7589 = vsel %vm4949, %v7587, %v7588
    %v7590 = vrot.slane %v7588, 4
    %v7591 = vrot.slane %v6162, 5
    %v7592 = vsel %vm4949, %v7590, %v7591
    %v7593 = vrot.slane %v7447, 5
    %v7594 = vrot.slane %v7593, 4
    %v7595 = vrot.slane %v6164, 5
    %v7596 = vsel %vm4949, %v7594, %v7595
    %v7597 = vrot.slane %v7595, 4
    %v7598 = vrot.slane %v6165, 5
    %v7599 = vsel %vm4949, %v7597, %v7598
    %v7600 = vrot.slane %v7448, 5
    %v7601 = vrot.slane %v7600, 4
    %v7602 = vrot.slane %v6167, 5
    %v7603 = vsel %vm4949, %v7601, %v7602
    %v7604 = vrot.slane %v7602, 4
    %v7605 = vrot.slane %v6168, 5
    %v7606 = vsel %vm4949, %v7604, %v7605
    %v7607 = vrot.slane %v7449, 5
    %v7608 = vrot.slane %v7607, 4
    %v7609 = vrot.slane %v6170, 5
    %v7610 = vsel %vm4949, %v7608, %v7609
    %v7611 = vrot.slane %v7609, 4
    %v7612 = vrot.slane %v6171, 5
    %v7613 = vsel %vm4949, %v7611, %v7612
    %v7614 = vrot.slane %v7450, 5
    %v7615 = vrot.slane %v7614, 4
    %v7616 = vrot.slane %v6173, 5
    %v7617 = vsel %vm4949, %v7615, %v7616
    %v7618 = vrot.slane %v7616, 4
    %v7619 = vrot.slane %v6174, 5
    %v7620 = vsel %vm4949, %v7618, %v7619
    %v7621 = vrot.slane %v7451, 5
    %v7622 = vrot.slane %v7621, 4
    %v7623 = vrot.slane %v6176, 5
    %v7624 = vsel %vm4949, %v7622, %v7623
    %v7625 = vrot.slane %v7623, 4
    %v7626 = vrot.slane %v6177, 5
    %v7627 = vsel %vm4949, %v7625, %v7626
    %v7628 = vrot.slane %v7452, 5
    %v7629 = vrot.slane %v7628, 4
    %v7630 = vrot.slane %v6179, 5
    %v7631 = vsel %vm4949, %v7629, %v7630
    %v7632 = vrot.slane %v7630, 4
    %v7633 = vrot.slane %v6180, 5
    %v7634 = vsel %vm4949, %v7632, %v7633
    %v7635 = vrot.slane %v7453, 5
    %v7636 = vrot.slane %v7635, 4
    %v7637 = vrot.slane %v6182, 5
    %v7638 = vsel %vm4949, %v7636, %v7637
    %v7639 = vrot.slane %v7637, 4
    %v7640 = vrot.slane %v6183, 5
    %v7641 = vsel %vm4949, %v7639, %v7640
    %v7642 = vrot.slane %v7454, 5
    %v7643 = vrot.slane %v7642, 4
    %v7644 = vrot.slane %v6185, 5
    %v7645 = vsel %vm4949, %v7643, %v7644
    %v7646 = vrot.slane %v7644, 4
    %v7647 = vrot.slane %v6186, 5
    %v7648 = vsel %vm4949, %v7646, %v7647
    %v7649 = vrot.slane %v7455, 5
    %v7650 = vrot.slane %v7649, 4
    %v7651 = vrot.slane %v6188, 5
    %v7652 = vsel %vm4949, %v7650, %v7651
    %v7653 = vrot.slane %v7651, 4
    %v7654 = vrot.slane %v6189, 5
    %v7655 = vsel %vm4949, %v7653, %v7654
    %v7656 = vrot.slane %v7456, 5
    %v7657 = vrot.slane %v7656, 4
    %v7658 = vrot.slane %v6191, 5
    %v7659 = vsel %vm4949, %v7657, %v7658
    %v7660 = vrot.slane %v7658, 4
    %v7661 = vrot.slane %v6192, 5
    %v7662 = vsel %vm4949, %v7660, %v7661
    %v7663 = vrot.slane %v7457, 5
    %v7664 = vrot.slane %v7663, 4
    %v7665 = vrot.slane %v6194, 5
    %v7666 = vsel %vm4949, %v7664, %v7665
    %v7667 = vrot.slane %v7665, 4
    %v7668 = vrot.slane %v6195, 5
    %v7669 = vsel %vm4949, %v7667, %v7668
    %v7670 = vrot.slane %v7458, 5
    %v7671 = vrot.slane %v7670, 4
    %v7672 = vrot.slane %v6197, 5
    %v7673 = vsel %vm4949, %v7671, %v7672
    %v7674 = vrot.slane %v7672, 4
    %v7675 = vrot.slane %v6198, 5
    %v7676 = vsel %vm4949, %v7674, %v7675
    %v7677 = vrot.slane %v7459, 5
    %v7678 = vrot.slane %v7677, 4
    %v7679 = vrot.slane %v6200, 5
    %v7680 = vsel %vm4949, %v7678, %v7679
    %v7681 = vrot.slane %v7679, 4
    %v7682 = vrot.slane %v6201, 5
    %v7683 = vsel %vm4949, %v7681, %v7682
    %v7684 = vrot.slane %v7460, 5
    %v7685 = vrot.slane %v7684, 4
    %v7686 = vrot.slane %v6203, 5
    %v7687 = vsel %vm4949, %v7685, %v7686
    %v7688 = vrot.slane %v7686, 4
    %v7689 = vrot.slane %v6204, 5
    %v7690 = vsel %vm4949, %v7688, %v7689
    %v7691 = vrot.slane %v7461, 5
    %v7692 = vrot.slane %v7691, 4
    %v7693 = vrot.slane %v6206, 5
    %v7694 = vsel %vm4949, %v7692, %v7693
    %v7695 = vrot.slane %v7693, 4
    %v7696 = vrot.slane %v6207, 5
    %v7697 = vsel %vm4949, %v7695, %v7696
    %v7698 = vrot.slane %v7462, 5
    %v7699 = vrot.slane %v7698, 4
    %v7700 = vrot.slane %v6209, 5
    %v7701 = vsel %vm4949, %v7699, %v7700
    %v7702 = vrot.slane %v7700, 4
    %v7703 = vrot.slane %v6210, 5
    %v7704 = vsel %vm4949, %v7702, %v7703
    %v7705 = vrot.slane %v7463, 5
    %v7706 = vrot.slane %v7705, 4
    %v7707 = vrot.slane %v6212, 5
    %v7708 = vsel %vm4949, %v7706, %v7707
    %v7709 = vrot.slane %v7707, 4
    %v7710 = vrot.slane %v6213, 5
    %v7711 = vsel %vm4949, %v7709, %v7710
    %v7712 = vrot.slane %v7464, 5
    %v7713 = vrot.slane %v7712, 4
    %v7714 = vrot.slane %v6215, 5
    %v7715 = vsel %vm4949, %v7713, %v7714
    %v7716 = vrot.slane %v7714, 4
    %v7717 = vrot.slane %v6216, 5
    %v7718 = vsel %vm4949, %v7716, %v7717
    %v7719 = vrot.slane %v7465, 5
    %v7720 = vrot.slane %v7719, 4
    %v7721 = vrot.slane %v6218, 5
    %v7722 = vsel %vm4949, %v7720, %v7721
    %v7723 = vrot.slane %v7721, 4
    %v7724 = vrot.slane %v6219, 5
    %v7725 = vsel %vm4949, %v7723, %v7724
    %v7726 = vrot.slane %v7466, 5
    %v7727 = vrot.slane %v7726, 4
    %v7728 = vrot.slane %v6221, 5
    %v7729 = vsel %vm4949, %v7727, %v7728
    %v7730 = vrot.slane %v7728, 4
    %v7731 = vrot.slane %v6222, 5
    %v7732 = vsel %vm4949, %v7730, %v7731
    %v7733 = vrot.slane %v7467, 5
    %v7734 = vrot.slane %v7733, 4
    %v7735 = vrot.slane %v6224, 5
    %v7736 = vsel %vm4949, %v7734, %v7735
    %v7737 = vrot.slane %v7735, 4
    %v7738 = vrot.slane %v6225, 5
    %v7739 = vsel %vm4949, %v7737, %v7738
    %v7740 = vrot.slane %v7468, 5
    %v7741 = vrot.slane %v7740, 4
    %v7742 = vrot.slane %v6227, 5
    %v7743 = vsel %vm4949, %v7741, %v7742
    %v7744 = vrot.slane %v7742, 4
    %v7745 = vrot.slane %v6228, 5
    %v7746 = vsel %vm4949, %v7744, %v7745
    %v7747 = vrot.slane %v7469, 5
    %v7748 = vrot.slane %v7747, 4
    %v7749 = vrot.slane %v6230, 5
    %v7750 = vsel %vm4949, %v7748, %v7749
    %v7751 = vrot.slane %v7749, 4
    %v7752 = vrot.slane %v6231, 5
    %v7753 = vsel %vm4949, %v7751, %v7752
    %v7754 = vrot.slane %v7470, 5
    %v7755 = vrot.slane %v7754, 4
    %v7756 = vrot.slane %v6233, 5
    %v7757 = vsel %vm4949, %v7755, %v7756
    %v7758 = vrot.slane %v7756, 4
    %v7759 = vrot.slane %v6234, 5
    %v7760 = vsel %vm4949, %v7758, %v7759
    %v7761 = vrot.slane %v7471, 5
    %v7762 = vrot.slane %v7761, 4
    %v7763 = vrot.slane %v6236, 5
    %v7764 = vsel %vm4949, %v7762, %v7763
    %v7765 = vrot.slane %v7763, 4
    %v7766 = vrot.slane %v6237, 5
    %v7767 = vsel %vm4949, %v7765, %v7766
    %v7768 = vrot.slane %v7472, 5
    %v7769 = vrot.slane %v7768, 4
    %v7770 = vrot.slane %v6239, 5
    %v7771 = vsel %vm4949, %v7769, %v7770
    %v7772 = vrot.slane %v7770, 4
    %v7773 = vrot.slane %v6240, 5
    %v7774 = vsel %vm4949, %v7772, %v7773
    %v7775 = vrot.slane %v7473, 5
    %v7776 = vrot.slane %v7775, 4
    %v7777 = vrot.slane %v6242, 5
    %v7778 = vsel %vm4949, %v7776, %v7777
    %v7779 = vrot.slane %v7777, 4
    %v7780 = vrot.slane %v6243, 5
    %v7781 = vsel %vm4949, %v7779, %v7780
    %v7782 = vrot.slane %v7474, 5
    %v7783 = vrot.slane %v7782, 4
    %v7784 = vrot.slane %v6245, 5
    %v7785 = vsel %vm4949, %v7783, %v7784
    %v7786 = vrot.slane %v7784, 4
    %v7787 = vrot.slane %v6246, 5
    %v7788 = vsel %vm4949, %v7786, %v7787
    %v7789 = vrot.slane %v7475, 5
    %v7790 = vrot.slane %v7789, 4
    %v7791 = vrot.slane %v6248, 5
    %v7792 = vsel %vm4949, %v7790, %v7791
    %v7793 = vrot.slane %v7791, 4
    %v7794 = vrot.slane %v6249, 5
    %v7795 = vsel %vm4949, %v7793, %v7794
    %s7796 = scalar_lea.vmem [#allocation11], 320
    %v7797 = vld [vmem:[%s7796] sm:$0xf]
    %v7798 = vld [vmem:[%s7796 + $0x4] sm:$0xf]
    %v7799 = vld [vmem:[%s7796 + $0x8] sm:$0xf]
    %v7800 = vld [vmem:[%s7796 + $0xc] sm:$0xf]
    %v7801 = vld [vmem:[%s7796 + $0x10] sm:$0xf]
    %v7802 = vld [vmem:[%s7796 + $0x14] sm:$0xf]
    %v7803 = vld [vmem:[%s7796 + $0x18] sm:$0xf]
    %v7804 = vld [vmem:[%s7796 + $0x1c] sm:$0xf]
    %v7805 = vld [vmem:[%s7796 + $0x20] sm:$0xf]
    %v7806 = vld [vmem:[%s7796 + $0x24] sm:$0xf]
    %v7807 = vld [vmem:[%s7796 + $0x28] sm:$0xf]
    %v7808 = vld [vmem:[%s7796 + $0x2c] sm:$0xf]
    %v7809 = vld [vmem:[%s7796 + $0x30] sm:$0xf]
    %v7810 = vld [vmem:[%s7796 + $0x34] sm:$0xf]
    %v7811 = vld [vmem:[%s7796 + $0x38] sm:$0xf]
    %v7812 = vld [vmem:[%s7796 + $0x3c] sm:$0xf]
    %v7813 = vunpack.c.l.b16 %v7575
    %v7814 = vunpack.c.l.b16 %v7578
    %v7815 = vunpack.c.l.b16 %v7582
    %v7816 = vunpack.c.l.b16 %v7585
    %v7817 = vunpack.c.l.b16 %v7589
    %v7818 = vunpack.c.l.b16 %v7592
    %v7819 = vunpack.c.l.b16 %v7596
    %v7820 = vunpack.c.l.b16 %v7599
    %v7821 = vunpack.c.l.b16 %v7603
    %v7822 = vunpack.c.l.b16 %v7606
    %v7823 = vunpack.c.l.b16 %v7610
    %v7824 = vunpack.c.l.b16 %v7613
    %v7825 = vunpack.c.l.b16 %v7617
    %v7826 = vunpack.c.l.b16 %v7620
    %v7827 = vunpack.c.l.b16 %v7624
    %v7828 = vunpack.c.l.b16 %v7627
    %v7829 = vunpack.c.l.b16 %v7631
    %v7830 = vunpack.c.l.b16 %v7634
    %v7831 = vunpack.c.l.b16 %v7638
    %v7832 = vunpack.c.l.b16 %v7641
    %v7833 = vunpack.c.l.b16 %v7645
    %v7834 = vunpack.c.l.b16 %v7648
    %v7835 = vunpack.c.l.b16 %v7652
    %v7836 = vunpack.c.l.b16 %v7655
    %v7837 = vunpack.c.l.b16 %v7659
    %v7838 = vunpack.c.l.b16 %v7662
    %v7839 = vunpack.c.l.b16 %v7666
    %v7840 = vunpack.c.l.b16 %v7669
    %v7841 = vunpack.c.l.b16 %v7673
    %v7842 = vunpack.c.l.b16 %v7676
    %v7843 = vunpack.c.l.b16 %v7680
    %v7844 = vunpack.c.l.b16 %v7683
    %v7845 = vunpack.c.l.b16 %v7687
    %v7846 = vunpack.c.l.b16 %v7690
    %v7847 = vunpack.c.l.b16 %v7694
    %v7848 = vunpack.c.l.b16 %v7697
    %v7849 = vunpack.c.l.b16 %v7701
    %v7850 = vunpack.c.l.b16 %v7704
    %v7851 = vunpack.c.l.b16 %v7708
    %v7852 = vunpack.c.l.b16 %v7711
    %v7853 = vunpack.c.l.b16 %v7715
    %v7854 = vunpack.c.l.b16 %v7718
    %v7855 = vunpack.c.l.b16 %v7722
    %v7856 = vunpack.c.l.b16 %v7725
    %v7857 = vunpack.c.l.b16 %v7729
    %v7858 = vunpack.c.l.b16 %v7732
    %v7859 = vunpack.c.l.b16 %v7736
    %v7860 = vunpack.c.l.b16 %v7739
    %v7861 = vunpack.c.l.b16 %v7743
    %v7862 = vunpack.c.l.b16 %v7746
    %v7863 = vunpack.c.l.b16 %v7750
    %v7864 = vunpack.c.l.b16 %v7753
    %v7865 = vunpack.c.l.b16 %v7757
    %v7866 = vunpack.c.l.b16 %v7760
    %v7867 = vunpack.c.l.b16 %v7764
    %v7868 = vunpack.c.l.b16 %v7767
    %v7869 = vunpack.c.l.b16 %v7771
    %v7870 = vunpack.c.l.b16 %v7774
    %v7871 = vunpack.c.l.b16 %v7778
    %v7872 = vunpack.c.l.b16 %v7781
    %v7873 = vunpack.c.l.b16 %v7785
    %v7874 = vunpack.c.l.b16 %v7788
    %v7875 = vunpack.c.l.b16 %v7792
    %v7876 = vunpack.c.l.b16 %v7795
    %v7877 = vpack.c.b16 %v7814, %v7813
    %v7878 = vpack.c.b16 %v7816, %v7815
    %v7879 = vpack.c.b16 %v7818, %v7817
    %v7880 = vpack.c.b16 %v7820, %v7819
    %v7881 = vpack.c.b16 %v7822, %v7821
    %v7882 = vpack.c.b16 %v7824, %v7823
    %v7883 = vpack.c.b16 %v7826, %v7825
    %v7884 = vpack.c.b16 %v7828, %v7827
    %v7885 = vpack.c.b16 %v7830, %v7829
    %v7886 = vpack.c.b16 %v7832, %v7831
    %v7887 = vpack.c.b16 %v7834, %v7833
    %v7888 = vpack.c.b16 %v7836, %v7835
    %v7889 = vpack.c.b16 %v7838, %v7837
    %v7890 = vpack.c.b16 %v7840, %v7839
    %v7891 = vpack.c.b16 %v7842, %v7841
    %v7892 = vpack.c.b16 %v7844, %v7843
    %v7893 = vpack.c.b16 %v7846, %v7845
    %v7894 = vpack.c.b16 %v7848, %v7847
    %v7895 = vpack.c.b16 %v7850, %v7849
    %v7896 = vpack.c.b16 %v7852, %v7851
    %v7897 = vpack.c.b16 %v7854, %v7853
    %v7898 = vpack.c.b16 %v7856, %v7855
    %v7899 = vpack.c.b16 %v7858, %v7857
    %v7900 = vpack.c.b16 %v7860, %v7859
    %v7901 = vpack.c.b16 %v7862, %v7861
    %v7902 = vpack.c.b16 %v7864, %v7863
    %v7903 = vpack.c.b16 %v7866, %v7865
    %v7904 = vpack.c.b16 %v7868, %v7867
    %v7905 = vpack.c.b16 %v7870, %v7869
    %v7906 = vpack.c.b16 %v7872, %v7871
    %v7907 = vpack.c.b16 %v7874, %v7873
    %v7908 = vpack.c.b16 %v7876, %v7875
    %v7957 = vunpack.c.l.b16 %v7797
    %v7958 = vunpack.c.l.b16 %v7798
    %v7959 = vunpack.c.l.b16 %v7799
    %v7960 = vunpack.c.l.b16 %v7800
    %v7961 = vunpack.c.l.b16 %v7801
    %v7962 = vunpack.c.l.b16 %v7802
    %v7963 = vunpack.c.l.b16 %v7803
    %v7964 = vunpack.c.l.b16 %v7804
    %v7965 = vunpack.c.l.b16 %v7805
    %v7966 = vunpack.c.l.b16 %v7806
    %v7967 = vunpack.c.l.b16 %v7807
    %v7968 = vunpack.c.l.b16 %v7808
    %v7969 = vunpack.c.l.b16 %v7809
    %v7970 = vunpack.c.l.b16 %v7810
    %v7971 = vunpack.c.l.b16 %v7811
    %v7972 = vunpack.c.l.b16 %v7812
    %v7973 = vpack.c.b16 %v7958, %v7957
    %v7974 = vpack.c.b16 %v7960, %v7959
    %v7975 = vpack.c.b16 %v7962, %v7961
    %v7976 = vpack.c.b16 %v7964, %v7963
    %v7977 = vpack.c.b16 %v7966, %v7965
    %v7978 = vpack.c.b16 %v7968, %v7967
    %v7979 = vpack.c.b16 %v7970, %v7969
    %v7980 = vpack.c.b16 %v7972, %v7971
    %7989 = vmatpush.bf16.msra.mxu0 %v7980
    %7990 = vmatpush.bf16.msra.mxu0 %v7979
    %7991 = vmatpush.bf16.msra.mxu0 %v7978
    %7992 = vmatpush.bf16.msra.mxu0 %v7977
    %7993 = vmatpush.bf16.msra.mxu0 %v7976
    %7994 = vmatpush.bf16.msra.mxu0 %v7975
    %7995 = vmatpush.bf16.msra.mxu0 %v7974
    %7996 = vmatpush.bf16.msra.mxu0 %v7973
    %7997 = vmatmul.bf16.gmra.mxu0 %v7877
    %v7998 = vpop.f32.mrf.mxu0
    %v7999 = vadd.f32 0.0, %v7998
    %v8000 = vpop.f32.mrf.mxu0
    %v8001 = vadd.f32 0.0, %v8000
    %8002 = vmatmul.bf16.gmra.mxu0 %v7878
    %v8003 = vpop.f32.mrf.mxu0
    %v8004 = vadd.f32 0.0, %v8003
    %v8005 = vpop.f32.mrf.mxu0
    %v8006 = vadd.f32 0.0, %v8005
    %8007 = vmatmul.bf16.gmra.mxu0 %v7879
    %v8008 = vpop.f32.mrf.mxu0
    %v8009 = vadd.f32 0.0, %v8008
    %v8010 = vpop.f32.mrf.mxu0
    %v8011 = vadd.f32 0.0, %v8010
    %8012 = vmatmul.bf16.gmra.mxu0 %v7880
    %v8013 = vpop.f32.mrf.mxu0
    %v8014 = vadd.f32 0.0, %v8013
    %v8015 = vpop.f32.mrf.mxu0
    %v8016 = vadd.f32 0.0, %v8015
    %8017 = vmatmul.bf16.gmra.mxu0 %v7881
    %v8018 = vpop.f32.mrf.mxu0
    %v8019 = vadd.f32 0.0, %v8018
    %v8020 = vpop.f32.mrf.mxu0
    %v8021 = vadd.f32 0.0, %v8020
    %8022 = vmatmul.bf16.gmra.mxu0 %v7882
    %v8023 = vpop.f32.mrf.mxu0
    %v8024 = vadd.f32 0.0, %v8023
    %v8025 = vpop.f32.mrf.mxu0
    %v8026 = vadd.f32 0.0, %v8025
    %8027 = vmatmul.bf16.gmra.mxu0 %v7883
    %v8028 = vpop.f32.mrf.mxu0
    %v8029 = vadd.f32 0.0, %v8028
    %v8030 = vpop.f32.mrf.mxu0
    %v8031 = vadd.f32 0.0, %v8030
    %8032 = vmatmul.bf16.gmra.mxu0 %v7884
    %v8033 = vpop.f32.mrf.mxu0
    %v8034 = vadd.f32 0.0, %v8033
    %v8035 = vpop.f32.mrf.mxu0
    %v8036 = vadd.f32 0.0, %v8035
    %8037 = vmatmul.bf16.gmra.mxu0 %v7885
    %v8038 = vpop.f32.mrf.mxu0
    %v8039 = vadd.f32 0.0, %v8038
    %v8040 = vpop.f32.mrf.mxu0
    %v8041 = vadd.f32 0.0, %v8040
    %8042 = vmatmul.bf16.gmra.mxu0 %v7886
    %v8043 = vpop.f32.mrf.mxu0
    %v8044 = vadd.f32 0.0, %v8043
    %v8045 = vpop.f32.mrf.mxu0
    %v8046 = vadd.f32 0.0, %v8045
    %8047 = vmatmul.bf16.gmra.mxu0 %v7887
    %v8048 = vpop.f32.mrf.mxu0
    %v8049 = vadd.f32 0.0, %v8048
    %v8050 = vpop.f32.mrf.mxu0
    %v8051 = vadd.f32 0.0, %v8050
    %8052 = vmatmul.bf16.gmra.mxu0 %v7888
    %v8053 = vpop.f32.mrf.mxu0
    %v8054 = vadd.f32 0.0, %v8053
    %v8055 = vpop.f32.mrf.mxu0
    %v8056 = vadd.f32 0.0, %v8055
    %8057 = vmatmul.bf16.gmra.mxu0 %v7889
    %v8058 = vpop.f32.mrf.mxu0
    %v8059 = vadd.f32 0.0, %v8058
    %v8060 = vpop.f32.mrf.mxu0
    %v8061 = vadd.f32 0.0, %v8060
    %8062 = vmatmul.bf16.gmra.mxu0 %v7890
    %v8063 = vpop.f32.mrf.mxu0
    %v8064 = vadd.f32 0.0, %v8063
    %v8065 = vpop.f32.mrf.mxu0
    %v8066 = vadd.f32 0.0, %v8065
    %8067 = vmatmul.bf16.gmra.mxu0 %v7891
    %v8068 = vpop.f32.mrf.mxu0
    %v8069 = vadd.f32 0.0, %v8068
    %v8070 = vpop.f32.mrf.mxu0
    %v8071 = vadd.f32 0.0, %v8070
    %8072 = vmatmul.bf16.gmra.mxu0 %v7892
    %v8073 = vpop.f32.mrf.mxu0
    %v8074 = vadd.f32 0.0, %v8073
    %v8075 = vpop.f32.mrf.mxu0
    %v8076 = vadd.f32 0.0, %v8075
    %8077 = vmatmul.bf16.gmra.mxu0 %v7893
    %v8078 = vpop.f32.mrf.mxu0
    %v8079 = vadd.f32 0.0, %v8078
    %v8080 = vpop.f32.mrf.mxu0
    %v8081 = vadd.f32 0.0, %v8080
    %8082 = vmatmul.bf16.gmra.mxu0 %v7894
    %v8083 = vpop.f32.mrf.mxu0
    %v8084 = vadd.f32 0.0, %v8083
    %v8085 = vpop.f32.mrf.mxu0
    %v8086 = vadd.f32 0.0, %v8085
    %8087 = vmatmul.bf16.gmra.mxu0 %v7895
    %v8088 = vpop.f32.mrf.mxu0
    %v8089 = vadd.f32 0.0, %v8088
    %v8090 = vpop.f32.mrf.mxu0
    %v8091 = vadd.f32 0.0, %v8090
    %8092 = vmatmul.bf16.gmra.mxu0 %v7896
    %v8093 = vpop.f32.mrf.mxu0
    %v8094 = vadd.f32 0.0, %v8093
    %v8095 = vpop.f32.mrf.mxu0
    %v8096 = vadd.f32 0.0, %v8095
    %8097 = vmatmul.bf16.gmra.mxu0 %v7897
    %v8098 = vpop.f32.mrf.mxu0
    %v8099 = vadd.f32 0.0, %v8098
    %v8100 = vpop.f32.mrf.mxu0
    %v8101 = vadd.f32 0.0, %v8100
    %8102 = vmatmul.bf16.gmra.mxu0 %v7898
    %v8103 = vpop.f32.mrf.mxu0
    %v8104 = vadd.f32 0.0, %v8103
    %v8105 = vpop.f32.mrf.mxu0
    %v8106 = vadd.f32 0.0, %v8105
    %8107 = vmatmul.bf16.gmra.mxu0 %v7899
    %v8108 = vpop.f32.mrf.mxu0
    %v8109 = vadd.f32 0.0, %v8108
    %v8110 = vpop.f32.mrf.mxu0
    %v8111 = vadd.f32 0.0, %v8110
    %8112 = vmatmul.bf16.gmra.mxu0 %v7900
    %v8113 = vpop.f32.mrf.mxu0
    %v8114 = vadd.f32 0.0, %v8113
    %v8115 = vpop.f32.mrf.mxu0
    %v8116 = vadd.f32 0.0, %v8115
    %8117 = vmatmul.bf16.gmra.mxu0 %v7901
    %v8118 = vpop.f32.mrf.mxu0
    %v8119 = vadd.f32 0.0, %v8118
    %v8120 = vpop.f32.mrf.mxu0
    %v8121 = vadd.f32 0.0, %v8120
    %8122 = vmatmul.bf16.gmra.mxu0 %v7902
    %v8123 = vpop.f32.mrf.mxu0
    %v8124 = vadd.f32 0.0, %v8123
    %v8125 = vpop.f32.mrf.mxu0
    %v8126 = vadd.f32 0.0, %v8125
    %8127 = vmatmul.bf16.gmra.mxu0 %v7903
    %v8128 = vpop.f32.mrf.mxu0
    %v8129 = vadd.f32 0.0, %v8128
    %v8130 = vpop.f32.mrf.mxu0
    %v8131 = vadd.f32 0.0, %v8130
    %8132 = vmatmul.bf16.gmra.mxu0 %v7904
    %v8133 = vpop.f32.mrf.mxu0
    %v8134 = vadd.f32 0.0, %v8133
    %v8135 = vpop.f32.mrf.mxu0
    %v8136 = vadd.f32 0.0, %v8135
    %8137 = vmatmul.bf16.gmra.mxu0 %v7905
    %v8138 = vpop.f32.mrf.mxu0
    %v8139 = vadd.f32 0.0, %v8138
    %v8140 = vpop.f32.mrf.mxu0
    %v8141 = vadd.f32 0.0, %v8140
    %8142 = vmatmul.bf16.gmra.mxu0 %v7906
    %v8143 = vpop.f32.mrf.mxu0
    %v8144 = vadd.f32 0.0, %v8143
    %v8145 = vpop.f32.mrf.mxu0
    %v8146 = vadd.f32 0.0, %v8145
    %8147 = vmatmul.bf16.gmra.mxu0 %v7907
    %v8148 = vpop.f32.mrf.mxu0
    %v8149 = vadd.f32 0.0, %v8148
    %v8150 = vpop.f32.mrf.mxu0
    %v8151 = vadd.f32 0.0, %v8150
    %8152 = vmatmul.bf16.gmra.mxu0 %v7908
    %v8153 = vpop.f32.mrf.mxu0
    %v8154 = vadd.f32 0.0, %v8153
    %v8155 = vpop.f32.mrf.mxu0
    %v8156 = vadd.f32 0.0, %v8155
    %8157 = vdwg.mxu0
    %v8158 = vadd.f32 %v7380, %v7999
    %v8159 = vadd.f32 %v7381, %v8001
    %v8160 = vadd.f32 %v7382, %v8004
    %v8161 = vadd.f32 %v7383, %v8006
    %v8162 = vadd.f32 %v7384, %v8009
    %v8163 = vadd.f32 %v7385, %v8011
    %v8164 = vadd.f32 %v7386, %v8014
    %v8165 = vadd.f32 %v7387, %v8016
    %v8166 = vadd.f32 %v7388, %v8019
    %v8167 = vadd.f32 %v7389, %v8021
    %v8168 = vadd.f32 %v7390, %v8024
    %v8169 = vadd.f32 %v7391, %v8026
    %v8170 = vadd.f32 %v7392, %v8029
    %v8171 = vadd.f32 %v7393, %v8031
    %v8172 = vadd.f32 %v7394, %v8034
    %v8173 = vadd.f32 %v7395, %v8036
    %v8174 = vadd.f32 %v7396, %v8039
    %v8175 = vadd.f32 %v7397, %v8041
    %v8176 = vadd.f32 %v7398, %v8044
    %v8177 = vadd.f32 %v7399, %v8046
    %v8178 = vadd.f32 %v7400, %v8049
    %v8179 = vadd.f32 %v7401, %v8051
    %v8180 = vadd.f32 %v7402, %v8054
    %v8181 = vadd.f32 %v7403, %v8056
    %v8182 = vadd.f32 %v7404, %v8059
    %v8183 = vadd.f32 %v7405, %v8061
    %v8184 = vadd.f32 %v7406, %v8064
    %v8185 = vadd.f32 %v7407, %v8066
    %v8186 = vadd.f32 %v7408, %v8069
    %v8187 = vadd.f32 %v7409, %v8071
    %v8188 = vadd.f32 %v7410, %v8074
    %v8189 = vadd.f32 %v7411, %v8076
    %v8190 = vadd.f32 %v7412, %v8079
    %v8191 = vadd.f32 %v7413, %v8081
    %v8192 = vadd.f32 %v7414, %v8084
    %v8193 = vadd.f32 %v7415, %v8086
    %v8194 = vadd.f32 %v7416, %v8089
    %v8195 = vadd.f32 %v7417, %v8091
    %v8196 = vadd.f32 %v7418, %v8094
    %v8197 = vadd.f32 %v7419, %v8096
    %v8198 = vadd.f32 %v7420, %v8099
    %v8199 = vadd.f32 %v7421, %v8101
    %v8200 = vadd.f32 %v7422, %v8104
    %v8201 = vadd.f32 %v7423, %v8106
    %v8202 = vadd.f32 %v7424, %v8109
    %v8203 = vadd.f32 %v7425, %v8111
    %v8204 = vadd.f32 %v7426, %v8114
    %v8205 = vadd.f32 %v7427, %v8116
    %v8206 = vadd.f32 %v7428, %v8119
    %v8207 = vadd.f32 %v7429, %v8121
    %v8208 = vadd.f32 %v7430, %v8124
    %v8209 = vadd.f32 %v7431, %v8126
    %v8210 = vadd.f32 %v7432, %v8129
    %v8211 = vadd.f32 %v7433, %v8131
    %v8212 = vadd.f32 %v7434, %v8134
    %v8213 = vadd.f32 %v7435, %v8136
    %v8214 = vadd.f32 %v7436, %v8139
    %v8215 = vadd.f32 %v7437, %v8141
    %v8216 = vadd.f32 %v7438, %v8144
    %v8217 = vadd.f32 %v7439, %v8146
    %v8218 = vadd.f32 %v7440, %v8149
    %v8219 = vadd.f32 %v7441, %v8151
    %v8220 = vadd.f32 %v7442, %v8154
    %v8221 = vadd.f32 %v7443, %v8156
    %s8222 = scalar_lea.vmem [#allocation2], 24
    %v8223 = vld [vmem:[%s8222] sm:$0xf]
    %v8224 = vld [vmem:[%s8222 + $0x4] sm:$0xf]
    %v8225 = vld [vmem:[%s8222 + $0xc] sm:$0xf]
    %v8226 = vld [vmem:[%s8222 + $0x10] sm:$0xf]
    %v8227 = vld [vmem:[%s8222 + $0x18] sm:$0xf]
    %v8228 = vld [vmem:[%s8222 + $0x1c] sm:$0xf]
    %v8229 = vld [vmem:[%s8222 + $0x24] sm:$0xf]
    %v8230 = vld [vmem:[%s8222 + $0x28] sm:$0xf]
    %v8231 = vld [vmem:[%s8222 + $0x30] sm:$0xf]
    %v8232 = vld [vmem:[%s8222 + $0x34] sm:$0xf]
    %v8233 = vld [vmem:[%s8222 + $0x3c] sm:$0xf]
    %v8234 = vld [vmem:[%s8222 + $0x40] sm:$0xf]
    %v8235 = vld [vmem:[%s8222 + $0x48] sm:$0xf]
    %v8236 = vld [vmem:[%s8222 + $0x4c] sm:$0xf]
    %v8237 = vld [vmem:[%s8222 + $0x54] sm:$0xf]
    %v8238 = vld [vmem:[%s8222 + $0x58] sm:$0xf]
    %v8239 = vld [vmem:[%s8222 + $0x60] sm:$0xf]
    %v8240 = vld [vmem:[%s8222 + $0x64] sm:$0xf]
    %v8241 = vld [vmem:[%s8222 + $0x6c] sm:$0xf]
    %v8242 = vld [vmem:[%s8222 + $0x70] sm:$0xf]
    %v8243 = vld [vmem:[%s8222 + $0x78] sm:$0xf]
    %v8244 = vld [vmem:[%s8222 + $0x7c] sm:$0xf]
    %v8245 = vld [vmem:[%s8222 + $0x84] sm:$0xf]
    %v8246 = vld [vmem:[%s8222 + $0x88] sm:$0xf]
    %v8247 = vld [vmem:[%s8222 + $0x90] sm:$0xf]
    %v8248 = vld [vmem:[%s8222 + $0x94] sm:$0xf]
    %v8249 = vld [vmem:[%s8222 + $0x9c] sm:$0xf]
    %v8250 = vld [vmem:[%s8222 + $0xa0] sm:$0xf]
    %v8251 = vld [vmem:[%s8222 + $0xa8] sm:$0xf]
    %v8252 = vld [vmem:[%s8222 + $0xac] sm:$0xf]
    %v8253 = vld [vmem:[%s8222 + $0xb4] sm:$0xf]
    %v8254 = vld [vmem:[%s8222 + $0xb8] sm:$0xf]
    %v8255 = vld [vmem:[%s8222 + $0xd8] sm:$0xf]
    %v8256 = vld [vmem:[%s8222 + $0xdc] sm:$0xf]
    %v8257 = vld [vmem:[%s8222 + $0xe4] sm:$0xf]
    %v8258 = vld [vmem:[%s8222 + $0xe8] sm:$0xf]
    %v8259 = vld [vmem:[%s8222 + $0xf0] sm:$0xf]
    %v8260 = vld [vmem:[%s8222 + $0xf4] sm:$0xf]
    %v8261 = vld [vmem:[%s8222 + $0xfc] sm:$0xf]
    %v8262 = vld [vmem:[%s8222 + $0x100] sm:$0xf]
    %v8263 = vld [vmem:[%s8222 + $0x108] sm:$0xf]
    %v8264 = vld [vmem:[%s8222 + $0x10c] sm:$0xf]
    %v8265 = vld [vmem:[%s8222 + $0x114] sm:$0xf]
    %v8266 = vld [vmem:[%s8222 + $0x118] sm:$0xf]
    %v8267 = vld [vmem:[%s8222 + $0x120] sm:$0xf]
    %v8268 = vld [vmem:[%s8222 + $0x124] sm:$0xf]
    %v8269 = vld [vmem:[%s8222 + $0x12c] sm:$0xf]
    %v8270 = vld [vmem:[%s8222 + $0x130] sm:$0xf]
    %v8271 = vld [vmem:[%s8222 + $0x138] sm:$0xf]
    %v8272 = vld [vmem:[%s8222 + $0x13c] sm:$0xf]
    %v8273 = vld [vmem:[%s8222 + $0x144] sm:$0xf]
    %v8274 = vld [vmem:[%s8222 + $0x148] sm:$0xf]
    %v8275 = vld [vmem:[%s8222 + $0x150] sm:$0xf]
    %v8276 = vld [vmem:[%s8222 + $0x154] sm:$0xf]
    %v8277 = vld [vmem:[%s8222 + $0x15c] sm:$0xf]
    %v8278 = vld [vmem:[%s8222 + $0x160] sm:$0xf]
    %v8279 = vld [vmem:[%s8222 + $0x168] sm:$0xf]
    %v8280 = vld [vmem:[%s8222 + $0x16c] sm:$0xf]
    %v8281 = vld [vmem:[%s8222 + $0x174] sm:$0xf]
    %v8282 = vld [vmem:[%s8222 + $0x178] sm:$0xf]
    %v8283 = vld [vmem:[%s8222 + $0x180] sm:$0xf]
    %v8284 = vld [vmem:[%s8222 + $0x184] sm:$0xf]
    %v8285 = vld [vmem:[%s8222 + $0x18c] sm:$0xf]
    %v8286 = vld [vmem:[%s8222 + $0x190] sm:$0xf]
    %s8287 = scalar_lea.vmem [#allocation11], 384
    %v8288 = vld [vmem:[%s8287] sm:$0xf]
    %v8289 = vld [vmem:[%s8287 + $0x4] sm:$0xf]
    %v8290 = vld [vmem:[%s8287 + $0x8] sm:$0xf]
    %v8291 = vld [vmem:[%s8287 + $0xc] sm:$0xf]
    %v8292 = vld [vmem:[%s8287 + $0x10] sm:$0xf]
    %v8293 = vld [vmem:[%s8287 + $0x14] sm:$0xf]
    %v8294 = vld [vmem:[%s8287 + $0x18] sm:$0xf]
    %v8295 = vld [vmem:[%s8287 + $0x1c] sm:$0xf]
    %v8296 = vld [vmem:[%s8287 + $0x20] sm:$0xf]
    %v8297 = vld [vmem:[%s8287 + $0x24] sm:$0xf]
    %v8298 = vld [vmem:[%s8287 + $0x28] sm:$0xf]
    %v8299 = vld [vmem:[%s8287 + $0x2c] sm:$0xf]
    %v8300 = vld [vmem:[%s8287 + $0x30] sm:$0xf]
    %v8301 = vld [vmem:[%s8287 + $0x34] sm:$0xf]
    %v8302 = vld [vmem:[%s8287 + $0x38] sm:$0xf]
    %v8303 = vld [vmem:[%s8287 + $0x3c] sm:$0xf]
    %v8368 = vunpack.c.l.b16 %v8223
    %v8369 = vunpack.c.l.b16 %v8224
    %v8370 = vunpack.c.l.b16 %v8225
    %v8371 = vunpack.c.l.b16 %v8226
    %v8372 = vunpack.c.l.b16 %v8227
    %v8373 = vunpack.c.l.b16 %v8228
    %v8374 = vunpack.c.l.b16 %v8229
    %v8375 = vunpack.c.l.b16 %v8230
    %v8376 = vunpack.c.l.b16 %v8231
    %v8377 = vunpack.c.l.b16 %v8232
    %v8378 = vunpack.c.l.b16 %v8233
    %v8379 = vunpack.c.l.b16 %v8234
    %v8380 = vunpack.c.l.b16 %v8235
    %v8381 = vunpack.c.l.b16 %v8236
    %v8382 = vunpack.c.l.b16 %v8237
    %v8383 = vunpack.c.l.b16 %v8238
    %v8384 = vunpack.c.l.b16 %v8239
    %v8385 = vunpack.c.l.b16 %v8240
    %v8386 = vunpack.c.l.b16 %v8241
    %v8387 = vunpack.c.l.b16 %v8242
    %v8388 = vunpack.c.l.b16 %v8243
    %v8389 = vunpack.c.l.b16 %v8244
    %v8390 = vunpack.c.l.b16 %v8245
    %v8391 = vunpack.c.l.b16 %v8246
    %v8392 = vunpack.c.l.b16 %v8247
    %v8393 = vunpack.c.l.b16 %v8248
    %v8394 = vunpack.c.l.b16 %v8249
    %v8395 = vunpack.c.l.b16 %v8250
    %v8396 = vunpack.c.l.b16 %v8251
    %v8397 = vunpack.c.l.b16 %v8252
    %v8398 = vunpack.c.l.b16 %v8253
    %v8399 = vunpack.c.l.b16 %v8254
    %v8400 = vunpack.c.l.b16 %v8255
    %v8401 = vunpack.c.l.b16 %v8256
    %v8402 = vunpack.c.l.b16 %v8257
    %v8403 = vunpack.c.l.b16 %v8258
    %v8404 = vunpack.c.l.b16 %v8259
    %v8405 = vunpack.c.l.b16 %v8260
    %v8406 = vunpack.c.l.b16 %v8261
    %v8407 = vunpack.c.l.b16 %v8262
    %v8408 = vunpack.c.l.b16 %v8263
    %v8409 = vunpack.c.l.b16 %v8264
    %v8410 = vunpack.c.l.b16 %v8265
    %v8411 = vunpack.c.l.b16 %v8266
    %v8412 = vunpack.c.l.b16 %v8267
    %v8413 = vunpack.c.l.b16 %v8268
    %v8414 = vunpack.c.l.b16 %v8269
    %v8415 = vunpack.c.l.b16 %v8270
    %v8416 = vunpack.c.l.b16 %v8271
    %v8417 = vunpack.c.l.b16 %v8272
    %v8418 = vunpack.c.l.b16 %v8273
    %v8419 = vunpack.c.l.b16 %v8274
    %v8420 = vunpack.c.l.b16 %v8275
    %v8421 = vunpack.c.l.b16 %v8276
    %v8422 = vunpack.c.l.b16 %v8277
    %v8423 = vunpack.c.l.b16 %v8278
    %v8424 = vunpack.c.l.b16 %v8279
    %v8425 = vunpack.c.l.b16 %v8280
    %v8426 = vunpack.c.l.b16 %v8281
    %v8427 = vunpack.c.l.b16 %v8282
    %v8428 = vunpack.c.l.b16 %v8283
    %v8429 = vunpack.c.l.b16 %v8284
    %v8430 = vunpack.c.l.b16 %v8285
    %v8431 = vunpack.c.l.b16 %v8286
    %v8432 = vpack.c.b16 %v8369, %v8368
    %v8433 = vpack.c.b16 %v8371, %v8370
    %v8434 = vpack.c.b16 %v8373, %v8372
    %v8435 = vpack.c.b16 %v8375, %v8374
    %v8436 = vpack.c.b16 %v8377, %v8376
    %v8437 = vpack.c.b16 %v8379, %v8378
    %v8438 = vpack.c.b16 %v8381, %v8380
    %v8439 = vpack.c.b16 %v8383, %v8382
    %v8440 = vpack.c.b16 %v8385, %v8384
    %v8441 = vpack.c.b16 %v8387, %v8386
    %v8442 = vpack.c.b16 %v8389, %v8388
    %v8443 = vpack.c.b16 %v8391, %v8390
    %v8444 = vpack.c.b16 %v8393, %v8392
    %v8445 = vpack.c.b16 %v8395, %v8394
    %v8446 = vpack.c.b16 %v8397, %v8396
    %v8447 = vpack.c.b16 %v8399, %v8398
    %v8448 = vpack.c.b16 %v8401, %v8400
    %v8449 = vpack.c.b16 %v8403, %v8402
    %v8450 = vpack.c.b16 %v8405, %v8404
    %v8451 = vpack.c.b16 %v8407, %v8406
    %v8452 = vpack.c.b16 %v8409, %v8408
    %v8453 = vpack.c.b16 %v8411, %v8410
    %v8454 = vpack.c.b16 %v8413, %v8412
    %v8455 = vpack.c.b16 %v8415, %v8414
    %v8456 = vpack.c.b16 %v8417, %v8416
    %v8457 = vpack.c.b16 %v8419, %v8418
    %v8458 = vpack.c.b16 %v8421, %v8420
    %v8459 = vpack.c.b16 %v8423, %v8422
    %v8460 = vpack.c.b16 %v8425, %v8424
    %v8461 = vpack.c.b16 %v8427, %v8426
    %v8462 = vpack.c.b16 %v8429, %v8428
    %v8463 = vpack.c.b16 %v8431, %v8430
    %v8512 = vunpack.c.l.b16 %v8288
    %v8513 = vunpack.c.l.b16 %v8289
    %v8514 = vunpack.c.l.b16 %v8290
    %v8515 = vunpack.c.l.b16 %v8291
    %v8516 = vunpack.c.l.b16 %v8292
    %v8517 = vunpack.c.l.b16 %v8293
    %v8518 = vunpack.c.l.b16 %v8294
    %v8519 = vunpack.c.l.b16 %v8295
    %v8520 = vunpack.c.l.b16 %v8296
    %v8521 = vunpack.c.l.b16 %v8297
    %v8522 = vunpack.c.l.b16 %v8298
    %v8523 = vunpack.c.l.b16 %v8299
    %v8524 = vunpack.c.l.b16 %v8300
    %v8525 = vunpack.c.l.b16 %v8301
    %v8526 = vunpack.c.l.b16 %v8302
    %v8527 = vunpack.c.l.b16 %v8303
    %v8528 = vpack.c.b16 %v8513, %v8512
    %v8529 = vpack.c.b16 %v8515, %v8514
    %v8530 = vpack.c.b16 %v8517, %v8516
    %v8531 = vpack.c.b16 %v8519, %v8518
    %v8532 = vpack.c.b16 %v8521, %v8520
    %v8533 = vpack.c.b16 %v8523, %v8522
    %v8534 = vpack.c.b16 %v8525, %v8524
    %v8535 = vpack.c.b16 %v8527, %v8526
    %8544 = vmatpush.bf16.msra.mxu0 %v8535
    %8545 = vmatpush.bf16.msra.mxu0 %v8534
    %8546 = vmatpush.bf16.msra.mxu0 %v8533
    %8547 = vmatpush.bf16.msra.mxu0 %v8532
    %8548 = vmatpush.bf16.msra.mxu0 %v8531
    %8549 = vmatpush.bf16.msra.mxu0 %v8530
    %8550 = vmatpush.bf16.msra.mxu0 %v8529
    %8551 = vmatpush.bf16.msra.mxu0 %v8528
    %8552 = vmatmul.bf16.gmra.mxu0 %v8432
    %v8553 = vpop.f32.mrf.mxu0
    %v8554 = vadd.f32 0.0, %v8553
    %v8555 = vpop.f32.mrf.mxu0
    %v8556 = vadd.f32 0.0, %v8555
    %8557 = vmatmul.bf16.gmra.mxu0 %v8433
    %v8558 = vpop.f32.mrf.mxu0
    %v8559 = vadd.f32 0.0, %v8558
    %v8560 = vpop.f32.mrf.mxu0
    %v8561 = vadd.f32 0.0, %v8560
    %8562 = vmatmul.bf16.gmra.mxu0 %v8434
    %v8563 = vpop.f32.mrf.mxu0
    %v8564 = vadd.f32 0.0, %v8563
    %v8565 = vpop.f32.mrf.mxu0
    %v8566 = vadd.f32 0.0, %v8565
    %8567 = vmatmul.bf16.gmra.mxu0 %v8435
    %v8568 = vpop.f32.mrf.mxu0
    %v8569 = vadd.f32 0.0, %v8568
    %v8570 = vpop.f32.mrf.mxu0
    %v8571 = vadd.f32 0.0, %v8570
    %8572 = vmatmul.bf16.gmra.mxu0 %v8436
    %v8573 = vpop.f32.mrf.mxu0
    %v8574 = vadd.f32 0.0, %v8573
    %v8575 = vpop.f32.mrf.mxu0
    %v8576 = vadd.f32 0.0, %v8575
    %8577 = vmatmul.bf16.gmra.mxu0 %v8437
    %v8578 = vpop.f32.mrf.mxu0
    %v8579 = vadd.f32 0.0, %v8578
    %v8580 = vpop.f32.mrf.mxu0
    %v8581 = vadd.f32 0.0, %v8580
    %8582 = vmatmul.bf16.gmra.mxu0 %v8438
    %v8583 = vpop.f32.mrf.mxu0
    %v8584 = vadd.f32 0.0, %v8583
    %v8585 = vpop.f32.mrf.mxu0
    %v8586 = vadd.f32 0.0, %v8585
    %8587 = vmatmul.bf16.gmra.mxu0 %v8439
    %v8588 = vpop.f32.mrf.mxu0
    %v8589 = vadd.f32 0.0, %v8588
    %v8590 = vpop.f32.mrf.mxu0
    %v8591 = vadd.f32 0.0, %v8590
    %8592 = vmatmul.bf16.gmra.mxu0 %v8440
    %v8593 = vpop.f32.mrf.mxu0
    %v8594 = vadd.f32 0.0, %v8593
    %v8595 = vpop.f32.mrf.mxu0
    %v8596 = vadd.f32 0.0, %v8595
    %8597 = vmatmul.bf16.gmra.mxu0 %v8441
    %v8598 = vpop.f32.mrf.mxu0
    %v8599 = vadd.f32 0.0, %v8598
    %v8600 = vpop.f32.mrf.mxu0
    %v8601 = vadd.f32 0.0, %v8600
    %8602 = vmatmul.bf16.gmra.mxu0 %v8442
    %v8603 = vpop.f32.mrf.mxu0
    %v8604 = vadd.f32 0.0, %v8603
    %v8605 = vpop.f32.mrf.mxu0
    %v8606 = vadd.f32 0.0, %v8605
    %8607 = vmatmul.bf16.gmra.mxu0 %v8443
    %v8608 = vpop.f32.mrf.mxu0
    %v8609 = vadd.f32 0.0, %v8608
    %v8610 = vpop.f32.mrf.mxu0
    %v8611 = vadd.f32 0.0, %v8610
    %8612 = vmatmul.bf16.gmra.mxu0 %v8444
    %v8613 = vpop.f32.mrf.mxu0
    %v8614 = vadd.f32 0.0, %v8613
    %v8615 = vpop.f32.mrf.mxu0
    %v8616 = vadd.f32 0.0, %v8615
    %8617 = vmatmul.bf16.gmra.mxu0 %v8445
    %v8618 = vpop.f32.mrf.mxu0
    %v8619 = vadd.f32 0.0, %v8618
    %v8620 = vpop.f32.mrf.mxu0
    %v8621 = vadd.f32 0.0, %v8620
    %8622 = vmatmul.bf16.gmra.mxu0 %v8446
    %v8623 = vpop.f32.mrf.mxu0
    %v8624 = vadd.f32 0.0, %v8623
    %v8625 = vpop.f32.mrf.mxu0
    %v8626 = vadd.f32 0.0, %v8625
    %8627 = vmatmul.bf16.gmra.mxu0 %v8447
    %v8628 = vpop.f32.mrf.mxu0
    %v8629 = vadd.f32 0.0, %v8628
    %v8630 = vpop.f32.mrf.mxu0
    %v8631 = vadd.f32 0.0, %v8630
    %8632 = vmatmul.bf16.gmra.mxu0 %v8448
    %v8633 = vpop.f32.mrf.mxu0
    %v8634 = vadd.f32 0.0, %v8633
    %v8635 = vpop.f32.mrf.mxu0
    %v8636 = vadd.f32 0.0, %v8635
    %8637 = vmatmul.bf16.gmra.mxu0 %v8449
    %v8638 = vpop.f32.mrf.mxu0
    %v8639 = vadd.f32 0.0, %v8638
    %v8640 = vpop.f32.mrf.mxu0
    %v8641 = vadd.f32 0.0, %v8640
    %8642 = vmatmul.bf16.gmra.mxu0 %v8450
    %v8643 = vpop.f32.mrf.mxu0
    %v8644 = vadd.f32 0.0, %v8643
    %v8645 = vpop.f32.mrf.mxu0
    %v8646 = vadd.f32 0.0, %v8645
    %8647 = vmatmul.bf16.gmra.mxu0 %v8451
    %v8648 = vpop.f32.mrf.mxu0
    %v8649 = vadd.f32 0.0, %v8648
    %v8650 = vpop.f32.mrf.mxu0
    %v8651 = vadd.f32 0.0, %v8650
    %8652 = vmatmul.bf16.gmra.mxu0 %v8452
    %v8653 = vpop.f32.mrf.mxu0
    %v8654 = vadd.f32 0.0, %v8653
    %v8655 = vpop.f32.mrf.mxu0
    %v8656 = vadd.f32 0.0, %v8655
    %8657 = vmatmul.bf16.gmra.mxu0 %v8453
    %v8658 = vpop.f32.mrf.mxu0
    %v8659 = vadd.f32 0.0, %v8658
    %v8660 = vpop.f32.mrf.mxu0
    %v8661 = vadd.f32 0.0, %v8660
    %8662 = vmatmul.bf16.gmra.mxu0 %v8454
    %v8663 = vpop.f32.mrf.mxu0
    %v8664 = vadd.f32 0.0, %v8663
    %v8665 = vpop.f32.mrf.mxu0
    %v8666 = vadd.f32 0.0, %v8665
    %8667 = vmatmul.bf16.gmra.mxu0 %v8455
    %v8668 = vpop.f32.mrf.mxu0
    %v8669 = vadd.f32 0.0, %v8668
    %v8670 = vpop.f32.mrf.mxu0
    %v8671 = vadd.f32 0.0, %v8670
    %8672 = vmatmul.bf16.gmra.mxu0 %v8456
    %v8673 = vpop.f32.mrf.mxu0
    %v8674 = vadd.f32 0.0, %v8673
    %v8675 = vpop.f32.mrf.mxu0
    %v8676 = vadd.f32 0.0, %v8675
    %8677 = vmatmul.bf16.gmra.mxu0 %v8457
    %v8678 = vpop.f32.mrf.mxu0
    %v8679 = vadd.f32 0.0, %v8678
    %v8680 = vpop.f32.mrf.mxu0
    %v8681 = vadd.f32 0.0, %v8680
    %8682 = vmatmul.bf16.gmra.mxu0 %v8458
    %v8683 = vpop.f32.mrf.mxu0
    %v8684 = vadd.f32 0.0, %v8683
    %v8685 = vpop.f32.mrf.mxu0
    %v8686 = vadd.f32 0.0, %v8685
    %8687 = vmatmul.bf16.gmra.mxu0 %v8459
    %v8688 = vpop.f32.mrf.mxu0
    %v8689 = vadd.f32 0.0, %v8688
    %v8690 = vpop.f32.mrf.mxu0
    %v8691 = vadd.f32 0.0, %v8690
    %8692 = vmatmul.bf16.gmra.mxu0 %v8460
    %v8693 = vpop.f32.mrf.mxu0
    %v8694 = vadd.f32 0.0, %v8693
    %v8695 = vpop.f32.mrf.mxu0
    %v8696 = vadd.f32 0.0, %v8695
    %8697 = vmatmul.bf16.gmra.mxu0 %v8461
    %v8698 = vpop.f32.mrf.mxu0
    %v8699 = vadd.f32 0.0, %v8698
    %v8700 = vpop.f32.mrf.mxu0
    %v8701 = vadd.f32 0.0, %v8700
    %8702 = vmatmul.bf16.gmra.mxu0 %v8462
    %v8703 = vpop.f32.mrf.mxu0
    %v8704 = vadd.f32 0.0, %v8703
    %v8705 = vpop.f32.mrf.mxu0
    %v8706 = vadd.f32 0.0, %v8705
    %8707 = vmatmul.bf16.gmra.mxu0 %v8463
    %v8708 = vpop.f32.mrf.mxu0
    %v8709 = vadd.f32 0.0, %v8708
    %v8710 = vpop.f32.mrf.mxu0
    %v8711 = vadd.f32 0.0, %v8710
    %8712 = vdwg.mxu0
    %v8713 = vadd.f32 %v8158, %v8554
    %v8714 = vadd.f32 %v8159, %v8556
    %v8715 = vadd.f32 %v8160, %v8559
    %v8716 = vadd.f32 %v8161, %v8561
    %v8717 = vadd.f32 %v8162, %v8564
    %v8718 = vadd.f32 %v8163, %v8566
    %v8719 = vadd.f32 %v8164, %v8569
    %v8720 = vadd.f32 %v8165, %v8571
    %v8721 = vadd.f32 %v8166, %v8574
    %v8722 = vadd.f32 %v8167, %v8576
    %v8723 = vadd.f32 %v8168, %v8579
    %v8724 = vadd.f32 %v8169, %v8581
    %v8725 = vadd.f32 %v8170, %v8584
    %v8726 = vadd.f32 %v8171, %v8586
    %v8727 = vadd.f32 %v8172, %v8589
    %v8728 = vadd.f32 %v8173, %v8591
    %v8729 = vadd.f32 %v8174, %v8594
    %v8730 = vadd.f32 %v8175, %v8596
    %v8731 = vadd.f32 %v8176, %v8599
    %v8732 = vadd.f32 %v8177, %v8601
    %v8733 = vadd.f32 %v8178, %v8604
    %v8734 = vadd.f32 %v8179, %v8606
    %v8735 = vadd.f32 %v8180, %v8609
    %v8736 = vadd.f32 %v8181, %v8611
    %v8737 = vadd.f32 %v8182, %v8614
    %v8738 = vadd.f32 %v8183, %v8616
    %v8739 = vadd.f32 %v8184, %v8619
    %v8740 = vadd.f32 %v8185, %v8621
    %v8741 = vadd.f32 %v8186, %v8624
    %v8742 = vadd.f32 %v8187, %v8626
    %v8743 = vadd.f32 %v8188, %v8629
    %v8744 = vadd.f32 %v8189, %v8631
    %v8745 = vadd.f32 %v8190, %v8634
    %v8746 = vadd.f32 %v8191, %v8636
    %v8747 = vadd.f32 %v8192, %v8639
    %v8748 = vadd.f32 %v8193, %v8641
    %v8749 = vadd.f32 %v8194, %v8644
    %v8750 = vadd.f32 %v8195, %v8646
    %v8751 = vadd.f32 %v8196, %v8649
    %v8752 = vadd.f32 %v8197, %v8651
    %v8753 = vadd.f32 %v8198, %v8654
    %v8754 = vadd.f32 %v8199, %v8656
    %v8755 = vadd.f32 %v8200, %v8659
    %v8756 = vadd.f32 %v8201, %v8661
    %v8757 = vadd.f32 %v8202, %v8664
    %v8758 = vadd.f32 %v8203, %v8666
    %v8759 = vadd.f32 %v8204, %v8669
    %v8760 = vadd.f32 %v8205, %v8671
    %v8761 = vadd.f32 %v8206, %v8674
    %v8762 = vadd.f32 %v8207, %v8676
    %v8763 = vadd.f32 %v8208, %v8679
    %v8764 = vadd.f32 %v8209, %v8681
    %v8765 = vadd.f32 %v8210, %v8684
    %v8766 = vadd.f32 %v8211, %v8686
    %v8767 = vadd.f32 %v8212, %v8689
    %v8768 = vadd.f32 %v8213, %v8691
    %v8769 = vadd.f32 %v8214, %v8694
    %v8770 = vadd.f32 %v8215, %v8696
    %v8771 = vadd.f32 %v8216, %v8699
    %v8772 = vadd.f32 %v8217, %v8701
    %v8773 = vadd.f32 %v8218, %v8704
    %v8774 = vadd.f32 %v8219, %v8706
    %v8775 = vadd.f32 %v8220, %v8709
    %v8776 = vadd.f32 %v8221, %v8711
    %v8777 = vld [vmem:[%s8222] sm:$0xf]
    %v8778 = vld [vmem:[%s8222 + $0x4] sm:$0xf]
    %v8779 = vld [vmem:[%s8222 + $0x8] sm:$0x1]
    %v8780 = vld [vmem:[%s8222 + $0xc] sm:$0xf]
    %v8781 = vld [vmem:[%s8222 + $0x10] sm:$0xf]
    %v8782 = vld [vmem:[%s8222 + $0x14] sm:$0x1]
    %v8783 = vld [vmem:[%s8222 + $0x18] sm:$0xf]
    %v8784 = vld [vmem:[%s8222 + $0x1c] sm:$0xf]
    %v8785 = vld [vmem:[%s8222 + $0x20] sm:$0x1]
    %v8786 = vld [vmem:[%s8222 + $0x24] sm:$0xf]
    %v8787 = vld [vmem:[%s8222 + $0x28] sm:$0xf]
    %v8788 = vld [vmem:[%s8222 + $0x2c] sm:$0x1]
    %v8789 = vld [vmem:[%s8222 + $0x30] sm:$0xf]
    %v8790 = vld [vmem:[%s8222 + $0x34] sm:$0xf]
    %v8791 = vld [vmem:[%s8222 + $0x38] sm:$0x1]
    %v8792 = vld [vmem:[%s8222 + $0x3c] sm:$0xf]
    %v8793 = vld [vmem:[%s8222 + $0x40] sm:$0xf]
    %v8794 = vld [vmem:[%s8222 + $0x44] sm:$0x1]
    %v8795 = vld [vmem:[%s8222 + $0x48] sm:$0xf]
    %v8796 = vld [vmem:[%s8222 + $0x4c] sm:$0xf]
    %v8797 = vld [vmem:[%s8222 + $0x50] sm:$0x1]
    %v8798 = vld [vmem:[%s8222 + $0x54] sm:$0xf]
    %v8799 = vld [vmem:[%s8222 + $0x58] sm:$0xf]
    %v8800 = vld [vmem:[%s8222 + $0x5c] sm:$0x1]
    %v8801 = vld [vmem:[%s8222 + $0x60] sm:$0xf]
    %v8802 = vld [vmem:[%s8222 + $0x64] sm:$0xf]
    %v8803 = vld [vmem:[%s8222 + $0x68] sm:$0x1]
    %v8804 = vld [vmem:[%s8222 + $0x6c] sm:$0xf]
    %v8805 = vld [vmem:[%s8222 + $0x70] sm:$0xf]
    %v8806 = vld [vmem:[%s8222 + $0x74] sm:$0x1]
    %v8807 = vld [vmem:[%s8222 + $0x78] sm:$0xf]
    %v8808 = vld [vmem:[%s8222 + $0x7c] sm:$0xf]
    %v8809 = vld [vmem:[%s8222 + $0x80] sm:$0x1]
    %v8810 = vld [vmem:[%s8222 + $0x84] sm:$0xf]
    %v8811 = vld [vmem:[%s8222 + $0x88] sm:$0xf]
    %v8812 = vld [vmem:[%s8222 + $0x8c] sm:$0x1]
    %v8813 = vld [vmem:[%s8222 + $0x90] sm:$0xf]
    %v8814 = vld [vmem:[%s8222 + $0x94] sm:$0xf]
    %v8815 = vld [vmem:[%s8222 + $0x98] sm:$0x1]
    %v8816 = vld [vmem:[%s8222 + $0x9c] sm:$0xf]
    %v8817 = vld [vmem:[%s8222 + $0xa0] sm:$0xf]
    %v8818 = vld [vmem:[%s8222 + $0xa4] sm:$0x1]
    %v8819 = vld [vmem:[%s8222 + $0xa8] sm:$0xf]
    %v8820 = vld [vmem:[%s8222 + $0xac] sm:$0xf]
    %v8821 = vld [vmem:[%s8222 + $0xb0] sm:$0x1]
    %v8822 = vld [vmem:[%s8222 + $0xb4] sm:$0xf]
    %v8823 = vld [vmem:[%s8222 + $0xb8] sm:$0xf]
    %v8824 = vld [vmem:[%s8222 + $0xbc] sm:$0x1]
    %v8825 = vld [vmem:[%s8222 + $0xd8] sm:$0xf]
    %v8826 = vld [vmem:[%s8222 + $0xdc] sm:$0xf]
    %v8827 = vld [vmem:[%s8222 + $0xe0] sm:$0x1]
    %v8828 = vld [vmem:[%s8222 + $0xe4] sm:$0xf]
    %v8829 = vld [vmem:[%s8222 + $0xe8] sm:$0xf]
    %v8830 = vld [vmem:[%s8222 + $0xec] sm:$0x1]
    %v8831 = vld [vmem:[%s8222 + $0xf0] sm:$0xf]
    %v8832 = vld [vmem:[%s8222 + $0xf4] sm:$0xf]
    %v8833 = vld [vmem:[%s8222 + $0xf8] sm:$0x1]
    %v8834 = vld [vmem:[%s8222 + $0xfc] sm:$0xf]
    %v8835 = vld [vmem:[%s8222 + $0x100] sm:$0xf]
    %v8836 = vld [vmem:[%s8222 + $0x104] sm:$0x1]
    %v8837 = vld [vmem:[%s8222 + $0x108] sm:$0xf]
    %v8838 = vld [vmem:[%s8222 + $0x10c] sm:$0xf]
    %v8839 = vld [vmem:[%s8222 + $0x110] sm:$0x1]
    %v8840 = vld [vmem:[%s8222 + $0x114] sm:$0xf]
    %v8841 = vld [vmem:[%s8222 + $0x118] sm:$0xf]
    %v8842 = vld [vmem:[%s8222 + $0x11c] sm:$0x1]
    %v8843 = vld [vmem:[%s8222 + $0x120] sm:$0xf]
    %v8844 = vld [vmem:[%s8222 + $0x124] sm:$0xf]
    %v8845 = vld [vmem:[%s8222 + $0x128] sm:$0x1]
    %v8846 = vld [vmem:[%s8222 + $0x12c] sm:$0xf]
    %v8847 = vld [vmem:[%s8222 + $0x130] sm:$0xf]
    %v8848 = vld [vmem:[%s8222 + $0x134] sm:$0x1]
    %v8849 = vld [vmem:[%s8222 + $0x138] sm:$0xf]
    %v8850 = vld [vmem:[%s8222 + $0x13c] sm:$0xf]
    %v8851 = vld [vmem:[%s8222 + $0x140] sm:$0x1]
    %v8852 = vld [vmem:[%s8222 + $0x144] sm:$0xf]
    %v8853 = vld [vmem:[%s8222 + $0x148] sm:$0xf]
    %v8854 = vld [vmem:[%s8222 + $0x14c] sm:$0x1]
    %v8855 = vld [vmem:[%s8222 + $0x150] sm:$0xf]
    %v8856 = vld [vmem:[%s8222 + $0x154] sm:$0xf]
    %v8857 = vld [vmem:[%s8222 + $0x158] sm:$0x1]
    %v8858 = vld [vmem:[%s8222 + $0x15c] sm:$0xf]
    %v8859 = vld [vmem:[%s8222 + $0x160] sm:$0xf]
    %v8860 = vld [vmem:[%s8222 + $0x164] sm:$0x1]
    %v8861 = vld [vmem:[%s8222 + $0x168] sm:$0xf]
    %v8862 = vld [vmem:[%s8222 + $0x16c] sm:$0xf]
    %v8863 = vld [vmem:[%s8222 + $0x170] sm:$0x1]
    %v8864 = vld [vmem:[%s8222 + $0x174] sm:$0xf]
    %v8865 = vld [vmem:[%s8222 + $0x178] sm:$0xf]
    %v8866 = vld [vmem:[%s8222 + $0x17c] sm:$0x1]
    %v8867 = vld [vmem:[%s8222 + $0x180] sm:$0xf]
    %v8868 = vld [vmem:[%s8222 + $0x184] sm:$0xf]
    %v8869 = vld [vmem:[%s8222 + $0x188] sm:$0x1]
    %v8870 = vld [vmem:[%s8222 + $0x18c] sm:$0xf]
    %v8871 = vld [vmem:[%s8222 + $0x190] sm:$0xf]
    %v8872 = vld [vmem:[%s8222 + $0x194] sm:$0x1]
    %v8874 = vshrl.u32 %v8777, 16
    %v8876 = vrot.slane %v8874, 4
    %v8877 = vshll.u32 %v8777, 16
    %v8879 = vrot.slane %v8877, 5
    %v8880 = vor.u32 %v8876, %v8879
    %v8881 = vrot.slane %v8880, 4
    %v8883 = vshll.u32 %v8778, 16
    %v8885 = vrot.slane %v8883, 5
    %v8886 = vsel %vm3311, %v8881, %v8885
    %v8887 = vshrl.u32 %v8778, 16
    %v8889 = vrot.slane %v8887, 4
    %v8890 = vor.u32 %v8889, %v8885
    %v8891 = vrot.slane %v8890, 4
    %v8893 = vshll.u32 %v8779, 16
    %v8895 = vrot.slane %v8893, 5
    %v8896 = vsel %vm3311, %v8891, %v8895
    %v8898 = vshrl.u32 %v8780, 16
    %v8900 = vrot.slane %v8898, 4
    %v8901 = vshll.u32 %v8780, 16
    %v8903 = vrot.slane %v8901, 5
    %v8904 = vor.u32 %v8900, %v8903
    %v8905 = vrot.slane %v8904, 4
    %v8907 = vshll.u32 %v8781, 16
    %v8909 = vrot.slane %v8907, 5
    %v8910 = vsel %vm3311, %v8905, %v8909
    %v8911 = vshrl.u32 %v8781, 16
    %v8913 = vrot.slane %v8911, 4
    %v8914 = vor.u32 %v8913, %v8909
    %v8915 = vrot.slane %v8914, 4
    %v8917 = vshll.u32 %v8782, 16
    %v8919 = vrot.slane %v8917, 5
    %v8920 = vsel %vm3311, %v8915, %v8919
    %v8922 = vshrl.u32 %v8783, 16
    %v8924 = vrot.slane %v8922, 4
    %v8925 = vshll.u32 %v8783, 16
    %v8927 = vrot.slane %v8925, 5
    %v8928 = vor.u32 %v8924, %v8927
    %v8929 = vrot.slane %v8928, 4
    %v8931 = vshll.u32 %v8784, 16
    %v8933 = vrot.slane %v8931, 5
    %v8934 = vsel %vm3311, %v8929, %v8933
    %v8935 = vshrl.u32 %v8784, 16
    %v8937 = vrot.slane %v8935, 4
    %v8938 = vor.u32 %v8937, %v8933
    %v8939 = vrot.slane %v8938, 4
    %v8941 = vshll.u32 %v8785, 16
    %v8943 = vrot.slane %v8941, 5
    %v8944 = vsel %vm3311, %v8939, %v8943
    %v8946 = vshrl.u32 %v8786, 16
    %v8948 = vrot.slane %v8946, 4
    %v8949 = vshll.u32 %v8786, 16
    %v8951 = vrot.slane %v8949, 5
    %v8952 = vor.u32 %v8948, %v8951
    %v8953 = vrot.slane %v8952, 4
    %v8955 = vshll.u32 %v8787, 16
    %v8957 = vrot.slane %v8955, 5
    %v8958 = vsel %vm3311, %v8953, %v8957
    %v8959 = vshrl.u32 %v8787, 16
    %v8961 = vrot.slane %v8959, 4
    %v8962 = vor.u32 %v8961, %v8957
    %v8963 = vrot.slane %v8962, 4
    %v8965 = vshll.u32 %v8788, 16
    %v8967 = vrot.slane %v8965, 5
    %v8968 = vsel %vm3311, %v8963, %v8967
    %v8970 = vshrl.u32 %v8789, 16
    %v8972 = vrot.slane %v8970, 4
    %v8973 = vshll.u32 %v8789, 16
    %v8975 = vrot.slane %v8973, 5
    %v8976 = vor.u32 %v8972, %v8975
    %v8977 = vrot.slane %v8976, 4
    %v8979 = vshll.u32 %v8790, 16
    %v8981 = vrot.slane %v8979, 5
    %v8982 = vsel %vm3311, %v8977, %v8981
    %v8983 = vshrl.u32 %v8790, 16
    %v8985 = vrot.slane %v8983, 4
    %v8986 = vor.u32 %v8985, %v8981
    %v8987 = vrot.slane %v8986, 4
    %v8989 = vshll.u32 %v8791, 16
    %v8991 = vrot.slane %v8989, 5
    %v8992 = vsel %vm3311, %v8987, %v8991
    %v8994 = vshrl.u32 %v8792, 16
    %v8996 = vrot.slane %v8994, 4
    %v8997 = vshll.u32 %v8792, 16
    %v8999 = vrot.slane %v8997, 5
    %v9000 = vor.u32 %v8996, %v8999
    %v9001 = vrot.slane %v9000, 4
    %v9003 = vshll.u32 %v8793, 16
    %v9005 = vrot.slane %v9003, 5
    %v9006 = vsel %vm3311, %v9001, %v9005
    %v9007 = vshrl.u32 %v8793, 16
    %v9009 = vrot.slane %v9007, 4
    %v9010 = vor.u32 %v9009, %v9005
    %v9011 = vrot.slane %v9010, 4
    %v9013 = vshll.u32 %v8794, 16
    %v9015 = vrot.slane %v9013, 5
    %v9016 = vsel %vm3311, %v9011, %v9015
    %v9018 = vshrl.u32 %v8795, 16
    %v9020 = vrot.slane %v9018, 4
    %v9021 = vshll.u32 %v8795, 16
    %v9023 = vrot.slane %v9021, 5
    %v9024 = vor.u32 %v9020, %v9023
    %v9025 = vrot.slane %v9024, 4
    %v9027 = vshll.u32 %v8796, 16
    %v9029 = vrot.slane %v9027, 5
    %v9030 = vsel %vm3311, %v9025, %v9029
    %v9031 = vshrl.u32 %v8796, 16
    %v9033 = vrot.slane %v9031, 4
    %v9034 = vor.u32 %v9033, %v9029
    %v9035 = vrot.slane %v9034, 4
    %v9037 = vshll.u32 %v8797, 16
    %v9039 = vrot.slane %v9037, 5
    %v9040 = vsel %vm3311, %v9035, %v9039
    %v9042 = vshrl.u32 %v8798, 16
    %v9044 = vrot.slane %v9042, 4
    %v9045 = vshll.u32 %v8798, 16
    %v9047 = vrot.slane %v9045, 5
    %v9048 = vor.u32 %v9044, %v9047
    %v9049 = vrot.slane %v9048, 4
    %v9051 = vshll.u32 %v8799, 16
    %v9053 = vrot.slane %v9051, 5
    %v9054 = vsel %vm3311, %v9049, %v9053
    %v9055 = vshrl.u32 %v8799, 16
    %v9057 = vrot.slane %v9055, 4
    %v9058 = vor.u32 %v9057, %v9053
    %v9059 = vrot.slane %v9058, 4
    %v9061 = vshll.u32 %v8800, 16
    %v9063 = vrot.slane %v9061, 5
    %v9064 = vsel %vm3311, %v9059, %v9063
    %v9066 = vshrl.u32 %v8801, 16
    %v9068 = vrot.slane %v9066, 4
    %v9069 = vshll.u32 %v8801, 16
    %v9071 = vrot.slane %v9069, 5
    %v9072 = vor.u32 %v9068, %v9071
    %v9073 = vrot.slane %v9072, 4
    %v9075 = vshll.u32 %v8802, 16
    %v9077 = vrot.slane %v9075, 5
    %v9078 = vsel %vm3311, %v9073, %v9077
    %v9079 = vshrl.u32 %v8802, 16
    %v9081 = vrot.slane %v9079, 4
    %v9082 = vor.u32 %v9081, %v9077
    %v9083 = vrot.slane %v9082, 4
    %v9085 = vshll.u32 %v8803, 16
    %v9087 = vrot.slane %v9085, 5
    %v9088 = vsel %vm3311, %v9083, %v9087
    %v9090 = vshrl.u32 %v8804, 16
    %v9092 = vrot.slane %v9090, 4
    %v9093 = vshll.u32 %v8804, 16
    %v9095 = vrot.slane %v9093, 5
    %v9096 = vor.u32 %v9092, %v9095
    %v9097 = vrot.slane %v9096, 4
    %v9099 = vshll.u32 %v8805, 16
    %v9101 = vrot.slane %v9099, 5
    %v9102 = vsel %vm3311, %v9097, %v9101
    %v9103 = vshrl.u32 %v8805, 16
    %v9105 = vrot.slane %v9103, 4
    %v9106 = vor.u32 %v9105, %v9101
    %v9107 = vrot.slane %v9106, 4
    %v9109 = vshll.u32 %v8806, 16
    %v9111 = vrot.slane %v9109, 5
    %v9112 = vsel %vm3311, %v9107, %v9111
    %v9114 = vshrl.u32 %v8807, 16
    %v9116 = vrot.slane %v9114, 4
    %v9117 = vshll.u32 %v8807, 16
    %v9119 = vrot.slane %v9117, 5
    %v9120 = vor.u32 %v9116, %v9119
    %v9121 = vrot.slane %v9120, 4
    %v9123 = vshll.u32 %v8808, 16
    %v9125 = vrot.slane %v9123, 5
    %v9126 = vsel %vm3311, %v9121, %v9125
    %v9127 = vshrl.u32 %v8808, 16
    %v9129 = vrot.slane %v9127, 4
    %v9130 = vor.u32 %v9129, %v9125
    %v9131 = vrot.slane %v9130, 4
    %v9133 = vshll.u32 %v8809, 16
    %v9135 = vrot.slane %v9133, 5
    %v9136 = vsel %vm3311, %v9131, %v9135
    %v9138 = vshrl.u32 %v8810, 16
    %v9140 = vrot.slane %v9138, 4
    %v9141 = vshll.u32 %v8810, 16
    %v9143 = vrot.slane %v9141, 5
    %v9144 = vor.u32 %v9140, %v9143
    %v9145 = vrot.slane %v9144, 4
    %v9147 = vshll.u32 %v8811, 16
    %v9149 = vrot.slane %v9147, 5
    %v9150 = vsel %vm3311, %v9145, %v9149
    %v9151 = vshrl.u32 %v8811, 16
    %v9153 = vrot.slane %v9151, 4
    %v9154 = vor.u32 %v9153, %v9149
    %v9155 = vrot.slane %v9154, 4
    %v9157 = vshll.u32 %v8812, 16
    %v9159 = vrot.slane %v9157, 5
    %v9160 = vsel %vm3311, %v9155, %v9159
    %v9162 = vshrl.u32 %v8813, 16
    %v9164 = vrot.slane %v9162, 4
    %v9165 = vshll.u32 %v8813, 16
    %v9167 = vrot.slane %v9165, 5
    %v9168 = vor.u32 %v9164, %v9167
    %v9169 = vrot.slane %v9168, 4
    %v9171 = vshll.u32 %v8814, 16
    %v9173 = vrot.slane %v9171, 5
    %v9174 = vsel %vm3311, %v9169, %v9173
    %v9175 = vshrl.u32 %v8814, 16
    %v9177 = vrot.slane %v9175, 4
    %v9178 = vor.u32 %v9177, %v9173
    %v9179 = vrot.slane %v9178, 4
    %v9181 = vshll.u32 %v8815, 16
    %v9183 = vrot.slane %v9181, 5
    %v9184 = vsel %vm3311, %v9179, %v9183
    %v9186 = vshrl.u32 %v8816, 16
    %v9188 = vrot.slane %v9186, 4
    %v9189 = vshll.u32 %v8816, 16
    %v9191 = vrot.slane %v9189, 5
    %v9192 = vor.u32 %v9188, %v9191
    %v9193 = vrot.slane %v9192, 4
    %v9195 = vshll.u32 %v8817, 16
    %v9197 = vrot.slane %v9195, 5
    %v9198 = vsel %vm3311, %v9193, %v9197
    %v9199 = vshrl.u32 %v8817, 16
    %v9201 = vrot.slane %v9199, 4
    %v9202 = vor.u32 %v9201, %v9197
    %v9203 = vrot.slane %v9202, 4
    %v9205 = vshll.u32 %v8818, 16
    %v9207 = vrot.slane %v9205, 5
    %v9208 = vsel %vm3311, %v9203, %v9207
    %v9210 = vshrl.u32 %v8819, 16
    %v9212 = vrot.slane %v9210, 4
    %v9213 = vshll.u32 %v8819, 16
    %v9215 = vrot.slane %v9213, 5
    %v9216 = vor.u32 %v9212, %v9215
    %v9217 = vrot.slane %v9216, 4
    %v9219 = vshll.u32 %v8820, 16
    %v9221 = vrot.slane %v9219, 5
    %v9222 = vsel %vm3311, %v9217, %v9221
    %v9223 = vshrl.u32 %v8820, 16
    %v9225 = vrot.slane %v9223, 4
    %v9226 = vor.u32 %v9225, %v9221
    %v9227 = vrot.slane %v9226, 4
    %v9229 = vshll.u32 %v8821, 16
    %v9231 = vrot.slane %v9229, 5
    %v9232 = vsel %vm3311, %v9227, %v9231
    %v9234 = vshrl.u32 %v8822, 16
    %v9236 = vrot.slane %v9234, 4
    %v9237 = vshll.u32 %v8822, 16
    %v9239 = vrot.slane %v9237, 5
    %v9240 = vor.u32 %v9236, %v9239
    %v9241 = vrot.slane %v9240, 4
    %v9243 = vshll.u32 %v8823, 16
    %v9245 = vrot.slane %v9243, 5
    %v9246 = vsel %vm3311, %v9241, %v9245
    %v9247 = vshrl.u32 %v8823, 16
    %v9249 = vrot.slane %v9247, 4
    %v9250 = vor.u32 %v9249, %v9245
    %v9251 = vrot.slane %v9250, 4
    %v9253 = vshll.u32 %v8824, 16
    %v9255 = vrot.slane %v9253, 5
    %v9256 = vsel %vm3311, %v9251, %v9255
    %v9258 = vshrl.u32 %v8825, 16
    %v9260 = vrot.slane %v9258, 4
    %v9261 = vshll.u32 %v8825, 16
    %v9263 = vrot.slane %v9261, 5
    %v9264 = vor.u32 %v9260, %v9263
    %v9265 = vrot.slane %v9264, 4
    %v9267 = vshll.u32 %v8826, 16
    %v9269 = vrot.slane %v9267, 5
    %v9270 = vsel %vm3311, %v9265, %v9269
    %v9271 = vshrl.u32 %v8826, 16
    %v9273 = vrot.slane %v9271, 4
    %v9274 = vor.u32 %v9273, %v9269
    %v9275 = vrot.slane %v9274, 4
    %v9277 = vshll.u32 %v8827, 16
    %v9279 = vrot.slane %v9277, 5
    %v9280 = vsel %vm3311, %v9275, %v9279
    %v9282 = vshrl.u32 %v8828, 16
    %v9284 = vrot.slane %v9282, 4
    %v9285 = vshll.u32 %v8828, 16
    %v9287 = vrot.slane %v9285, 5
    %v9288 = vor.u32 %v9284, %v9287
    %v9289 = vrot.slane %v9288, 4
    %v9291 = vshll.u32 %v8829, 16
    %v9293 = vrot.slane %v9291, 5
    %v9294 = vsel %vm3311, %v9289, %v9293
    %v9295 = vshrl.u32 %v8829, 16
    %v9297 = vrot.slane %v9295, 4
    %v9298 = vor.u32 %v9297, %v9293
    %v9299 = vrot.slane %v9298, 4
    %v9301 = vshll.u32 %v8830, 16
    %v9303 = vrot.slane %v9301, 5
    %v9304 = vsel %vm3311, %v9299, %v9303
    %v9306 = vshrl.u32 %v8831, 16
    %v9308 = vrot.slane %v9306, 4
    %v9309 = vshll.u32 %v8831, 16
    %v9311 = vrot.slane %v9309, 5
    %v9312 = vor.u32 %v9308, %v9311
    %v9313 = vrot.slane %v9312, 4
    %v9315 = vshll.u32 %v8832, 16
    %v9317 = vrot.slane %v9315, 5
    %v9318 = vsel %vm3311, %v9313, %v9317
    %v9319 = vshrl.u32 %v8832, 16
    %v9321 = vrot.slane %v9319, 4
    %v9322 = vor.u32 %v9321, %v9317
    %v9323 = vrot.slane %v9322, 4
    %v9325 = vshll.u32 %v8833, 16
    %v9327 = vrot.slane %v9325, 5
    %v9328 = vsel %vm3311, %v9323, %v9327
    %v9330 = vshrl.u32 %v8834, 16
    %v9332 = vrot.slane %v9330, 4
    %v9333 = vshll.u32 %v8834, 16
    %v9335 = vrot.slane %v9333, 5
    %v9336 = vor.u32 %v9332, %v9335
    %v9337 = vrot.slane %v9336, 4
    %v9339 = vshll.u32 %v8835, 16
    %v9341 = vrot.slane %v9339, 5
    %v9342 = vsel %vm3311, %v9337, %v9341
    %v9343 = vshrl.u32 %v8835, 16
    %v9345 = vrot.slane %v9343, 4
    %v9346 = vor.u32 %v9345, %v9341
    %v9347 = vrot.slane %v9346, 4
    %v9349 = vshll.u32 %v8836, 16
    %v9351 = vrot.slane %v9349, 5
    %v9352 = vsel %vm3311, %v9347, %v9351
    %v9354 = vshrl.u32 %v8837, 16
    %v9356 = vrot.slane %v9354, 4
    %v9357 = vshll.u32 %v8837, 16
    %v9359 = vrot.slane %v9357, 5
    %v9360 = vor.u32 %v9356, %v9359
    %v9361 = vrot.slane %v9360, 4
    %v9363 = vshll.u32 %v8838, 16
    %v9365 = vrot.slane %v9363, 5
    %v9366 = vsel %vm3311, %v9361, %v9365
    %v9367 = vshrl.u32 %v8838, 16
    %v9369 = vrot.slane %v9367, 4
    %v9370 = vor.u32 %v9369, %v9365
    %v9371 = vrot.slane %v9370, 4
    %v9373 = vshll.u32 %v8839, 16
    %v9375 = vrot.slane %v9373, 5
    %v9376 = vsel %vm3311, %v9371, %v9375
    %v9378 = vshrl.u32 %v8840, 16
    %v9380 = vrot.slane %v9378, 4
    %v9381 = vshll.u32 %v8840, 16
    %v9383 = vrot.slane %v9381, 5
    %v9384 = vor.u32 %v9380, %v9383
    %v9385 = vrot.slane %v9384, 4
    %v9387 = vshll.u32 %v8841, 16
    %v9389 = vrot.slane %v9387, 5
    %v9390 = vsel %vm3311, %v9385, %v9389
    %v9391 = vshrl.u32 %v8841, 16
    %v9393 = vrot.slane %v9391, 4
    %v9394 = vor.u32 %v9393, %v9389
    %v9395 = vrot.slane %v9394, 4
    %v9397 = vshll.u32 %v8842, 16
    %v9399 = vrot.slane %v9397, 5
    %v9400 = vsel %vm3311, %v9395, %v9399
    %v9402 = vshrl.u32 %v8843, 16
    %v9404 = vrot.slane %v9402, 4
    %v9405 = vshll.u32 %v8843, 16
    %v9407 = vrot.slane %v9405, 5
    %v9408 = vor.u32 %v9404, %v9407
    %v9409 = vrot.slane %v9408, 4
    %v9411 = vshll.u32 %v8844, 16
    %v9413 = vrot.slane %v9411, 5
    %v9414 = vsel %vm3311, %v9409, %v9413
    %v9415 = vshrl.u32 %v8844, 16
    %v9417 = vrot.slane %v9415, 4
    %v9418 = vor.u32 %v9417, %v9413
    %v9419 = vrot.slane %v9418, 4
    %v9421 = vshll.u32 %v8845, 16
    %v9423 = vrot.slane %v9421, 5
    %v9424 = vsel %vm3311, %v9419, %v9423
    %v9426 = vshrl.u32 %v8846, 16
    %v9428 = vrot.slane %v9426, 4
    %v9429 = vshll.u32 %v8846, 16
    %v9431 = vrot.slane %v9429, 5
    %v9432 = vor.u32 %v9428, %v9431
    %v9433 = vrot.slane %v9432, 4
    %v9435 = vshll.u32 %v8847, 16
    %v9437 = vrot.slane %v9435, 5
    %v9438 = vsel %vm3311, %v9433, %v9437
    %v9439 = vshrl.u32 %v8847, 16
    %v9441 = vrot.slane %v9439, 4
    %v9442 = vor.u32 %v9441, %v9437
    %v9443 = vrot.slane %v9442, 4
    %v9445 = vshll.u32 %v8848, 16
    %v9447 = vrot.slane %v9445, 5
    %v9448 = vsel %vm3311, %v9443, %v9447
    %v9450 = vshrl.u32 %v8849, 16
    %v9452 = vrot.slane %v9450, 4
    %v9453 = vshll.u32 %v8849, 16
    %v9455 = vrot.slane %v9453, 5
    %v9456 = vor.u32 %v9452, %v9455
    %v9457 = vrot.slane %v9456, 4
    %v9459 = vshll.u32 %v8850, 16
    %v9461 = vrot.slane %v9459, 5
    %v9462 = vsel %vm3311, %v9457, %v9461
    %v9463 = vshrl.u32 %v8850, 16
    %v9465 = vrot.slane %v9463, 4
    %v9466 = vor.u32 %v9465, %v9461
    %v9467 = vrot.slane %v9466, 4
    %v9469 = vshll.u32 %v8851, 16
    %v9471 = vrot.slane %v9469, 5
    %v9472 = vsel %vm3311, %v9467, %v9471
    %v9474 = vshrl.u32 %v8852, 16
    %v9476 = vrot.slane %v9474, 4
    %v9477 = vshll.u32 %v8852, 16
    %v9479 = vrot.slane %v9477, 5
    %v9480 = vor.u32 %v9476, %v9479
    %v9481 = vrot.slane %v9480, 4
    %v9483 = vshll.u32 %v8853, 16
    %v9485 = vrot.slane %v9483, 5
    %v9486 = vsel %vm3311, %v9481, %v9485
    %v9487 = vshrl.u32 %v8853, 16
    %v9489 = vrot.slane %v9487, 4
    %v9490 = vor.u32 %v9489, %v9485
    %v9491 = vrot.slane %v9490, 4
    %v9493 = vshll.u32 %v8854, 16
    %v9495 = vrot.slane %v9493, 5
    %v9496 = vsel %vm3311, %v9491, %v9495
    %v9498 = vshrl.u32 %v8855, 16
    %v9500 = vrot.slane %v9498, 4
    %v9501 = vshll.u32 %v8855, 16
    %v9503 = vrot.slane %v9501, 5
    %v9504 = vor.u32 %v9500, %v9503
    %v9505 = vrot.slane %v9504, 4
    %v9507 = vshll.u32 %v8856, 16
    %v9509 = vrot.slane %v9507, 5
    %v9510 = vsel %vm3311, %v9505, %v9509
    %v9511 = vshrl.u32 %v8856, 16
    %v9513 = vrot.slane %v9511, 4
    %v9514 = vor.u32 %v9513, %v9509
    %v9515 = vrot.slane %v9514, 4
    %v9517 = vshll.u32 %v8857, 16
    %v9519 = vrot.slane %v9517, 5
    %v9520 = vsel %vm3311, %v9515, %v9519
    %v9522 = vshrl.u32 %v8858, 16
    %v9524 = vrot.slane %v9522, 4
    %v9525 = vshll.u32 %v8858, 16
    %v9527 = vrot.slane %v9525, 5
    %v9528 = vor.u32 %v9524, %v9527
    %v9529 = vrot.slane %v9528, 4
    %v9531 = vshll.u32 %v8859, 16
    %v9533 = vrot.slane %v9531, 5
    %v9534 = vsel %vm3311, %v9529, %v9533
    %v9535 = vshrl.u32 %v8859, 16
    %v9537 = vrot.slane %v9535, 4
    %v9538 = vor.u32 %v9537, %v9533
    %v9539 = vrot.slane %v9538, 4
    %v9541 = vshll.u32 %v8860, 16
    %v9543 = vrot.slane %v9541, 5
    %v9544 = vsel %vm3311, %v9539, %v9543
    %v9546 = vshrl.u32 %v8861, 16
    %v9548 = vrot.slane %v9546, 4
    %v9549 = vshll.u32 %v8861, 16
    %v9551 = vrot.slane %v9549, 5
    %v9552 = vor.u32 %v9548, %v9551
    %v9553 = vrot.slane %v9552, 4
    %v9555 = vshll.u32 %v8862, 16
    %v9557 = vrot.slane %v9555, 5
    %v9558 = vsel %vm3311, %v9553, %v9557
    %v9559 = vshrl.u32 %v8862, 16
    %v9561 = vrot.slane %v9559, 4
    %v9562 = vor.u32 %v9561, %v9557
    %v9563 = vrot.slane %v9562, 4
    %v9565 = vshll.u32 %v8863, 16
    %v9567 = vrot.slane %v9565, 5
    %v9568 = vsel %vm3311, %v9563, %v9567
    %v9570 = vshrl.u32 %v8864, 16
    %v9572 = vrot.slane %v9570, 4
    %v9573 = vshll.u32 %v8864, 16
    %v9575 = vrot.slane %v9573, 5
    %v9576 = vor.u32 %v9572, %v9575
    %v9577 = vrot.slane %v9576, 4
    %v9579 = vshll.u32 %v8865, 16
    %v9581 = vrot.slane %v9579, 5
    %v9582 = vsel %vm3311, %v9577, %v9581
    %v9583 = vshrl.u32 %v8865, 16
    %v9585 = vrot.slane %v9583, 4
    %v9586 = vor.u32 %v9585, %v9581
    %v9587 = vrot.slane %v9586, 4
    %v9589 = vshll.u32 %v8866, 16
    %v9591 = vrot.slane %v9589, 5
    %v9592 = vsel %vm3311, %v9587, %v9591
    %v9594 = vshrl.u32 %v8867, 16
    %v9596 = vrot.slane %v9594, 4
    %v9597 = vshll.u32 %v8867, 16
    %v9599 = vrot.slane %v9597, 5
    %v9600 = vor.u32 %v9596, %v9599
    %v9601 = vrot.slane %v9600, 4
    %v9603 = vshll.u32 %v8868, 16
    %v9605 = vrot.slane %v9603, 5
    %v9606 = vsel %vm3311, %v9601, %v9605
    %v9607 = vshrl.u32 %v8868, 16
    %v9609 = vrot.slane %v9607, 4
    %v9610 = vor.u32 %v9609, %v9605
    %v9611 = vrot.slane %v9610, 4
    %v9613 = vshll.u32 %v8869, 16
    %v9615 = vrot.slane %v9613, 5
    %v9616 = vsel %vm3311, %v9611, %v9615
    %v9618 = vshrl.u32 %v8870, 16
    %v9620 = vrot.slane %v9618, 4
    %v9621 = vshll.u32 %v8870, 16
    %v9623 = vrot.slane %v9621, 5
    %v9624 = vor.u32 %v9620, %v9623
    %v9625 = vrot.slane %v9624, 4
    %v9627 = vshll.u32 %v8871, 16
    %v9629 = vrot.slane %v9627, 5
    %v9630 = vsel %vm3311, %v9625, %v9629
    %v9631 = vshrl.u32 %v8871, 16
    %v9633 = vrot.slane %v9631, 4
    %v9634 = vor.u32 %v9633, %v9629
    %v9635 = vrot.slane %v9634, 4
    %v9637 = vshll.u32 %v8872, 16
    %v9639 = vrot.slane %v9637, 5
    %v9640 = vsel %vm3311, %v9635, %v9639
    %s9641 = scalar_lea.vmem [#allocation11], 448
    %v9642 = vld [vmem:[%s9641] sm:$0xf]
    %v9643 = vld [vmem:[%s9641 + $0x4] sm:$0xf]
    %v9644 = vld [vmem:[%s9641 + $0x8] sm:$0xf]
    %v9645 = vld [vmem:[%s9641 + $0xc] sm:$0xf]
    %v9646 = vld [vmem:[%s9641 + $0x10] sm:$0xf]
    %v9647 = vld [vmem:[%s9641 + $0x14] sm:$0xf]
    %v9648 = vld [vmem:[%s9641 + $0x18] sm:$0xf]
    %v9649 = vld [vmem:[%s9641 + $0x1c] sm:$0xf]
    %v9650 = vld [vmem:[%s9641 + $0x20] sm:$0xf]
    %v9651 = vld [vmem:[%s9641 + $0x24] sm:$0xf]
    %v9652 = vld [vmem:[%s9641 + $0x28] sm:$0xf]
    %v9653 = vld [vmem:[%s9641 + $0x2c] sm:$0xf]
    %v9654 = vld [vmem:[%s9641 + $0x30] sm:$0xf]
    %v9655 = vld [vmem:[%s9641 + $0x34] sm:$0xf]
    %v9656 = vld [vmem:[%s9641 + $0x38] sm:$0xf]
    %v9657 = vld [vmem:[%s9641 + $0x3c] sm:$0xf]
    %v9658 = vunpack.c.l.b16 %v8886
    %v9659 = vunpack.c.l.b16 %v8896
    %v9660 = vunpack.c.l.b16 %v8910
    %v9661 = vunpack.c.l.b16 %v8920
    %v9662 = vunpack.c.l.b16 %v8934
    %v9663 = vunpack.c.l.b16 %v8944
    %v9664 = vunpack.c.l.b16 %v8958
    %v9665 = vunpack.c.l.b16 %v8968
    %v9666 = vunpack.c.l.b16 %v8982
    %v9667 = vunpack.c.l.b16 %v8992
    %v9668 = vunpack.c.l.b16 %v9006
    %v9669 = vunpack.c.l.b16 %v9016
    %v9670 = vunpack.c.l.b16 %v9030
    %v9671 = vunpack.c.l.b16 %v9040
    %v9672 = vunpack.c.l.b16 %v9054
    %v9673 = vunpack.c.l.b16 %v9064
    %v9674 = vunpack.c.l.b16 %v9078
    %v9675 = vunpack.c.l.b16 %v9088
    %v9676 = vunpack.c.l.b16 %v9102
    %v9677 = vunpack.c.l.b16 %v9112
    %v9678 = vunpack.c.l.b16 %v9126
    %v9679 = vunpack.c.l.b16 %v9136
    %v9680 = vunpack.c.l.b16 %v9150
    %v9681 = vunpack.c.l.b16 %v9160
    %v9682 = vunpack.c.l.b16 %v9174
    %v9683 = vunpack.c.l.b16 %v9184
    %v9684 = vunpack.c.l.b16 %v9198
    %v9685 = vunpack.c.l.b16 %v9208
    %v9686 = vunpack.c.l.b16 %v9222
    %v9687 = vunpack.c.l.b16 %v9232
    %v9688 = vunpack.c.l.b16 %v9246
    %v9689 = vunpack.c.l.b16 %v9256
    %v9690 = vunpack.c.l.b16 %v9270
    %v9691 = vunpack.c.l.b16 %v9280
    %v9692 = vunpack.c.l.b16 %v9294
    %v9693 = vunpack.c.l.b16 %v9304
    %v9694 = vunpack.c.l.b16 %v9318
    %v9695 = vunpack.c.l.b16 %v9328
    %v9696 = vunpack.c.l.b16 %v9342
    %v9697 = vunpack.c.l.b16 %v9352
    %v9698 = vunpack.c.l.b16 %v9366
    %v9699 = vunpack.c.l.b16 %v9376
    %v9700 = vunpack.c.l.b16 %v9390
    %v9701 = vunpack.c.l.b16 %v9400
    %v9702 = vunpack.c.l.b16 %v9414
    %v9703 = vunpack.c.l.b16 %v9424
    %v9704 = vunpack.c.l.b16 %v9438
    %v9705 = vunpack.c.l.b16 %v9448
    %v9706 = vunpack.c.l.b16 %v9462
    %v9707 = vunpack.c.l.b16 %v9472
    %v9708 = vunpack.c.l.b16 %v9486
    %v9709 = vunpack.c.l.b16 %v9496
    %v9710 = vunpack.c.l.b16 %v9510
    %v9711 = vunpack.c.l.b16 %v9520
    %v9712 = vunpack.c.l.b16 %v9534
    %v9713 = vunpack.c.l.b16 %v9544
    %v9714 = vunpack.c.l.b16 %v9558
    %v9715 = vunpack.c.l.b16 %v9568
    %v9716 = vunpack.c.l.b16 %v9582
    %v9717 = vunpack.c.l.b16 %v9592
    %v9718 = vunpack.c.l.b16 %v9606
    %v9719 = vunpack.c.l.b16 %v9616
    %v9720 = vunpack.c.l.b16 %v9630
    %v9721 = vunpack.c.l.b16 %v9640
    %v9722 = vpack.c.b16 %v9659, %v9658
    %v9723 = vpack.c.b16 %v9661, %v9660
    %v9724 = vpack.c.b16 %v9663, %v9662
    %v9725 = vpack.c.b16 %v9665, %v9664
    %v9726 = vpack.c.b16 %v9667, %v9666
    %v9727 = vpack.c.b16 %v9669, %v9668
    %v9728 = vpack.c.b16 %v9671, %v9670
    %v9729 = vpack.c.b16 %v9673, %v9672
    %v9730 = vpack.c.b16 %v9675, %v9674
    %v9731 = vpack.c.b16 %v9677, %v9676
    %v9732 = vpack.c.b16 %v9679, %v9678
    %v9733 = vpack.c.b16 %v9681, %v9680
    %v9734 = vpack.c.b16 %v9683, %v9682
    %v9735 = vpack.c.b16 %v9685, %v9684
    %v9736 = vpack.c.b16 %v9687, %v9686
    %v9737 = vpack.c.b16 %v9689, %v9688
    %v9738 = vpack.c.b16 %v9691, %v9690
    %v9739 = vpack.c.b16 %v9693, %v9692
    %v9740 = vpack.c.b16 %v9695, %v9694
    %v9741 = vpack.c.b16 %v9697, %v9696
    %v9742 = vpack.c.b16 %v9699, %v9698
    %v9743 = vpack.c.b16 %v9701, %v9700
    %v9744 = vpack.c.b16 %v9703, %v9702
    %v9745 = vpack.c.b16 %v9705, %v9704
    %v9746 = vpack.c.b16 %v9707, %v9706
    %v9747 = vpack.c.b16 %v9709, %v9708
    %v9748 = vpack.c.b16 %v9711, %v9710
    %v9749 = vpack.c.b16 %v9713, %v9712
    %v9750 = vpack.c.b16 %v9715, %v9714
    %v9751 = vpack.c.b16 %v9717, %v9716
    %v9752 = vpack.c.b16 %v9719, %v9718
    %v9753 = vpack.c.b16 %v9721, %v9720
    %v9802 = vunpack.c.l.b16 %v9642
    %v9803 = vunpack.c.l.b16 %v9643
    %v9804 = vunpack.c.l.b16 %v9644
    %v9805 = vunpack.c.l.b16 %v9645
    %v9806 = vunpack.c.l.b16 %v9646
    %v9807 = vunpack.c.l.b16 %v9647
    %v9808 = vunpack.c.l.b16 %v9648
    %v9809 = vunpack.c.l.b16 %v9649
    %v9810 = vunpack.c.l.b16 %v9650
    %v9811 = vunpack.c.l.b16 %v9651
    %v9812 = vunpack.c.l.b16 %v9652
    %v9813 = vunpack.c.l.b16 %v9653
    %v9814 = vunpack.c.l.b16 %v9654
    %v9815 = vunpack.c.l.b16 %v9655
    %v9816 = vunpack.c.l.b16 %v9656
    %v9817 = vunpack.c.l.b16 %v9657
    %v9818 = vpack.c.b16 %v9803, %v9802
    %v9819 = vpack.c.b16 %v9805, %v9804
    %v9820 = vpack.c.b16 %v9807, %v9806
    %v9821 = vpack.c.b16 %v9809, %v9808
    %v9822 = vpack.c.b16 %v9811, %v9810
    %v9823 = vpack.c.b16 %v9813, %v9812
    %v9824 = vpack.c.b16 %v9815, %v9814
    %v9825 = vpack.c.b16 %v9817, %v9816
    %9834 = vmatpush.bf16.msra.mxu0 %v9825
    %9835 = vmatpush.bf16.msra.mxu0 %v9824
    %9836 = vmatpush.bf16.msra.mxu0 %v9823
    %9837 = vmatpush.bf16.msra.mxu0 %v9822
    %9838 = vmatpush.bf16.msra.mxu0 %v9821
    %9839 = vmatpush.bf16.msra.mxu0 %v9820
    %9840 = vmatpush.bf16.msra.mxu0 %v9819
    %9841 = vmatpush.bf16.msra.mxu0 %v9818
    %9842 = vmatmul.bf16.gmra.mxu0 %v9722
    %v9843 = vpop.f32.mrf.mxu0
    %v9844 = vadd.f32 0.0, %v9843
    %v9845 = vpop.f32.mrf.mxu0
    %v9846 = vadd.f32 0.0, %v9845
    %9847 = vmatmul.bf16.gmra.mxu0 %v9723
    %v9848 = vpop.f32.mrf.mxu0
    %v9849 = vadd.f32 0.0, %v9848
    %v9850 = vpop.f32.mrf.mxu0
    %v9851 = vadd.f32 0.0, %v9850
    %9852 = vmatmul.bf16.gmra.mxu0 %v9724
    %v9853 = vpop.f32.mrf.mxu0
    %v9854 = vadd.f32 0.0, %v9853
    %v9855 = vpop.f32.mrf.mxu0
    %v9856 = vadd.f32 0.0, %v9855
    %9857 = vmatmul.bf16.gmra.mxu0 %v9725
    %v9858 = vpop.f32.mrf.mxu0
    %v9859 = vadd.f32 0.0, %v9858
    %v9860 = vpop.f32.mrf.mxu0
    %v9861 = vadd.f32 0.0, %v9860
    %9862 = vmatmul.bf16.gmra.mxu0 %v9726
    %v9863 = vpop.f32.mrf.mxu0
    %v9864 = vadd.f32 0.0, %v9863
    %v9865 = vpop.f32.mrf.mxu0
    %v9866 = vadd.f32 0.0, %v9865
    %9867 = vmatmul.bf16.gmra.mxu0 %v9727
    %v9868 = vpop.f32.mrf.mxu0
    %v9869 = vadd.f32 0.0, %v9868
    %v9870 = vpop.f32.mrf.mxu0
    %v9871 = vadd.f32 0.0, %v9870
    %9872 = vmatmul.bf16.gmra.mxu0 %v9728
    %v9873 = vpop.f32.mrf.mxu0
    %v9874 = vadd.f32 0.0, %v9873
    %v9875 = vpop.f32.mrf.mxu0
    %v9876 = vadd.f32 0.0, %v9875
    %9877 = vmatmul.bf16.gmra.mxu0 %v9729
    %v9878 = vpop.f32.mrf.mxu0
    %v9879 = vadd.f32 0.0, %v9878
    %v9880 = vpop.f32.mrf.mxu0
    %v9881 = vadd.f32 0.0, %v9880
    %9882 = vmatmul.bf16.gmra.mxu0 %v9730
    %v9883 = vpop.f32.mrf.mxu0
    %v9884 = vadd.f32 0.0, %v9883
    %v9885 = vpop.f32.mrf.mxu0
    %v9886 = vadd.f32 0.0, %v9885
    %9887 = vmatmul.bf16.gmra.mxu0 %v9731
    %v9888 = vpop.f32.mrf.mxu0
    %v9889 = vadd.f32 0.0, %v9888
    %v9890 = vpop.f32.mrf.mxu0
    %v9891 = vadd.f32 0.0, %v9890
    %9892 = vmatmul.bf16.gmra.mxu0 %v9732
    %v9893 = vpop.f32.mrf.mxu0
    %v9894 = vadd.f32 0.0, %v9893
    %v9895 = vpop.f32.mrf.mxu0
    %v9896 = vadd.f32 0.0, %v9895
    %9897 = vmatmul.bf16.gmra.mxu0 %v9733
    %v9898 = vpop.f32.mrf.mxu0
    %v9899 = vadd.f32 0.0, %v9898
    %v9900 = vpop.f32.mrf.mxu0
    %v9901 = vadd.f32 0.0, %v9900
    %9902 = vmatmul.bf16.gmra.mxu0 %v9734
    %v9903 = vpop.f32.mrf.mxu0
    %v9904 = vadd.f32 0.0, %v9903
    %v9905 = vpop.f32.mrf.mxu0
    %v9906 = vadd.f32 0.0, %v9905
    %9907 = vmatmul.bf16.gmra.mxu0 %v9735
    %v9908 = vpop.f32.mrf.mxu0
    %v9909 = vadd.f32 0.0, %v9908
    %v9910 = vpop.f32.mrf.mxu0
    %v9911 = vadd.f32 0.0, %v9910
    %9912 = vmatmul.bf16.gmra.mxu0 %v9736
    %v9913 = vpop.f32.mrf.mxu0
    %v9914 = vadd.f32 0.0, %v9913
    %v9915 = vpop.f32.mrf.mxu0
    %v9916 = vadd.f32 0.0, %v9915
    %9917 = vmatmul.bf16.gmra.mxu0 %v9737
    %v9918 = vpop.f32.mrf.mxu0
    %v9919 = vadd.f32 0.0, %v9918
    %v9920 = vpop.f32.mrf.mxu0
    %v9921 = vadd.f32 0.0, %v9920
    %9922 = vmatmul.bf16.gmra.mxu0 %v9738
    %v9923 = vpop.f32.mrf.mxu0
    %v9924 = vadd.f32 0.0, %v9923
    %v9925 = vpop.f32.mrf.mxu0
    %v9926 = vadd.f32 0.0, %v9925
    %9927 = vmatmul.bf16.gmra.mxu0 %v9739
    %v9928 = vpop.f32.mrf.mxu0
    %v9929 = vadd.f32 0.0, %v9928
    %v9930 = vpop.f32.mrf.mxu0
    %v9931 = vadd.f32 0.0, %v9930
    %9932 = vmatmul.bf16.gmra.mxu0 %v9740
    %v9933 = vpop.f32.mrf.mxu0
    %v9934 = vadd.f32 0.0, %v9933
    %v9935 = vpop.f32.mrf.mxu0
    %v9936 = vadd.f32 0.0, %v9935
    %9937 = vmatmul.bf16.gmra.mxu0 %v9741
    %v9938 = vpop.f32.mrf.mxu0
    %v9939 = vadd.f32 0.0, %v9938
    %v9940 = vpop.f32.mrf.mxu0
    %v9941 = vadd.f32 0.0, %v9940
    %9942 = vmatmul.bf16.gmra.mxu0 %v9742
    %v9943 = vpop.f32.mrf.mxu0
    %v9944 = vadd.f32 0.0, %v9943
    %v9945 = vpop.f32.mrf.mxu0
    %v9946 = vadd.f32 0.0, %v9945
    %9947 = vmatmul.bf16.gmra.mxu0 %v9743
    %v9948 = vpop.f32.mrf.mxu0
    %v9949 = vadd.f32 0.0, %v9948
    %v9950 = vpop.f32.mrf.mxu0
    %v9951 = vadd.f32 0.0, %v9950
    %9952 = vmatmul.bf16.gmra.mxu0 %v9744
    %v9953 = vpop.f32.mrf.mxu0
    %v9954 = vadd.f32 0.0, %v9953
    %v9955 = vpop.f32.mrf.mxu0
    %v9956 = vadd.f32 0.0, %v9955
    %9957 = vmatmul.bf16.gmra.mxu0 %v9745
    %v9958 = vpop.f32.mrf.mxu0
    %v9959 = vadd.f32 0.0, %v9958
    %v9960 = vpop.f32.mrf.mxu0
    %v9961 = vadd.f32 0.0, %v9960
    %9962 = vmatmul.bf16.gmra.mxu0 %v9746
    %v9963 = vpop.f32.mrf.mxu0
    %v9964 = vadd.f32 0.0, %v9963
    %v9965 = vpop.f32.mrf.mxu0
    %v9966 = vadd.f32 0.0, %v9965
    %9967 = vmatmul.bf16.gmra.mxu0 %v9747
    %v9968 = vpop.f32.mrf.mxu0
    %v9969 = vadd.f32 0.0, %v9968
    %v9970 = vpop.f32.mrf.mxu0
    %v9971 = vadd.f32 0.0, %v9970
    %9972 = vmatmul.bf16.gmra.mxu0 %v9748
    %v9973 = vpop.f32.mrf.mxu0
    %v9974 = vadd.f32 0.0, %v9973
    %v9975 = vpop.f32.mrf.mxu0
    %v9976 = vadd.f32 0.0, %v9975
    %9977 = vmatmul.bf16.gmra.mxu0 %v9749
    %v9978 = vpop.f32.mrf.mxu0
    %v9979 = vadd.f32 0.0, %v9978
    %v9980 = vpop.f32.mrf.mxu0
    %v9981 = vadd.f32 0.0, %v9980
    %9982 = vmatmul.bf16.gmra.mxu0 %v9750
    %v9983 = vpop.f32.mrf.mxu0
    %v9984 = vadd.f32 0.0, %v9983
    %v9985 = vpop.f32.mrf.mxu0
    %v9986 = vadd.f32 0.0, %v9985
    %9987 = vmatmul.bf16.gmra.mxu0 %v9751
    %v9988 = vpop.f32.mrf.mxu0
    %v9989 = vadd.f32 0.0, %v9988
    %v9990 = vpop.f32.mrf.mxu0
    %v9991 = vadd.f32 0.0, %v9990
    %9992 = vmatmul.bf16.gmra.mxu0 %v9752
    %v9993 = vpop.f32.mrf.mxu0
    %v9994 = vadd.f32 0.0, %v9993
    %v9995 = vpop.f32.mrf.mxu0
    %v9996 = vadd.f32 0.0, %v9995
    %9997 = vmatmul.bf16.gmra.mxu0 %v9753
    %v9998 = vpop.f32.mrf.mxu0
    %v9999 = vadd.f32 0.0, %v9998
    %v10000 = vpop.f32.mrf.mxu0
    %v10001 = vadd.f32 0.0, %v10000
    %10002 = vdwg.mxu0
    %v10003 = vadd.f32 %v8713, %v9844
    %v10004 = vadd.f32 %v8714, %v9846
    %v10005 = vadd.f32 %v8715, %v9849
    %v10006 = vadd.f32 %v8716, %v9851
    %v10007 = vadd.f32 %v8717, %v9854
    %v10008 = vadd.f32 %v8718, %v9856
    %v10009 = vadd.f32 %v8719, %v9859
    %v10010 = vadd.f32 %v8720, %v9861
    %v10011 = vadd.f32 %v8721, %v9864
    %v10012 = vadd.f32 %v8722, %v9866
    %v10013 = vadd.f32 %v8723, %v9869
    %v10014 = vadd.f32 %v8724, %v9871
    %v10015 = vadd.f32 %v8725, %v9874
    %v10016 = vadd.f32 %v8726, %v9876
    %v10017 = vadd.f32 %v8727, %v9879
    %v10018 = vadd.f32 %v8728, %v9881
    %v10019 = vadd.f32 %v8729, %v9884
    %v10020 = vadd.f32 %v8730, %v9886
    %v10021 = vadd.f32 %v8731, %v9889
    %v10022 = vadd.f32 %v8732, %v9891
    %v10023 = vadd.f32 %v8733, %v9894
    %v10024 = vadd.f32 %v8734, %v9896
    %v10025 = vadd.f32 %v8735, %v9899
    %v10026 = vadd.f32 %v8736, %v9901
    %v10027 = vadd.f32 %v8737, %v9904
    %v10028 = vadd.f32 %v8738, %v9906
    %v10029 = vadd.f32 %v8739, %v9909
    %v10030 = vadd.f32 %v8740, %v9911
    %v10031 = vadd.f32 %v8741, %v9914
    %v10032 = vadd.f32 %v8742, %v9916
    %v10033 = vadd.f32 %v8743, %v9919
    %v10034 = vadd.f32 %v8744, %v9921
    %v10035 = vadd.f32 %v8745, %v9924
    %v10036 = vadd.f32 %v8746, %v9926
    %v10037 = vadd.f32 %v8747, %v9929
    %v10038 = vadd.f32 %v8748, %v9931
    %v10039 = vadd.f32 %v8749, %v9934
    %v10040 = vadd.f32 %v8750, %v9936
    %v10041 = vadd.f32 %v8751, %v9939
    %v10042 = vadd.f32 %v8752, %v9941
    %v10043 = vadd.f32 %v8753, %v9944
    %v10044 = vadd.f32 %v8754, %v9946
    %v10045 = vadd.f32 %v8755, %v9949
    %v10046 = vadd.f32 %v8756, %v9951
    %v10047 = vadd.f32 %v8757, %v9954
    %v10048 = vadd.f32 %v8758, %v9956
    %v10049 = vadd.f32 %v8759, %v9959
    %v10050 = vadd.f32 %v8760, %v9961
    %v10051 = vadd.f32 %v8761, %v9964
    %v10052 = vadd.f32 %v8762, %v9966
    %v10053 = vadd.f32 %v8763, %v9969
    %v10054 = vadd.f32 %v8764, %v9971
    %v10055 = vadd.f32 %v8765, %v9974
    %v10056 = vadd.f32 %v8766, %v9976
    %v10057 = vadd.f32 %v8767, %v9979
    %v10058 = vadd.f32 %v8768, %v9981
    %v10059 = vadd.f32 %v8769, %v9984
    %v10060 = vadd.f32 %v8770, %v9986
    %v10061 = vadd.f32 %v8771, %v9989
    %v10062 = vadd.f32 %v8772, %v9991
    %v10063 = vadd.f32 %v8773, %v9994
    %v10064 = vadd.f32 %v8774, %v9996
    %v10065 = vadd.f32 %v8775, %v9999
    %v10066 = vadd.f32 %v8776, %v10001
    %v10067 = vld [vmem:[%s8222] sm:$0xe]
    %v10068 = vld [vmem:[%s8222 + $0xc] sm:$0xe]
    %v10069 = vld [vmem:[%s8222 + $0x18] sm:$0xe]
    %v10070 = vld [vmem:[%s8222 + $0x24] sm:$0xe]
    %v10071 = vld [vmem:[%s8222 + $0x30] sm:$0xe]
    %v10072 = vld [vmem:[%s8222 + $0x3c] sm:$0xe]
    %v10073 = vld [vmem:[%s8222 + $0x48] sm:$0xe]
    %v10074 = vld [vmem:[%s8222 + $0x54] sm:$0xe]
    %v10075 = vld [vmem:[%s8222 + $0x60] sm:$0xe]
    %v10076 = vld [vmem:[%s8222 + $0x6c] sm:$0xe]
    %v10077 = vld [vmem:[%s8222 + $0x78] sm:$0xe]
    %v10078 = vld [vmem:[%s8222 + $0x84] sm:$0xe]
    %v10079 = vld [vmem:[%s8222 + $0x90] sm:$0xe]
    %v10080 = vld [vmem:[%s8222 + $0x9c] sm:$0xe]
    %v10081 = vld [vmem:[%s8222 + $0xa8] sm:$0xe]
    %v10082 = vld [vmem:[%s8222 + $0xb4] sm:$0xe]
    %v10083 = vld [vmem:[%s8222 + $0xd8] sm:$0xe]
    %v10084 = vld [vmem:[%s8222 + $0xe4] sm:$0xe]
    %v10085 = vld [vmem:[%s8222 + $0xf0] sm:$0xe]
    %v10086 = vld [vmem:[%s8222 + $0xfc] sm:$0xe]
    %v10087 = vld [vmem:[%s8222 + $0x108] sm:$0xe]
    %v10088 = vld [vmem:[%s8222 + $0x114] sm:$0xe]
    %v10089 = vld [vmem:[%s8222 + $0x120] sm:$0xe]
    %v10090 = vld [vmem:[%s8222 + $0x12c] sm:$0xe]
    %v10091 = vld [vmem:[%s8222 + $0x138] sm:$0xe]
    %v10092 = vld [vmem:[%s8222 + $0x144] sm:$0xe]
    %v10093 = vld [vmem:[%s8222 + $0x150] sm:$0xe]
    %v10094 = vld [vmem:[%s8222 + $0x15c] sm:$0xe]
    %v10095 = vld [vmem:[%s8222 + $0x168] sm:$0xe]
    %v10096 = vld [vmem:[%s8222 + $0x174] sm:$0xe]
    %v10097 = vld [vmem:[%s8222 + $0x180] sm:$0xe]
    %v10098 = vld [vmem:[%s8222 + $0x18c] sm:$0xe]
    %v10195 = vrot.slane %v10067, 5
    %v10196 = vrot.slane %v10195, 4
    %v10197 = vrot.slane %v8778, 5
    %v10198 = vsel %vm4949, %v10196, %v10197
    %v10199 = vrot.slane %v10197, 4
    %v10200 = vrot.slane %v8779, 5
    %v10201 = vsel %vm4949, %v10199, %v10200
    %v10202 = vrot.slane %v10068, 5
    %v10203 = vrot.slane %v10202, 4
    %v10204 = vrot.slane %v8781, 5
    %v10205 = vsel %vm4949, %v10203, %v10204
    %v10206 = vrot.slane %v10204, 4
    %v10207 = vrot.slane %v8782, 5
    %v10208 = vsel %vm4949, %v10206, %v10207
    %v10209 = vrot.slane %v10069, 5
    %v10210 = vrot.slane %v10209, 4
    %v10211 = vrot.slane %v8784, 5
    %v10212 = vsel %vm4949, %v10210, %v10211
    %v10213 = vrot.slane %v10211, 4
    %v10214 = vrot.slane %v8785, 5
    %v10215 = vsel %vm4949, %v10213, %v10214
    %v10216 = vrot.slane %v10070, 5
    %v10217 = vrot.slane %v10216, 4
    %v10218 = vrot.slane %v8787, 5
    %v10219 = vsel %vm4949, %v10217, %v10218
    %v10220 = vrot.slane %v10218, 4
    %v10221 = vrot.slane %v8788, 5
    %v10222 = vsel %vm4949, %v10220, %v10221
    %v10223 = vrot.slane %v10071, 5
    %v10224 = vrot.slane %v10223, 4
    %v10225 = vrot.slane %v8790, 5
    %v10226 = vsel %vm4949, %v10224, %v10225
    %v10227 = vrot.slane %v10225, 4
    %v10228 = vrot.slane %v8791, 5
    %v10229 = vsel %vm4949, %v10227, %v10228
    %v10230 = vrot.slane %v10072, 5
    %v10231 = vrot.slane %v10230, 4
    %v10232 = vrot.slane %v8793, 5
    %v10233 = vsel %vm4949, %v10231, %v10232
    %v10234 = vrot.slane %v10232, 4
    %v10235 = vrot.slane %v8794, 5
    %v10236 = vsel %vm4949, %v10234, %v10235
    %v10237 = vrot.slane %v10073, 5
    %v10238 = vrot.slane %v10237, 4
    %v10239 = vrot.slane %v8796, 5
    %v10240 = vsel %vm4949, %v10238, %v10239
    %v10241 = vrot.slane %v10239, 4
    %v10242 = vrot.slane %v8797, 5
    %v10243 = vsel %vm4949, %v10241, %v10242
    %v10244 = vrot.slane %v10074, 5
    %v10245 = vrot.slane %v10244, 4
    %v10246 = vrot.slane %v8799, 5
    %v10247 = vsel %vm4949, %v10245, %v10246
    %v10248 = vrot.slane %v10246, 4
    %v10249 = vrot.slane %v8800, 5
    %v10250 = vsel %vm4949, %v10248, %v10249
    %v10251 = vrot.slane %v10075, 5
    %v10252 = vrot.slane %v10251, 4
    %v10253 = vrot.slane %v8802, 5
    %v10254 = vsel %vm4949, %v10252, %v10253
    %v10255 = vrot.slane %v10253, 4
    %v10256 = vrot.slane %v8803, 5
    %v10257 = vsel %vm4949, %v10255, %v10256
    %v10258 = vrot.slane %v10076, 5
    %v10259 = vrot.slane %v10258, 4
    %v10260 = vrot.slane %v8805, 5
    %v10261 = vsel %vm4949, %v10259, %v10260
    %v10262 = vrot.slane %v10260, 4
    %v10263 = vrot.slane %v8806, 5
    %v10264 = vsel %vm4949, %v10262, %v10263
    %v10265 = vrot.slane %v10077, 5
    %v10266 = vrot.slane %v10265, 4
    %v10267 = vrot.slane %v8808, 5
    %v10268 = vsel %vm4949, %v10266, %v10267
    %v10269 = vrot.slane %v10267, 4
    %v10270 = vrot.slane %v8809, 5
    %v10271 = vsel %vm4949, %v10269, %v10270
    %v10272 = vrot.slane %v10078, 5
    %v10273 = vrot.slane %v10272, 4
    %v10274 = vrot.slane %v8811, 5
    %v10275 = vsel %vm4949, %v10273, %v10274
    %v10276 = vrot.slane %v10274, 4
    %v10277 = vrot.slane %v8812, 5
    %v10278 = vsel %vm4949, %v10276, %v10277
    %v10279 = vrot.slane %v10079, 5
    %v10280 = vrot.slane %v10279, 4
    %v10281 = vrot.slane %v8814, 5
    %v10282 = vsel %vm4949, %v10280, %v10281
    %v10283 = vrot.slane %v10281, 4
    %v10284 = vrot.slane %v8815, 5
    %v10285 = vsel %vm4949, %v10283, %v10284
    %v10286 = vrot.slane %v10080, 5
    %v10287 = vrot.slane %v10286, 4
    %v10288 = vrot.slane %v8817, 5
    %v10289 = vsel %vm4949, %v10287, %v10288
    %v10290 = vrot.slane %v10288, 4
    %v10291 = vrot.slane %v8818, 5
    %v10292 = vsel %vm4949, %v10290, %v10291
    %v10293 = vrot.slane %v10081, 5
    %v10294 = vrot.slane %v10293, 4
    %v10295 = vrot.slane %v8820, 5
    %v10296 = vsel %vm4949, %v10294, %v10295
    %v10297 = vrot.slane %v10295, 4
    %v10298 = vrot.slane %v8821, 5
    %v10299 = vsel %vm4949, %v10297, %v10298
    %v10300 = vrot.slane %v10082, 5
    %v10301 = vrot.slane %v10300, 4
    %v10302 = vrot.slane %v8823, 5
    %v10303 = vsel %vm4949, %v10301, %v10302
    %v10304 = vrot.slane %v10302, 4
    %v10305 = vrot.slane %v8824, 5
    %v10306 = vsel %vm4949, %v10304, %v10305
    %v10307 = vrot.slane %v10083, 5
    %v10308 = vrot.slane %v10307, 4
    %v10309 = vrot.slane %v8826, 5
    %v10310 = vsel %vm4949, %v10308, %v10309
    %v10311 = vrot.slane %v10309, 4
    %v10312 = vrot.slane %v8827, 5
    %v10313 = vsel %vm4949, %v10311, %v10312
    %v10314 = vrot.slane %v10084, 5
    %v10315 = vrot.slane %v10314, 4
    %v10316 = vrot.slane %v8829, 5
    %v10317 = vsel %vm4949, %v10315, %v10316
    %v10318 = vrot.slane %v10316, 4
    %v10319 = vrot.slane %v8830, 5
    %v10320 = vsel %vm4949, %v10318, %v10319
    %v10321 = vrot.slane %v10085, 5
    %v10322 = vrot.slane %v10321, 4
    %v10323 = vrot.slane %v8832, 5
    %v10324 = vsel %vm4949, %v10322, %v10323
    %v10325 = vrot.slane %v10323, 4
    %v10326 = vrot.slane %v8833, 5
    %v10327 = vsel %vm4949, %v10325, %v10326
    %v10328 = vrot.slane %v10086, 5
    %v10329 = vrot.slane %v10328, 4
    %v10330 = vrot.slane %v8835, 5
    %v10331 = vsel %vm4949, %v10329, %v10330
    %v10332 = vrot.slane %v10330, 4
    %v10333 = vrot.slane %v8836, 5
    %v10334 = vsel %vm4949, %v10332, %v10333
    %v10335 = vrot.slane %v10087, 5
    %v10336 = vrot.slane %v10335, 4
    %v10337 = vrot.slane %v8838, 5
    %v10338 = vsel %vm4949, %v10336, %v10337
    %v10339 = vrot.slane %v10337, 4
    %v10340 = vrot.slane %v8839, 5
    %v10341 = vsel %vm4949, %v10339, %v10340
    %v10342 = vrot.slane %v10088, 5
    %v10343 = vrot.slane %v10342, 4
    %v10344 = vrot.slane %v8841, 5
    %v10345 = vsel %vm4949, %v10343, %v10344
    %v10346 = vrot.slane %v10344, 4
    %v10347 = vrot.slane %v8842, 5
    %v10348 = vsel %vm4949, %v10346, %v10347
    %v10349 = vrot.slane %v10089, 5
    %v10350 = vrot.slane %v10349, 4
    %v10351 = vrot.slane %v8844, 5
    %v10352 = vsel %vm4949, %v10350, %v10351
    %v10353 = vrot.slane %v10351, 4
    %v10354 = vrot.slane %v8845, 5
    %v10355 = vsel %vm4949, %v10353, %v10354
    %v10356 = vrot.slane %v10090, 5
    %v10357 = vrot.slane %v10356, 4
    %v10358 = vrot.slane %v8847, 5
    %v10359 = vsel %vm4949, %v10357, %v10358
    %v10360 = vrot.slane %v10358, 4
    %v10361 = vrot.slane %v8848, 5
    %v10362 = vsel %vm4949, %v10360, %v10361
    %v10363 = vrot.slane %v10091, 5
    %v10364 = vrot.slane %v10363, 4
    %v10365 = vrot.slane %v8850, 5
    %v10366 = vsel %vm4949, %v10364, %v10365
    %v10367 = vrot.slane %v10365, 4
    %v10368 = vrot.slane %v8851, 5
    %v10369 = vsel %vm4949, %v10367, %v10368
    %v10370 = vrot.slane %v10092, 5
    %v10371 = vrot.slane %v10370, 4
    %v10372 = vrot.slane %v8853, 5
    %v10373 = vsel %vm4949, %v10371, %v10372
    %v10374 = vrot.slane %v10372, 4
    %v10375 = vrot.slane %v8854, 5
    %v10376 = vsel %vm4949, %v10374, %v10375
    %v10377 = vrot.slane %v10093, 5
    %v10378 = vrot.slane %v10377, 4
    %v10379 = vrot.slane %v8856, 5
    %v10380 = vsel %vm4949, %v10378, %v10379
    %v10381 = vrot.slane %v10379, 4
    %v10382 = vrot.slane %v8857, 5
    %v10383 = vsel %vm4949, %v10381, %v10382
    %v10384 = vrot.slane %v10094, 5
    %v10385 = vrot.slane %v10384, 4
    %v10386 = vrot.slane %v8859, 5
    %v10387 = vsel %vm4949, %v10385, %v10386
    %v10388 = vrot.slane %v10386, 4
    %v10389 = vrot.slane %v8860, 5
    %v10390 = vsel %vm4949, %v10388, %v10389
    %v10391 = vrot.slane %v10095, 5
    %v10392 = vrot.slane %v10391, 4
    %v10393 = vrot.slane %v8862, 5
    %v10394 = vsel %vm4949, %v10392, %v10393
    %v10395 = vrot.slane %v10393, 4
    %v10396 = vrot.slane %v8863, 5
    %v10397 = vsel %vm4949, %v10395, %v10396
    %v10398 = vrot.slane %v10096, 5
    %v10399 = vrot.slane %v10398, 4
    %v10400 = vrot.slane %v8865, 5
    %v10401 = vsel %vm4949, %v10399, %v10400
    %v10402 = vrot.slane %v10400, 4
    %v10403 = vrot.slane %v8866, 5
    %v10404 = vsel %vm4949, %v10402, %v10403
    %v10405 = vrot.slane %v10097, 5
    %v10406 = vrot.slane %v10405, 4
    %v10407 = vrot.slane %v8868, 5
    %v10408 = vsel %vm4949, %v10406, %v10407
    %v10409 = vrot.slane %v10407, 4
    %v10410 = vrot.slane %v8869, 5
    %v10411 = vsel %vm4949, %v10409, %v10410
    %v10412 = vrot.slane %v10098, 5
    %v10413 = vrot.slane %v10412, 4
    %v10414 = vrot.slane %v8871, 5
    %v10415 = vsel %vm4949, %v10413, %v10414
    %v10416 = vrot.slane %v10414, 4
    %v10417 = vrot.slane %v8872, 5
    %v10418 = vsel %vm4949, %v10416, %v10417
    %s10419 = scalar_lea.vmem [#allocation11], 512
    %v10420 = vld [vmem:[%s10419] sm:$0xf]
    %v10421 = vld [vmem:[%s10419 + $0x4] sm:$0xf]
    %v10422 = vld [vmem:[%s10419 + $0x8] sm:$0xf]
    %v10423 = vld [vmem:[%s10419 + $0xc] sm:$0xf]
    %v10424 = vld [vmem:[%s10419 + $0x10] sm:$0xf]
    %v10425 = vld [vmem:[%s10419 + $0x14] sm:$0xf]
    %v10426 = vld [vmem:[%s10419 + $0x18] sm:$0xf]
    %v10427 = vld [vmem:[%s10419 + $0x1c] sm:$0xf]
    %v10428 = vld [vmem:[%s10419 + $0x20] sm:$0xf]
    %v10429 = vld [vmem:[%s10419 + $0x24] sm:$0xf]
    %v10430 = vld [vmem:[%s10419 + $0x28] sm:$0xf]
    %v10431 = vld [vmem:[%s10419 + $0x2c] sm:$0xf]
    %v10432 = vld [vmem:[%s10419 + $0x30] sm:$0xf]
    %v10433 = vld [vmem:[%s10419 + $0x34] sm:$0xf]
    %v10434 = vld [vmem:[%s10419 + $0x38] sm:$0xf]
    %v10435 = vld [vmem:[%s10419 + $0x3c] sm:$0xf]
    %v10436 = vunpack.c.l.b16 %v10198
    %v10437 = vunpack.c.l.b16 %v10201
    %v10438 = vunpack.c.l.b16 %v10205
    %v10439 = vunpack.c.l.b16 %v10208
    %v10440 = vunpack.c.l.b16 %v10212
    %v10441 = vunpack.c.l.b16 %v10215
    %v10442 = vunpack.c.l.b16 %v10219
    %v10443 = vunpack.c.l.b16 %v10222
    %v10444 = vunpack.c.l.b16 %v10226
    %v10445 = vunpack.c.l.b16 %v10229
    %v10446 = vunpack.c.l.b16 %v10233
    %v10447 = vunpack.c.l.b16 %v10236
    %v10448 = vunpack.c.l.b16 %v10240
    %v10449 = vunpack.c.l.b16 %v10243
    %v10450 = vunpack.c.l.b16 %v10247
    %v10451 = vunpack.c.l.b16 %v10250
    %v10452 = vunpack.c.l.b16 %v10254
    %v10453 = vunpack.c.l.b16 %v10257
    %v10454 = vunpack.c.l.b16 %v10261
    %v10455 = vunpack.c.l.b16 %v10264
    %v10456 = vunpack.c.l.b16 %v10268
    %v10457 = vunpack.c.l.b16 %v10271
    %v10458 = vunpack.c.l.b16 %v10275
    %v10459 = vunpack.c.l.b16 %v10278
    %v10460 = vunpack.c.l.b16 %v10282
    %v10461 = vunpack.c.l.b16 %v10285
    %v10462 = vunpack.c.l.b16 %v10289
    %v10463 = vunpack.c.l.b16 %v10292
    %v10464 = vunpack.c.l.b16 %v10296
    %v10465 = vunpack.c.l.b16 %v10299
    %v10466 = vunpack.c.l.b16 %v10303
    %v10467 = vunpack.c.l.b16 %v10306
    %v10468 = vunpack.c.l.b16 %v10310
    %v10469 = vunpack.c.l.b16 %v10313
    %v10470 = vunpack.c.l.b16 %v10317
    %v10471 = vunpack.c.l.b16 %v10320
    %v10472 = vunpack.c.l.b16 %v10324
    %v10473 = vunpack.c.l.b16 %v10327
    %v10474 = vunpack.c.l.b16 %v10331
    %v10475 = vunpack.c.l.b16 %v10334
    %v10476 = vunpack.c.l.b16 %v10338
    %v10477 = vunpack.c.l.b16 %v10341
    %v10478 = vunpack.c.l.b16 %v10345
    %v10479 = vunpack.c.l.b16 %v10348
    %v10480 = vunpack.c.l.b16 %v10352
    %v10481 = vunpack.c.l.b16 %v10355
    %v10482 = vunpack.c.l.b16 %v10359
    %v10483 = vunpack.c.l.b16 %v10362
    %v10484 = vunpack.c.l.b16 %v10366
    %v10485 = vunpack.c.l.b16 %v10369
    %v10486 = vunpack.c.l.b16 %v10373
    %v10487 = vunpack.c.l.b16 %v10376
    %v10488 = vunpack.c.l.b16 %v10380
    %v10489 = vunpack.c.l.b16 %v10383
    %v10490 = vunpack.c.l.b16 %v10387
    %v10491 = vunpack.c.l.b16 %v10390
    %v10492 = vunpack.c.l.b16 %v10394
    %v10493 = vunpack.c.l.b16 %v10397
    %v10494 = vunpack.c.l.b16 %v10401
    %v10495 = vunpack.c.l.b16 %v10404
    %v10496 = vunpack.c.l.b16 %v10408
    %v10497 = vunpack.c.l.b16 %v10411
    %v10498 = vunpack.c.l.b16 %v10415
    %v10499 = vunpack.c.l.b16 %v10418
    %v10500 = vpack.c.b16 %v10437, %v10436
    %v10501 = vpack.c.b16 %v10439, %v10438
    %v10502 = vpack.c.b16 %v10441, %v10440
    %v10503 = vpack.c.b16 %v10443, %v10442
    %v10504 = vpack.c.b16 %v10445, %v10444
    %v10505 = vpack.c.b16 %v10447, %v10446
    %v10506 = vpack.c.b16 %v10449, %v10448
    %v10507 = vpack.c.b16 %v10451, %v10450
    %v10508 = vpack.c.b16 %v10453, %v10452
    %v10509 = vpack.c.b16 %v10455, %v10454
    %v10510 = vpack.c.b16 %v10457, %v10456
    %v10511 = vpack.c.b16 %v10459, %v10458
    %v10512 = vpack.c.b16 %v10461, %v10460
    %v10513 = vpack.c.b16 %v10463, %v10462
    %v10514 = vpack.c.b16 %v10465, %v10464
    %v10515 = vpack.c.b16 %v10467, %v10466
    %v10516 = vpack.c.b16 %v10469, %v10468
    %v10517 = vpack.c.b16 %v10471, %v10470
    %v10518 = vpack.c.b16 %v10473, %v10472
    %v10519 = vpack.c.b16 %v10475, %v10474
    %v10520 = vpack.c.b16 %v10477, %v10476
    %v10521 = vpack.c.b16 %v10479, %v10478
    %v10522 = vpack.c.b16 %v10481, %v10480
    %v10523 = vpack.c.b16 %v10483, %v10482
    %v10524 = vpack.c.b16 %v10485, %v10484
    %v10525 = vpack.c.b16 %v10487, %v10486
    %v10526 = vpack.c.b16 %v10489, %v10488
    %v10527 = vpack.c.b16 %v10491, %v10490
    %v10528 = vpack.c.b16 %v10493, %v10492
    %v10529 = vpack.c.b16 %v10495, %v10494
    %v10530 = vpack.c.b16 %v10497, %v10496
    %v10531 = vpack.c.b16 %v10499, %v10498
    %v10580 = vunpack.c.l.b16 %v10420
    %v10581 = vunpack.c.l.b16 %v10421
    %v10582 = vunpack.c.l.b16 %v10422
    %v10583 = vunpack.c.l.b16 %v10423
    %v10584 = vunpack.c.l.b16 %v10424
    %v10585 = vunpack.c.l.b16 %v10425
    %v10586 = vunpack.c.l.b16 %v10426
    %v10587 = vunpack.c.l.b16 %v10427
    %v10588 = vunpack.c.l.b16 %v10428
    %v10589 = vunpack.c.l.b16 %v10429
    %v10590 = vunpack.c.l.b16 %v10430
    %v10591 = vunpack.c.l.b16 %v10431
    %v10592 = vunpack.c.l.b16 %v10432
    %v10593 = vunpack.c.l.b16 %v10433
    %v10594 = vunpack.c.l.b16 %v10434
    %v10595 = vunpack.c.l.b16 %v10435
    %v10596 = vpack.c.b16 %v10581, %v10580
    %v10597 = vpack.c.b16 %v10583, %v10582
    %v10598 = vpack.c.b16 %v10585, %v10584
    %v10599 = vpack.c.b16 %v10587, %v10586
    %v10600 = vpack.c.b16 %v10589, %v10588
    %v10601 = vpack.c.b16 %v10591, %v10590
    %v10602 = vpack.c.b16 %v10593, %v10592
    %v10603 = vpack.c.b16 %v10595, %v10594
    %10612 = vmatpush.bf16.msra.mxu0 %v10603
    %10613 = vmatpush.bf16.msra.mxu0 %v10602
    %10614 = vmatpush.bf16.msra.mxu0 %v10601
    %10615 = vmatpush.bf16.msra.mxu0 %v10600
    %10616 = vmatpush.bf16.msra.mxu0 %v10599
    %10617 = vmatpush.bf16.msra.mxu0 %v10598
    %10618 = vmatpush.bf16.msra.mxu0 %v10597
    %10619 = vmatpush.bf16.msra.mxu0 %v10596
    %10620 = vmatmul.bf16.gmra.mxu0 %v10500
    %v10621 = vpop.f32.mrf.mxu0
    %v10622 = vadd.f32 0.0, %v10621
    %v10623 = vpop.f32.mrf.mxu0
    %v10624 = vadd.f32 0.0, %v10623
    %10625 = vmatmul.bf16.gmra.mxu0 %v10501
    %v10626 = vpop.f32.mrf.mxu0
    %v10627 = vadd.f32 0.0, %v10626
    %v10628 = vpop.f32.mrf.mxu0
    %v10629 = vadd.f32 0.0, %v10628
    %10630 = vmatmul.bf16.gmra.mxu0 %v10502
    %v10631 = vpop.f32.mrf.mxu0
    %v10632 = vadd.f32 0.0, %v10631
    %v10633 = vpop.f32.mrf.mxu0
    %v10634 = vadd.f32 0.0, %v10633
    %10635 = vmatmul.bf16.gmra.mxu0 %v10503
    %v10636 = vpop.f32.mrf.mxu0
    %v10637 = vadd.f32 0.0, %v10636
    %v10638 = vpop.f32.mrf.mxu0
    %v10639 = vadd.f32 0.0, %v10638
    %10640 = vmatmul.bf16.gmra.mxu0 %v10504
    %v10641 = vpop.f32.mrf.mxu0
    %v10642 = vadd.f32 0.0, %v10641
    %v10643 = vpop.f32.mrf.mxu0
    %v10644 = vadd.f32 0.0, %v10643
    %10645 = vmatmul.bf16.gmra.mxu0 %v10505
    %v10646 = vpop.f32.mrf.mxu0
    %v10647 = vadd.f32 0.0, %v10646
    %v10648 = vpop.f32.mrf.mxu0
    %v10649 = vadd.f32 0.0, %v10648
    %10650 = vmatmul.bf16.gmra.mxu0 %v10506
    %v10651 = vpop.f32.mrf.mxu0
    %v10652 = vadd.f32 0.0, %v10651
    %v10653 = vpop.f32.mrf.mxu0
    %v10654 = vadd.f32 0.0, %v10653
    %10655 = vmatmul.bf16.gmra.mxu0 %v10507
    %v10656 = vpop.f32.mrf.mxu0
    %v10657 = vadd.f32 0.0, %v10656
    %v10658 = vpop.f32.mrf.mxu0
    %v10659 = vadd.f32 0.0, %v10658
    %10660 = vmatmul.bf16.gmra.mxu0 %v10508
    %v10661 = vpop.f32.mrf.mxu0
    %v10662 = vadd.f32 0.0, %v10661
    %v10663 = vpop.f32.mrf.mxu0
    %v10664 = vadd.f32 0.0, %v10663
    %10665 = vmatmul.bf16.gmra.mxu0 %v10509
    %v10666 = vpop.f32.mrf.mxu0
    %v10667 = vadd.f32 0.0, %v10666
    %v10668 = vpop.f32.mrf.mxu0
    %v10669 = vadd.f32 0.0, %v10668
    %10670 = vmatmul.bf16.gmra.mxu0 %v10510
    %v10671 = vpop.f32.mrf.mxu0
    %v10672 = vadd.f32 0.0, %v10671
    %v10673 = vpop.f32.mrf.mxu0
    %v10674 = vadd.f32 0.0, %v10673
    %10675 = vmatmul.bf16.gmra.mxu0 %v10511
    %v10676 = vpop.f32.mrf.mxu0
    %v10677 = vadd.f32 0.0, %v10676
    %v10678 = vpop.f32.mrf.mxu0
    %v10679 = vadd.f32 0.0, %v10678
    %10680 = vmatmul.bf16.gmra.mxu0 %v10512
    %v10681 = vpop.f32.mrf.mxu0
    %v10682 = vadd.f32 0.0, %v10681
    %v10683 = vpop.f32.mrf.mxu0
    %v10684 = vadd.f32 0.0, %v10683
    %10685 = vmatmul.bf16.gmra.mxu0 %v10513
    %v10686 = vpop.f32.mrf.mxu0
    %v10687 = vadd.f32 0.0, %v10686
    %v10688 = vpop.f32.mrf.mxu0
    %v10689 = vadd.f32 0.0, %v10688
    %10690 = vmatmul.bf16.gmra.mxu0 %v10514
    %v10691 = vpop.f32.mrf.mxu0
    %v10692 = vadd.f32 0.0, %v10691
    %v10693 = vpop.f32.mrf.mxu0
    %v10694 = vadd.f32 0.0, %v10693
    %10695 = vmatmul.bf16.gmra.mxu0 %v10515
    %v10696 = vpop.f32.mrf.mxu0
    %v10697 = vadd.f32 0.0, %v10696
    %v10698 = vpop.f32.mrf.mxu0
    %v10699 = vadd.f32 0.0, %v10698
    %10700 = vmatmul.bf16.gmra.mxu0 %v10516
    %v10701 = vpop.f32.mrf.mxu0
    %v10702 = vadd.f32 0.0, %v10701
    %v10703 = vpop.f32.mrf.mxu0
    %v10704 = vadd.f32 0.0, %v10703
    %10705 = vmatmul.bf16.gmra.mxu0 %v10517
    %v10706 = vpop.f32.mrf.mxu0
    %v10707 = vadd.f32 0.0, %v10706
    %v10708 = vpop.f32.mrf.mxu0
    %v10709 = vadd.f32 0.0, %v10708
    %10710 = vmatmul.bf16.gmra.mxu0 %v10518
    %v10711 = vpop.f32.mrf.mxu0
    %v10712 = vadd.f32 0.0, %v10711
    %v10713 = vpop.f32.mrf.mxu0
    %v10714 = vadd.f32 0.0, %v10713
    %10715 = vmatmul.bf16.gmra.mxu0 %v10519
    %v10716 = vpop.f32.mrf.mxu0
    %v10717 = vadd.f32 0.0, %v10716
    %v10718 = vpop.f32.mrf.mxu0
    %v10719 = vadd.f32 0.0, %v10718
    %10720 = vmatmul.bf16.gmra.mxu0 %v10520
    %v10721 = vpop.f32.mrf.mxu0
    %v10722 = vadd.f32 0.0, %v10721
    %v10723 = vpop.f32.mrf.mxu0
    %v10724 = vadd.f32 0.0, %v10723
    %10725 = vmatmul.bf16.gmra.mxu0 %v10521
    %v10726 = vpop.f32.mrf.mxu0
    %v10727 = vadd.f32 0.0, %v10726
    %v10728 = vpop.f32.mrf.mxu0
    %v10729 = vadd.f32 0.0, %v10728
    %10730 = vmatmul.bf16.gmra.mxu0 %v10522
    %v10731 = vpop.f32.mrf.mxu0
    %v10732 = vadd.f32 0.0, %v10731
    %v10733 = vpop.f32.mrf.mxu0
    %v10734 = vadd.f32 0.0, %v10733
    %10735 = vmatmul.bf16.gmra.mxu0 %v10523
    %v10736 = vpop.f32.mrf.mxu0
    %v10737 = vadd.f32 0.0, %v10736
    %v10738 = vpop.f32.mrf.mxu0
    %v10739 = vadd.f32 0.0, %v10738
    %10740 = vmatmul.bf16.gmra.mxu0 %v10524
    %v10741 = vpop.f32.mrf.mxu0
    %v10742 = vadd.f32 0.0, %v10741
    %v10743 = vpop.f32.mrf.mxu0
    %v10744 = vadd.f32 0.0, %v10743
    %10745 = vmatmul.bf16.gmra.mxu0 %v10525
    %v10746 = vpop.f32.mrf.mxu0
    %v10747 = vadd.f32 0.0, %v10746
    %v10748 = vpop.f32.mrf.mxu0
    %v10749 = vadd.f32 0.0, %v10748
    %10750 = vmatmul.bf16.gmra.mxu0 %v10526
    %v10751 = vpop.f32.mrf.mxu0
    %v10752 = vadd.f32 0.0, %v10751
    %v10753 = vpop.f32.mrf.mxu0
    %v10754 = vadd.f32 0.0, %v10753
    %10755 = vmatmul.bf16.gmra.mxu0 %v10527
    %v10756 = vpop.f32.mrf.mxu0
    %v10757 = vadd.f32 0.0, %v10756
    %v10758 = vpop.f32.mrf.mxu0
    %v10759 = vadd.f32 0.0, %v10758
    %10760 = vmatmul.bf16.gmra.mxu0 %v10528
    %v10761 = vpop.f32.mrf.mxu0
    %v10762 = vadd.f32 0.0, %v10761
    %v10763 = vpop.f32.mrf.mxu0
    %v10764 = vadd.f32 0.0, %v10763
    %10765 = vmatmul.bf16.gmra.mxu0 %v10529
    %v10766 = vpop.f32.mrf.mxu0
    %v10767 = vadd.f32 0.0, %v10766
    %v10768 = vpop.f32.mrf.mxu0
    %v10769 = vadd.f32 0.0, %v10768
    %10770 = vmatmul.bf16.gmra.mxu0 %v10530
    %v10771 = vpop.f32.mrf.mxu0
    %v10772 = vadd.f32 0.0, %v10771
    %v10773 = vpop.f32.mrf.mxu0
    %v10774 = vadd.f32 0.0, %v10773
    %10775 = vmatmul.bf16.gmra.mxu0 %v10531
    %v10776 = vpop.f32.mrf.mxu0
    %v10777 = vadd.f32 0.0, %v10776
    %v10778 = vpop.f32.mrf.mxu0
    %v10779 = vadd.f32 0.0, %v10778
    %10780 = vdwg.mxu0
    %v10781 = vadd.f32 %v10003, %v10622
    %v10782 = vadd.f32 %v10004, %v10624
    %v10783 = vadd.f32 %v10005, %v10627
    %v10784 = vadd.f32 %v10006, %v10629
    %v10785 = vadd.f32 %v10007, %v10632
    %v10786 = vadd.f32 %v10008, %v10634
    %v10787 = vadd.f32 %v10009, %v10637
    %v10788 = vadd.f32 %v10010, %v10639
    %v10789 = vadd.f32 %v10011, %v10642
    %v10790 = vadd.f32 %v10012, %v10644
    %v10791 = vadd.f32 %v10013, %v10647
    %v10792 = vadd.f32 %v10014, %v10649
    %v10793 = vadd.f32 %v10015, %v10652
    %v10794 = vadd.f32 %v10016, %v10654
    %v10795 = vadd.f32 %v10017, %v10657
    %v10796 = vadd.f32 %v10018, %v10659
    %v10797 = vadd.f32 %v10019, %v10662
    %v10798 = vadd.f32 %v10020, %v10664
    %v10799 = vadd.f32 %v10021, %v10667
    %v10800 = vadd.f32 %v10022, %v10669
    %v10801 = vadd.f32 %v10023, %v10672
    %v10802 = vadd.f32 %v10024, %v10674
    %v10803 = vadd.f32 %v10025, %v10677
    %v10804 = vadd.f32 %v10026, %v10679
    %v10805 = vadd.f32 %v10027, %v10682
    %v10806 = vadd.f32 %v10028, %v10684
    %v10807 = vadd.f32 %v10029, %v10687
    %v10808 = vadd.f32 %v10030, %v10689
    %v10809 = vadd.f32 %v10031, %v10692
    %v10810 = vadd.f32 %v10032, %v10694
    %v10811 = vadd.f32 %v10033, %v10697
    %v10812 = vadd.f32 %v10034, %v10699
    %v10813 = vadd.f32 %v10035, %v10702
    %v10814 = vadd.f32 %v10036, %v10704
    %v10815 = vadd.f32 %v10037, %v10707
    %v10816 = vadd.f32 %v10038, %v10709
    %v10817 = vadd.f32 %v10039, %v10712
    %v10818 = vadd.f32 %v10040, %v10714
    %v10819 = vadd.f32 %v10041, %v10717
    %v10820 = vadd.f32 %v10042, %v10719
    %v10821 = vadd.f32 %v10043, %v10722
    %v10822 = vadd.f32 %v10044, %v10724
    %v10823 = vadd.f32 %v10045, %v10727
    %v10824 = vadd.f32 %v10046, %v10729
    %v10825 = vadd.f32 %v10047, %v10732
    %v10826 = vadd.f32 %v10048, %v10734
    %v10827 = vadd.f32 %v10049, %v10737
    %v10828 = vadd.f32 %v10050, %v10739
    %v10829 = vadd.f32 %v10051, %v10742
    %v10830 = vadd.f32 %v10052, %v10744
    %v10831 = vadd.f32 %v10053, %v10747
    %v10832 = vadd.f32 %v10054, %v10749
    %v10833 = vadd.f32 %v10055, %v10752
    %v10834 = vadd.f32 %v10056, %v10754
    %v10835 = vadd.f32 %v10057, %v10757
    %v10836 = vadd.f32 %v10058, %v10759
    %v10837 = vadd.f32 %v10059, %v10762
    %v10838 = vadd.f32 %v10060, %v10764
    %v10839 = vadd.f32 %v10061, %v10767
    %v10840 = vadd.f32 %v10062, %v10769
    %v10841 = vadd.f32 %v10063, %v10772
    %v10842 = vadd.f32 %v10064, %v10774
    %v10843 = vadd.f32 %v10065, %v10777
    %v10844 = vadd.f32 %v10066, %v10779
    %v10845 = vld [vmem:[#allocation12] sm:$0x1]
    %v10847 = vperm.slane %v10845, 0
    %v10849 = vmul.f32 %v10781, %v10847
    %v10850 = vmul.f32 %v10782, %v10847
    %v10851 = vmul.f32 %v10783, %v10847
    %v10852 = vmul.f32 %v10784, %v10847
    %v10853 = vmul.f32 %v10785, %v10847
    %v10854 = vmul.f32 %v10786, %v10847
    %v10855 = vmul.f32 %v10787, %v10847
    %v10856 = vmul.f32 %v10788, %v10847
    %v10857 = vmul.f32 %v10789, %v10847
    %v10858 = vmul.f32 %v10790, %v10847
    %v10859 = vmul.f32 %v10791, %v10847
    %v10860 = vmul.f32 %v10792, %v10847
    %v10861 = vmul.f32 %v10793, %v10847
    %v10862 = vmul.f32 %v10794, %v10847
    %v10863 = vmul.f32 %v10795, %v10847
    %v10864 = vmul.f32 %v10796, %v10847
    %v10865 = vmul.f32 %v10797, %v10847
    %v10866 = vmul.f32 %v10798, %v10847
    %v10867 = vmul.f32 %v10799, %v10847
    %v10868 = vmul.f32 %v10800, %v10847
    %v10869 = vmul.f32 %v10801, %v10847
    %v10870 = vmul.f32 %v10802, %v10847
    %v10871 = vmul.f32 %v10803, %v10847
    %v10872 = vmul.f32 %v10804, %v10847
    %v10873 = vmul.f32 %v10805, %v10847
    %v10874 = vmul.f32 %v10806, %v10847
    %v10875 = vmul.f32 %v10807, %v10847
    %v10876 = vmul.f32 %v10808, %v10847
    %v10877 = vmul.f32 %v10809, %v10847
    %v10878 = vmul.f32 %v10810, %v10847
    %v10879 = vmul.f32 %v10811, %v10847
    %v10880 = vmul.f32 %v10812, %v10847
    %v10881 = vmul.f32 %v10813, %v10847
    %v10882 = vmul.f32 %v10814, %v10847
    %v10883 = vmul.f32 %v10815, %v10847
    %v10884 = vmul.f32 %v10816, %v10847
    %v10885 = vmul.f32 %v10817, %v10847
    %v10886 = vmul.f32 %v10818, %v10847
    %v10887 = vmul.f32 %v10819, %v10847
    %v10888 = vmul.f32 %v10820, %v10847
    %v10889 = vmul.f32 %v10821, %v10847
    %v10890 = vmul.f32 %v10822, %v10847
    %v10891 = vmul.f32 %v10823, %v10847
    %v10892 = vmul.f32 %v10824, %v10847
    %v10893 = vmul.f32 %v10825, %v10847
    %v10894 = vmul.f32 %v10826, %v10847
    %v10895 = vmul.f32 %v10827, %v10847
    %v10896 = vmul.f32 %v10828, %v10847
    %v10897 = vmul.f32 %v10829, %v10847
    %v10898 = vmul.f32 %v10830, %v10847
    %v10899 = vmul.f32 %v10831, %v10847
    %v10900 = vmul.f32 %v10832, %v10847
    %v10901 = vmul.f32 %v10833, %v10847
    %v10902 = vmul.f32 %v10834, %v10847
    %v10903 = vmul.f32 %v10835, %v10847
    %v10904 = vmul.f32 %v10836, %v10847
    %v10905 = vmul.f32 %v10837, %v10847
    %v10906 = vmul.f32 %v10838, %v10847
    %v10907 = vmul.f32 %v10839, %v10847
    %v10908 = vmul.f32 %v10840, %v10847
    %v10909 = vmul.f32 %v10841, %v10847
    %v10910 = vmul.f32 %v10842, %v10847
    %v10911 = vmul.f32 %v10843, %v10847
    %v10912 = vmul.f32 %v10844, %v10847
    %v10913 = vld [vmem:[#allocation14] sm:$0x1]
    %v10915 = vperm.slane %v10913, 0
    %v10917 = vadd.f32 %v10849, %v10915
    %v10918 = vadd.f32 %v10850, %v10915
    %v10919 = vadd.f32 %v10851, %v10915
    %v10920 = vadd.f32 %v10852, %v10915
    %v10921 = vadd.f32 %v10853, %v10915
    %v10922 = vadd.f32 %v10854, %v10915
    %v10923 = vadd.f32 %v10855, %v10915
    %v10924 = vadd.f32 %v10856, %v10915
    %v10925 = vadd.f32 %v10857, %v10915
    %v10926 = vadd.f32 %v10858, %v10915
    %v10927 = vadd.f32 %v10859, %v10915
    %v10928 = vadd.f32 %v10860, %v10915
    %v10929 = vadd.f32 %v10861, %v10915
    %v10930 = vadd.f32 %v10862, %v10915
    %v10931 = vadd.f32 %v10863, %v10915
    %v10932 = vadd.f32 %v10864, %v10915
    %v10933 = vadd.f32 %v10865, %v10915
    %v10934 = vadd.f32 %v10866, %v10915
    %v10935 = vadd.f32 %v10867, %v10915
    %v10936 = vadd.f32 %v10868, %v10915
    %v10937 = vadd.f32 %v10869, %v10915
    %v10938 = vadd.f32 %v10870, %v10915
    %v10939 = vadd.f32 %v10871, %v10915
    %v10940 = vadd.f32 %v10872, %v10915
    %v10941 = vadd.f32 %v10873, %v10915
    %v10942 = vadd.f32 %v10874, %v10915
    %v10943 = vadd.f32 %v10875, %v10915
    %v10944 = vadd.f32 %v10876, %v10915
    %v10945 = vadd.f32 %v10877, %v10915
    %v10946 = vadd.f32 %v10878, %v10915
    %v10947 = vadd.f32 %v10879, %v10915
    %v10948 = vadd.f32 %v10880, %v10915
    %v10949 = vadd.f32 %v10881, %v10915
    %v10950 = vadd.f32 %v10882, %v10915
    %v10951 = vadd.f32 %v10883, %v10915
    %v10952 = vadd.f32 %v10884, %v10915
    %v10953 = vadd.f32 %v10885, %v10915
    %v10954 = vadd.f32 %v10886, %v10915
    %v10955 = vadd.f32 %v10887, %v10915
    %v10956 = vadd.f32 %v10888, %v10915
    %v10957 = vadd.f32 %v10889, %v10915
    %v10958 = vadd.f32 %v10890, %v10915
    %v10959 = vadd.f32 %v10891, %v10915
    %v10960 = vadd.f32 %v10892, %v10915
    %v10961 = vadd.f32 %v10893, %v10915
    %v10962 = vadd.f32 %v10894, %v10915
    %v10963 = vadd.f32 %v10895, %v10915
    %v10964 = vadd.f32 %v10896, %v10915
    %v10965 = vadd.f32 %v10897, %v10915
    %v10966 = vadd.f32 %v10898, %v10915
    %v10967 = vadd.f32 %v10899, %v10915
    %v10968 = vadd.f32 %v10900, %v10915
    %v10969 = vadd.f32 %v10901, %v10915
    %v10970 = vadd.f32 %v10902, %v10915
    %v10971 = vadd.f32 %v10903, %v10915
    %v10972 = vadd.f32 %v10904, %v10915
    %v10973 = vadd.f32 %v10905, %v10915
    %v10974 = vadd.f32 %v10906, %v10915
    %v10975 = vadd.f32 %v10907, %v10915
    %v10976 = vadd.f32 %v10908, %v10915
    %v10977 = vadd.f32 %v10909, %v10915
    %v10978 = vadd.f32 %v10910, %v10915
    %v10979 = vadd.f32 %v10911, %v10915
    %v10980 = vadd.f32 %v10912, %v10915
    %v10981 = vmax.f32 %v10917, 0.0
    %v10982 = vmax.f32 %v10918, 0.0
    %v10983 = vmax.f32 %v10919, 0.0
    %v10984 = vmax.f32 %v10920, 0.0
    %v10985 = vmax.f32 %v10921, 0.0
    %v10986 = vmax.f32 %v10922, 0.0
    %v10987 = vmax.f32 %v10923, 0.0
    %v10988 = vmax.f32 %v10924, 0.0
    %v10989 = vmax.f32 %v10925, 0.0
    %v10990 = vmax.f32 %v10926, 0.0
    %v10991 = vmax.f32 %v10927, 0.0
    %v10992 = vmax.f32 %v10928, 0.0
    %v10993 = vmax.f32 %v10929, 0.0
    %v10994 = vmax.f32 %v10930, 0.0
    %v10995 = vmax.f32 %v10931, 0.0
    %v10996 = vmax.f32 %v10932, 0.0
    %v10997 = vmax.f32 %v10933, 0.0
    %v10998 = vmax.f32 %v10934, 0.0
    %v10999 = vmax.f32 %v10935, 0.0
    %v11000 = vmax.f32 %v10936, 0.0
    %v11001 = vmax.f32 %v10937, 0.0
    %v11002 = vmax.f32 %v10938, 0.0
    %v11003 = vmax.f32 %v10939, 0.0
    %v11004 = vmax.f32 %v10940, 0.0
    %v11005 = vmax.f32 %v10941, 0.0
    %v11006 = vmax.f32 %v10942, 0.0
    %v11007 = vmax.f32 %v10943, 0.0
    %v11008 = vmax.f32 %v10944, 0.0
    %v11009 = vmax.f32 %v10945, 0.0
    %v11010 = vmax.f32 %v10946, 0.0
    %v11011 = vmax.f32 %v10947, 0.0
    %v11012 = vmax.f32 %v10948, 0.0
    %v11013 = vmax.f32 %v10949, 0.0
    %v11014 = vmax.f32 %v10950, 0.0
    %v11015 = vmax.f32 %v10951, 0.0
    %v11016 = vmax.f32 %v10952, 0.0
    %v11017 = vmax.f32 %v10953, 0.0
    %v11018 = vmax.f32 %v10954, 0.0
    %v11019 = vmax.f32 %v10955, 0.0
    %v11020 = vmax.f32 %v10956, 0.0
    %v11021 = vmax.f32 %v10957, 0.0
    %v11022 = vmax.f32 %v10958, 0.0
    %v11023 = vmax.f32 %v10959, 0.0
    %v11024 = vmax.f32 %v10960, 0.0
    %v11025 = vmax.f32 %v10961, 0.0
    %v11026 = vmax.f32 %v10962, 0.0
    %v11027 = vmax.f32 %v10963, 0.0
    %v11028 = vmax.f32 %v10964, 0.0
    %v11029 = vmax.f32 %v10965, 0.0
    %v11030 = vmax.f32 %v10966, 0.0
    %v11031 = vmax.f32 %v10967, 0.0
    %v11032 = vmax.f32 %v10968, 0.0
    %v11033 = vmax.f32 %v10969, 0.0
    %v11034 = vmax.f32 %v10970, 0.0
    %v11035 = vmax.f32 %v10971, 0.0
    %v11036 = vmax.f32 %v10972, 0.0
    %v11037 = vmax.f32 %v10973, 0.0
    %v11038 = vmax.f32 %v10974, 0.0
    %v11039 = vmax.f32 %v10975, 0.0
    %v11040 = vmax.f32 %v10976, 0.0
    %v11041 = vmax.f32 %v10977, 0.0
    %v11042 = vmax.f32 %v10978, 0.0
    %v11043 = vmax.f32 %v10979, 0.0
    %v11044 = vmax.f32 %v10980, 0.0
    %v11045 = vpack.c.bf16 %v10982, %v10981
    %v11046 = vpack.c.bf16 %v10984, %v10983
    %v11047 = vpack.c.bf16 %v10986, %v10985
    %v11048 = vpack.c.bf16 %v10988, %v10987
    %v11049 = vpack.c.bf16 %v10990, %v10989
    %v11050 = vpack.c.bf16 %v10992, %v10991
    %v11051 = vpack.c.bf16 %v10994, %v10993
    %v11052 = vpack.c.bf16 %v10996, %v10995
    %v11053 = vpack.c.bf16 %v10998, %v10997
    %v11054 = vpack.c.bf16 %v11000, %v10999
    %v11055 = vpack.c.bf16 %v11002, %v11001
    %v11056 = vpack.c.bf16 %v11004, %v11003
    %v11057 = vpack.c.bf16 %v11006, %v11005
    %v11058 = vpack.c.bf16 %v11008, %v11007
    %v11059 = vpack.c.bf16 %v11010, %v11009
    %v11060 = vpack.c.bf16 %v11012, %v11011
    %v11061 = vpack.c.bf16 %v11014, %v11013
    %v11062 = vpack.c.bf16 %v11016, %v11015
    %v11063 = vpack.c.bf16 %v11018, %v11017
    %v11064 = vpack.c.bf16 %v11020, %v11019
    %v11065 = vpack.c.bf16 %v11022, %v11021
    %v11066 = vpack.c.bf16 %v11024, %v11023
    %v11067 = vpack.c.bf16 %v11026, %v11025
    %v11068 = vpack.c.bf16 %v11028, %v11027
    %v11069 = vpack.c.bf16 %v11030, %v11029
    %v11070 = vpack.c.bf16 %v11032, %v11031
    %v11071 = vpack.c.bf16 %v11034, %v11033
    %v11072 = vpack.c.bf16 %v11036, %v11035
    %v11073 = vpack.c.bf16 %v11038, %v11037
    %v11074 = vpack.c.bf16 %v11040, %v11039
    %v11075 = vpack.c.bf16 %v11042, %v11041
    %v11076 = vpack.c.bf16 %v11044, %v11043
    %v11077 = vld [vmem:[#allocation15] sm:$0xff]
    %v11078 = vld [vmem:[#allocation15 + $0x8] sm:$0xff]
    %v11079 = vld [vmem:[#allocation15 + $0x10] sm:$0xff]
    %v11080 = vld [vmem:[#allocation15 + $0x18] sm:$0xff]
    %v11081 = vld [vmem:[#allocation15 + $0x20] sm:$0xff]
    %v11082 = vld [vmem:[#allocation15 + $0x28] sm:$0xff]
    %v11083 = vld [vmem:[#allocation15 + $0x30] sm:$0xff]
    %v11084 = vld [vmem:[#allocation15 + $0x38] sm:$0xff]
    %v11085 = vld [vmem:[#allocation15 + $0x40] sm:$0xff]
    %v11086 = vld [vmem:[#allocation15 + $0x48] sm:$0xff]
    %v11087 = vld [vmem:[#allocation15 + $0x50] sm:$0xff]
    %v11088 = vld [vmem:[#allocation15 + $0x58] sm:$0xff]
    %v11089 = vld [vmem:[#allocation15 + $0x60] sm:$0xff]
    %v11090 = vld [vmem:[#allocation15 + $0x68] sm:$0xff]
    %v11091 = vld [vmem:[#allocation15 + $0x70] sm:$0xff]
    %v11092 = vld [vmem:[#allocation15 + $0x78] sm:$0xff]
    %v11093 = vld [vmem:[#allocation15 + $0x80] sm:$0xff]
    %v11094 = vld [vmem:[#allocation15 + $0x88] sm:$0xff]
    %v11095 = vld [vmem:[#allocation15 + $0x90] sm:$0xff]
    %v11096 = vld [vmem:[#allocation15 + $0x98] sm:$0xff]
    %v11097 = vld [vmem:[#allocation15 + $0xa0] sm:$0xff]
    %v11098 = vld [vmem:[#allocation15 + $0xa8] sm:$0xff]
    %v11099 = vld [vmem:[#allocation15 + $0xb0] sm:$0xff]
    %v11100 = vld [vmem:[#allocation15 + $0xb8] sm:$0xff]
    %v11101 = vld [vmem:[#allocation15 + $0xc0] sm:$0xff]
    %v11102 = vld [vmem:[#allocation15 + $0xc8] sm:$0xff]
    %v11103 = vld [vmem:[#allocation15 + $0xd0] sm:$0xff]
    %v11104 = vld [vmem:[#allocation15 + $0xd8] sm:$0xff]
    %v11105 = vld [vmem:[#allocation15 + $0xe0] sm:$0xff]
    %v11106 = vld [vmem:[#allocation15 + $0xe8] sm:$0xff]
    %v11107 = vld [vmem:[#allocation15 + $0xf0] sm:$0xff]
    %v11108 = vld [vmem:[#allocation15 + $0xf8] sm:$0xff]
    %v11141 = vunpack.c.l.b16 %v11077
    %v11142 = vunpack.c.h.b16 %v11077
    %v11143 = vunpack.c.l.b16 %v11078
    %v11144 = vunpack.c.h.b16 %v11078
    %v11145 = vunpack.c.l.b16 %v11079
    %v11146 = vunpack.c.h.b16 %v11079
    %v11147 = vunpack.c.l.b16 %v11080
    %v11148 = vunpack.c.h.b16 %v11080
    %v11149 = vunpack.c.l.b16 %v11081
    %v11150 = vunpack.c.h.b16 %v11081
    %v11151 = vunpack.c.l.b16 %v11082
    %v11152 = vunpack.c.h.b16 %v11082
    %v11153 = vunpack.c.l.b16 %v11083
    %v11154 = vunpack.c.h.b16 %v11083
    %v11155 = vunpack.c.l.b16 %v11084
    %v11156 = vunpack.c.h.b16 %v11084
    %v11157 = vunpack.c.l.b16 %v11085
    %v11158 = vunpack.c.h.b16 %v11085
    %v11159 = vunpack.c.l.b16 %v11086
    %v11160 = vunpack.c.h.b16 %v11086
    %v11161 = vunpack.c.l.b16 %v11087
    %v11162 = vunpack.c.h.b16 %v11087
    %v11163 = vunpack.c.l.b16 %v11088
    %v11164 = vunpack.c.h.b16 %v11088
    %v11165 = vunpack.c.l.b16 %v11089
    %v11166 = vunpack.c.h.b16 %v11089
    %v11167 = vunpack.c.l.b16 %v11090
    %v11168 = vunpack.c.h.b16 %v11090
    %v11169 = vunpack.c.l.b16 %v11091
    %v11170 = vunpack.c.h.b16 %v11091
    %v11171 = vunpack.c.l.b16 %v11092
    %v11172 = vunpack.c.h.b16 %v11092
    %v11173 = vunpack.c.l.b16 %v11093
    %v11174 = vunpack.c.h.b16 %v11093
    %v11175 = vunpack.c.l.b16 %v11094
    %v11176 = vunpack.c.h.b16 %v11094
    %v11177 = vunpack.c.l.b16 %v11095
    %v11178 = vunpack.c.h.b16 %v11095
    %v11179 = vunpack.c.l.b16 %v11096
    %v11180 = vunpack.c.h.b16 %v11096
    %v11181 = vunpack.c.l.b16 %v11097
    %v11182 = vunpack.c.h.b16 %v11097
    %v11183 = vunpack.c.l.b16 %v11098
    %v11184 = vunpack.c.h.b16 %v11098
    %v11185 = vunpack.c.l.b16 %v11099
    %v11186 = vunpack.c.h.b16 %v11099
    %v11187 = vunpack.c.l.b16 %v11100
    %v11188 = vunpack.c.h.b16 %v11100
    %v11189 = vunpack.c.l.b16 %v11101
    %v11190 = vunpack.c.h.b16 %v11101
    %v11191 = vunpack.c.l.b16 %v11102
    %v11192 = vunpack.c.h.b16 %v11102
    %v11193 = vunpack.c.l.b16 %v11103
    %v11194 = vunpack.c.h.b16 %v11103
    %v11195 = vunpack.c.l.b16 %v11104
    %v11196 = vunpack.c.h.b16 %v11104
    %v11197 = vunpack.c.l.b16 %v11105
    %v11198 = vunpack.c.h.b16 %v11105
    %v11199 = vunpack.c.l.b16 %v11106
    %v11200 = vunpack.c.h.b16 %v11106
    %v11201 = vunpack.c.l.b16 %v11107
    %v11202 = vunpack.c.h.b16 %v11107
    %v11203 = vunpack.c.l.b16 %v11108
    %v11204 = vunpack.c.h.b16 %v11108
    %v11205 = vpack.c.b16 %v11145, %v11141
    %v11206 = vpack.c.b16 %v11146, %v11142
    %v11207 = vpack.c.b16 %v11147, %v11143
    %v11208 = vpack.c.b16 %v11148, %v11144
    %v11209 = vpack.c.b16 %v11153, %v11149
    %v11210 = vpack.c.b16 %v11154, %v11150
    %v11211 = vpack.c.b16 %v11155, %v11151
    %v11212 = vpack.c.b16 %v11156, %v11152
    %v11213 = vpack.c.b16 %v11161, %v11157
    %v11214 = vpack.c.b16 %v11162, %v11158
    %v11215 = vpack.c.b16 %v11163, %v11159
    %v11216 = vpack.c.b16 %v11164, %v11160
    %v11217 = vpack.c.b16 %v11169, %v11165
    %v11218 = vpack.c.b16 %v11170, %v11166
    %v11219 = vpack.c.b16 %v11171, %v11167
    %v11220 = vpack.c.b16 %v11172, %v11168
    %v11221 = vpack.c.b16 %v11177, %v11173
    %v11222 = vpack.c.b16 %v11178, %v11174
    %v11223 = vpack.c.b16 %v11179, %v11175
    %v11224 = vpack.c.b16 %v11180, %v11176
    %v11225 = vpack.c.b16 %v11185, %v11181
    %v11226 = vpack.c.b16 %v11186, %v11182
    %v11227 = vpack.c.b16 %v11187, %v11183
    %v11228 = vpack.c.b16 %v11188, %v11184
    %v11229 = vpack.c.b16 %v11193, %v11189
    %v11230 = vpack.c.b16 %v11194, %v11190
    %v11231 = vpack.c.b16 %v11195, %v11191
    %v11232 = vpack.c.b16 %v11196, %v11192
    %v11233 = vpack.c.b16 %v11201, %v11197
    %v11234 = vpack.c.b16 %v11202, %v11198
    %v11235 = vpack.c.b16 %v11203, %v11199
    %v11236 = vpack.c.b16 %v11204, %v11200
    %11269 = vmatpush.bf16.msra.mxu0 %v11233
    %11270 = vmatpush.bf16.msra.mxu0 %v11229
    %11271 = vmatpush.bf16.msra.mxu0 %v11225
    %11272 = vmatpush.bf16.msra.mxu0 %v11221
    %11273 = vmatpush.bf16.msra.mxu0 %v11217
    %11274 = vmatpush.bf16.msra.mxu0 %v11213
    %11275 = vmatpush.bf16.msra.mxu0 %v11209
    %11276 = vmatpush.bf16.msra.mxu0 %v11205
    %11277 = vmatmul.bf16.gmra.mxu0 %v11045
    %v11278 = vpop.f32.mrf.mxu0
    %v11279 = vadd.f32 0.0, %v11278
    %v11280 = vpop.f32.mrf.mxu0
    %v11281 = vadd.f32 0.0, %v11280
    %11282 = vmatmul.bf16.gmra.mxu0 %v11046
    %v11283 = vpop.f32.mrf.mxu0
    %v11284 = vadd.f32 0.0, %v11283
    %v11285 = vpop.f32.mrf.mxu0
    %v11286 = vadd.f32 0.0, %v11285
    %11287 = vmatmul.bf16.gmra.mxu0 %v11047
    %v11288 = vpop.f32.mrf.mxu0
    %v11289 = vadd.f32 0.0, %v11288
    %v11290 = vpop.f32.mrf.mxu0
    %v11291 = vadd.f32 0.0, %v11290
    %11292 = vmatmul.bf16.gmra.mxu0 %v11048
    %v11293 = vpop.f32.mrf.mxu0
    %v11294 = vadd.f32 0.0, %v11293
    %v11295 = vpop.f32.mrf.mxu0
    %v11296 = vadd.f32 0.0, %v11295
    %11297 = vmatmul.bf16.gmra.mxu0 %v11049
    %v11298 = vpop.f32.mrf.mxu0
    %v11299 = vadd.f32 0.0, %v11298
    %v11300 = vpop.f32.mrf.mxu0
    %v11301 = vadd.f32 0.0, %v11300
    %11302 = vmatmul.bf16.gmra.mxu0 %v11050
    %v11303 = vpop.f32.mrf.mxu0
    %v11304 = vadd.f32 0.0, %v11303
    %v11305 = vpop.f32.mrf.mxu0
    %v11306 = vadd.f32 0.0, %v11305
    %11307 = vmatmul.bf16.gmra.mxu0 %v11051
    %v11308 = vpop.f32.mrf.mxu0
    %v11309 = vadd.f32 0.0, %v11308
    %v11310 = vpop.f32.mrf.mxu0
    %v11311 = vadd.f32 0.0, %v11310
    %11312 = vmatmul.bf16.gmra.mxu0 %v11052
    %v11313 = vpop.f32.mrf.mxu0
    %v11314 = vadd.f32 0.0, %v11313
    %v11315 = vpop.f32.mrf.mxu0
    %v11316 = vadd.f32 0.0, %v11315
    %11317 = vmatmul.bf16.gmra.mxu0 %v11053
    %v11318 = vpop.f32.mrf.mxu0
    %v11319 = vadd.f32 0.0, %v11318
    %v11320 = vpop.f32.mrf.mxu0
    %v11321 = vadd.f32 0.0, %v11320
    %11322 = vmatmul.bf16.gmra.mxu0 %v11054
    %v11323 = vpop.f32.mrf.mxu0
    %v11324 = vadd.f32 0.0, %v11323
    %v11325 = vpop.f32.mrf.mxu0
    %v11326 = vadd.f32 0.0, %v11325
    %11327 = vmatmul.bf16.gmra.mxu0 %v11055
    %v11328 = vpop.f32.mrf.mxu0
    %v11329 = vadd.f32 0.0, %v11328
    %v11330 = vpop.f32.mrf.mxu0
    %v11331 = vadd.f32 0.0, %v11330
    %11332 = vmatmul.bf16.gmra.mxu0 %v11056
    %v11333 = vpop.f32.mrf.mxu0
    %v11334 = vadd.f32 0.0, %v11333
    %v11335 = vpop.f32.mrf.mxu0
    %v11336 = vadd.f32 0.0, %v11335
    %11337 = vmatmul.bf16.gmra.mxu0 %v11057
    %v11338 = vpop.f32.mrf.mxu0
    %v11339 = vadd.f32 0.0, %v11338
    %v11340 = vpop.f32.mrf.mxu0
    %v11341 = vadd.f32 0.0, %v11340
    %11342 = vmatmul.bf16.gmra.mxu0 %v11058
    %v11343 = vpop.f32.mrf.mxu0
    %v11344 = vadd.f32 0.0, %v11343
    %v11345 = vpop.f32.mrf.mxu0
    %v11346 = vadd.f32 0.0, %v11345
    %11347 = vmatmul.bf16.gmra.mxu0 %v11059
    %v11348 = vpop.f32.mrf.mxu0
    %v11349 = vadd.f32 0.0, %v11348
    %v11350 = vpop.f32.mrf.mxu0
    %v11351 = vadd.f32 0.0, %v11350
    %11352 = vmatmul.bf16.gmra.mxu0 %v11060
    %v11353 = vpop.f32.mrf.mxu0
    %v11354 = vadd.f32 0.0, %v11353
    %v11355 = vpop.f32.mrf.mxu0
    %v11356 = vadd.f32 0.0, %v11355
    %11357 = vmatmul.bf16.gmra.mxu0 %v11061
    %v11358 = vpop.f32.mrf.mxu0
    %v11359 = vadd.f32 0.0, %v11358
    %v11360 = vpop.f32.mrf.mxu0
    %v11361 = vadd.f32 0.0, %v11360
    %11362 = vmatmul.bf16.gmra.mxu0 %v11062
    %v11363 = vpop.f32.mrf.mxu0
    %v11364 = vadd.f32 0.0, %v11363
    %v11365 = vpop.f32.mrf.mxu0
    %v11366 = vadd.f32 0.0, %v11365
    %11367 = vmatmul.bf16.gmra.mxu0 %v11063
    %v11368 = vpop.f32.mrf.mxu0
    %v11369 = vadd.f32 0.0, %v11368
    %v11370 = vpop.f32.mrf.mxu0
    %v11371 = vadd.f32 0.0, %v11370
    %11372 = vmatmul.bf16.gmra.mxu0 %v11064
    %v11373 = vpop.f32.mrf.mxu0
    %v11374 = vadd.f32 0.0, %v11373
    %v11375 = vpop.f32.mrf.mxu0
    %v11376 = vadd.f32 0.0, %v11375
    %11377 = vmatmul.bf16.gmra.mxu0 %v11065
    %v11378 = vpop.f32.mrf.mxu0
    %v11379 = vadd.f32 0.0, %v11378
    %v11380 = vpop.f32.mrf.mxu0
    %v11381 = vadd.f32 0.0, %v11380
    %11382 = vmatmul.bf16.gmra.mxu0 %v11066
    %v11383 = vpop.f32.mrf.mxu0
    %v11384 = vadd.f32 0.0, %v11383
    %v11385 = vpop.f32.mrf.mxu0
    %v11386 = vadd.f32 0.0, %v11385
    %11387 = vmatmul.bf16.gmra.mxu0 %v11067
    %v11388 = vpop.f32.mrf.mxu0
    %v11389 = vadd.f32 0.0, %v11388
    %v11390 = vpop.f32.mrf.mxu0
    %v11391 = vadd.f32 0.0, %v11390
    %11392 = vmatmul.bf16.gmra.mxu0 %v11068
    %v11393 = vpop.f32.mrf.mxu0
    %v11394 = vadd.f32 0.0, %v11393
    %v11395 = vpop.f32.mrf.mxu0
    %v11396 = vadd.f32 0.0, %v11395
    %11397 = vmatmul.bf16.gmra.mxu0 %v11069
    %v11398 = vpop.f32.mrf.mxu0
    %v11399 = vadd.f32 0.0, %v11398
    %v11400 = vpop.f32.mrf.mxu0
    %v11401 = vadd.f32 0.0, %v11400
    %11402 = vmatmul.bf16.gmra.mxu0 %v11070
    %v11403 = vpop.f32.mrf.mxu0
    %v11404 = vadd.f32 0.0, %v11403
    %v11405 = vpop.f32.mrf.mxu0
    %v11406 = vadd.f32 0.0, %v11405
    %11407 = vmatmul.bf16.gmra.mxu0 %v11071
    %v11408 = vpop.f32.mrf.mxu0
    %v11409 = vadd.f32 0.0, %v11408
    %v11410 = vpop.f32.mrf.mxu0
    %v11411 = vadd.f32 0.0, %v11410
    %11412 = vmatmul.bf16.gmra.mxu0 %v11072
    %v11413 = vpop.f32.mrf.mxu0
    %v11414 = vadd.f32 0.0, %v11413
    %v11415 = vpop.f32.mrf.mxu0
    %v11416 = vadd.f32 0.0, %v11415
    %11417 = vmatmul.bf16.gmra.mxu0 %v11073
    %v11418 = vpop.f32.mrf.mxu0
    %v11419 = vadd.f32 0.0, %v11418
    %v11420 = vpop.f32.mrf.mxu0
    %v11421 = vadd.f32 0.0, %v11420
    %11422 = vmatmul.bf16.gmra.mxu0 %v11074
    %v11423 = vpop.f32.mrf.mxu0
    %v11424 = vadd.f32 0.0, %v11423
    %v11425 = vpop.f32.mrf.mxu0
    %v11426 = vadd.f32 0.0, %v11425
    %11427 = vmatmul.bf16.gmra.mxu0 %v11075
    %v11428 = vpop.f32.mrf.mxu0
    %v11429 = vadd.f32 0.0, %v11428
    %v11430 = vpop.f32.mrf.mxu0
    %v11431 = vadd.f32 0.0, %v11430
    %11432 = vmatmul.bf16.gmra.mxu0 %v11076
    %v11433 = vpop.f32.mrf.mxu0
    %v11434 = vadd.f32 0.0, %v11433
    %v11435 = vpop.f32.mrf.mxu0
    %v11436 = vadd.f32 0.0, %v11435
    %11437 = vdwg.mxu0
    %11438 = vmatpush.bf16.msra.mxu0 %v11234
    %11439 = vmatpush.bf16.msra.mxu0 %v11230
    %11440 = vmatpush.bf16.msra.mxu0 %v11226
    %11441 = vmatpush.bf16.msra.mxu0 %v11222
    %11442 = vmatpush.bf16.msra.mxu0 %v11218
    %11443 = vmatpush.bf16.msra.mxu0 %v11214
    %11444 = vmatpush.bf16.msra.mxu0 %v11210
    %11445 = vmatpush.bf16.msra.mxu0 %v11206
    %11446 = vmatmul.bf16.gmra.mxu0 %v11045
    %v11447 = vpop.f32.mrf.mxu0
    %v11448 = vadd.f32 0.0, %v11447
    %v11449 = vpop.f32.mrf.mxu0
    %v11450 = vadd.f32 0.0, %v11449
    %11451 = vmatmul.bf16.gmra.mxu0 %v11046
    %v11452 = vpop.f32.mrf.mxu0
    %v11453 = vadd.f32 0.0, %v11452
    %v11454 = vpop.f32.mrf.mxu0
    %v11455 = vadd.f32 0.0, %v11454
    %11456 = vmatmul.bf16.gmra.mxu0 %v11047
    %v11457 = vpop.f32.mrf.mxu0
    %v11458 = vadd.f32 0.0, %v11457
    %v11459 = vpop.f32.mrf.mxu0
    %v11460 = vadd.f32 0.0, %v11459
    %11461 = vmatmul.bf16.gmra.mxu0 %v11048
    %v11462 = vpop.f32.mrf.mxu0
    %v11463 = vadd.f32 0.0, %v11462
    %v11464 = vpop.f32.mrf.mxu0
    %v11465 = vadd.f32 0.0, %v11464
    %11466 = vmatmul.bf16.gmra.mxu0 %v11049
    %v11467 = vpop.f32.mrf.mxu0
    %v11468 = vadd.f32 0.0, %v11467
    %v11469 = vpop.f32.mrf.mxu0
    %v11470 = vadd.f32 0.0, %v11469
    %11471 = vmatmul.bf16.gmra.mxu0 %v11050
    %v11472 = vpop.f32.mrf.mxu0
    %v11473 = vadd.f32 0.0, %v11472
    %v11474 = vpop.f32.mrf.mxu0
    %v11475 = vadd.f32 0.0, %v11474
    %11476 = vmatmul.bf16.gmra.mxu0 %v11051
    %v11477 = vpop.f32.mrf.mxu0
    %v11478 = vadd.f32 0.0, %v11477
    %v11479 = vpop.f32.mrf.mxu0
    %v11480 = vadd.f32 0.0, %v11479
    %11481 = vmatmul.bf16.gmra.mxu0 %v11052
    %v11482 = vpop.f32.mrf.mxu0
    %v11483 = vadd.f32 0.0, %v11482
    %v11484 = vpop.f32.mrf.mxu0
    %v11485 = vadd.f32 0.0, %v11484
    %11486 = vmatmul.bf16.gmra.mxu0 %v11053
    %v11487 = vpop.f32.mrf.mxu0
    %v11488 = vadd.f32 0.0, %v11487
    %v11489 = vpop.f32.mrf.mxu0
    %v11490 = vadd.f32 0.0, %v11489
    %11491 = vmatmul.bf16.gmra.mxu0 %v11054
    %v11492 = vpop.f32.mrf.mxu0
    %v11493 = vadd.f32 0.0, %v11492
    %v11494 = vpop.f32.mrf.mxu0
    %v11495 = vadd.f32 0.0, %v11494
    %11496 = vmatmul.bf16.gmra.mxu0 %v11055
    %v11497 = vpop.f32.mrf.mxu0
    %v11498 = vadd.f32 0.0, %v11497
    %v11499 = vpop.f32.mrf.mxu0
    %v11500 = vadd.f32 0.0, %v11499
    %11501 = vmatmul.bf16.gmra.mxu0 %v11056
    %v11502 = vpop.f32.mrf.mxu0
    %v11503 = vadd.f32 0.0, %v11502
    %v11504 = vpop.f32.mrf.mxu0
    %v11505 = vadd.f32 0.0, %v11504
    %11506 = vmatmul.bf16.gmra.mxu0 %v11057
    %v11507 = vpop.f32.mrf.mxu0
    %v11508 = vadd.f32 0.0, %v11507
    %v11509 = vpop.f32.mrf.mxu0
    %v11510 = vadd.f32 0.0, %v11509
    %11511 = vmatmul.bf16.gmra.mxu0 %v11058
    %v11512 = vpop.f32.mrf.mxu0
    %v11513 = vadd.f32 0.0, %v11512
    %v11514 = vpop.f32.mrf.mxu0
    %v11515 = vadd.f32 0.0, %v11514
    %11516 = vmatmul.bf16.gmra.mxu0 %v11059
    %v11517 = vpop.f32.mrf.mxu0
    %v11518 = vadd.f32 0.0, %v11517
    %v11519 = vpop.f32.mrf.mxu0
    %v11520 = vadd.f32 0.0, %v11519
    %11521 = vmatmul.bf16.gmra.mxu0 %v11060
    %v11522 = vpop.f32.mrf.mxu0
    %v11523 = vadd.f32 0.0, %v11522
    %v11524 = vpop.f32.mrf.mxu0
    %v11525 = vadd.f32 0.0, %v11524
    %11526 = vmatmul.bf16.gmra.mxu0 %v11061
    %v11527 = vpop.f32.mrf.mxu0
    %v11528 = vadd.f32 0.0, %v11527
    %v11529 = vpop.f32.mrf.mxu0
    %v11530 = vadd.f32 0.0, %v11529
    %11531 = vmatmul.bf16.gmra.mxu0 %v11062
    %v11532 = vpop.f32.mrf.mxu0
    %v11533 = vadd.f32 0.0, %v11532
    %v11534 = vpop.f32.mrf.mxu0
    %v11535 = vadd.f32 0.0, %v11534
    %11536 = vmatmul.bf16.gmra.mxu0 %v11063
    %v11537 = vpop.f32.mrf.mxu0
    %v11538 = vadd.f32 0.0, %v11537
    %v11539 = vpop.f32.mrf.mxu0
    %v11540 = vadd.f32 0.0, %v11539
    %11541 = vmatmul.bf16.gmra.mxu0 %v11064
    %v11542 = vpop.f32.mrf.mxu0
    %v11543 = vadd.f32 0.0, %v11542
    %v11544 = vpop.f32.mrf.mxu0
    %v11545 = vadd.f32 0.0, %v11544
    %11546 = vmatmul.bf16.gmra.mxu0 %v11065
    %v11547 = vpop.f32.mrf.mxu0
    %v11548 = vadd.f32 0.0, %v11547
    %v11549 = vpop.f32.mrf.mxu0
    %v11550 = vadd.f32 0.0, %v11549
    %11551 = vmatmul.bf16.gmra.mxu0 %v11066
    %v11552 = vpop.f32.mrf.mxu0
    %v11553 = vadd.f32 0.0, %v11552
    %v11554 = vpop.f32.mrf.mxu0
    %v11555 = vadd.f32 0.0, %v11554
    %11556 = vmatmul.bf16.gmra.mxu0 %v11067
    %v11557 = vpop.f32.mrf.mxu0
    %v11558 = vadd.f32 0.0, %v11557
    %v11559 = vpop.f32.mrf.mxu0
    %v11560 = vadd.f32 0.0, %v11559
    %11561 = vmatmul.bf16.gmra.mxu0 %v11068
    %v11562 = vpop.f32.mrf.mxu0
    %v11563 = vadd.f32 0.0, %v11562
    %v11564 = vpop.f32.mrf.mxu0
    %v11565 = vadd.f32 0.0, %v11564
    %11566 = vmatmul.bf16.gmra.mxu0 %v11069
    %v11567 = vpop.f32.mrf.mxu0
    %v11568 = vadd.f32 0.0, %v11567
    %v11569 = vpop.f32.mrf.mxu0
    %v11570 = vadd.f32 0.0, %v11569
    %11571 = vmatmul.bf16.gmra.mxu0 %v11070
    %v11572 = vpop.f32.mrf.mxu0
    %v11573 = vadd.f32 0.0, %v11572
    %v11574 = vpop.f32.mrf.mxu0
    %v11575 = vadd.f32 0.0, %v11574
    %11576 = vmatmul.bf16.gmra.mxu0 %v11071
    %v11577 = vpop.f32.mrf.mxu0
    %v11578 = vadd.f32 0.0, %v11577
    %v11579 = vpop.f32.mrf.mxu0
    %v11580 = vadd.f32 0.0, %v11579
    %11581 = vmatmul.bf16.gmra.mxu0 %v11072
    %v11582 = vpop.f32.mrf.mxu0
    %v11583 = vadd.f32 0.0, %v11582
    %v11584 = vpop.f32.mrf.mxu0
    %v11585 = vadd.f32 0.0, %v11584
    %11586 = vmatmul.bf16.gmra.mxu0 %v11073
    %v11587 = vpop.f32.mrf.mxu0
    %v11588 = vadd.f32 0.0, %v11587
    %v11589 = vpop.f32.mrf.mxu0
    %v11590 = vadd.f32 0.0, %v11589
    %11591 = vmatmul.bf16.gmra.mxu0 %v11074
    %v11592 = vpop.f32.mrf.mxu0
    %v11593 = vadd.f32 0.0, %v11592
    %v11594 = vpop.f32.mrf.mxu0
    %v11595 = vadd.f32 0.0, %v11594
    %11596 = vmatmul.bf16.gmra.mxu0 %v11075
    %v11597 = vpop.f32.mrf.mxu0
    %v11598 = vadd.f32 0.0, %v11597
    %v11599 = vpop.f32.mrf.mxu0
    %v11600 = vadd.f32 0.0, %v11599
    %11601 = vmatmul.bf16.gmra.mxu0 %v11076
    %v11602 = vpop.f32.mrf.mxu0
    %v11603 = vadd.f32 0.0, %v11602
    %v11604 = vpop.f32.mrf.mxu0
    %v11605 = vadd.f32 0.0, %v11604
    %11606 = vdwg.mxu0
    %11607 = vmatpush.bf16.msra.mxu0 %v11235
    %11608 = vmatpush.bf16.msra.mxu0 %v11231
    %11609 = vmatpush.bf16.msra.mxu0 %v11227
    %11610 = vmatpush.bf16.msra.mxu0 %v11223
    %11611 = vmatpush.bf16.msra.mxu0 %v11219
    %11612 = vmatpush.bf16.msra.mxu0 %v11215
    %11613 = vmatpush.bf16.msra.mxu0 %v11211
    %11614 = vmatpush.bf16.msra.mxu0 %v11207
    %11615 = vmatmul.bf16.gmra.mxu0 %v11045
    %v11616 = vpop.f32.mrf.mxu0
    %v11617 = vadd.f32 0.0, %v11616
    %v11618 = vpop.f32.mrf.mxu0
    %v11619 = vadd.f32 0.0, %v11618
    %11620 = vmatmul.bf16.gmra.mxu0 %v11046
    %v11621 = vpop.f32.mrf.mxu0
    %v11622 = vadd.f32 0.0, %v11621
    %v11623 = vpop.f32.mrf.mxu0
    %v11624 = vadd.f32 0.0, %v11623
    %11625 = vmatmul.bf16.gmra.mxu0 %v11047
    %v11626 = vpop.f32.mrf.mxu0
    %v11627 = vadd.f32 0.0, %v11626
    %v11628 = vpop.f32.mrf.mxu0
    %v11629 = vadd.f32 0.0, %v11628
    %11630 = vmatmul.bf16.gmra.mxu0 %v11048
    %v11631 = vpop.f32.mrf.mxu0
    %v11632 = vadd.f32 0.0, %v11631
    %v11633 = vpop.f32.mrf.mxu0
    %v11634 = vadd.f32 0.0, %v11633
    %11635 = vmatmul.bf16.gmra.mxu0 %v11049
    %v11636 = vpop.f32.mrf.mxu0
    %v11637 = vadd.f32 0.0, %v11636
    %v11638 = vpop.f32.mrf.mxu0
    %v11639 = vadd.f32 0.0, %v11638
    %11640 = vmatmul.bf16.gmra.mxu0 %v11050
    %v11641 = vpop.f32.mrf.mxu0
    %v11642 = vadd.f32 0.0, %v11641
    %v11643 = vpop.f32.mrf.mxu0
    %v11644 = vadd.f32 0.0, %v11643
    %11645 = vmatmul.bf16.gmra.mxu0 %v11051
    %v11646 = vpop.f32.mrf.mxu0
    %v11647 = vadd.f32 0.0, %v11646
    %v11648 = vpop.f32.mrf.mxu0
    %v11649 = vadd.f32 0.0, %v11648
    %11650 = vmatmul.bf16.gmra.mxu0 %v11052
    %v11651 = vpop.f32.mrf.mxu0
    %v11652 = vadd.f32 0.0, %v11651
    %v11653 = vpop.f32.mrf.mxu0
    %v11654 = vadd.f32 0.0, %v11653
    %11655 = vmatmul.bf16.gmra.mxu0 %v11053
    %v11656 = vpop.f32.mrf.mxu0
    %v11657 = vadd.f32 0.0, %v11656
    %v11658 = vpop.f32.mrf.mxu0
    %v11659 = vadd.f32 0.0, %v11658
    %11660 = vmatmul.bf16.gmra.mxu0 %v11054
    %v11661 = vpop.f32.mrf.mxu0
    %v11662 = vadd.f32 0.0, %v11661
    %v11663 = vpop.f32.mrf.mxu0
    %v11664 = vadd.f32 0.0, %v11663
    %11665 = vmatmul.bf16.gmra.mxu0 %v11055
    %v11666 = vpop.f32.mrf.mxu0
    %v11667 = vadd.f32 0.0, %v11666
    %v11668 = vpop.f32.mrf.mxu0
    %v11669 = vadd.f32 0.0, %v11668
    %11670 = vmatmul.bf16.gmra.mxu0 %v11056
    %v11671 = vpop.f32.mrf.mxu0
    %v11672 = vadd.f32 0.0, %v11671
    %v11673 = vpop.f32.mrf.mxu0
    %v11674 = vadd.f32 0.0, %v11673
    %11675 = vmatmul.bf16.gmra.mxu0 %v11057
    %v11676 = vpop.f32.mrf.mxu0
    %v11677 = vadd.f32 0.0, %v11676
    %v11678 = vpop.f32.mrf.mxu0
    %v11679 = vadd.f32 0.0, %v11678
    %11680 = vmatmul.bf16.gmra.mxu0 %v11058
    %v11681 = vpop.f32.mrf.mxu0
    %v11682 = vadd.f32 0.0, %v11681
    %v11683 = vpop.f32.mrf.mxu0
    %v11684 = vadd.f32 0.0, %v11683
    %11685 = vmatmul.bf16.gmra.mxu0 %v11059
    %v11686 = vpop.f32.mrf.mxu0
    %v11687 = vadd.f32 0.0, %v11686
    %v11688 = vpop.f32.mrf.mxu0
    %v11689 = vadd.f32 0.0, %v11688
    %11690 = vmatmul.bf16.gmra.mxu0 %v11060
    %v11691 = vpop.f32.mrf.mxu0
    %v11692 = vadd.f32 0.0, %v11691
    %v11693 = vpop.f32.mrf.mxu0
    %v11694 = vadd.f32 0.0, %v11693
    %11695 = vmatmul.bf16.gmra.mxu0 %v11061
    %v11696 = vpop.f32.mrf.mxu0
    %v11697 = vadd.f32 0.0, %v11696
    %v11698 = vpop.f32.mrf.mxu0
    %v11699 = vadd.f32 0.0, %v11698
    %11700 = vmatmul.bf16.gmra.mxu0 %v11062
    %v11701 = vpop.f32.mrf.mxu0
    %v11702 = vadd.f32 0.0, %v11701
    %v11703 = vpop.f32.mrf.mxu0
    %v11704 = vadd.f32 0.0, %v11703
    %11705 = vmatmul.bf16.gmra.mxu0 %v11063
    %v11706 = vpop.f32.mrf.mxu0
    %v11707 = vadd.f32 0.0, %v11706
    %v11708 = vpop.f32.mrf.mxu0
    %v11709 = vadd.f32 0.0, %v11708
    %11710 = vmatmul.bf16.gmra.mxu0 %v11064
    %v11711 = vpop.f32.mrf.mxu0
    %v11712 = vadd.f32 0.0, %v11711
    %v11713 = vpop.f32.mrf.mxu0
    %v11714 = vadd.f32 0.0, %v11713
    %11715 = vmatmul.bf16.gmra.mxu0 %v11065
    %v11716 = vpop.f32.mrf.mxu0
    %v11717 = vadd.f32 0.0, %v11716
    %v11718 = vpop.f32.mrf.mxu0
    %v11719 = vadd.f32 0.0, %v11718
    %11720 = vmatmul.bf16.gmra.mxu0 %v11066
    %v11721 = vpop.f32.mrf.mxu0
    %v11722 = vadd.f32 0.0, %v11721
    %v11723 = vpop.f32.mrf.mxu0
    %v11724 = vadd.f32 0.0, %v11723
    %11725 = vmatmul.bf16.gmra.mxu0 %v11067
    %v11726 = vpop.f32.mrf.mxu0
    %v11727 = vadd.f32 0.0, %v11726
    %v11728 = vpop.f32.mrf.mxu0
    %v11729 = vadd.f32 0.0, %v11728
    %11730 = vmatmul.bf16.gmra.mxu0 %v11068
    %v11731 = vpop.f32.mrf.mxu0
    %v11732 = vadd.f32 0.0, %v11731
    %v11733 = vpop.f32.mrf.mxu0
    %v11734 = vadd.f32 0.0, %v11733
    %11735 = vmatmul.bf16.gmra.mxu0 %v11069
    %v11736 = vpop.f32.mrf.mxu0
    %v11737 = vadd.f32 0.0, %v11736
    %v11738 = vpop.f32.mrf.mxu0
    %v11739 = vadd.f32 0.0, %v11738
    %11740 = vmatmul.bf16.gmra.mxu0 %v11070
    %v11741 = vpop.f32.mrf.mxu0
    %v11742 = vadd.f32 0.0, %v11741
    %v11743 = vpop.f32.mrf.mxu0
    %v11744 = vadd.f32 0.0, %v11743
    %11745 = vmatmul.bf16.gmra.mxu0 %v11071
    %v11746 = vpop.f32.mrf.mxu0
    %v11747 = vadd.f32 0.0, %v11746
    %v11748 = vpop.f32.mrf.mxu0
    %v11749 = vadd.f32 0.0, %v11748
    %11750 = vmatmul.bf16.gmra.mxu0 %v11072
    %v11751 = vpop.f32.mrf.mxu0
    %v11752 = vadd.f32 0.0, %v11751
    %v11753 = vpop.f32.mrf.mxu0
    %v11754 = vadd.f32 0.0, %v11753
    %11755 = vmatmul.bf16.gmra.mxu0 %v11073
    %v11756 = vpop.f32.mrf.mxu0
    %v11757 = vadd.f32 0.0, %v11756
    %v11758 = vpop.f32.mrf.mxu0
    %v11759 = vadd.f32 0.0, %v11758
    %11760 = vmatmul.bf16.gmra.mxu0 %v11074
    %v11761 = vpop.f32.mrf.mxu0
    %v11762 = vadd.f32 0.0, %v11761
    %v11763 = vpop.f32.mrf.mxu0
    %v11764 = vadd.f32 0.0, %v11763
    %11765 = vmatmul.bf16.gmra.mxu0 %v11075
    %v11766 = vpop.f32.mrf.mxu0
    %v11767 = vadd.f32 0.0, %v11766
    %v11768 = vpop.f32.mrf.mxu0
    %v11769 = vadd.f32 0.0, %v11768
    %11770 = vmatmul.bf16.gmra.mxu0 %v11076
    %v11771 = vpop.f32.mrf.mxu0
    %v11772 = vadd.f32 0.0, %v11771
    %v11773 = vpop.f32.mrf.mxu0
    %v11774 = vadd.f32 0.0, %v11773
    %11775 = vdwg.mxu0
    %11776 = vmatpush.bf16.msra.mxu0 %v11236
    %11777 = vmatpush.bf16.msra.mxu0 %v11232
    %11778 = vmatpush.bf16.msra.mxu0 %v11228
    %11779 = vmatpush.bf16.msra.mxu0 %v11224
    %11780 = vmatpush.bf16.msra.mxu0 %v11220
    %11781 = vmatpush.bf16.msra.mxu0 %v11216
    %11782 = vmatpush.bf16.msra.mxu0 %v11212
    %11783 = vmatpush.bf16.msra.mxu0 %v11208
    %11784 = vmatmul.bf16.gmra.mxu0 %v11045
    %v11785 = vpop.f32.mrf.mxu0
    %v11786 = vadd.f32 0.0, %v11785
    %v11787 = vpop.f32.mrf.mxu0
    %v11788 = vadd.f32 0.0, %v11787
    %11789 = vmatmul.bf16.gmra.mxu0 %v11046
    %v11790 = vpop.f32.mrf.mxu0
    %v11791 = vadd.f32 0.0, %v11790
    %v11792 = vpop.f32.mrf.mxu0
    %v11793 = vadd.f32 0.0, %v11792
    %11794 = vmatmul.bf16.gmra.mxu0 %v11047
    %v11795 = vpop.f32.mrf.mxu0
    %v11796 = vadd.f32 0.0, %v11795
    %v11797 = vpop.f32.mrf.mxu0
    %v11798 = vadd.f32 0.0, %v11797
    %11799 = vmatmul.bf16.gmra.mxu0 %v11048
    %v11800 = vpop.f32.mrf.mxu0
    %v11801 = vadd.f32 0.0, %v11800
    %v11802 = vpop.f32.mrf.mxu0
    %v11803 = vadd.f32 0.0, %v11802
    %11804 = vmatmul.bf16.gmra.mxu0 %v11049
    %v11805 = vpop.f32.mrf.mxu0
    %v11806 = vadd.f32 0.0, %v11805
    %v11807 = vpop.f32.mrf.mxu0
    %v11808 = vadd.f32 0.0, %v11807
    %11809 = vmatmul.bf16.gmra.mxu0 %v11050
    %v11810 = vpop.f32.mrf.mxu0
    %v11811 = vadd.f32 0.0, %v11810
    %v11812 = vpop.f32.mrf.mxu0
    %v11813 = vadd.f32 0.0, %v11812
    %11814 = vmatmul.bf16.gmra.mxu0 %v11051
    %v11815 = vpop.f32.mrf.mxu0
    %v11816 = vadd.f32 0.0, %v11815
    %v11817 = vpop.f32.mrf.mxu0
    %v11818 = vadd.f32 0.0, %v11817
    %11819 = vmatmul.bf16.gmra.mxu0 %v11052
    %v11820 = vpop.f32.mrf.mxu0
    %v11821 = vadd.f32 0.0, %v11820
    %v11822 = vpop.f32.mrf.mxu0
    %v11823 = vadd.f32 0.0, %v11822
    %11824 = vmatmul.bf16.gmra.mxu0 %v11053
    %v11825 = vpop.f32.mrf.mxu0
    %v11826 = vadd.f32 0.0, %v11825
    %v11827 = vpop.f32.mrf.mxu0
    %v11828 = vadd.f32 0.0, %v11827
    %11829 = vmatmul.bf16.gmra.mxu0 %v11054
    %v11830 = vpop.f32.mrf.mxu0
    %v11831 = vadd.f32 0.0, %v11830
    %v11832 = vpop.f32.mrf.mxu0
    %v11833 = vadd.f32 0.0, %v11832
    %11834 = vmatmul.bf16.gmra.mxu0 %v11055
    %v11835 = vpop.f32.mrf.mxu0
    %v11836 = vadd.f32 0.0, %v11835
    %v11837 = vpop.f32.mrf.mxu0
    %v11838 = vadd.f32 0.0, %v11837
    %11839 = vmatmul.bf16.gmra.mxu0 %v11056
    %v11840 = vpop.f32.mrf.mxu0
    %v11841 = vadd.f32 0.0, %v11840
    %v11842 = vpop.f32.mrf.mxu0
    %v11843 = vadd.f32 0.0, %v11842
    %11844 = vmatmul.bf16.gmra.mxu0 %v11057
    %v11845 = vpop.f32.mrf.mxu0
    %v11846 = vadd.f32 0.0, %v11845
    %v11847 = vpop.f32.mrf.mxu0
    %v11848 = vadd.f32 0.0, %v11847
    %11849 = vmatmul.bf16.gmra.mxu0 %v11058
    %v11850 = vpop.f32.mrf.mxu0
    %v11851 = vadd.f32 0.0, %v11850
    %v11852 = vpop.f32.mrf.mxu0
    %v11853 = vadd.f32 0.0, %v11852
    %11854 = vmatmul.bf16.gmra.mxu0 %v11059
    %v11855 = vpop.f32.mrf.mxu0
    %v11856 = vadd.f32 0.0, %v11855
    %v11857 = vpop.f32.mrf.mxu0
    %v11858 = vadd.f32 0.0, %v11857
    %11859 = vmatmul.bf16.gmra.mxu0 %v11060
    %v11860 = vpop.f32.mrf.mxu0
    %v11861 = vadd.f32 0.0, %v11860
    %v11862 = vpop.f32.mrf.mxu0
    %v11863 = vadd.f32 0.0, %v11862
    %11864 = vmatmul.bf16.gmra.mxu0 %v11061
    %v11865 = vpop.f32.mrf.mxu0
    %v11866 = vadd.f32 0.0, %v11865
    %v11867 = vpop.f32.mrf.mxu0
    %v11868 = vadd.f32 0.0, %v11867
    %11869 = vmatmul.bf16.gmra.mxu0 %v11062
    %v11870 = vpop.f32.mrf.mxu0
    %v11871 = vadd.f32 0.0, %v11870
    %v11872 = vpop.f32.mrf.mxu0
    %v11873 = vadd.f32 0.0, %v11872
    %11874 = vmatmul.bf16.gmra.mxu0 %v11063
    %v11875 = vpop.f32.mrf.mxu0
    %v11876 = vadd.f32 0.0, %v11875
    %v11877 = vpop.f32.mrf.mxu0
    %v11878 = vadd.f32 0.0, %v11877
    %11879 = vmatmul.bf16.gmra.mxu0 %v11064
    %v11880 = vpop.f32.mrf.mxu0
    %v11881 = vadd.f32 0.0, %v11880
    %v11882 = vpop.f32.mrf.mxu0
    %v11883 = vadd.f32 0.0, %v11882
    %11884 = vmatmul.bf16.gmra.mxu0 %v11065
    %v11885 = vpop.f32.mrf.mxu0
    %v11886 = vadd.f32 0.0, %v11885
    %v11887 = vpop.f32.mrf.mxu0
    %v11888 = vadd.f32 0.0, %v11887
    %11889 = vmatmul.bf16.gmra.mxu0 %v11066
    %v11890 = vpop.f32.mrf.mxu0
    %v11891 = vadd.f32 0.0, %v11890
    %v11892 = vpop.f32.mrf.mxu0
    %v11893 = vadd.f32 0.0, %v11892
    %11894 = vmatmul.bf16.gmra.mxu0 %v11067
    %v11895 = vpop.f32.mrf.mxu0
    %v11896 = vadd.f32 0.0, %v11895
    %v11897 = vpop.f32.mrf.mxu0
    %v11898 = vadd.f32 0.0, %v11897
    %11899 = vmatmul.bf16.gmra.mxu0 %v11068
    %v11900 = vpop.f32.mrf.mxu0
    %v11901 = vadd.f32 0.0, %v11900
    %v11902 = vpop.f32.mrf.mxu0
    %v11903 = vadd.f32 0.0, %v11902
    %11904 = vmatmul.bf16.gmra.mxu0 %v11069
    %v11905 = vpop.f32.mrf.mxu0
    %v11906 = vadd.f32 0.0, %v11905
    %v11907 = vpop.f32.mrf.mxu0
    %v11908 = vadd.f32 0.0, %v11907
    %11909 = vmatmul.bf16.gmra.mxu0 %v11070
    %v11910 = vpop.f32.mrf.mxu0
    %v11911 = vadd.f32 0.0, %v11910
    %v11912 = vpop.f32.mrf.mxu0
    %v11913 = vadd.f32 0.0, %v11912
    %11914 = vmatmul.bf16.gmra.mxu0 %v11071
    %v11915 = vpop.f32.mrf.mxu0
    %v11916 = vadd.f32 0.0, %v11915
    %v11917 = vpop.f32.mrf.mxu0
    %v11918 = vadd.f32 0.0, %v11917
    %11919 = vmatmul.bf16.gmra.mxu0 %v11072
    %v11920 = vpop.f32.mrf.mxu0
    %v11921 = vadd.f32 0.0, %v11920
    %v11922 = vpop.f32.mrf.mxu0
    %v11923 = vadd.f32 0.0, %v11922
    %11924 = vmatmul.bf16.gmra.mxu0 %v11073
    %v11925 = vpop.f32.mrf.mxu0
    %v11926 = vadd.f32 0.0, %v11925
    %v11927 = vpop.f32.mrf.mxu0
    %v11928 = vadd.f32 0.0, %v11927
    %11929 = vmatmul.bf16.gmra.mxu0 %v11074
    %v11930 = vpop.f32.mrf.mxu0
    %v11931 = vadd.f32 0.0, %v11930
    %v11932 = vpop.f32.mrf.mxu0
    %v11933 = vadd.f32 0.0, %v11932
    %11934 = vmatmul.bf16.gmra.mxu0 %v11075
    %v11935 = vpop.f32.mrf.mxu0
    %v11936 = vadd.f32 0.0, %v11935
    %v11937 = vpop.f32.mrf.mxu0
    %v11938 = vadd.f32 0.0, %v11937
    %11939 = vmatmul.bf16.gmra.mxu0 %v11076
    %v11940 = vpop.f32.mrf.mxu0
    %v11941 = vadd.f32 0.0, %v11940
    %v11942 = vpop.f32.mrf.mxu0
    %v11943 = vadd.f32 0.0, %v11942
    %11944 = vdwg.mxu0
    %v11945 = vld [vmem:[%s8] sm:$0xf]
    %v11947 = vperm.slane %v11945, 0
    %v11948 = vperm.slane %v11945, 1
    %v11949 = vperm.slane %v11945, 2
    %v11950 = vperm.slane %v11945, 3
    %v11955 = vmul.f32 %v11279, %v11947
    %v11956 = vmul.f32 %v11448, %v11948
    %v11957 = vmul.f32 %v11617, %v11949
    %v11958 = vmul.f32 %v11786, %v11950
    %v11959 = vmul.f32 %v11281, %v11947
    %v11960 = vmul.f32 %v11450, %v11948
    %v11961 = vmul.f32 %v11619, %v11949
    %v11962 = vmul.f32 %v11788, %v11950
    %v11963 = vmul.f32 %v11284, %v11947
    %v11964 = vmul.f32 %v11453, %v11948
    %v11965 = vmul.f32 %v11622, %v11949
    %v11966 = vmul.f32 %v11791, %v11950
    %v11967 = vmul.f32 %v11286, %v11947
    %v11968 = vmul.f32 %v11455, %v11948
    %v11969 = vmul.f32 %v11624, %v11949
    %v11970 = vmul.f32 %v11793, %v11950
    %v11971 = vmul.f32 %v11289, %v11947
    %v11972 = vmul.f32 %v11458, %v11948
    %v11973 = vmul.f32 %v11627, %v11949
    %v11974 = vmul.f32 %v11796, %v11950
    %v11975 = vmul.f32 %v11291, %v11947
    %v11976 = vmul.f32 %v11460, %v11948
    %v11977 = vmul.f32 %v11629, %v11949
    %v11978 = vmul.f32 %v11798, %v11950
    %v11979 = vmul.f32 %v11294, %v11947
    %v11980 = vmul.f32 %v11463, %v11948
    %v11981 = vmul.f32 %v11632, %v11949
    %v11982 = vmul.f32 %v11801, %v11950
    %v11983 = vmul.f32 %v11296, %v11947
    %v11984 = vmul.f32 %v11465, %v11948
    %v11985 = vmul.f32 %v11634, %v11949
    %v11986 = vmul.f32 %v11803, %v11950
    %v11987 = vmul.f32 %v11299, %v11947
    %v11988 = vmul.f32 %v11468, %v11948
    %v11989 = vmul.f32 %v11637, %v11949
    %v11990 = vmul.f32 %v11806, %v11950
    %v11991 = vmul.f32 %v11301, %v11947
    %v11992 = vmul.f32 %v11470, %v11948
    %v11993 = vmul.f32 %v11639, %v11949
    %v11994 = vmul.f32 %v11808, %v11950
    %v11995 = vmul.f32 %v11304, %v11947
    %v11996 = vmul.f32 %v11473, %v11948
    %v11997 = vmul.f32 %v11642, %v11949
    %v11998 = vmul.f32 %v11811, %v11950
    %v11999 = vmul.f32 %v11306, %v11947
    %v12000 = vmul.f32 %v11475, %v11948
    %v12001 = vmul.f32 %v11644, %v11949
    %v12002 = vmul.f32 %v11813, %v11950
    %v12003 = vmul.f32 %v11309, %v11947
    %v12004 = vmul.f32 %v11478, %v11948
    %v12005 = vmul.f32 %v11647, %v11949
    %v12006 = vmul.f32 %v11816, %v11950
    %v12007 = vmul.f32 %v11311, %v11947
    %v12008 = vmul.f32 %v11480, %v11948
    %v12009 = vmul.f32 %v11649, %v11949
    %v12010 = vmul.f32 %v11818, %v11950
    %v12011 = vmul.f32 %v11314, %v11947
    %v12012 = vmul.f32 %v11483, %v11948
    %v12013 = vmul.f32 %v11652, %v11949
    %v12014 = vmul.f32 %v11821, %v11950
    %v12015 = vmul.f32 %v11316, %v11947
    %v12016 = vmul.f32 %v11485, %v11948
    %v12017 = vmul.f32 %v11654, %v11949
    %v12018 = vmul.f32 %v11823, %v11950
    %v12019 = vmul.f32 %v11319, %v11947
    %v12020 = vmul.f32 %v11488, %v11948
    %v12021 = vmul.f32 %v11657, %v11949
    %v12022 = vmul.f32 %v11826, %v11950
    %v12023 = vmul.f32 %v11321, %v11947
    %v12024 = vmul.f32 %v11490, %v11948
    %v12025 = vmul.f32 %v11659, %v11949
    %v12026 = vmul.f32 %v11828, %v11950
    %v12027 = vmul.f32 %v11324, %v11947
    %v12028 = vmul.f32 %v11493, %v11948
    %v12029 = vmul.f32 %v11662, %v11949
    %v12030 = vmul.f32 %v11831, %v11950
    %v12031 = vmul.f32 %v11326, %v11947
    %v12032 = vmul.f32 %v11495, %v11948
    %v12033 = vmul.f32 %v11664, %v11949
    %v12034 = vmul.f32 %v11833, %v11950
    %v12035 = vmul.f32 %v11329, %v11947
    %v12036 = vmul.f32 %v11498, %v11948
    %v12037 = vmul.f32 %v11667, %v11949
    %v12038 = vmul.f32 %v11836, %v11950
    %v12039 = vmul.f32 %v11331, %v11947
    %v12040 = vmul.f32 %v11500, %v11948
    %v12041 = vmul.f32 %v11669, %v11949
    %v12042 = vmul.f32 %v11838, %v11950
    %v12043 = vmul.f32 %v11334, %v11947
    %v12044 = vmul.f32 %v11503, %v11948
    %v12045 = vmul.f32 %v11672, %v11949
    %v12046 = vmul.f32 %v11841, %v11950
    %v12047 = vmul.f32 %v11336, %v11947
    %v12048 = vmul.f32 %v11505, %v11948
    %v12049 = vmul.f32 %v11674, %v11949
    %v12050 = vmul.f32 %v11843, %v11950
    %v12051 = vmul.f32 %v11339, %v11947
    %v12052 = vmul.f32 %v11508, %v11948
    %v12053 = vmul.f32 %v11677, %v11949
    %v12054 = vmul.f32 %v11846, %v11950
    %v12055 = vmul.f32 %v11341, %v11947
    %v12056 = vmul.f32 %v11510, %v11948
    %v12057 = vmul.f32 %v11679, %v11949
    %v12058 = vmul.f32 %v11848, %v11950
    %v12059 = vmul.f32 %v11344, %v11947
    %v12060 = vmul.f32 %v11513, %v11948
    %v12061 = vmul.f32 %v11682, %v11949
    %v12062 = vmul.f32 %v11851, %v11950
    %v12063 = vmul.f32 %v11346, %v11947
    %v12064 = vmul.f32 %v11515, %v11948
    %v12065 = vmul.f32 %v11684, %v11949
    %v12066 = vmul.f32 %v11853, %v11950
    %v12067 = vmul.f32 %v11349, %v11947
    %v12068 = vmul.f32 %v11518, %v11948
    %v12069 = vmul.f32 %v11687, %v11949
    %v12070 = vmul.f32 %v11856, %v11950
    %v12071 = vmul.f32 %v11351, %v11947
    %v12072 = vmul.f32 %v11520, %v11948
    %v12073 = vmul.f32 %v11689, %v11949
    %v12074 = vmul.f32 %v11858, %v11950
    %v12075 = vmul.f32 %v11354, %v11947
    %v12076 = vmul.f32 %v11523, %v11948
    %v12077 = vmul.f32 %v11692, %v11949
    %v12078 = vmul.f32 %v11861, %v11950
    %v12079 = vmul.f32 %v11356, %v11947
    %v12080 = vmul.f32 %v11525, %v11948
    %v12081 = vmul.f32 %v11694, %v11949
    %v12082 = vmul.f32 %v11863, %v11950
    %v12083 = vmul.f32 %v11359, %v11947
    %v12084 = vmul.f32 %v11528, %v11948
    %v12085 = vmul.f32 %v11697, %v11949
    %v12086 = vmul.f32 %v11866, %v11950
    %v12087 = vmul.f32 %v11361, %v11947
    %v12088 = vmul.f32 %v11530, %v11948
    %v12089 = vmul.f32 %v11699, %v11949
    %v12090 = vmul.f32 %v11868, %v11950
    %v12091 = vmul.f32 %v11364, %v11947
    %v12092 = vmul.f32 %v11533, %v11948
    %v12093 = vmul.f32 %v11702, %v11949
    %v12094 = vmul.f32 %v11871, %v11950
    %v12095 = vmul.f32 %v11366, %v11947
    %v12096 = vmul.f32 %v11535, %v11948
    %v12097 = vmul.f32 %v11704, %v11949
    %v12098 = vmul.f32 %v11873, %v11950
    %v12099 = vmul.f32 %v11369, %v11947
    %v12100 = vmul.f32 %v11538, %v11948
    %v12101 = vmul.f32 %v11707, %v11949
    %v12102 = vmul.f32 %v11876, %v11950
    %v12103 = vmul.f32 %v11371, %v11947
    %v12104 = vmul.f32 %v11540, %v11948
    %v12105 = vmul.f32 %v11709, %v11949
    %v12106 = vmul.f32 %v11878, %v11950
    %v12107 = vmul.f32 %v11374, %v11947
    %v12108 = vmul.f32 %v11543, %v11948
    %v12109 = vmul.f32 %v11712, %v11949
    %v12110 = vmul.f32 %v11881, %v11950
    %v12111 = vmul.f32 %v11376, %v11947
    %v12112 = vmul.f32 %v11545, %v11948
    %v12113 = vmul.f32 %v11714, %v11949
    %v12114 = vmul.f32 %v11883, %v11950
    %v12115 = vmul.f32 %v11379, %v11947
    %v12116 = vmul.f32 %v11548, %v11948
    %v12117 = vmul.f32 %v11717, %v11949
    %v12118 = vmul.f32 %v11886, %v11950
    %v12119 = vmul.f32 %v11381, %v11947
    %v12120 = vmul.f32 %v11550, %v11948
    %v12121 = vmul.f32 %v11719, %v11949
    %v12122 = vmul.f32 %v11888, %v11950
    %v12123 = vmul.f32 %v11384, %v11947
    %v12124 = vmul.f32 %v11553, %v11948
    %v12125 = vmul.f32 %v11722, %v11949
    %v12126 = vmul.f32 %v11891, %v11950
    %v12127 = vmul.f32 %v11386, %v11947
    %v12128 = vmul.f32 %v11555, %v11948
    %v12129 = vmul.f32 %v11724, %v11949
    %v12130 = vmul.f32 %v11893, %v11950
    %v12131 = vmul.f32 %v11389, %v11947
    %v12132 = vmul.f32 %v11558, %v11948
    %v12133 = vmul.f32 %v11727, %v11949
    %v12134 = vmul.f32 %v11896, %v11950
    %v12135 = vmul.f32 %v11391, %v11947
    %v12136 = vmul.f32 %v11560, %v11948
    %v12137 = vmul.f32 %v11729, %v11949
    %v12138 = vmul.f32 %v11898, %v11950
    %v12139 = vmul.f32 %v11394, %v11947
    %v12140 = vmul.f32 %v11563, %v11948
    %v12141 = vmul.f32 %v11732, %v11949
    %v12142 = vmul.f32 %v11901, %v11950
    %v12143 = vmul.f32 %v11396, %v11947
    %v12144 = vmul.f32 %v11565, %v11948
    %v12145 = vmul.f32 %v11734, %v11949
    %v12146 = vmul.f32 %v11903, %v11950
    %v12147 = vmul.f32 %v11399, %v11947
    %v12148 = vmul.f32 %v11568, %v11948
    %v12149 = vmul.f32 %v11737, %v11949
    %v12150 = vmul.f32 %v11906, %v11950
    %v12151 = vmul.f32 %v11401, %v11947
    %v12152 = vmul.f32 %v11570, %v11948
    %v12153 = vmul.f32 %v11739, %v11949
    %v12154 = vmul.f32 %v11908, %v11950
    %v12155 = vmul.f32 %v11404, %v11947
    %v12156 = vmul.f32 %v11573, %v11948
    %v12157 = vmul.f32 %v11742, %v11949
    %v12158 = vmul.f32 %v11911, %v11950
    %v12159 = vmul.f32 %v11406, %v11947
    %v12160 = vmul.f32 %v11575, %v11948
    %v12161 = vmul.f32 %v11744, %v11949
    %v12162 = vmul.f32 %v11913, %v11950
    %v12163 = vmul.f32 %v11409, %v11947
    %v12164 = vmul.f32 %v11578, %v11948
    %v12165 = vmul.f32 %v11747, %v11949
    %v12166 = vmul.f32 %v11916, %v11950
    %v12167 = vmul.f32 %v11411, %v11947
    %v12168 = vmul.f32 %v11580, %v11948
    %v12169 = vmul.f32 %v11749, %v11949
    %v12170 = vmul.f32 %v11918, %v11950
    %v12171 = vmul.f32 %v11414, %v11947
    %v12172 = vmul.f32 %v11583, %v11948
    %v12173 = vmul.f32 %v11752, %v11949
    %v12174 = vmul.f32 %v11921, %v11950
    %v12175 = vmul.f32 %v11416, %v11947
    %v12176 = vmul.f32 %v11585, %v11948
    %v12177 = vmul.f32 %v11754, %v11949
    %v12178 = vmul.f32 %v11923, %v11950
    %v12179 = vmul.f32 %v11419, %v11947
    %v12180 = vmul.f32 %v11588, %v11948
    %v12181 = vmul.f32 %v11757, %v11949
    %v12182 = vmul.f32 %v11926, %v11950
    %v12183 = vmul.f32 %v11421, %v11947
    %v12184 = vmul.f32 %v11590, %v11948
    %v12185 = vmul.f32 %v11759, %v11949
    %v12186 = vmul.f32 %v11928, %v11950
    %v12187 = vmul.f32 %v11424, %v11947
    %v12188 = vmul.f32 %v11593, %v11948
    %v12189 = vmul.f32 %v11762, %v11949
    %v12190 = vmul.f32 %v11931, %v11950
    %v12191 = vmul.f32 %v11426, %v11947
    %v12192 = vmul.f32 %v11595, %v11948
    %v12193 = vmul.f32 %v11764, %v11949
    %v12194 = vmul.f32 %v11933, %v11950
    %v12195 = vmul.f32 %v11429, %v11947
    %v12196 = vmul.f32 %v11598, %v11948
    %v12197 = vmul.f32 %v11767, %v11949
    %v12198 = vmul.f32 %v11936, %v11950
    %v12199 = vmul.f32 %v11431, %v11947
    %v12200 = vmul.f32 %v11600, %v11948
    %v12201 = vmul.f32 %v11769, %v11949
    %v12202 = vmul.f32 %v11938, %v11950
    %v12203 = vmul.f32 %v11434, %v11947
    %v12204 = vmul.f32 %v11603, %v11948
    %v12205 = vmul.f32 %v11772, %v11949
    %v12206 = vmul.f32 %v11941, %v11950
    %v12207 = vmul.f32 %v11436, %v11947
    %v12208 = vmul.f32 %v11605, %v11948
    %v12209 = vmul.f32 %v11774, %v11949
    %v12210 = vmul.f32 %v11943, %v11950
    %v12211 = vld [vmem:[%s9] sm:$0xf]
    %v12213 = vperm.slane %v12211, 0
    %v12214 = vperm.slane %v12211, 1
    %v12215 = vperm.slane %v12211, 2
    %v12216 = vperm.slane %v12211, 3
    %v12221 = vadd.f32 %v11955, %v12213
    %v12222 = vadd.f32 %v11956, %v12214
    %v12223 = vadd.f32 %v11957, %v12215
    %v12224 = vadd.f32 %v11958, %v12216
    %v12225 = vadd.f32 %v11959, %v12213
    %v12226 = vadd.f32 %v11960, %v12214
    %v12227 = vadd.f32 %v11961, %v12215
    %v12228 = vadd.f32 %v11962, %v12216
    %v12229 = vadd.f32 %v11963, %v12213
    %v12230 = vadd.f32 %v11964, %v12214
    %v12231 = vadd.f32 %v11965, %v12215
    %v12232 = vadd.f32 %v11966, %v12216
    %v12233 = vadd.f32 %v11967, %v12213
    %v12234 = vadd.f32 %v11968, %v12214
    %v12235 = vadd.f32 %v11969, %v12215
    %v12236 = vadd.f32 %v11970, %v12216
    %v12237 = vadd.f32 %v11971, %v12213
    %v12238 = vadd.f32 %v11972, %v12214
    %v12239 = vadd.f32 %v11973, %v12215
    %v12240 = vadd.f32 %v11974, %v12216
    %v12241 = vadd.f32 %v11975, %v12213
    %v12242 = vadd.f32 %v11976, %v12214
    %v12243 = vadd.f32 %v11977, %v12215
    %v12244 = vadd.f32 %v11978, %v12216
    %v12245 = vadd.f32 %v11979, %v12213
    %v12246 = vadd.f32 %v11980, %v12214
    %v12247 = vadd.f32 %v11981, %v12215
    %v12248 = vadd.f32 %v11982, %v12216
    %v12249 = vadd.f32 %v11983, %v12213
    %v12250 = vadd.f32 %v11984, %v12214
    %v12251 = vadd.f32 %v11985, %v12215
    %v12252 = vadd.f32 %v11986, %v12216
    %v12253 = vadd.f32 %v11987, %v12213
    %v12254 = vadd.f32 %v11988, %v12214
    %v12255 = vadd.f32 %v11989, %v12215
    %v12256 = vadd.f32 %v11990, %v12216
    %v12257 = vadd.f32 %v11991, %v12213
    %v12258 = vadd.f32 %v11992, %v12214
    %v12259 = vadd.f32 %v11993, %v12215
    %v12260 = vadd.f32 %v11994, %v12216
    %v12261 = vadd.f32 %v11995, %v12213
    %v12262 = vadd.f32 %v11996, %v12214
    %v12263 = vadd.f32 %v11997, %v12215
    %v12264 = vadd.f32 %v11998, %v12216
    %v12265 = vadd.f32 %v11999, %v12213
    %v12266 = vadd.f32 %v12000, %v12214
    %v12267 = vadd.f32 %v12001, %v12215
    %v12268 = vadd.f32 %v12002, %v12216
    %v12269 = vadd.f32 %v12003, %v12213
    %v12270 = vadd.f32 %v12004, %v12214
    %v12271 = vadd.f32 %v12005, %v12215
    %v12272 = vadd.f32 %v12006, %v12216
    %v12273 = vadd.f32 %v12007, %v12213
    %v12274 = vadd.f32 %v12008, %v12214
    %v12275 = vadd.f32 %v12009, %v12215
    %v12276 = vadd.f32 %v12010, %v12216
    %v12277 = vadd.f32 %v12011, %v12213
    %v12278 = vadd.f32 %v12012, %v12214
    %v12279 = vadd.f32 %v12013, %v12215
    %v12280 = vadd.f32 %v12014, %v12216
    %v12281 = vadd.f32 %v12015, %v12213
    %v12282 = vadd.f32 %v12016, %v12214
    %v12283 = vadd.f32 %v12017, %v12215
    %v12284 = vadd.f32 %v12018, %v12216
    %v12285 = vadd.f32 %v12019, %v12213
    %v12286 = vadd.f32 %v12020, %v12214
    %v12287 = vadd.f32 %v12021, %v12215
    %v12288 = vadd.f32 %v12022, %v12216
    %v12289 = vadd.f32 %v12023, %v12213
    %v12290 = vadd.f32 %v12024, %v12214
    %v12291 = vadd.f32 %v12025, %v12215
    %v12292 = vadd.f32 %v12026, %v12216
    %v12293 = vadd.f32 %v12027, %v12213
    %v12294 = vadd.f32 %v12028, %v12214
    %v12295 = vadd.f32 %v12029, %v12215
    %v12296 = vadd.f32 %v12030, %v12216
    %v12297 = vadd.f32 %v12031, %v12213
    %v12298 = vadd.f32 %v12032, %v12214
    %v12299 = vadd.f32 %v12033, %v12215
    %v12300 = vadd.f32 %v12034, %v12216
    %v12301 = vadd.f32 %v12035, %v12213
    %v12302 = vadd.f32 %v12036, %v12214
    %v12303 = vadd.f32 %v12037, %v12215
    %v12304 = vadd.f32 %v12038, %v12216
    %v12305 = vadd.f32 %v12039, %v12213
    %v12306 = vadd.f32 %v12040, %v12214
    %v12307 = vadd.f32 %v12041, %v12215
    %v12308 = vadd.f32 %v12042, %v12216
    %v12309 = vadd.f32 %v12043, %v12213
    %v12310 = vadd.f32 %v12044, %v12214
    %v12311 = vadd.f32 %v12045, %v12215
    %v12312 = vadd.f32 %v12046, %v12216
    %v12313 = vadd.f32 %v12047, %v12213
    %v12314 = vadd.f32 %v12048, %v12214
    %v12315 = vadd.f32 %v12049, %v12215
    %v12316 = vadd.f32 %v12050, %v12216
    %v12317 = vadd.f32 %v12051, %v12213
    %v12318 = vadd.f32 %v12052, %v12214
    %v12319 = vadd.f32 %v12053, %v12215
    %v12320 = vadd.f32 %v12054, %v12216
    %v12321 = vadd.f32 %v12055, %v12213
    %v12322 = vadd.f32 %v12056, %v12214
    %v12323 = vadd.f32 %v12057, %v12215
    %v12324 = vadd.f32 %v12058, %v12216
    %v12325 = vadd.f32 %v12059, %v12213
    %v12326 = vadd.f32 %v12060, %v12214
    %v12327 = vadd.f32 %v12061, %v12215
    %v12328 = vadd.f32 %v12062, %v12216
    %v12329 = vadd.f32 %v12063, %v12213
    %v12330 = vadd.f32 %v12064, %v12214
    %v12331 = vadd.f32 %v12065, %v12215
    %v12332 = vadd.f32 %v12066, %v12216
    %v12333 = vadd.f32 %v12067, %v12213
    %v12334 = vadd.f32 %v12068, %v12214
    %v12335 = vadd.f32 %v12069, %v12215
    %v12336 = vadd.f32 %v12070, %v12216
    %v12337 = vadd.f32 %v12071, %v12213
    %v12338 = vadd.f32 %v12072, %v12214
    %v12339 = vadd.f32 %v12073, %v12215
    %v12340 = vadd.f32 %v12074, %v12216
    %v12341 = vadd.f32 %v12075, %v12213
    %v12342 = vadd.f32 %v12076, %v12214
    %v12343 = vadd.f32 %v12077, %v12215
    %v12344 = vadd.f32 %v12078, %v12216
    %v12345 = vadd.f32 %v12079, %v12213
    %v12346 = vadd.f32 %v12080, %v12214
    %v12347 = vadd.f32 %v12081, %v12215
    %v12348 = vadd.f32 %v12082, %v12216
    %v12349 = vadd.f32 %v12083, %v12213
    %v12350 = vadd.f32 %v12084, %v12214
    %v12351 = vadd.f32 %v12085, %v12215
    %v12352 = vadd.f32 %v12086, %v12216
    %v12353 = vadd.f32 %v12087, %v12213
    %v12354 = vadd.f32 %v12088, %v12214
    %v12355 = vadd.f32 %v12089, %v12215
    %v12356 = vadd.f32 %v12090, %v12216
    %v12357 = vadd.f32 %v12091, %v12213
    %v12358 = vadd.f32 %v12092, %v12214
    %v12359 = vadd.f32 %v12093, %v12215
    %v12360 = vadd.f32 %v12094, %v12216
    %v12361 = vadd.f32 %v12095, %v12213
    %v12362 = vadd.f32 %v12096, %v12214
    %v12363 = vadd.f32 %v12097, %v12215
    %v12364 = vadd.f32 %v12098, %v12216
    %v12365 = vadd.f32 %v12099, %v12213
    %v12366 = vadd.f32 %v12100, %v12214
    %v12367 = vadd.f32 %v12101, %v12215
    %v12368 = vadd.f32 %v12102, %v12216
    %v12369 = vadd.f32 %v12103, %v12213
    %v12370 = vadd.f32 %v12104, %v12214
    %v12371 = vadd.f32 %v12105, %v12215
    %v12372 = vadd.f32 %v12106, %v12216
    %v12373 = vadd.f32 %v12107, %v12213
    %v12374 = vadd.f32 %v12108, %v12214
    %v12375 = vadd.f32 %v12109, %v12215
    %v12376 = vadd.f32 %v12110, %v12216
    %v12377 = vadd.f32 %v12111, %v12213
    %v12378 = vadd.f32 %v12112, %v12214
    %v12379 = vadd.f32 %v12113, %v12215
    %v12380 = vadd.f32 %v12114, %v12216
    %v12381 = vadd.f32 %v12115, %v12213
    %v12382 = vadd.f32 %v12116, %v12214
    %v12383 = vadd.f32 %v12117, %v12215
    %v12384 = vadd.f32 %v12118, %v12216
    %v12385 = vadd.f32 %v12119, %v12213
    %v12386 = vadd.f32 %v12120, %v12214
    %v12387 = vadd.f32 %v12121, %v12215
    %v12388 = vadd.f32 %v12122, %v12216
    %v12389 = vadd.f32 %v12123, %v12213
    %v12390 = vadd.f32 %v12124, %v12214
    %v12391 = vadd.f32 %v12125, %v12215
    %v12392 = vadd.f32 %v12126, %v12216
    %v12393 = vadd.f32 %v12127, %v12213
    %v12394 = vadd.f32 %v12128, %v12214
    %v12395 = vadd.f32 %v12129, %v12215
    %v12396 = vadd.f32 %v12130, %v12216
    %v12397 = vadd.f32 %v12131, %v12213
    %v12398 = vadd.f32 %v12132, %v12214
    %v12399 = vadd.f32 %v12133, %v12215
    %v12400 = vadd.f32 %v12134, %v12216
    %v12401 = vadd.f32 %v12135, %v12213
    %v12402 = vadd.f32 %v12136, %v12214
    %v12403 = vadd.f32 %v12137, %v12215
    %v12404 = vadd.f32 %v12138, %v12216
    %v12405 = vadd.f32 %v12139, %v12213
    %v12406 = vadd.f32 %v12140, %v12214
    %v12407 = vadd.f32 %v12141, %v12215
    %v12408 = vadd.f32 %v12142, %v12216
    %v12409 = vadd.f32 %v12143, %v12213
    %v12410 = vadd.f32 %v12144, %v12214
    %v12411 = vadd.f32 %v12145, %v12215
    %v12412 = vadd.f32 %v12146, %v12216
    %v12413 = vadd.f32 %v12147, %v12213
    %v12414 = vadd.f32 %v12148, %v12214
    %v12415 = vadd.f32 %v12149, %v12215
    %v12416 = vadd.f32 %v12150, %v12216
    %v12417 = vadd.f32 %v12151, %v12213
    %v12418 = vadd.f32 %v12152, %v12214
    %v12419 = vadd.f32 %v12153, %v12215
    %v12420 = vadd.f32 %v12154, %v12216
    %v12421 = vadd.f32 %v12155, %v12213
    %v12422 = vadd.f32 %v12156, %v12214
    %v12423 = vadd.f32 %v12157, %v12215
    %v12424 = vadd.f32 %v12158, %v12216
    %v12425 = vadd.f32 %v12159, %v12213
    %v12426 = vadd.f32 %v12160, %v12214
    %v12427 = vadd.f32 %v12161, %v12215
    %v12428 = vadd.f32 %v12162, %v12216
    %v12429 = vadd.f32 %v12163, %v12213
    %v12430 = vadd.f32 %v12164, %v12214
    %v12431 = vadd.f32 %v12165, %v12215
    %v12432 = vadd.f32 %v12166, %v12216
    %v12433 = vadd.f32 %v12167, %v12213
    %v12434 = vadd.f32 %v12168, %v12214
    %v12435 = vadd.f32 %v12169, %v12215
    %v12436 = vadd.f32 %v12170, %v12216
    %v12437 = vadd.f32 %v12171, %v12213
    %v12438 = vadd.f32 %v12172, %v12214
    %v12439 = vadd.f32 %v12173, %v12215
    %v12440 = vadd.f32 %v12174, %v12216
    %v12441 = vadd.f32 %v12175, %v12213
    %v12442 = vadd.f32 %v12176, %v12214
    %v12443 = vadd.f32 %v12177, %v12215
    %v12444 = vadd.f32 %v12178, %v12216
    %v12445 = vadd.f32 %v12179, %v12213
    %v12446 = vadd.f32 %v12180, %v12214
    %v12447 = vadd.f32 %v12181, %v12215
    %v12448 = vadd.f32 %v12182, %v12216
    %v12449 = vadd.f32 %v12183, %v12213
    %v12450 = vadd.f32 %v12184, %v12214
    %v12451 = vadd.f32 %v12185, %v12215
    %v12452 = vadd.f32 %v12186, %v12216
    %v12453 = vadd.f32 %v12187, %v12213
    %v12454 = vadd.f32 %v12188, %v12214
    %v12455 = vadd.f32 %v12189, %v12215
    %v12456 = vadd.f32 %v12190, %v12216
    %v12457 = vadd.f32 %v12191, %v12213
    %v12458 = vadd.f32 %v12192, %v12214
    %v12459 = vadd.f32 %v12193, %v12215
    %v12460 = vadd.f32 %v12194, %v12216
    %v12461 = vadd.f32 %v12195, %v12213
    %v12462 = vadd.f32 %v12196, %v12214
    %v12463 = vadd.f32 %v12197, %v12215
    %v12464 = vadd.f32 %v12198, %v12216
    %v12465 = vadd.f32 %v12199, %v12213
    %v12466 = vadd.f32 %v12200, %v12214
    %v12467 = vadd.f32 %v12201, %v12215
    %v12468 = vadd.f32 %v12202, %v12216
    %v12469 = vadd.f32 %v12203, %v12213
    %v12470 = vadd.f32 %v12204, %v12214
    %v12471 = vadd.f32 %v12205, %v12215
    %v12472 = vadd.f32 %v12206, %v12216
    %v12473 = vadd.f32 %v12207, %v12213
    %v12474 = vadd.f32 %v12208, %v12214
    %v12475 = vadd.f32 %v12209, %v12215
    %v12476 = vadd.f32 %v12210, %v12216
    %v12477 = vld [vmem:[#allocation3] sm:$0xff]
    %v12478 = vld [vmem:[#allocation3 + $0x8] sm:$0xff]
    %v12479 = vld [vmem:[#allocation3 + $0x10] sm:$0xff]
    %v12480 = vld [vmem:[#allocation3 + $0x18] sm:$0xff]
    %v12481 = vld [vmem:[#allocation3 + $0x20] sm:$0xff]
    %v12482 = vld [vmem:[#allocation3 + $0x28] sm:$0xff]
    %v12483 = vld [vmem:[#allocation3 + $0x30] sm:$0xff]
    %v12484 = vld [vmem:[#allocation3 + $0x38] sm:$0xff]
    %v12485 = vld [vmem:[#allocation3 + $0x40] sm:$0xff]
    %v12486 = vld [vmem:[#allocation3 + $0x48] sm:$0xff]
    %v12487 = vld [vmem:[#allocation3 + $0x50] sm:$0xff]
    %v12488 = vld [vmem:[#allocation3 + $0x58] sm:$0xff]
    %v12489 = vld [vmem:[#allocation3 + $0x60] sm:$0xff]
    %v12490 = vld [vmem:[#allocation3 + $0x68] sm:$0xff]
    %v12491 = vld [vmem:[#allocation3 + $0x70] sm:$0xff]
    %v12492 = vld [vmem:[#allocation3 + $0x78] sm:$0xff]
    %v12493 = vld [vmem:[#allocation3 + $0x80] sm:$0xff]
    %v12494 = vld [vmem:[#allocation3 + $0x88] sm:$0xff]
    %v12495 = vld [vmem:[#allocation3 + $0x90] sm:$0xff]
    %v12496 = vld [vmem:[#allocation3 + $0x98] sm:$0xff]
    %v12497 = vld [vmem:[#allocation3 + $0xa0] sm:$0xff]
    %v12498 = vld [vmem:[#allocation3 + $0xa8] sm:$0xff]
    %v12499 = vld [vmem:[#allocation3 + $0xb0] sm:$0xff]
    %v12500 = vld [vmem:[#allocation3 + $0xb8] sm:$0xff]
    %v12501 = vld [vmem:[#allocation3 + $0xc0] sm:$0xff]
    %v12502 = vld [vmem:[#allocation3 + $0xc8] sm:$0xff]
    %v12503 = vld [vmem:[#allocation3 + $0xd0] sm:$0xff]
    %v12504 = vld [vmem:[#allocation3 + $0xd8] sm:$0xff]
    %v12505 = vld [vmem:[#allocation3 + $0xe0] sm:$0xff]
    %v12506 = vld [vmem:[#allocation3 + $0xe8] sm:$0xff]
    %v12507 = vld [vmem:[#allocation3 + $0xf0] sm:$0xff]
    %v12508 = vld [vmem:[#allocation3 + $0xf8] sm:$0xff]
    %v12509 = vld [vmem:[#allocation3 + $0x100] sm:$0xff]
    %v12510 = vld [vmem:[#allocation3 + $0x108] sm:$0xff]
    %v12511 = vld [vmem:[#allocation3 + $0x110] sm:$0xff]
    %v12512 = vld [vmem:[#allocation3 + $0x118] sm:$0xff]
    %v12513 = vld [vmem:[#allocation3 + $0x120] sm:$0xff]
    %v12514 = vld [vmem:[#allocation3 + $0x128] sm:$0xff]
    %v12515 = vld [vmem:[#allocation3 + $0x130] sm:$0xff]
    %v12516 = vld [vmem:[#allocation3 + $0x138] sm:$0xff]
    %v12517 = vld [vmem:[#allocation3 + $0x140] sm:$0xff]
    %v12518 = vld [vmem:[#allocation3 + $0x148] sm:$0xff]
    %v12519 = vld [vmem:[#allocation3 + $0x150] sm:$0xff]
    %v12520 = vld [vmem:[#allocation3 + $0x158] sm:$0xff]
    %v12521 = vld [vmem:[#allocation3 + $0x160] sm:$0xff]
    %v12522 = vld [vmem:[#allocation3 + $0x168] sm:$0xff]
    %v12523 = vld [vmem:[#allocation3 + $0x170] sm:$0xff]
    %v12524 = vld [vmem:[#allocation3 + $0x178] sm:$0xff]
    %v12525 = vld [vmem:[#allocation3 + $0x180] sm:$0xff]
    %v12526 = vld [vmem:[#allocation3 + $0x188] sm:$0xff]
    %v12527 = vld [vmem:[#allocation3 + $0x190] sm:$0xff]
    %v12528 = vld [vmem:[#allocation3 + $0x198] sm:$0xff]
    %v12529 = vld [vmem:[#allocation3 + $0x1a0] sm:$0xff]
    %v12530 = vld [vmem:[#allocation3 + $0x1a8] sm:$0xff]
    %v12531 = vld [vmem:[#allocation3 + $0x1b0] sm:$0xff]
    %v12532 = vld [vmem:[#allocation3 + $0x1b8] sm:$0xff]
    %v12533 = vld [vmem:[#allocation3 + $0x1c0] sm:$0xff]
    %v12534 = vld [vmem:[#allocation3 + $0x1c8] sm:$0xff]
    %v12535 = vld [vmem:[#allocation3 + $0x1d0] sm:$0xff]
    %v12536 = vld [vmem:[#allocation3 + $0x1d8] sm:$0xff]
    %v12537 = vld [vmem:[#allocation3 + $0x1e0] sm:$0xff]
    %v12538 = vld [vmem:[#allocation3 + $0x1e8] sm:$0xff]
    %v12539 = vld [vmem:[#allocation3 + $0x1f0] sm:$0xff]
    %v12540 = vld [vmem:[#allocation3 + $0x1f8] sm:$0xff]
    %v12541 = vld [vmem:[#allocation3 + $0x200] sm:$0xff]
    %v12542 = vld [vmem:[#allocation3 + $0x208] sm:$0xff]
    %v12543 = vld [vmem:[#allocation3 + $0x210] sm:$0xff]
    %v12544 = vld [vmem:[#allocation3 + $0x218] sm:$0xff]
    %v12545 = vld [vmem:[#allocation3 + $0x220] sm:$0xff]
    %v12546 = vld [vmem:[#allocation3 + $0x228] sm:$0xff]
    %v12547 = vld [vmem:[#allocation3 + $0x230] sm:$0xff]
    %v12548 = vld [vmem:[#allocation3 + $0x238] sm:$0xff]
    %v12549 = vld [vmem:[#allocation3 + $0x240] sm:$0xff]
    %v12550 = vld [vmem:[#allocation3 + $0x248] sm:$0xff]
    %v12551 = vld [vmem:[#allocation3 + $0x250] sm:$0xff]
    %v12552 = vld [vmem:[#allocation3 + $0x258] sm:$0xff]
    %v12553 = vld [vmem:[#allocation3 + $0x260] sm:$0xff]
    %v12554 = vld [vmem:[#allocation3 + $0x268] sm:$0xff]
    %v12555 = vld [vmem:[#allocation3 + $0x270] sm:$0xff]
    %v12556 = vld [vmem:[#allocation3 + $0x278] sm:$0xff]
    %v12557 = vld [vmem:[#allocation3 + $0x280] sm:$0xff]
    %v12558 = vld [vmem:[#allocation3 + $0x288] sm:$0xff]
    %v12559 = vld [vmem:[#allocation3 + $0x290] sm:$0xff]
    %v12560 = vld [vmem:[#allocation3 + $0x298] sm:$0xff]
    %v12561 = vld [vmem:[#allocation3 + $0x2a0] sm:$0xff]
    %v12562 = vld [vmem:[#allocation3 + $0x2a8] sm:$0xff]
    %v12563 = vld [vmem:[#allocation3 + $0x2b0] sm:$0xff]
    %v12564 = vld [vmem:[#allocation3 + $0x2b8] sm:$0xff]
    %v12565 = vld [vmem:[#allocation3 + $0x2c0] sm:$0xff]
    %v12566 = vld [vmem:[#allocation3 + $0x2c8] sm:$0xff]
    %v12567 = vld [vmem:[#allocation3 + $0x2d0] sm:$0xff]
    %v12568 = vld [vmem:[#allocation3 + $0x2d8] sm:$0xff]
    %v12569 = vld [vmem:[#allocation3 + $0x2e0] sm:$0xff]
    %v12570 = vld [vmem:[#allocation3 + $0x2e8] sm:$0xff]
    %v12571 = vld [vmem:[#allocation3 + $0x2f0] sm:$0xff]
    %v12572 = vld [vmem:[#allocation3 + $0x2f8] sm:$0xff]
    %v12573 = vld [vmem:[#allocation3 + $0x300] sm:$0xff]
    %v12574 = vld [vmem:[#allocation3 + $0x308] sm:$0xff]
    %v12575 = vld [vmem:[#allocation3 + $0x310] sm:$0xff]
    %v12576 = vld [vmem:[#allocation3 + $0x318] sm:$0xff]
    %v12577 = vld [vmem:[#allocation3 + $0x320] sm:$0xff]
    %v12578 = vld [vmem:[#allocation3 + $0x328] sm:$0xff]
    %v12579 = vld [vmem:[#allocation3 + $0x330] sm:$0xff]
    %v12580 = vld [vmem:[#allocation3 + $0x338] sm:$0xff]
    %v12581 = vld [vmem:[#allocation3 + $0x340] sm:$0xff]
    %v12582 = vld [vmem:[#allocation3 + $0x348] sm:$0xff]
    %v12583 = vld [vmem:[#allocation3 + $0x350] sm:$0xff]
    %v12584 = vld [vmem:[#allocation3 + $0x358] sm:$0xff]
    %v12585 = vld [vmem:[#allocation3 + $0x360] sm:$0xff]
    %v12586 = vld [vmem:[#allocation3 + $0x368] sm:$0xff]
    %v12587 = vld [vmem:[#allocation3 + $0x370] sm:$0xff]
    %v12588 = vld [vmem:[#allocation3 + $0x378] sm:$0xff]
    %v12589 = vld [vmem:[#allocation3 + $0x380] sm:$0xff]
    %v12590 = vld [vmem:[#allocation3 + $0x388] sm:$0xff]
    %v12591 = vld [vmem:[#allocation3 + $0x390] sm:$0xff]
    %v12592 = vld [vmem:[#allocation3 + $0x398] sm:$0xff]
    %v12593 = vld [vmem:[#allocation3 + $0x3a0] sm:$0xff]
    %v12594 = vld [vmem:[#allocation3 + $0x3a8] sm:$0xff]
    %v12595 = vld [vmem:[#allocation3 + $0x3b0] sm:$0xff]
    %v12596 = vld [vmem:[#allocation3 + $0x3b8] sm:$0xff]
    %v12597 = vld [vmem:[#allocation3 + $0x3c0] sm:$0xff]
    %v12598 = vld [vmem:[#allocation3 + $0x3c8] sm:$0xff]
    %v12599 = vld [vmem:[#allocation3 + $0x3d0] sm:$0xff]
    %v12600 = vld [vmem:[#allocation3 + $0x3d8] sm:$0xff]
    %v12601 = vld [vmem:[#allocation3 + $0x3e0] sm:$0xff]
    %v12602 = vld [vmem:[#allocation3 + $0x3e8] sm:$0xff]
    %v12603 = vld [vmem:[#allocation3 + $0x3f0] sm:$0xff]
    %v12604 = vld [vmem:[#allocation3 + $0x3f8] sm:$0xff]
    %v12605 = vunpack.c.l.bf16 %v12477
    %v12606 = vunpack.c.h.bf16 %v12477
    %v12607 = vunpack.c.l.bf16 %v12478
    %v12608 = vunpack.c.h.bf16 %v12478
    %v12609 = vunpack.c.l.bf16 %v12479
    %v12610 = vunpack.c.h.bf16 %v12479
    %v12611 = vunpack.c.l.bf16 %v12480
    %v12612 = vunpack.c.h.bf16 %v12480
    %v12613 = vunpack.c.l.bf16 %v12481
    %v12614 = vunpack.c.h.bf16 %v12481
    %v12615 = vunpack.c.l.bf16 %v12482
    %v12616 = vunpack.c.h.bf16 %v12482
    %v12617 = vunpack.c.l.bf16 %v12483
    %v12618 = vunpack.c.h.bf16 %v12483
    %v12619 = vunpack.c.l.bf16 %v12484
    %v12620 = vunpack.c.h.bf16 %v12484
    %v12621 = vunpack.c.l.bf16 %v12485
    %v12622 = vunpack.c.h.bf16 %v12485
    %v12623 = vunpack.c.l.bf16 %v12486
    %v12624 = vunpack.c.h.bf16 %v12486
    %v12625 = vunpack.c.l.bf16 %v12487
    %v12626 = vunpack.c.h.bf16 %v12487
    %v12627 = vunpack.c.l.bf16 %v12488
    %v12628 = vunpack.c.h.bf16 %v12488
    %v12629 = vunpack.c.l.bf16 %v12489
    %v12630 = vunpack.c.h.bf16 %v12489
    %v12631 = vunpack.c.l.bf16 %v12490
    %v12632 = vunpack.c.h.bf16 %v12490
    %v12633 = vunpack.c.l.bf16 %v12491
    %v12634 = vunpack.c.h.bf16 %v12491
    %v12635 = vunpack.c.l.bf16 %v12492
    %v12636 = vunpack.c.h.bf16 %v12492
    %v12637 = vunpack.c.l.bf16 %v12493
    %v12638 = vunpack.c.h.bf16 %v12493
    %v12639 = vunpack.c.l.bf16 %v12494
    %v12640 = vunpack.c.h.bf16 %v12494
    %v12641 = vunpack.c.l.bf16 %v12495
    %v12642 = vunpack.c.h.bf16 %v12495
    %v12643 = vunpack.c.l.bf16 %v12496
    %v12644 = vunpack.c.h.bf16 %v12496
    %v12645 = vunpack.c.l.bf16 %v12497
    %v12646 = vunpack.c.h.bf16 %v12497
    %v12647 = vunpack.c.l.bf16 %v12498
    %v12648 = vunpack.c.h.bf16 %v12498
    %v12649 = vunpack.c.l.bf16 %v12499
    %v12650 = vunpack.c.h.bf16 %v12499
    %v12651 = vunpack.c.l.bf16 %v12500
    %v12652 = vunpack.c.h.bf16 %v12500
    %v12653 = vunpack.c.l.bf16 %v12501
    %v12654 = vunpack.c.h.bf16 %v12501
    %v12655 = vunpack.c.l.bf16 %v12502
    %v12656 = vunpack.c.h.bf16 %v12502
    %v12657 = vunpack.c.l.bf16 %v12503
    %v12658 = vunpack.c.h.bf16 %v12503
    %v12659 = vunpack.c.l.bf16 %v12504
    %v12660 = vunpack.c.h.bf16 %v12504
    %v12661 = vunpack.c.l.bf16 %v12505
    %v12662 = vunpack.c.h.bf16 %v12505
    %v12663 = vunpack.c.l.bf16 %v12506
    %v12664 = vunpack.c.h.bf16 %v12506
    %v12665 = vunpack.c.l.bf16 %v12507
    %v12666 = vunpack.c.h.bf16 %v12507
    %v12667 = vunpack.c.l.bf16 %v12508
    %v12668 = vunpack.c.h.bf16 %v12508
    %v12669 = vunpack.c.l.bf16 %v12509
    %v12670 = vunpack.c.h.bf16 %v12509
    %v12671 = vunpack.c.l.bf16 %v12510
    %v12672 = vunpack.c.h.bf16 %v12510
    %v12673 = vunpack.c.l.bf16 %v12511
    %v12674 = vunpack.c.h.bf16 %v12511
    %v12675 = vunpack.c.l.bf16 %v12512
    %v12676 = vunpack.c.h.bf16 %v12512
    %v12677 = vunpack.c.l.bf16 %v12513
    %v12678 = vunpack.c.h.bf16 %v12513
    %v12679 = vunpack.c.l.bf16 %v12514
    %v12680 = vunpack.c.h.bf16 %v12514
    %v12681 = vunpack.c.l.bf16 %v12515
    %v12682 = vunpack.c.h.bf16 %v12515
    %v12683 = vunpack.c.l.bf16 %v12516
    %v12684 = vunpack.c.h.bf16 %v12516
    %v12685 = vunpack.c.l.bf16 %v12517
    %v12686 = vunpack.c.h.bf16 %v12517
    %v12687 = vunpack.c.l.bf16 %v12518
    %v12688 = vunpack.c.h.bf16 %v12518
    %v12689 = vunpack.c.l.bf16 %v12519
    %v12690 = vunpack.c.h.bf16 %v12519
    %v12691 = vunpack.c.l.bf16 %v12520
    %v12692 = vunpack.c.h.bf16 %v12520
    %v12693 = vunpack.c.l.bf16 %v12521
    %v12694 = vunpack.c.h.bf16 %v12521
    %v12695 = vunpack.c.l.bf16 %v12522
    %v12696 = vunpack.c.h.bf16 %v12522
    %v12697 = vunpack.c.l.bf16 %v12523
    %v12698 = vunpack.c.h.bf16 %v12523
    %v12699 = vunpack.c.l.bf16 %v12524
    %v12700 = vunpack.c.h.bf16 %v12524
    %v12701 = vunpack.c.l.bf16 %v12525
    %v12702 = vunpack.c.h.bf16 %v12525
    %v12703 = vunpack.c.l.bf16 %v12526
    %v12704 = vunpack.c.h.bf16 %v12526
    %v12705 = vunpack.c.l.bf16 %v12527
    %v12706 = vunpack.c.h.bf16 %v12527
    %v12707 = vunpack.c.l.bf16 %v12528
    %v12708 = vunpack.c.h.bf16 %v12528
    %v12709 = vunpack.c.l.bf16 %v12529
    %v12710 = vunpack.c.h.bf16 %v12529
    %v12711 = vunpack.c.l.bf16 %v12530
    %v12712 = vunpack.c.h.bf16 %v12530
    %v12713 = vunpack.c.l.bf16 %v12531
    %v12714 = vunpack.c.h.bf16 %v12531
    %v12715 = vunpack.c.l.bf16 %v12532
    %v12716 = vunpack.c.h.bf16 %v12532
    %v12717 = vunpack.c.l.bf16 %v12533
    %v12718 = vunpack.c.h.bf16 %v12533
    %v12719 = vunpack.c.l.bf16 %v12534
    %v12720 = vunpack.c.h.bf16 %v12534
    %v12721 = vunpack.c.l.bf16 %v12535
    %v12722 = vunpack.c.h.bf16 %v12535
    %v12723 = vunpack.c.l.bf16 %v12536
    %v12724 = vunpack.c.h.bf16 %v12536
    %v12725 = vunpack.c.l.bf16 %v12537
    %v12726 = vunpack.c.h.bf16 %v12537
    %v12727 = vunpack.c.l.bf16 %v12538
    %v12728 = vunpack.c.h.bf16 %v12538
    %v12729 = vunpack.c.l.bf16 %v12539
    %v12730 = vunpack.c.h.bf16 %v12539
    %v12731 = vunpack.c.l.bf16 %v12540
    %v12732 = vunpack.c.h.bf16 %v12540
    %v12733 = vunpack.c.l.bf16 %v12541
    %v12734 = vunpack.c.h.bf16 %v12541
    %v12735 = vunpack.c.l.bf16 %v12542
    %v12736 = vunpack.c.h.bf16 %v12542
    %v12737 = vunpack.c.l.bf16 %v12543
    %v12738 = vunpack.c.h.bf16 %v12543
    %v12739 = vunpack.c.l.bf16 %v12544
    %v12740 = vunpack.c.h.bf16 %v12544
    %v12741 = vunpack.c.l.bf16 %v12545
    %v12742 = vunpack.c.h.bf16 %v12545
    %v12743 = vunpack.c.l.bf16 %v12546
    %v12744 = vunpack.c.h.bf16 %v12546
    %v12745 = vunpack.c.l.bf16 %v12547
    %v12746 = vunpack.c.h.bf16 %v12547
    %v12747 = vunpack.c.l.bf16 %v12548
    %v12748 = vunpack.c.h.bf16 %v12548
    %v12749 = vunpack.c.l.bf16 %v12549
    %v12750 = vunpack.c.h.bf16 %v12549
    %v12751 = vunpack.c.l.bf16 %v12550
    %v12752 = vunpack.c.h.bf16 %v12550
    %v12753 = vunpack.c.l.bf16 %v12551
    %v12754 = vunpack.c.h.bf16 %v12551
    %v12755 = vunpack.c.l.bf16 %v12552
    %v12756 = vunpack.c.h.bf16 %v12552
    %v12757 = vunpack.c.l.bf16 %v12553
    %v12758 = vunpack.c.h.bf16 %v12553
    %v12759 = vunpack.c.l.bf16 %v12554
    %v12760 = vunpack.c.h.bf16 %v12554
    %v12761 = vunpack.c.l.bf16 %v12555
    %v12762 = vunpack.c.h.bf16 %v12555
    %v12763 = vunpack.c.l.bf16 %v12556
    %v12764 = vunpack.c.h.bf16 %v12556
    %v12765 = vunpack.c.l.bf16 %v12557
    %v12766 = vunpack.c.h.bf16 %v12557
    %v12767 = vunpack.c.l.bf16 %v12558
    %v12768 = vunpack.c.h.bf16 %v12558
    %v12769 = vunpack.c.l.bf16 %v12559
    %v12770 = vunpack.c.h.bf16 %v12559
    %v12771 = vunpack.c.l.bf16 %v12560
    %v12772 = vunpack.c.h.bf16 %v12560
    %v12773 = vunpack.c.l.bf16 %v12561
    %v12774 = vunpack.c.h.bf16 %v12561
    %v12775 = vunpack.c.l.bf16 %v12562
    %v12776 = vunpack.c.h.bf16 %v12562
    %v12777 = vunpack.c.l.bf16 %v12563
    %v12778 = vunpack.c.h.bf16 %v12563
    %v12779 = vunpack.c.l.bf16 %v12564
    %v12780 = vunpack.c.h.bf16 %v12564
    %v12781 = vunpack.c.l.bf16 %v12565
    %v12782 = vunpack.c.h.bf16 %v12565
    %v12783 = vunpack.c.l.bf16 %v12566
    %v12784 = vunpack.c.h.bf16 %v12566
    %v12785 = vunpack.c.l.bf16 %v12567
    %v12786 = vunpack.c.h.bf16 %v12567
    %v12787 = vunpack.c.l.bf16 %v12568
    %v12788 = vunpack.c.h.bf16 %v12568
    %v12789 = vunpack.c.l.bf16 %v12569
    %v12790 = vunpack.c.h.bf16 %v12569
    %v12791 = vunpack.c.l.bf16 %v12570
    %v12792 = vunpack.c.h.bf16 %v12570
    %v12793 = vunpack.c.l.bf16 %v12571
    %v12794 = vunpack.c.h.bf16 %v12571
    %v12795 = vunpack.c.l.bf16 %v12572
    %v12796 = vunpack.c.h.bf16 %v12572
    %v12797 = vunpack.c.l.bf16 %v12573
    %v12798 = vunpack.c.h.bf16 %v12573
    %v12799 = vunpack.c.l.bf16 %v12574
    %v12800 = vunpack.c.h.bf16 %v12574
    %v12801 = vunpack.c.l.bf16 %v12575
    %v12802 = vunpack.c.h.bf16 %v12575
    %v12803 = vunpack.c.l.bf16 %v12576
    %v12804 = vunpack.c.h.bf16 %v12576
    %v12805 = vunpack.c.l.bf16 %v12577
    %v12806 = vunpack.c.h.bf16 %v12577
    %v12807 = vunpack.c.l.bf16 %v12578
    %v12808 = vunpack.c.h.bf16 %v12578
    %v12809 = vunpack.c.l.bf16 %v12579
    %v12810 = vunpack.c.h.bf16 %v12579
    %v12811 = vunpack.c.l.bf16 %v12580
    %v12812 = vunpack.c.h.bf16 %v12580
    %v12813 = vunpack.c.l.bf16 %v12581
    %v12814 = vunpack.c.h.bf16 %v12581
    %v12815 = vunpack.c.l.bf16 %v12582
    %v12816 = vunpack.c.h.bf16 %v12582
    %v12817 = vunpack.c.l.bf16 %v12583
    %v12818 = vunpack.c.h.bf16 %v12583
    %v12819 = vunpack.c.l.bf16 %v12584
    %v12820 = vunpack.c.h.bf16 %v12584
    %v12821 = vunpack.c.l.bf16 %v12585
    %v12822 = vunpack.c.h.bf16 %v12585
    %v12823 = vunpack.c.l.bf16 %v12586
    %v12824 = vunpack.c.h.bf16 %v12586
    %v12825 = vunpack.c.l.bf16 %v12587
    %v12826 = vunpack.c.h.bf16 %v12587
    %v12827 = vunpack.c.l.bf16 %v12588
    %v12828 = vunpack.c.h.bf16 %v12588
    %v12829 = vunpack.c.l.bf16 %v12589
    %v12830 = vunpack.c.h.bf16 %v12589
    %v12831 = vunpack.c.l.bf16 %v12590
    %v12832 = vunpack.c.h.bf16 %v12590
    %v12833 = vunpack.c.l.bf16 %v12591
    %v12834 = vunpack.c.h.bf16 %v12591
    %v12835 = vunpack.c.l.bf16 %v12592
    %v12836 = vunpack.c.h.bf16 %v12592
    %v12837 = vunpack.c.l.bf16 %v12593
    %v12838 = vunpack.c.h.bf16 %v12593
    %v12839 = vunpack.c.l.bf16 %v12594
    %v12840 = vunpack.c.h.bf16 %v12594
    %v12841 = vunpack.c.l.bf16 %v12595
    %v12842 = vunpack.c.h.bf16 %v12595
    %v12843 = vunpack.c.l.bf16 %v12596
    %v12844 = vunpack.c.h.bf16 %v12596
    %v12845 = vunpack.c.l.bf16 %v12597
    %v12846 = vunpack.c.h.bf16 %v12597
    %v12847 = vunpack.c.l.bf16 %v12598
    %v12848 = vunpack.c.h.bf16 %v12598
    %v12849 = vunpack.c.l.bf16 %v12599
    %v12850 = vunpack.c.h.bf16 %v12599
    %v12851 = vunpack.c.l.bf16 %v12600
    %v12852 = vunpack.c.h.bf16 %v12600
    %v12853 = vunpack.c.l.bf16 %v12601
    %v12854 = vunpack.c.h.bf16 %v12601
    %v12855 = vunpack.c.l.bf16 %v12602
    %v12856 = vunpack.c.h.bf16 %v12602
    %v12857 = vunpack.c.l.bf16 %v12603
    %v12858 = vunpack.c.h.bf16 %v12603
    %v12859 = vunpack.c.l.bf16 %v12604
    %v12860 = vunpack.c.h.bf16 %v12604
    %v12861 = vadd.f32 %v12221, %v12605
    %v12862 = vadd.f32 %v12222, %v12606
    %v12863 = vadd.f32 %v12223, %v12607
    %v12864 = vadd.f32 %v12224, %v12608
    %v12865 = vadd.f32 %v12225, %v12609
    %v12866 = vadd.f32 %v12226, %v12610
    %v12867 = vadd.f32 %v12227, %v12611
    %v12868 = vadd.f32 %v12228, %v12612
    %v12869 = vadd.f32 %v12229, %v12613
    %v12870 = vadd.f32 %v12230, %v12614
    %v12871 = vadd.f32 %v12231, %v12615
    %v12872 = vadd.f32 %v12232, %v12616
    %v12873 = vadd.f32 %v12233, %v12617
    %v12874 = vadd.f32 %v12234, %v12618
    %v12875 = vadd.f32 %v12235, %v12619
    %v12876 = vadd.f32 %v12236, %v12620
    %v12877 = vadd.f32 %v12237, %v12621
    %v12878 = vadd.f32 %v12238, %v12622
    %v12879 = vadd.f32 %v12239, %v12623
    %v12880 = vadd.f32 %v12240, %v12624
    %v12881 = vadd.f32 %v12241, %v12625
    %v12882 = vadd.f32 %v12242, %v12626
    %v12883 = vadd.f32 %v12243, %v12627
    %v12884 = vadd.f32 %v12244, %v12628
    %v12885 = vadd.f32 %v12245, %v12629
    %v12886 = vadd.f32 %v12246, %v12630
    %v12887 = vadd.f32 %v12247, %v12631
    %v12888 = vadd.f32 %v12248, %v12632
    %v12889 = vadd.f32 %v12249, %v12633
    %v12890 = vadd.f32 %v12250, %v12634
    %v12891 = vadd.f32 %v12251, %v12635
    %v12892 = vadd.f32 %v12252, %v12636
    %v12893 = vadd.f32 %v12253, %v12637
    %v12894 = vadd.f32 %v12254, %v12638
    %v12895 = vadd.f32 %v12255, %v12639
    %v12896 = vadd.f32 %v12256, %v12640
    %v12897 = vadd.f32 %v12257, %v12641
    %v12898 = vadd.f32 %v12258, %v12642
    %v12899 = vadd.f32 %v12259, %v12643
    %v12900 = vadd.f32 %v12260, %v12644
    %v12901 = vadd.f32 %v12261, %v12645
    %v12902 = vadd.f32 %v12262, %v12646
    %v12903 = vadd.f32 %v12263, %v12647
    %v12904 = vadd.f32 %v12264, %v12648
    %v12905 = vadd.f32 %v12265, %v12649
    %v12906 = vadd.f32 %v12266, %v12650
    %v12907 = vadd.f32 %v12267, %v12651
    %v12908 = vadd.f32 %v12268, %v12652
    %v12909 = vadd.f32 %v12269, %v12653
    %v12910 = vadd.f32 %v12270, %v12654
    %v12911 = vadd.f32 %v12271, %v12655
    %v12912 = vadd.f32 %v12272, %v12656
    %v12913 = vadd.f32 %v12273, %v12657
    %v12914 = vadd.f32 %v12274, %v12658
    %v12915 = vadd.f32 %v12275, %v12659
    %v12916 = vadd.f32 %v12276, %v12660
    %v12917 = vadd.f32 %v12277, %v12661
    %v12918 = vadd.f32 %v12278, %v12662
    %v12919 = vadd.f32 %v12279, %v12663
    %v12920 = vadd.f32 %v12280, %v12664
    %v12921 = vadd.f32 %v12281, %v12665
    %v12922 = vadd.f32 %v12282, %v12666
    %v12923 = vadd.f32 %v12283, %v12667
    %v12924 = vadd.f32 %v12284, %v12668
    %v12925 = vadd.f32 %v12285, %v12669
    %v12926 = vadd.f32 %v12286, %v12670
    %v12927 = vadd.f32 %v12287, %v12671
    %v12928 = vadd.f32 %v12288, %v12672
    %v12929 = vadd.f32 %v12289, %v12673
    %v12930 = vadd.f32 %v12290, %v12674
    %v12931 = vadd.f32 %v12291, %v12675
    %v12932 = vadd.f32 %v12292, %v12676
    %v12933 = vadd.f32 %v12293, %v12677
    %v12934 = vadd.f32 %v12294, %v12678
    %v12935 = vadd.f32 %v12295, %v12679
    %v12936 = vadd.f32 %v12296, %v12680
    %v12937 = vadd.f32 %v12297, %v12681
    %v12938 = vadd.f32 %v12298, %v12682
    %v12939 = vadd.f32 %v12299, %v12683
    %v12940 = vadd.f32 %v12300, %v12684
    %v12941 = vadd.f32 %v12301, %v12685
    %v12942 = vadd.f32 %v12302, %v12686
    %v12943 = vadd.f32 %v12303, %v12687
    %v12944 = vadd.f32 %v12304, %v12688
    %v12945 = vadd.f32 %v12305, %v12689
    %v12946 = vadd.f32 %v12306, %v12690
    %v12947 = vadd.f32 %v12307, %v12691
    %v12948 = vadd.f32 %v12308, %v12692
    %v12949 = vadd.f32 %v12309, %v12693
    %v12950 = vadd.f32 %v12310, %v12694
    %v12951 = vadd.f32 %v12311, %v12695
    %v12952 = vadd.f32 %v12312, %v12696
    %v12953 = vadd.f32 %v12313, %v12697
    %v12954 = vadd.f32 %v12314, %v12698
    %v12955 = vadd.f32 %v12315, %v12699
    %v12956 = vadd.f32 %v12316, %v12700
    %v12957 = vadd.f32 %v12317, %v12701
    %v12958 = vadd.f32 %v12318, %v12702
    %v12959 = vadd.f32 %v12319, %v12703
    %v12960 = vadd.f32 %v12320, %v12704
    %v12961 = vadd.f32 %v12321, %v12705
    %v12962 = vadd.f32 %v12322, %v12706
    %v12963 = vadd.f32 %v12323, %v12707
    %v12964 = vadd.f32 %v12324, %v12708
    %v12965 = vadd.f32 %v12325, %v12709
    %v12966 = vadd.f32 %v12326, %v12710
    %v12967 = vadd.f32 %v12327, %v12711
    %v12968 = vadd.f32 %v12328, %v12712
    %v12969 = vadd.f32 %v12329, %v12713
    %v12970 = vadd.f32 %v12330, %v12714
    %v12971 = vadd.f32 %v12331, %v12715
    %v12972 = vadd.f32 %v12332, %v12716
    %v12973 = vadd.f32 %v12333, %v12717
    %v12974 = vadd.f32 %v12334, %v12718
    %v12975 = vadd.f32 %v12335, %v12719
    %v12976 = vadd.f32 %v12336, %v12720
    %v12977 = vadd.f32 %v12337, %v12721
    %v12978 = vadd.f32 %v12338, %v12722
    %v12979 = vadd.f32 %v12339, %v12723
    %v12980 = vadd.f32 %v12340, %v12724
    %v12981 = vadd.f32 %v12341, %v12725
    %v12982 = vadd.f32 %v12342, %v12726
    %v12983 = vadd.f32 %v12343, %v12727
    %v12984 = vadd.f32 %v12344, %v12728
    %v12985 = vadd.f32 %v12345, %v12729
    %v12986 = vadd.f32 %v12346, %v12730
    %v12987 = vadd.f32 %v12347, %v12731
    %v12988 = vadd.f32 %v12348, %v12732
    %v12989 = vadd.f32 %v12349, %v12733
    %v12990 = vadd.f32 %v12350, %v12734
    %v12991 = vadd.f32 %v12351, %v12735
    %v12992 = vadd.f32 %v12352, %v12736
    %v12993 = vadd.f32 %v12353, %v12737
    %v12994 = vadd.f32 %v12354, %v12738
    %v12995 = vadd.f32 %v12355, %v12739
    %v12996 = vadd.f32 %v12356, %v12740
    %v12997 = vadd.f32 %v12357, %v12741
    %v12998 = vadd.f32 %v12358, %v12742
    %v12999 = vadd.f32 %v12359, %v12743
    %v13000 = vadd.f32 %v12360, %v12744
    %v13001 = vadd.f32 %v12361, %v12745
    %v13002 = vadd.f32 %v12362, %v12746
    %v13003 = vadd.f32 %v12363, %v12747
    %v13004 = vadd.f32 %v12364, %v12748
    %v13005 = vadd.f32 %v12365, %v12749
    %v13006 = vadd.f32 %v12366, %v12750
    %v13007 = vadd.f32 %v12367, %v12751
    %v13008 = vadd.f32 %v12368, %v12752
    %v13009 = vadd.f32 %v12369, %v12753
    %v13010 = vadd.f32 %v12370, %v12754
    %v13011 = vadd.f32 %v12371, %v12755
    %v13012 = vadd.f32 %v12372, %v12756
    %v13013 = vadd.f32 %v12373, %v12757
    %v13014 = vadd.f32 %v12374, %v12758
    %v13015 = vadd.f32 %v12375, %v12759
    %v13016 = vadd.f32 %v12376, %v12760
    %v13017 = vadd.f32 %v12377, %v12761
    %v13018 = vadd.f32 %v12378, %v12762
    %v13019 = vadd.f32 %v12379, %v12763
    %v13020 = vadd.f32 %v12380, %v12764
    %v13021 = vadd.f32 %v12381, %v12765
    %v13022 = vadd.f32 %v12382, %v12766
    %v13023 = vadd.f32 %v12383, %v12767
    %v13024 = vadd.f32 %v12384, %v12768
    %v13025 = vadd.f32 %v12385, %v12769
    %v13026 = vadd.f32 %v12386, %v12770
    %v13027 = vadd.f32 %v12387, %v12771
    %v13028 = vadd.f32 %v12388, %v12772
    %v13029 = vadd.f32 %v12389, %v12773
    %v13030 = vadd.f32 %v12390, %v12774
    %v13031 = vadd.f32 %v12391, %v12775
    %v13032 = vadd.f32 %v12392, %v12776
    %v13033 = vadd.f32 %v12393, %v12777
    %v13034 = vadd.f32 %v12394, %v12778
    %v13035 = vadd.f32 %v12395, %v12779
    %v13036 = vadd.f32 %v12396, %v12780
    %v13037 = vadd.f32 %v12397, %v12781
    %v13038 = vadd.f32 %v12398, %v12782
    %v13039 = vadd.f32 %v12399, %v12783
    %v13040 = vadd.f32 %v12400, %v12784
    %v13041 = vadd.f32 %v12401, %v12785
    %v13042 = vadd.f32 %v12402, %v12786
    %v13043 = vadd.f32 %v12403, %v12787
    %v13044 = vadd.f32 %v12404, %v12788
    %v13045 = vadd.f32 %v12405, %v12789
    %v13046 = vadd.f32 %v12406, %v12790
    %v13047 = vadd.f32 %v12407, %v12791
    %v13048 = vadd.f32 %v12408, %v12792
    %v13049 = vadd.f32 %v12409, %v12793
    %v13050 = vadd.f32 %v12410, %v12794
    %v13051 = vadd.f32 %v12411, %v12795
    %v13052 = vadd.f32 %v12412, %v12796
    %v13053 = vadd.f32 %v12413, %v12797
    %v13054 = vadd.f32 %v12414, %v12798
    %v13055 = vadd.f32 %v12415, %v12799
    %v13056 = vadd.f32 %v12416, %v12800
    %v13057 = vadd.f32 %v12417, %v12801
    %v13058 = vadd.f32 %v12418, %v12802
    %v13059 = vadd.f32 %v12419, %v12803
    %v13060 = vadd.f32 %v12420, %v12804
    %v13061 = vadd.f32 %v12421, %v12805
    %v13062 = vadd.f32 %v12422, %v12806
    %v13063 = vadd.f32 %v12423, %v12807
    %v13064 = vadd.f32 %v12424, %v12808
    %v13065 = vadd.f32 %v12425, %v12809
    %v13066 = vadd.f32 %v12426, %v12810
    %v13067 = vadd.f32 %v12427, %v12811
    %v13068 = vadd.f32 %v12428, %v12812
    %v13069 = vadd.f32 %v12429, %v12813
    %v13070 = vadd.f32 %v12430, %v12814
    %v13071 = vadd.f32 %v12431, %v12815
    %v13072 = vadd.f32 %v12432, %v12816
    %v13073 = vadd.f32 %v12433, %v12817
    %v13074 = vadd.f32 %v12434, %v12818
    %v13075 = vadd.f32 %v12435, %v12819
    %v13076 = vadd.f32 %v12436, %v12820
    %v13077 = vadd.f32 %v12437, %v12821
    %v13078 = vadd.f32 %v12438, %v12822
    %v13079 = vadd.f32 %v12439, %v12823
    %v13080 = vadd.f32 %v12440, %v12824
    %v13081 = vadd.f32 %v12441, %v12825
    %v13082 = vadd.f32 %v12442, %v12826
    %v13083 = vadd.f32 %v12443, %v12827
    %v13084 = vadd.f32 %v12444, %v12828
    %v13085 = vadd.f32 %v12445, %v12829
    %v13086 = vadd.f32 %v12446, %v12830
    %v13087 = vadd.f32 %v12447, %v12831
    %v13088 = vadd.f32 %v12448, %v12832
    %v13089 = vadd.f32 %v12449, %v12833
    %v13090 = vadd.f32 %v12450, %v12834
    %v13091 = vadd.f32 %v12451, %v12835
    %v13092 = vadd.f32 %v12452, %v12836
    %v13093 = vadd.f32 %v12453, %v12837
    %v13094 = vadd.f32 %v12454, %v12838
    %v13095 = vadd.f32 %v12455, %v12839
    %v13096 = vadd.f32 %v12456, %v12840
    %v13097 = vadd.f32 %v12457, %v12841
    %v13098 = vadd.f32 %v12458, %v12842
    %v13099 = vadd.f32 %v12459, %v12843
    %v13100 = vadd.f32 %v12460, %v12844
    %v13101 = vadd.f32 %v12461, %v12845
    %v13102 = vadd.f32 %v12462, %v12846
    %v13103 = vadd.f32 %v12463, %v12847
    %v13104 = vadd.f32 %v12464, %v12848
    %v13105 = vadd.f32 %v12465, %v12849
    %v13106 = vadd.f32 %v12466, %v12850
    %v13107 = vadd.f32 %v12467, %v12851
    %v13108 = vadd.f32 %v12468, %v12852
    %v13109 = vadd.f32 %v12469, %v12853
    %v13110 = vadd.f32 %v12470, %v12854
    %v13111 = vadd.f32 %v12471, %v12855
    %v13112 = vadd.f32 %v12472, %v12856
    %v13113 = vadd.f32 %v12473, %v12857
    %v13114 = vadd.f32 %v12474, %v12858
    %v13115 = vadd.f32 %v12475, %v12859
    %v13116 = vadd.f32 %v12476, %v12860
    %v13117 = vmax.f32 %v12861, 0.0
    %v13118 = vmax.f32 %v12862, 0.0
    %v13119 = vmax.f32 %v12863, 0.0
    %v13120 = vmax.f32 %v12864, 0.0
    %v13121 = vmax.f32 %v12865, 0.0
    %v13122 = vmax.f32 %v12866, 0.0
    %v13123 = vmax.f32 %v12867, 0.0
    %v13124 = vmax.f32 %v12868, 0.0
    %v13125 = vmax.f32 %v12869, 0.0
    %v13126 = vmax.f32 %v12870, 0.0
    %v13127 = vmax.f32 %v12871, 0.0
    %v13128 = vmax.f32 %v12872, 0.0
    %v13129 = vmax.f32 %v12873, 0.0
    %v13130 = vmax.f32 %v12874, 0.0
    %v13131 = vmax.f32 %v12875, 0.0
    %v13132 = vmax.f32 %v12876, 0.0
    %v13133 = vmax.f32 %v12877, 0.0
    %v13134 = vmax.f32 %v12878, 0.0
    %v13135 = vmax.f32 %v12879, 0.0
    %v13136 = vmax.f32 %v12880, 0.0
    %v13137 = vmax.f32 %v12881, 0.0
    %v13138 = vmax.f32 %v12882, 0.0
    %v13139 = vmax.f32 %v12883, 0.0
    %v13140 = vmax.f32 %v12884, 0.0
    %v13141 = vmax.f32 %v12885, 0.0
    %v13142 = vmax.f32 %v12886, 0.0
    %v13143 = vmax.f32 %v12887, 0.0
    %v13144 = vmax.f32 %v12888, 0.0
    %v13145 = vmax.f32 %v12889, 0.0
    %v13146 = vmax.f32 %v12890, 0.0
    %v13147 = vmax.f32 %v12891, 0.0
    %v13148 = vmax.f32 %v12892, 0.0
    %v13149 = vmax.f32 %v12893, 0.0
    %v13150 = vmax.f32 %v12894, 0.0
    %v13151 = vmax.f32 %v12895, 0.0
    %v13152 = vmax.f32 %v12896, 0.0
    %v13153 = vmax.f32 %v12897, 0.0
    %v13154 = vmax.f32 %v12898, 0.0
    %v13155 = vmax.f32 %v12899, 0.0
    %v13156 = vmax.f32 %v12900, 0.0
    %v13157 = vmax.f32 %v12901, 0.0
    %v13158 = vmax.f32 %v12902, 0.0
    %v13159 = vmax.f32 %v12903, 0.0
    %v13160 = vmax.f32 %v12904, 0.0
    %v13161 = vmax.f32 %v12905, 0.0
    %v13162 = vmax.f32 %v12906, 0.0
    %v13163 = vmax.f32 %v12907, 0.0
    %v13164 = vmax.f32 %v12908, 0.0
    %v13165 = vmax.f32 %v12909, 0.0
    %v13166 = vmax.f32 %v12910, 0.0
    %v13167 = vmax.f32 %v12911, 0.0
    %v13168 = vmax.f32 %v12912, 0.0
    %v13169 = vmax.f32 %v12913, 0.0
    %v13170 = vmax.f32 %v12914, 0.0
    %v13171 = vmax.f32 %v12915, 0.0
    %v13172 = vmax.f32 %v12916, 0.0
    %v13173 = vmax.f32 %v12917, 0.0
    %v13174 = vmax.f32 %v12918, 0.0
    %v13175 = vmax.f32 %v12919, 0.0
    %v13176 = vmax.f32 %v12920, 0.0
    %v13177 = vmax.f32 %v12921, 0.0
    %v13178 = vmax.f32 %v12922, 0.0
    %v13179 = vmax.f32 %v12923, 0.0
    %v13180 = vmax.f32 %v12924, 0.0
    %v13181 = vmax.f32 %v12925, 0.0
    %v13182 = vmax.f32 %v12926, 0.0
    %v13183 = vmax.f32 %v12927, 0.0
    %v13184 = vmax.f32 %v12928, 0.0
    %v13185 = vmax.f32 %v12929, 0.0
    %v13186 = vmax.f32 %v12930, 0.0
    %v13187 = vmax.f32 %v12931, 0.0
    %v13188 = vmax.f32 %v12932, 0.0
    %v13189 = vmax.f32 %v12933, 0.0
    %v13190 = vmax.f32 %v12934, 0.0
    %v13191 = vmax.f32 %v12935, 0.0
    %v13192 = vmax.f32 %v12936, 0.0
    %v13193 = vmax.f32 %v12937, 0.0
    %v13194 = vmax.f32 %v12938, 0.0
    %v13195 = vmax.f32 %v12939, 0.0
    %v13196 = vmax.f32 %v12940, 0.0
    %v13197 = vmax.f32 %v12941, 0.0
    %v13198 = vmax.f32 %v12942, 0.0
    %v13199 = vmax.f32 %v12943, 0.0
    %v13200 = vmax.f32 %v12944, 0.0
    %v13201 = vmax.f32 %v12945, 0.0
    %v13202 = vmax.f32 %v12946, 0.0
    %v13203 = vmax.f32 %v12947, 0.0
    %v13204 = vmax.f32 %v12948, 0.0
    %v13205 = vmax.f32 %v12949, 0.0
    %v13206 = vmax.f32 %v12950, 0.0
    %v13207 = vmax.f32 %v12951, 0.0
    %v13208 = vmax.f32 %v12952, 0.0
    %v13209 = vmax.f32 %v12953, 0.0
    %v13210 = vmax.f32 %v12954, 0.0
    %v13211 = vmax.f32 %v12955, 0.0
    %v13212 = vmax.f32 %v12956, 0.0
    %v13213 = vmax.f32 %v12957, 0.0
    %v13214 = vmax.f32 %v12958, 0.0
    %v13215 = vmax.f32 %v12959, 0.0
    %v13216 = vmax.f32 %v12960, 0.0
    %v13217 = vmax.f32 %v12961, 0.0
    %v13218 = vmax.f32 %v12962, 0.0
    %v13219 = vmax.f32 %v12963, 0.0
    %v13220 = vmax.f32 %v12964, 0.0
    %v13221 = vmax.f32 %v12965, 0.0
    %v13222 = vmax.f32 %v12966, 0.0
    %v13223 = vmax.f32 %v12967, 0.0
    %v13224 = vmax.f32 %v12968, 0.0
    %v13225 = vmax.f32 %v12969, 0.0
    %v13226 = vmax.f32 %v12970, 0.0
    %v13227 = vmax.f32 %v12971, 0.0
    %v13228 = vmax.f32 %v12972, 0.0
    %v13229 = vmax.f32 %v12973, 0.0
    %v13230 = vmax.f32 %v12974, 0.0
    %v13231 = vmax.f32 %v12975, 0.0
    %v13232 = vmax.f32 %v12976, 0.0
    %v13233 = vmax.f32 %v12977, 0.0
    %v13234 = vmax.f32 %v12978, 0.0
    %v13235 = vmax.f32 %v12979, 0.0
    %v13236 = vmax.f32 %v12980, 0.0
    %v13237 = vmax.f32 %v12981, 0.0
    %v13238 = vmax.f32 %v12982, 0.0
    %v13239 = vmax.f32 %v12983, 0.0
    %v13240 = vmax.f32 %v12984, 0.0
    %v13241 = vmax.f32 %v12985, 0.0
    %v13242 = vmax.f32 %v12986, 0.0
    %v13243 = vmax.f32 %v12987, 0.0
    %v13244 = vmax.f32 %v12988, 0.0
    %v13245 = vmax.f32 %v12989, 0.0
    %v13246 = vmax.f32 %v12990, 0.0
    %v13247 = vmax.f32 %v12991, 0.0
    %v13248 = vmax.f32 %v12992, 0.0
    %v13249 = vmax.f32 %v12993, 0.0
    %v13250 = vmax.f32 %v12994, 0.0
    %v13251 = vmax.f32 %v12995, 0.0
    %v13252 = vmax.f32 %v12996, 0.0
    %v13253 = vmax.f32 %v12997, 0.0
    %v13254 = vmax.f32 %v12998, 0.0
    %v13255 = vmax.f32 %v12999, 0.0
    %v13256 = vmax.f32 %v13000, 0.0
    %v13257 = vmax.f32 %v13001, 0.0
    %v13258 = vmax.f32 %v13002, 0.0
    %v13259 = vmax.f32 %v13003, 0.0
    %v13260 = vmax.f32 %v13004, 0.0
    %v13261 = vmax.f32 %v13005, 0.0
    %v13262 = vmax.f32 %v13006, 0.0
    %v13263 = vmax.f32 %v13007, 0.0
    %v13264 = vmax.f32 %v13008, 0.0
    %v13265 = vmax.f32 %v13009, 0.0
    %v13266 = vmax.f32 %v13010, 0.0
    %v13267 = vmax.f32 %v13011, 0.0
    %v13268 = vmax.f32 %v13012, 0.0
    %v13269 = vmax.f32 %v13013, 0.0
    %v13270 = vmax.f32 %v13014, 0.0
    %v13271 = vmax.f32 %v13015, 0.0
    %v13272 = vmax.f32 %v13016, 0.0
    %v13273 = vmax.f32 %v13017, 0.0
    %v13274 = vmax.f32 %v13018, 0.0
    %v13275 = vmax.f32 %v13019, 0.0
    %v13276 = vmax.f32 %v13020, 0.0
    %v13277 = vmax.f32 %v13021, 0.0
    %v13278 = vmax.f32 %v13022, 0.0
    %v13279 = vmax.f32 %v13023, 0.0
    %v13280 = vmax.f32 %v13024, 0.0
    %v13281 = vmax.f32 %v13025, 0.0
    %v13282 = vmax.f32 %v13026, 0.0
    %v13283 = vmax.f32 %v13027, 0.0
    %v13284 = vmax.f32 %v13028, 0.0
    %v13285 = vmax.f32 %v13029, 0.0
    %v13286 = vmax.f32 %v13030, 0.0
    %v13287 = vmax.f32 %v13031, 0.0
    %v13288 = vmax.f32 %v13032, 0.0
    %v13289 = vmax.f32 %v13033, 0.0
    %v13290 = vmax.f32 %v13034, 0.0
    %v13291 = vmax.f32 %v13035, 0.0
    %v13292 = vmax.f32 %v13036, 0.0
    %v13293 = vmax.f32 %v13037, 0.0
    %v13294 = vmax.f32 %v13038, 0.0
    %v13295 = vmax.f32 %v13039, 0.0
    %v13296 = vmax.f32 %v13040, 0.0
    %v13297 = vmax.f32 %v13041, 0.0
    %v13298 = vmax.f32 %v13042, 0.0
    %v13299 = vmax.f32 %v13043, 0.0
    %v13300 = vmax.f32 %v13044, 0.0
    %v13301 = vmax.f32 %v13045, 0.0
    %v13302 = vmax.f32 %v13046, 0.0
    %v13303 = vmax.f32 %v13047, 0.0
    %v13304 = vmax.f32 %v13048, 0.0
    %v13305 = vmax.f32 %v13049, 0.0
    %v13306 = vmax.f32 %v13050, 0.0
    %v13307 = vmax.f32 %v13051, 0.0
    %v13308 = vmax.f32 %v13052, 0.0
    %v13309 = vmax.f32 %v13053, 0.0
    %v13310 = vmax.f32 %v13054, 0.0
    %v13311 = vmax.f32 %v13055, 0.0
    %v13312 = vmax.f32 %v13056, 0.0
    %v13313 = vmax.f32 %v13057, 0.0
    %v13314 = vmax.f32 %v13058, 0.0
    %v13315 = vmax.f32 %v13059, 0.0
    %v13316 = vmax.f32 %v13060, 0.0
    %v13317 = vmax.f32 %v13061, 0.0
    %v13318 = vmax.f32 %v13062, 0.0
    %v13319 = vmax.f32 %v13063, 0.0
    %v13320 = vmax.f32 %v13064, 0.0
    %v13321 = vmax.f32 %v13065, 0.0
    %v13322 = vmax.f32 %v13066, 0.0
    %v13323 = vmax.f32 %v13067, 0.0
    %v13324 = vmax.f32 %v13068, 0.0
    %v13325 = vmax.f32 %v13069, 0.0
    %v13326 = vmax.f32 %v13070, 0.0
    %v13327 = vmax.f32 %v13071, 0.0
    %v13328 = vmax.f32 %v13072, 0.0
    %v13329 = vmax.f32 %v13073, 0.0
    %v13330 = vmax.f32 %v13074, 0.0
    %v13331 = vmax.f32 %v13075, 0.0
    %v13332 = vmax.f32 %v13076, 0.0
    %v13333 = vmax.f32 %v13077, 0.0
    %v13334 = vmax.f32 %v13078, 0.0
    %v13335 = vmax.f32 %v13079, 0.0
    %v13336 = vmax.f32 %v13080, 0.0
    %v13337 = vmax.f32 %v13081, 0.0
    %v13338 = vmax.f32 %v13082, 0.0
    %v13339 = vmax.f32 %v13083, 0.0
    %v13340 = vmax.f32 %v13084, 0.0
    %v13341 = vmax.f32 %v13085, 0.0
    %v13342 = vmax.f32 %v13086, 0.0
    %v13343 = vmax.f32 %v13087, 0.0
    %v13344 = vmax.f32 %v13088, 0.0
    %v13345 = vmax.f32 %v13089, 0.0
    %v13346 = vmax.f32 %v13090, 0.0
    %v13347 = vmax.f32 %v13091, 0.0
    %v13348 = vmax.f32 %v13092, 0.0
    %v13349 = vmax.f32 %v13093, 0.0
    %v13350 = vmax.f32 %v13094, 0.0
    %v13351 = vmax.f32 %v13095, 0.0
    %v13352 = vmax.f32 %v13096, 0.0
    %v13353 = vmax.f32 %v13097, 0.0
    %v13354 = vmax.f32 %v13098, 0.0
    %v13355 = vmax.f32 %v13099, 0.0
    %v13356 = vmax.f32 %v13100, 0.0
    %v13357 = vmax.f32 %v13101, 0.0
    %v13358 = vmax.f32 %v13102, 0.0
    %v13359 = vmax.f32 %v13103, 0.0
    %v13360 = vmax.f32 %v13104, 0.0
    %v13361 = vmax.f32 %v13105, 0.0
    %v13362 = vmax.f32 %v13106, 0.0
    %v13363 = vmax.f32 %v13107, 0.0
    %v13364 = vmax.f32 %v13108, 0.0
    %v13365 = vmax.f32 %v13109, 0.0
    %v13366 = vmax.f32 %v13110, 0.0
    %v13367 = vmax.f32 %v13111, 0.0
    %v13368 = vmax.f32 %v13112, 0.0
    %v13369 = vmax.f32 %v13113, 0.0
    %v13370 = vmax.f32 %v13114, 0.0
    %v13371 = vmax.f32 %v13115, 0.0
    %v13372 = vmax.f32 %v13116, 0.0
    %v13373 = vpack.c.bf16 %v13118, %v13117
    %v13374 = vpack.c.bf16 %v13120, %v13119
    %v13375 = vpack.c.bf16 %v13122, %v13121
    %v13376 = vpack.c.bf16 %v13124, %v13123
    %v13377 = vpack.c.bf16 %v13126, %v13125
    %v13378 = vpack.c.bf16 %v13128, %v13127
    %v13379 = vpack.c.bf16 %v13130, %v13129
    %v13380 = vpack.c.bf16 %v13132, %v13131
    %v13381 = vpack.c.bf16 %v13134, %v13133
    %v13382 = vpack.c.bf16 %v13136, %v13135
    %v13383 = vpack.c.bf16 %v13138, %v13137
    %v13384 = vpack.c.bf16 %v13140, %v13139
    %v13385 = vpack.c.bf16 %v13142, %v13141
    %v13386 = vpack.c.bf16 %v13144, %v13143
    %v13387 = vpack.c.bf16 %v13146, %v13145
    %v13388 = vpack.c.bf16 %v13148, %v13147
    %v13389 = vpack.c.bf16 %v13150, %v13149
    %v13390 = vpack.c.bf16 %v13152, %v13151
    %v13391 = vpack.c.bf16 %v13154, %v13153
    %v13392 = vpack.c.bf16 %v13156, %v13155
    %v13393 = vpack.c.bf16 %v13158, %v13157
    %v13394 = vpack.c.bf16 %v13160, %v13159
    %v13395 = vpack.c.bf16 %v13162, %v13161
    %v13396 = vpack.c.bf16 %v13164, %v13163
    %v13397 = vpack.c.bf16 %v13166, %v13165
    %v13398 = vpack.c.bf16 %v13168, %v13167
    %v13399 = vpack.c.bf16 %v13170, %v13169
    %v13400 = vpack.c.bf16 %v13172, %v13171
    %v13401 = vpack.c.bf16 %v13174, %v13173
    %v13402 = vpack.c.bf16 %v13176, %v13175
    %v13403 = vpack.c.bf16 %v13178, %v13177
    %v13404 = vpack.c.bf16 %v13180, %v13179
    %v13405 = vpack.c.bf16 %v13182, %v13181
    %v13406 = vpack.c.bf16 %v13184, %v13183
    %v13407 = vpack.c.bf16 %v13186, %v13185
    %v13408 = vpack.c.bf16 %v13188, %v13187
    %v13409 = vpack.c.bf16 %v13190, %v13189
    %v13410 = vpack.c.bf16 %v13192, %v13191
    %v13411 = vpack.c.bf16 %v13194, %v13193
    %v13412 = vpack.c.bf16 %v13196, %v13195
    %v13413 = vpack.c.bf16 %v13198, %v13197
    %v13414 = vpack.c.bf16 %v13200, %v13199
    %v13415 = vpack.c.bf16 %v13202, %v13201
    %v13416 = vpack.c.bf16 %v13204, %v13203
    %v13417 = vpack.c.bf16 %v13206, %v13205
    %v13418 = vpack.c.bf16 %v13208, %v13207
    %v13419 = vpack.c.bf16 %v13210, %v13209
    %v13420 = vpack.c.bf16 %v13212, %v13211
    %v13421 = vpack.c.bf16 %v13214, %v13213
    %v13422 = vpack.c.bf16 %v13216, %v13215
    %v13423 = vpack.c.bf16 %v13218, %v13217
    %v13424 = vpack.c.bf16 %v13220, %v13219
    %v13425 = vpack.c.bf16 %v13222, %v13221
    %v13426 = vpack.c.bf16 %v13224, %v13223
    %v13427 = vpack.c.bf16 %v13226, %v13225
    %v13428 = vpack.c.bf16 %v13228, %v13227
    %v13429 = vpack.c.bf16 %v13230, %v13229
    %v13430 = vpack.c.bf16 %v13232, %v13231
    %v13431 = vpack.c.bf16 %v13234, %v13233
    %v13432 = vpack.c.bf16 %v13236, %v13235
    %v13433 = vpack.c.bf16 %v13238, %v13237
    %v13434 = vpack.c.bf16 %v13240, %v13239
    %v13435 = vpack.c.bf16 %v13242, %v13241
    %v13436 = vpack.c.bf16 %v13244, %v13243
    %v13437 = vpack.c.bf16 %v13246, %v13245
    %v13438 = vpack.c.bf16 %v13248, %v13247
    %v13439 = vpack.c.bf16 %v13250, %v13249
    %v13440 = vpack.c.bf16 %v13252, %v13251
    %v13441 = vpack.c.bf16 %v13254, %v13253
    %v13442 = vpack.c.bf16 %v13256, %v13255
    %v13443 = vpack.c.bf16 %v13258, %v13257
    %v13444 = vpack.c.bf16 %v13260, %v13259
    %v13445 = vpack.c.bf16 %v13262, %v13261
    %v13446 = vpack.c.bf16 %v13264, %v13263
    %v13447 = vpack.c.bf16 %v13266, %v13265
    %v13448 = vpack.c.bf16 %v13268, %v13267
    %v13449 = vpack.c.bf16 %v13270, %v13269
    %v13450 = vpack.c.bf16 %v13272, %v13271
    %v13451 = vpack.c.bf16 %v13274, %v13273
    %v13452 = vpack.c.bf16 %v13276, %v13275
    %v13453 = vpack.c.bf16 %v13278, %v13277
    %v13454 = vpack.c.bf16 %v13280, %v13279
    %v13455 = vpack.c.bf16 %v13282, %v13281
    %v13456 = vpack.c.bf16 %v13284, %v13283
    %v13457 = vpack.c.bf16 %v13286, %v13285
    %v13458 = vpack.c.bf16 %v13288, %v13287
    %v13459 = vpack.c.bf16 %v13290, %v13289
    %v13460 = vpack.c.bf16 %v13292, %v13291
    %v13461 = vpack.c.bf16 %v13294, %v13293
    %v13462 = vpack.c.bf16 %v13296, %v13295
    %v13463 = vpack.c.bf16 %v13298, %v13297
    %v13464 = vpack.c.bf16 %v13300, %v13299
    %v13465 = vpack.c.bf16 %v13302, %v13301
    %v13466 = vpack.c.bf16 %v13304, %v13303
    %v13467 = vpack.c.bf16 %v13306, %v13305
    %v13468 = vpack.c.bf16 %v13308, %v13307
    %v13469 = vpack.c.bf16 %v13310, %v13309
    %v13470 = vpack.c.bf16 %v13312, %v13311
    %v13471 = vpack.c.bf16 %v13314, %v13313
    %v13472 = vpack.c.bf16 %v13316, %v13315
    %v13473 = vpack.c.bf16 %v13318, %v13317
    %v13474 = vpack.c.bf16 %v13320, %v13319
    %v13475 = vpack.c.bf16 %v13322, %v13321
    %v13476 = vpack.c.bf16 %v13324, %v13323
    %v13477 = vpack.c.bf16 %v13326, %v13325
    %v13478 = vpack.c.bf16 %v13328, %v13327
    %v13479 = vpack.c.bf16 %v13330, %v13329
    %v13480 = vpack.c.bf16 %v13332, %v13331
    %v13481 = vpack.c.bf16 %v13334, %v13333
    %v13482 = vpack.c.bf16 %v13336, %v13335
    %v13483 = vpack.c.bf16 %v13338, %v13337
    %v13484 = vpack.c.bf16 %v13340, %v13339
    %v13485 = vpack.c.bf16 %v13342, %v13341
    %v13486 = vpack.c.bf16 %v13344, %v13343
    %v13487 = vpack.c.bf16 %v13346, %v13345
    %v13488 = vpack.c.bf16 %v13348, %v13347
    %v13489 = vpack.c.bf16 %v13350, %v13349
    %v13490 = vpack.c.bf16 %v13352, %v13351
    %v13491 = vpack.c.bf16 %v13354, %v13353
    %v13492 = vpack.c.bf16 %v13356, %v13355
    %v13493 = vpack.c.bf16 %v13358, %v13357
    %v13494 = vpack.c.bf16 %v13360, %v13359
    %v13495 = vpack.c.bf16 %v13362, %v13361
    %v13496 = vpack.c.bf16 %v13364, %v13363
    %v13497 = vpack.c.bf16 %v13366, %v13365
    %v13498 = vpack.c.bf16 %v13368, %v13367
    %v13499 = vpack.c.bf16 %v13370, %v13369
    %v13500 = vpack.c.bf16 %v13372, %v13371
    %13501 = vst [vmem:[#allocation17] sm:$0xff] %v13373
    %13502 = vst [vmem:[#allocation17 + $0x8] sm:$0xff] %v13374
    %13503 = vst [vmem:[#allocation17 + $0x10] sm:$0xff] %v13375
    %13504 = vst [vmem:[#allocation17 + $0x18] sm:$0xff] %v13376
    %13505 = vst [vmem:[#allocation17 + $0x20] sm:$0xff] %v13377
    %13506 = vst [vmem:[#allocation17 + $0x28] sm:$0xff] %v13378
    %13507 = vst [vmem:[#allocation17 + $0x30] sm:$0xff] %v13379
    %13508 = vst [vmem:[#allocation17 + $0x38] sm:$0xff] %v13380
    %13509 = vst [vmem:[#allocation17 + $0x40] sm:$0xff] %v13381
    %13510 = vst [vmem:[#allocation17 + $0x48] sm:$0xff] %v13382
    %13511 = vst [vmem:[#allocation17 + $0x50] sm:$0xff] %v13383
    %13512 = vst [vmem:[#allocation17 + $0x58] sm:$0xff] %v13384
    %13513 = vst [vmem:[#allocation17 + $0x60] sm:$0xff] %v13385
    %13514 = vst [vmem:[#allocation17 + $0x68] sm:$0xff] %v13386
    %13515 = vst [vmem:[#allocation17 + $0x70] sm:$0xff] %v13387
    %13516 = vst [vmem:[#allocation17 + $0x78] sm:$0xff] %v13388
    %13517 = vst [vmem:[#allocation17 + $0x80] sm:$0xff] %v13389
    %13518 = vst [vmem:[#allocation17 + $0x88] sm:$0xff] %v13390
    %13519 = vst [vmem:[#allocation17 + $0x90] sm:$0xff] %v13391
    %13520 = vst [vmem:[#allocation17 + $0x98] sm:$0xff] %v13392
    %13521 = vst [vmem:[#allocation17 + $0xa0] sm:$0xff] %v13393
    %13522 = vst [vmem:[#allocation17 + $0xa8] sm:$0xff] %v13394
    %13523 = vst [vmem:[#allocation17 + $0xb0] sm:$0xff] %v13395
    %13524 = vst [vmem:[#allocation17 + $0xb8] sm:$0xff] %v13396
    %13525 = vst [vmem:[#allocation17 + $0xc0] sm:$0xff] %v13397
    %13526 = vst [vmem:[#allocation17 + $0xc8] sm:$0xff] %v13398
    %13527 = vst [vmem:[#allocation17 + $0xd0] sm:$0xff] %v13399
    %13528 = vst [vmem:[#allocation17 + $0xd8] sm:$0xff] %v13400
    %13529 = vst [vmem:[#allocation17 + $0xe0] sm:$0xff] %v13401
    %13530 = vst [vmem:[#allocation17 + $0xe8] sm:$0xff] %v13402
    %13531 = vst [vmem:[#allocation17 + $0xf0] sm:$0xff] %v13403
    %13532 = vst [vmem:[#allocation17 + $0xf8] sm:$0xff] %v13404
    %13533 = vst [vmem:[#allocation17 + $0x100] sm:$0xff] %v13405
    %13534 = vst [vmem:[#allocation17 + $0x108] sm:$0xff] %v13406
    %13535 = vst [vmem:[#allocation17 + $0x110] sm:$0xff] %v13407
    %13536 = vst [vmem:[#allocation17 + $0x118] sm:$0xff] %v13408
    %13537 = vst [vmem:[#allocation17 + $0x120] sm:$0xff] %v13409
    %13538 = vst [vmem:[#allocation17 + $0x128] sm:$0xff] %v13410
    %13539 = vst [vmem:[#allocation17 + $0x130] sm:$0xff] %v13411
    %13540 = vst [vmem:[#allocation17 + $0x138] sm:$0xff] %v13412
    %13541 = vst [vmem:[#allocation17 + $0x140] sm:$0xff] %v13413
    %13542 = vst [vmem:[#allocation17 + $0x148] sm:$0xff] %v13414
    %13543 = vst [vmem:[#allocation17 + $0x150] sm:$0xff] %v13415
    %13544 = vst [vmem:[#allocation17 + $0x158] sm:$0xff] %v13416
    %13545 = vst [vmem:[#allocation17 + $0x160] sm:$0xff] %v13417
    %13546 = vst [vmem:[#allocation17 + $0x168] sm:$0xff] %v13418
    %13547 = vst [vmem:[#allocation17 + $0x170] sm:$0xff] %v13419
    %13548 = vst [vmem:[#allocation17 + $0x178] sm:$0xff] %v13420
    %13549 = vst [vmem:[#allocation17 + $0x180] sm:$0xff] %v13421
    %13550 = vst [vmem:[#allocation17 + $0x188] sm:$0xff] %v13422
    %13551 = vst [vmem:[#allocation17 + $0x190] sm:$0xff] %v13423
    %13552 = vst [vmem:[#allocation17 + $0x198] sm:$0xff] %v13424
    %13553 = vst [vmem:[#allocation17 + $0x1a0] sm:$0xff] %v13425
    %13554 = vst [vmem:[#allocation17 + $0x1a8] sm:$0xff] %v13426
    %13555 = vst [vmem:[#allocation17 + $0x1b0] sm:$0xff] %v13427
    %13556 = vst [vmem:[#allocation17 + $0x1b8] sm:$0xff] %v13428
    %13557 = vst [vmem:[#allocation17 + $0x1c0] sm:$0xff] %v13429
    %13558 = vst [vmem:[#allocation17 + $0x1c8] sm:$0xff] %v13430
    %13559 = vst [vmem:[#allocation17 + $0x1d0] sm:$0xff] %v13431
    %13560 = vst [vmem:[#allocation17 + $0x1d8] sm:$0xff] %v13432
    %13561 = vst [vmem:[#allocation17 + $0x1e0] sm:$0xff] %v13433
    %13562 = vst [vmem:[#allocation17 + $0x1e8] sm:$0xff] %v13434
    %13563 = vst [vmem:[#allocation17 + $0x1f0] sm:$0xff] %v13435
    %13564 = vst [vmem:[#allocation17 + $0x1f8] sm:$0xff] %v13436
    %13565 = vst [vmem:[#allocation17 + $0x200] sm:$0xff] %v13437
    %13566 = vst [vmem:[#allocation17 + $0x208] sm:$0xff] %v13438
    %13567 = vst [vmem:[#allocation17 + $0x210] sm:$0xff] %v13439
    %13568 = vst [vmem:[#allocation17 + $0x218] sm:$0xff] %v13440
    %13569 = vst [vmem:[#allocation17 + $0x220] sm:$0xff] %v13441
    %13570 = vst [vmem:[#allocation17 + $0x228] sm:$0xff] %v13442
    %13571 = vst [vmem:[#allocation17 + $0x230] sm:$0xff] %v13443
    %13572 = vst [vmem:[#allocation17 + $0x238] sm:$0xff] %v13444
    %13573 = vst [vmem:[#allocation17 + $0x240] sm:$0xff] %v13445
    %13574 = vst [vmem:[#allocation17 + $0x248] sm:$0xff] %v13446
    %13575 = vst [vmem:[#allocation17 + $0x250] sm:$0xff] %v13447
    %13576 = vst [vmem:[#allocation17 + $0x258] sm:$0xff] %v13448
    %13577 = vst [vmem:[#allocation17 + $0x260] sm:$0xff] %v13449
    %13578 = vst [vmem:[#allocation17 + $0x268] sm:$0xff] %v13450
    %13579 = vst [vmem:[#allocation17 + $0x270] sm:$0xff] %v13451
    %13580 = vst [vmem:[#allocation17 + $0x278] sm:$0xff] %v13452
    %13581 = vst [vmem:[#allocation17 + $0x280] sm:$0xff] %v13453
    %13582 = vst [vmem:[#allocation17 + $0x288] sm:$0xff] %v13454
    %13583 = vst [vmem:[#allocation17 + $0x290] sm:$0xff] %v13455
    %13584 = vst [vmem:[#allocation17 + $0x298] sm:$0xff] %v13456
    %13585 = vst [vmem:[#allocation17 + $0x2a0] sm:$0xff] %v13457
    %13586 = vst [vmem:[#allocation17 + $0x2a8] sm:$0xff] %v13458
    %13587 = vst [vmem:[#allocation17 + $0x2b0] sm:$0xff] %v13459
    %13588 = vst [vmem:[#allocation17 + $0x2b8] sm:$0xff] %v13460
    %13589 = vst [vmem:[#allocation17 + $0x2c0] sm:$0xff] %v13461
    %13590 = vst [vmem:[#allocation17 + $0x2c8] sm:$0xff] %v13462
    %13591 = vst [vmem:[#allocation17 + $0x2d0] sm:$0xff] %v13463
    %13592 = vst [vmem:[#allocation17 + $0x2d8] sm:$0xff] %v13464
    %13593 = vst [vmem:[#allocation17 + $0x2e0] sm:$0xff] %v13465
    %13594 = vst [vmem:[#allocation17 + $0x2e8] sm:$0xff] %v13466
    %13595 = vst [vmem:[#allocation17 + $0x2f0] sm:$0xff] %v13467
    %13596 = vst [vmem:[#allocation17 + $0x2f8] sm:$0xff] %v13468
    %13597 = vst [vmem:[#allocation17 + $0x300] sm:$0xff] %v13469
    %13598 = vst [vmem:[#allocation17 + $0x308] sm:$0xff] %v13470
    %13599 = vst [vmem:[#allocation17 + $0x310] sm:$0xff] %v13471
    %13600 = vst [vmem:[#allocation17 + $0x318] sm:$0xff] %v13472
    %13601 = vst [vmem:[#allocation17 + $0x320] sm:$0xff] %v13473
    %13602 = vst [vmem:[#allocation17 + $0x328] sm:$0xff] %v13474
    %13603 = vst [vmem:[#allocation17 + $0x330] sm:$0xff] %v13475
    %13604 = vst [vmem:[#allocation17 + $0x338] sm:$0xff] %v13476
    %13605 = vst [vmem:[#allocation17 + $0x340] sm:$0xff] %v13477
    %13606 = vst [vmem:[#allocation17 + $0x348] sm:$0xff] %v13478
    %13607 = vst [vmem:[#allocation17 + $0x350] sm:$0xff] %v13479
    %13608 = vst [vmem:[#allocation17 + $0x358] sm:$0xff] %v13480
    %13609 = vst [vmem:[#allocation17 + $0x360] sm:$0xff] %v13481
    %13610 = vst [vmem:[#allocation17 + $0x368] sm:$0xff] %v13482
    %13611 = vst [vmem:[#allocation17 + $0x370] sm:$0xff] %v13483
    %13612 = vst [vmem:[#allocation17 + $0x378] sm:$0xff] %v13484
    %13613 = vst [vmem:[#allocation17 + $0x380] sm:$0xff] %v13485
    %13614 = vst [vmem:[#allocation17 + $0x388] sm:$0xff] %v13486
    %13615 = vst [vmem:[#allocation17 + $0x390] sm:$0xff] %v13487
    %13616 = vst [vmem:[#allocation17 + $0x398] sm:$0xff] %v13488
    %13617 = vst [vmem:[#allocation17 + $0x3a0] sm:$0xff] %v13489
    %13618 = vst [vmem:[#allocation17 + $0x3a8] sm:$0xff] %v13490
    %13619 = vst [vmem:[#allocation17 + $0x3b0] sm:$0xff] %v13491
    %13620 = vst [vmem:[#allocation17 + $0x3b8] sm:$0xff] %v13492
    %13621 = vst [vmem:[#allocation17 + $0x3c0] sm:$0xff] %v13493
    %13622 = vst [vmem:[#allocation17 + $0x3c8] sm:$0xff] %v13494
    %13623 = vst [vmem:[#allocation17 + $0x3d0] sm:$0xff] %v13495
    %13624 = vst [vmem:[#allocation17 + $0x3d8] sm:$0xff] %v13496
    %13625 = vst [vmem:[#allocation17 + $0x3e0] sm:$0xff] %v13497
    %13626 = vst [vmem:[#allocation17 + $0x3e8] sm:$0xff] %v13498
    %13627 = vst [vmem:[#allocation17 + $0x3f0] sm:$0xff] %v13499
    %13628 = vst [vmem:[#allocation17 + $0x3f8] sm:$0xff] %v13500
    // Predicated region
    $region74: #{tpu_custom_call.1} parent=1 // pred_check
      _
    $region75: #{tpu_custom_call.1} parent=1 // pred_check_branch
      %13630 = sbr.rel (0) target = $region77
    $region76: #{tpu_custom_call.1} parent=1 // pred_region
      %13632 = vsyncadd [#allocation5], 0
      %s13633 = sshll.u32 [#allocation17], 4
      %s13634 = int_to_ptr.vmem [resolvable:$true] %s13633
      %s13635 = sshll.u32 %s10, 4
      %s13636 = int_to_ptr.hbm [resolvable:$true] %s13635
      %13641 = dma.vmem_to_hbm [thread:$0]  %s13634, 16384, %s13636, [#allocation5], 256, 256, 16
    $region77: #{tpu_custom_call.1} parent=1 // pred_fallthru
      _
    // Predicated region
    $region78: #{tpu_custom_call.1} parent=1 // pred_check
      _
    $region79: #{tpu_custom_call.1} parent=1 // pred_check_branch
      %13643 = sbr.rel (0) target = $region81
    $region80: #{tpu_custom_call.1} parent=1 // pred_region
      %13645 = dma.done [#allocation5], 16384
    $region81: #{tpu_custom_call.1} parent=1 // pred_fallthru
      _
    %13646 = vsyncpa [#allocation4], 1
    %13647 = vsyncpa [#allocation7], 1
    %13648 = vsyncpa [#allocation10], 1
    %13649 = vsyncpa [#allocation13], 1
    %13650 = vsyncpa [#allocation16], 1
    %13651 = vsyncpa [#allocation5], 1

</llo_original>
